<compile_context>
chip_gen: v7x
topology: tpu7x:2x2x1
jax: 0.10.0
libtpu: 0.0.40
codegen_flags: <defaults>
</compile_context>

<pallas_src>
import functools
import math

import jax
import jax.numpy as jnp
from jax.experimental import pallas as pl
from jax.experimental.pallas import tpu as pltpu


# ----------------------------------------------------------------------------
# Small helpers
# ----------------------------------------------------------------------------
def _round_up(n, m):
    return ((n + m - 1) // m) * m


def _layernorm(x, gamma, beta, eps=1e-5):
    mu = jnp.mean(x, axis=-1, keepdims=True)
    var = jnp.mean(jnp.square(x - mu), axis=-1, keepdims=True)
    return (x - mu) * jax.lax.rsqrt(var + eps) * gamma + beta


# ----------------------------------------------------------------------------
# Pallas kernel: one CLIP transformer layer.
# grid = (B, n_hidden_tiles); the attention sub-block runs at t == 0, the MLP
# is accumulated tile-by-tile over the 4*D hidden dim, residual-2 (+ optional
# fused final LayerNorm) is emitted at the last tile.
# ----------------------------------------------------------------------------
def clip_layer_kernel(n_head, dh, fuse_final_ln,
                      x_ref, ln1_g, ln1_b, wq, wk, wv, bq, bk, bv, wo, bo,
                      ln2_g, ln2_b, w1, b1, w2, b2, fin_g, fin_b,
                      out_ref, xmid, h2, acc):
    t = pl.program_id(1)
    nt = pl.num_programs(1)

    # ---- attention sub-block: once per batch element (t == 0) --------------
    @pl.when(t == 0)
    def _attention():
        x = x_ref[0]                                        # (S, D) f32
        S, D = x.shape
        h = _layernorm(x, ln1_g[...], ln1_b[...])
        hb = h.astype(jnp.bfloat16)

        # additive causal mask, built once (also masks padded key columns)
        row = jax.lax.broadcasted_iota(jnp.int32, (S, S), 0)
        col = jax.lax.broadcasted_iota(jnp.int32, (S, S), 1)
        neg_mask = jnp.where(col <= row, 0.0, -1e30).astype(jnp.float32)

        scale = 1.0 / math.sqrt(dh)
        dn_t = (((1,), (1,)), ((), ()))                     # contract last dims
        attn = jnp.zeros((S, D), jnp.float32)
        for hd in range(n_head):                            # static unroll; only leading-axis slices
            q = (jax.lax.dot_general(hb, wq[hd], dn_t,
                                     preferred_element_type=jnp.float32)
                 + bq[hd]) * scale
            k = jax.lax.dot_general(hb, wk[hd], dn_t,
                                    preferred_element_type=jnp.float32) + bk[hd]
            v = jax.lax.dot_general(hb, wv[hd], dn_t,
                                    preferred_element_type=jnp.float32) + bv[hd]
            s = jax.lax.dot_general(q.astype(jnp.bfloat16), k.astype(jnp.bfloat16),
                                    dn_t, preferred_element_type=jnp.float32)
            s = s + neg_mask
            m = jnp.max(s, axis=-1, keepdims=True)
            p = jnp.exp(s - m)
            denom = jnp.sum(p, axis=-1, keepdims=True)
            o = jnp.dot(p.astype(jnp.bfloat16), v.astype(jnp.bfloat16),
                        preferred_element_type=jnp.float32)
            o = o * pl.reciprocal(denom, approx=True)       # divide on EUP, post-PV
            attn = attn + jnp.dot(o.astype(jnp.bfloat16), wo[hd],
                                  preferred_element_type=jnp.float32)

        xm = x + attn + bo[...]                             # residual 1
        xmid[...] = xm
        h2[...] = _layernorm(xm, ln2_g[...], ln2_b[...]).astype(jnp.bfloat16)
        acc[...] = jnp.zeros_like(acc)

    # ---- MLP sub-block (QuickGELU), streamed over the 4*D hidden dim -------
    # TODO(synk): the reference forward applies layernorm_1 where linear_1 should
    # be (a transcription bug that would be a shape error in PyTorch); the
    # intended linear_1 -> x*sigmoid(1.702x) -> linear_2 path is implemented.
    g = jnp.dot(h2[...], w1[...], preferred_element_type=jnp.float32) + b1[...]
    g = g * jax.nn.sigmoid(1.702 * g)
    acc[...] += jnp.dot(g.astype(jnp.bfloat16), w2[...],
                        preferred_element_type=jnp.float32)

    # ---- finalize: residual 2 (+ optional fused final LayerNorm) -----------
    @pl.when(t == nt - 1)
    def _finalize():
        y = xmid[...] + acc[...] + b2[...]
        if fuse_final_ln:
            y = _layernorm(y, fin_g[...], fin_b[...])
        out_ref[0] = y


def run_clip_layer(x, p, n_head, *, final_g, final_b, fuse_final_ln,
                   n_h_tiles=4):
    B, S, D = x.shape
    dh = D // n_head
    H4 = 4 * D
    assert H4 % n_h_tiles == 0
    TH = H4 // n_h_tiles
    assert TH % 128 == 0, "hidden tile must be lane aligned"
    assert S % 8 == 0 and D % 128 == 0

    kern = functools.partial(clip_layer_kernel, n_head, dh, fuse_final_ln)

    def const_spec(a):
        nd = a.ndim
        return pl.BlockSpec(a.shape, lambda b, t, _nd=nd: (0,) * _nd)

    const_args = (p["ln1_g"], p["ln1_b"], p["wq"], p["wk"], p["wv"],
                  p["bq"], p["bk"], p["bv"], p["wo"], p["bo"],
                  p["ln2_g"], p["ln2_b"])

    in_specs = ([pl.BlockSpec((1, S, D), lambda b, t: (b, 0, 0))]
                + [const_spec(a) for a in const_args]
                + [pl.BlockSpec((D, TH), lambda b, t: (0, t)),   # w1 tile
                   pl.BlockSpec((1, TH), lambda b, t: (0, t)),   # b1 tile
                   pl.BlockSpec((TH, D), lambda b, t: (t, 0)),   # w2 tile
                   const_spec(p["b2"]),
                   const_spec(final_g), const_spec(final_b)])

    return pl.pallas_call(
        kern,
        out_shape=jax.ShapeDtypeStruct((B, S, D), jnp.float32),
        grid_spec=pltpu.PrefetchScalarGridSpec(
            num_scalar_prefetch=0,
            grid=(B, n_h_tiles),
            in_specs=in_specs,
            out_specs=pl.BlockSpec((1, S, D), lambda b, t: (b, 0, 0)),
            scratch_shapes=[pltpu.VMEM((S, D), jnp.float32),    # x + attn (residual)
                            pltpu.VMEM((S, D), jnp.bfloat16),   # layernorm_2 output
                            pltpu.VMEM((S, D), jnp.float32)],   # MLP accumulator
        ),
        compiler_params=pltpu.CompilerParams(
            dimension_semantics=("parallel", "arbitrary")),
    )(x, *const_args, p["w1"], p["b1"], p["w2"], p["b2"], final_g, final_b)


# ----------------------------------------------------------------------------
# Parameter init (PyTorch-module layout, f32) + kernel-layout preparation
# ----------------------------------------------------------------------------
def init_params(key, n_vocab, n_embd, n_pos, n_layers):
    k_emb, k_pos, k_layers = jax.random.split(key, 3)
    scale = 0.02

    def dense(k, shape):
        return (scale * jax.random.normal(k, shape)).astype(jnp.float32)

    params = {
        "tok_emb": dense(k_emb, (n_vocab, n_embd)),
        "pos_emb": dense(k_pos, (n_pos, n_embd)),
        "final_g": jnp.ones((1, n_embd), jnp.float32),
        "final_b": jnp.zeros((1, n_embd), jnp.float32),
        "layers": [],
    }
    lkeys = jax.random.split(k_layers, n_layers)
    for lk in lkeys:
        k1, k2, k3, k4 = jax.random.split(lk, 4)
        params["layers"].append({
            "ln1_g": jnp.ones((1, n_embd), jnp.float32),
            "ln1_b": jnp.zeros((1, n_embd), jnp.float32),
            "wqkv": dense(k1, (n_embd, 3 * n_embd)),
            "bqkv": jnp.zeros((1, 3 * n_embd), jnp.float32),
            "wo": dense(k2, (n_embd, n_embd)),
            "bo": jnp.zeros((1, n_embd), jnp.float32),
            "ln2_g": jnp.ones((1, n_embd), jnp.float32),
            "ln2_b": jnp.zeros((1, n_embd), jnp.float32),
            "w1": dense(k3, (n_embd, 4 * n_embd)),
            "b1": jnp.zeros((1, 4 * n_embd), jnp.float32),
            "w2": dense(k4, (4 * n_embd, n_embd)),
            "b2": jnp.zeros((1, n_embd), jnp.float32),
        })
    return params


def prepare_params(raw, n_head):
    """Convert PyTorch-layout f32 params to the kernel layout (bf16 weights,
    per-head (n_head, dh, D) projection matrices, f32 biases / LN params)."""
    def prep_layer(p):
        D = p["wqkv"].shape[0]
        dh = D // n_head
        wq_, wk_, wv_ = jnp.split(p["wqkv"], 3, axis=1)        # each (D, D)

        def heads_w(w):                                        # (D, D) -> (n_head, dh, D) (transposed per head)
            return w.reshape(D, n_head, dh).transpose(1, 2, 0).astype(jnp.bfloat16)

        bq_, bk_, bv_ = jnp.split(p["bqkv"].reshape(-1), 3)    # each (D,)

        def heads_b(b):                                        # (D,) -> (n_head, 1, dh)
            return b.reshape(n_head, 1, dh).astype(jnp.float32)

        return {
            "ln1_g": p["ln1_g"], "ln1_b": p["ln1_b"],
            "wq": heads_w(wq_), "wk": heads_w(wk_), "wv": heads_w(wv_),
            "bq": heads_b(bq_), "bk": heads_b(bk_), "bv": heads_b(bv_),
            "wo": p["wo"].reshape(n_head, dh, D).astype(jnp.bfloat16),
            "bo": p["bo"],
            "ln2_g": p["ln2_g"], "ln2_b": p["ln2_b"],
            "w1": p["w1"].astype(jnp.bfloat16), "b1": p["b1"],
            "w2": p["w2"].astype(jnp.bfloat16), "b2": p["b2"],
        }

    return {
        "tok_emb": raw["tok_emb"], "pos_emb": raw["pos_emb"],
        "final_g": raw["final_g"], "final_b": raw["final_b"],
        "layers": [prep_layer(p) for p in raw["layers"]],
    }


# ----------------------------------------------------------------------------
# Full forward
# ----------------------------------------------------------------------------
def clip_forward(tokens, params, n_head, n_h_tiles=4):
    tokens = tokens.astype(jnp.int32)                 # tokens.type(torch.long)
    B, S = tokens.shape
    # embedding gather + position add (plain-JAX glue; data-dependent gather)
    x = params["tok_emb"][tokens] + params["pos_emb"][None, :S, :]
    # pad seq to a sublane-aligned length; causal mask isolates padded rows,
    # so we simply slice them off at the end.
    S_pad = _round_up(S, 8)
    if S_pad != S:
        x = jnp.pad(x, ((0, 0), (0, S_pad - S), (0, 0)))
    n_layers = len(params["layers"])
    for i, lp in enumerate(params["layers"]):
        x = run_clip_layer(x, lp, n_head,
                           final_g=params["final_g"], final_b=params["final_b"],
                           fuse_final_ln=(i == n_layers - 1),
                           n_h_tiles=n_h_tiles)
    return x[:, :S, :]


# ----------------------------------------------------------------------------
# Pure-JAX reference (same math / same bf16 weight quantization) for checking
# ----------------------------------------------------------------------------
def _ref_layer(x, p, n_head):
    B, S, D = x.shape
    dh = D // n_head
    h = _layernorm(x, p["ln1_g"], p["ln1_b"]).astype(jnp.bfloat16)
    scale = 1.0 / math.sqrt(dh)
    q = (jnp.einsum("bsd,hed->bhse", h, p["wq"],
                    preferred_element_type=jnp.float32) + p["bq"][None]) * scale
    k = jnp.einsum("bsd,hed->bhse", h, p["wk"],
                   preferred_element_type=jnp.float32) + p["bk"][None]
    v = jnp.einsum("bsd,hed->bhse", h, p["wv"],
                   preferred_element_type=jnp.float32) + p["bv"][None]
    s = jnp.einsum("bhqe,bhke->bhqk", q.astype(jnp.bfloat16), k.astype(jnp.bfloat16),
                   preferred_element_type=jnp.float32)
    mask = jnp.tril(jnp.ones((S, S), bool))
    s = s + jnp.where(mask, 0.0, -1e30)
    m = jnp.max(s, axis=-1, keepdims=True)
    pr = jnp.exp(s - m)
    den = jnp.sum(pr, axis=-1, keepdims=True)
    o = jnp.einsum("bhqk,bhke->bhqe", pr.astype(jnp.bfloat16), v.astype(jnp.bfloat16),
                   preferred_element_type=jnp.float32) / den
    attn = jnp.einsum("bhqe,hed->bqd", o.astype(jnp.bfloat16), p["wo"],
                      preferred_element_type=jnp.float32) + p["bo"]
    x = x + attn
    g = _layernorm(x, p["ln2_g"], p["ln2_b"]).astype(jnp.bfloat16)
    g = jnp.einsum("bsd,de->bse", g, p["w1"],
                   preferred_element_type=jnp.float32) + p["b1"]
    g = g * jax.nn.sigmoid(1.702 * g)
    return x + jnp.einsum("bse,ed->bsd", g.astype(jnp.bfloat16), p["w2"],
                          preferred_element_type=jnp.float32) + p["b2"]


def _ref_forward(tokens, params, n_head):
    tokens = tokens.astype(jnp.int32)
    S = tokens.shape[1]
    x = params["tok_emb"][tokens] + params["pos_emb"][None, :S, :]
    for lp in params["layers"]:
        x = _ref_layer(x, lp, n_head)
    return _layernorm(x, params["final_g"], params["final_b"])


# ----------------------------------------------------------------------------
if __name__ == "__main__":
    # Small config consistent with CLIP(49408, 768, 77; 12 layers, 12 heads):
    B, S = 2, 12                         # S=12 also exercises the pad-to-16 path
    N_VOCAB, N_EMBD, N_HEAD, N_LAYERS = 512, 128, 4, 2

    key = jax.random.PRNGKey(0)
    k_param, k_tok = jax.random.split(key)
    raw_params = init_params(k_param, N_VOCAB, N_EMBD, S, N_LAYERS)
    params = prepare_params(raw_params, N_HEAD)
    tokens = jax.random.randint(k_tok, (B, S), 0, N_VOCAB, dtype=jnp.int32)

    fwd = jax.jit(functools.partial(clip_forward, n_head=N_HEAD))
    out = jax.block_until_ready(fwd(tokens, params))
    assert out.shape == (B, S, N_EMBD) and out.dtype == jnp.float32

    ref = jax.block_until_ready(_ref_forward(tokens, params, N_HEAD))
    assert jnp.allclose(out, ref, atol=5e-2, rtol=5e-2), "mismatch vs JAX reference"

    print("KERNEL_OK")
</pallas_src>

<mosaic_0001>
module attributes {stable_mosaic.version = 11 : i64} {
  func.func @clip_layer_kernel(%arg0: i32, %arg1: i32, %arg2: memref<1x16x128xf32, #tpu.memory_space<vmem>>, %arg3: memref<1x128xf32, #tpu.memory_space<vmem>>, %arg4: memref<1x128xf32, #tpu.memory_space<vmem>>, %arg5: memref<4x32x128xbf16, #tpu.memory_space<vmem>>, %arg6: memref<4x32x128xbf16, #tpu.memory_space<vmem>>, %arg7: memref<4x32x128xbf16, #tpu.memory_space<vmem>>, %arg8: memref<4x1x32xf32, #tpu.memory_space<vmem>>, %arg9: memref<4x1x32xf32, #tpu.memory_space<vmem>>, %arg10: memref<4x1x32xf32, #tpu.memory_space<vmem>>, %arg11: memref<4x32x128xbf16, #tpu.memory_space<vmem>>, %arg12: memref<1x128xf32, #tpu.memory_space<vmem>>, %arg13: memref<1x128xf32, #tpu.memory_space<vmem>>, %arg14: memref<1x128xf32, #tpu.memory_space<vmem>>, %arg15: memref<128x128xbf16, #tpu.memory_space<vmem>>, %arg16: memref<1x128xf32, #tpu.memory_space<vmem>>, %arg17: memref<128x128xbf16, #tpu.memory_space<vmem>>, %arg18: memref<1x128xf32, #tpu.memory_space<vmem>>, %arg19: memref<1x128xf32, #tpu.memory_space<vmem>>, %arg20: memref<1x128xf32, #tpu.memory_space<vmem>>, %arg21: memref<1x16x128xf32, #tpu.memory_space<vmem>>, %arg22: memref<16x128xf32, #tpu.memory_space<vmem>>, %arg23: memref<16x128xbf16, #tpu.memory_space<vmem>>, %arg24: memref<16x128xf32, #tpu.memory_space<vmem>>) attributes {dimension_semantics = [#tpu.dimension_semantics<parallel>, #tpu.dimension_semantics<arbitrary>], iteration_bounds = array<i64: 2, 4>, scalar_prefetch = 0 : i64, scratch_operands = 3 : i64, tpu.core_type = #tpu.core_type<tc>, window_params = [{transform_indices = @transform_0, window_bounds = array<i64: 1, 16, 128>}, {pipeline_mode = #tpu.pipeline_mode<synchronous>, transform_indices = @transform_1, window_bounds = array<i64: 1, 128>}, {pipeline_mode = #tpu.pipeline_mode<synchronous>, transform_indices = @transform_2, window_bounds = array<i64: 1, 128>}, {pipeline_mode = #tpu.pipeline_mode<synchronous>, transform_indices = @transform_3, window_bounds = array<i64: 4, 32, 128>}, {pipeline_mode = #tpu.pipeline_mode<synchronous>, transform_indices = @transform_4, window_bounds = array<i64: 4, 32, 128>}, {pipeline_mode = #tpu.pipeline_mode<synchronous>, transform_indices = @transform_5, window_bounds = array<i64: 4, 32, 128>}, {pipeline_mode = #tpu.pipeline_mode<synchronous>, transform_indices = @transform_6, window_bounds = array<i64: 4, 1, 32>}, {pipeline_mode = #tpu.pipeline_mode<synchronous>, transform_indices = @transform_7, window_bounds = array<i64: 4, 1, 32>}, {pipeline_mode = #tpu.pipeline_mode<synchronous>, transform_indices = @transform_8, window_bounds = array<i64: 4, 1, 32>}, {pipeline_mode = #tpu.pipeline_mode<synchronous>, transform_indices = @transform_9, window_bounds = array<i64: 4, 32, 128>}, {pipeline_mode = #tpu.pipeline_mode<synchronous>, transform_indices = @transform_10, window_bounds = array<i64: 1, 128>}, {pipeline_mode = #tpu.pipeline_mode<synchronous>, transform_indices = @transform_11, window_bounds = array<i64: 1, 128>}, {pipeline_mode = #tpu.pipeline_mode<synchronous>, transform_indices = @transform_12, window_bounds = array<i64: 1, 128>}, {transform_indices = @transform_13, window_bounds = array<i64: 128, 128>}, {transform_indices = @transform_14, window_bounds = array<i64: 1, 128>}, {transform_indices = @transform_15, window_bounds = array<i64: 128, 128>}, {pipeline_mode = #tpu.pipeline_mode<synchronous>, transform_indices = @transform_16, window_bounds = array<i64: 1, 128>}, {pipeline_mode = #tpu.pipeline_mode<synchronous>, transform_indices = @transform_17, window_bounds = array<i64: 1, 128>}, {pipeline_mode = #tpu.pipeline_mode<synchronous>, transform_indices = @transform_18, window_bounds = array<i64: 1, 128>}, {transform_indices = @transform_19, window_bounds = array<i64: 1, 16, 128>}]} {
    %c0_i32 = arith.constant 0 : i32
    %0 = arith.cmpi eq, %arg1, %c0_i32 : i32
    %1 = arith.extui %0 : i1 to i32
    %c0_i32_0 = arith.constant 0 : i32
    %2 = arith.cmpi ne, %1, %c0_i32_0 : i32
    scf.if %2 {
      %c0_16 = arith.constant 0 : index
      %c0_17 = arith.constant 0 : index
      %c0_18 = arith.constant 0 : index
      %26 = vector.load %arg2[%c0_16, %c0_17, %c0_18] : memref<1x16x128xf32, #tpu.memory_space<vmem>>, vector<1x16x128xf32>
      %27 = vector.shape_cast %26 : vector<1x16x128xf32> to vector<16x128xf32>
      %c0_19 = arith.constant 0 : index
      %c0_20 = arith.constant 0 : index
      %28 = vector.load %arg3[%c0_19, %c0_20] : memref<1x128xf32, #tpu.memory_space<vmem>>, vector<1x128xf32>
      %c0_21 = arith.constant 0 : index
      %c0_22 = arith.constant 0 : index
      %29 = vector.load %arg4[%c0_21, %c0_22] : memref<1x128xf32, #tpu.memory_space<vmem>>, vector<1x128xf32>
      %cst_23 = arith.constant dense<0.000000e+00> : vector<16xf32>
      %30 = vector.multi_reduction <add>, %27, %cst_23 [1] : vector<16x128xf32> to vector<16xf32>
      %31 = vector.shape_cast %30 : vector<16xf32> to vector<16x1xf32>
      %cst_24 = arith.constant 1.280000e+02 : f32
      %32 = vector.broadcast %cst_24 : f32 to vector<16x1xf32>
      %33 = arith.divf %31, %32 : vector<16x1xf32>
      %34 = vector.broadcast %33 : vector<16x1xf32> to vector<16x128xf32>
      %35 = arith.subf %27, %34 : vector<16x128xf32>
      %36 = arith.mulf %35, %35 : vector<16x128xf32>
      %cst_25 = arith.constant dense<0.000000e+00> : vector<16xf32>
      %37 = vector.multi_reduction <add>, %36, %cst_25 [1] : vector<16x128xf32> to vector<16xf32>
      %38 = vector.shape_cast %37 : vector<16xf32> to vector<16x1xf32>
      %cst_26 = arith.constant 1.280000e+02 : f32
      %39 = vector.broadcast %cst_26 : f32 to vector<16x1xf32>
      %40 = arith.divf %38, %39 : vector<16x1xf32>
      %41 = vector.broadcast %33 : vector<16x1xf32> to vector<16x128xf32>
      %42 = arith.subf %27, %41 : vector<16x128xf32>
      %cst_27 = arith.constant 9.99999974E-6 : f32
      %43 = vector.broadcast %cst_27 : f32 to vector<16x1xf32>
      %44 = arith.addf %40, %43 : vector<16x1xf32>
      %45 = math.rsqrt %44 : vector<16x1xf32>
      %46 = vector.broadcast %45 : vector<16x1xf32> to vector<16x128xf32>
      %47 = arith.mulf %42, %46 : vector<16x128xf32>
      %48 = vector.broadcast %28 : vector<1x128xf32> to vector<16x128xf32>
      %49 = arith.mulf %47, %48 : vector<16x128xf32>
      %50 = vector.broadcast %29 : vector<1x128xf32> to vector<16x128xf32>
      %51 = arith.addf %49, %50 : vector<16x128xf32>
      %52 = arith.truncf %51 : vector<16x128xf32> to vector<16x128xbf16>
      %53 = tpu.iota {dimensions = array<i32: 0>} : vector<16x16xi32>
      %54 = tpu.iota {dimensions = array<i32: 1>} : vector<16x16xi32>
      %55 = arith.cmpi sle, %54, %53 : vector<16x16xi32>
      %cst_28 = arith.constant 0.000000e+00 : f32
      %cst_29 = arith.constant -1.000000e+30 : f32
      %56 = vector.broadcast %cst_28 : f32 to vector<16x16xf32>
      %57 = vector.broadcast %cst_29 : f32 to vector<16x16xf32>
      %58 = arith.select %55, %56, %57 : vector<16x16xi1>, vector<16x16xf32>
      %cst_30 = arith.constant 0.000000e+00 : f32
      %59 = vector.broadcast %cst_30 : f32 to vector<16x128xf32>
      %c0_31 = arith.constant 0 : index
      %c0_32 = arith.constant 0 : index
      %c0_33 = arith.constant 0 : index
      %60 = vector.load %arg5[%c0_31, %c0_32, %c0_33] : memref<4x32x128xbf16, #tpu.memory_space<vmem>>, vector<1x32x128xbf16>
      %61 = vector.shape_cast %60 : vector<1x32x128xbf16> to vector<32x128xbf16>
      %cst_34 = arith.constant dense<0.000000e+00> : vector<16x32xf32>
      %62 = tpu.matmul %52, %61, %cst_34 {dimension_numbers = #tpu.dot_dimension_numbers<[1], [1], [0], [0], [0, 0, 1, 0], [], []>} : vector<16x128xbf16>, vector<32x128xbf16>, vector<16x32xf32> -> vector<16x32xf32>
      %c0_35 = arith.constant 0 : index
      %c0_36 = arith.constant 0 : index
      %c0_37 = arith.constant 0 : index
      %63 = vector.load %arg8[%c0_35, %c0_36, %c0_37] : memref<4x1x32xf32, #tpu.memory_space<vmem>>, vector<1x1x32xf32>
      %64 = vector.shape_cast %63 : vector<1x1x32xf32> to vector<1x32xf32>
      %65 = vector.broadcast %64 : vector<1x32xf32> to vector<16x32xf32>
      %66 = arith.addf %62, %65 : vector<16x32xf32>
      %cst_38 = arith.constant 0.176776692 : f32
      %67 = vector.broadcast %cst_38 : f32 to vector<16x32xf32>
      %68 = arith.mulf %66, %67 : vector<16x32xf32>
      %c0_39 = arith.constant 0 : index
      %c0_40 = arith.constant 0 : index
      %c0_41 = arith.constant 0 : index
      %69 = vector.load %arg6[%c0_39, %c0_40, %c0_41] : memref<4x32x128xbf16, #tpu.memory_space<vmem>>, vector<1x32x128xbf16>
      %70 = vector.shape_cast %69 : vector<1x32x128xbf16> to vector<32x128xbf16>
      %cst_42 = arith.constant dense<0.000000e+00> : vector<16x32xf32>
      %71 = tpu.matmul %52, %70, %cst_42 {dimension_numbers = #tpu.dot_dimension_numbers<[1], [1], [0], [0], [0, 0, 1, 0], [], []>} : vector<16x128xbf16>, vector<32x128xbf16>, vector<16x32xf32> -> vector<16x32xf32>
      %c0_43 = arith.constant 0 : index
      %c0_44 = arith.constant 0 : index
      %c0_45 = arith.constant 0 : index
      %72 = vector.load %arg9[%c0_43, %c0_44, %c0_45] : memref<4x1x32xf32, #tpu.memory_space<vmem>>, vector<1x1x32xf32>
      %73 = vector.shape_cast %72 : vector<1x1x32xf32> to vector<1x32xf32>
      %74 = vector.broadcast %73 : vector<1x32xf32> to vector<16x32xf32>
      %75 = arith.addf %71, %74 : vector<16x32xf32>
      %c0_46 = arith.constant 0 : index
      %c0_47 = arith.constant 0 : index
      %c0_48 = arith.constant 0 : index
      %76 = vector.load %arg7[%c0_46, %c0_47, %c0_48] : memref<4x32x128xbf16, #tpu.memory_space<vmem>>, vector<1x32x128xbf16>
      %77 = vector.shape_cast %76 : vector<1x32x128xbf16> to vector<32x128xbf16>
      %cst_49 = arith.constant dense<0.000000e+00> : vector<16x32xf32>
      %78 = tpu.matmul %52, %77, %cst_49 {dimension_numbers = #tpu.dot_dimension_numbers<[1], [1], [0], [0], [0, 0, 1, 0], [], []>} : vector<16x128xbf16>, vector<32x128xbf16>, vector<16x32xf32> -> vector<16x32xf32>
      %c0_50 = arith.constant 0 : index
      %c0_51 = arith.constant 0 : index
      %c0_52 = arith.constant 0 : index
      %79 = vector.load %arg10[%c0_50, %c0_51, %c0_52] : memref<4x1x32xf32, #tpu.memory_space<vmem>>, vector<1x1x32xf32>
      %80 = vector.shape_cast %79 : vector<1x1x32xf32> to vector<1x32xf32>
      %81 = vector.broadcast %80 : vector<1x32xf32> to vector<16x32xf32>
      %82 = arith.addf %78, %81 : vector<16x32xf32>
      %83 = arith.truncf %68 : vector<16x32xf32> to vector<16x32xbf16>
      %84 = arith.truncf %75 : vector<16x32xf32> to vector<16x32xbf16>
      %cst_53 = arith.constant dense<0.000000e+00> : vector<16x16xf32>
      %85 = tpu.matmul %83, %84, %cst_53 {dimension_numbers = #tpu.dot_dimension_numbers<[1], [1], [0], [0], [0, 0, 1, 0], [], []>} : vector<16x32xbf16>, vector<16x32xbf16>, vector<16x16xf32> -> vector<16x16xf32>
      %86 = arith.addf %85, %58 : vector<16x16xf32>
      %cst_54 = arith.constant dense<0xFF800000> : vector<16xf32>
      %87 = vector.multi_reduction <maximumf>, %86, %cst_54 [1] : vector<16x16xf32> to vector<16xf32>
      %88 = vector.shape_cast %87 : vector<16xf32> to vector<16x1xf32>
      %89 = vector.broadcast %88 : vector<16x1xf32> to vector<16x16xf32>
      %90 = arith.subf %86, %89 : vector<16x16xf32>
      %91 = math.exp %90 : vector<16x16xf32>
      %cst_55 = arith.constant dense<0.000000e+00> : vector<16xf32>
      %92 = vector.multi_reduction <add>, %91, %cst_55 [1] : vector<16x16xf32> to vector<16xf32>
      %93 = vector.shape_cast %92 : vector<16xf32> to vector<16x1xf32>
      %94 = arith.truncf %91 : vector<16x16xf32> to vector<16x16xbf16>
      %95 = arith.truncf %82 : vector<16x32xf32> to vector<16x32xbf16>
      %cst_56 = arith.constant dense<0.000000e+00> : vector<16x32xf32>
      %96 = tpu.matmul %94, %95, %cst_56 {dimension_numbers = #tpu.dot_dimension_numbers<[1], [0], [0], [1], [0, 0, 1, 1], [], []>} : vector<16x16xbf16>, vector<16x32xbf16>, vector<16x32xf32> -> vector<16x32xf32>
      %97 = tpu.reciprocal %93 {approx = true} : vector<16x1xf32> -> vector<16x1xf32>
      %98 = vector.broadcast %97 : vector<16x1xf32> to vector<16x32xf32>
      %99 = arith.mulf %96, %98 : vector<16x32xf32>
      %100 = arith.truncf %99 : vector<16x32xf32> to vector<16x32xbf16>
      %c0_57 = arith.constant 0 : index
      %c0_58 = arith.constant 0 : index
      %c0_59 = arith.constant 0 : index
      %101 = vector.load %arg11[%c0_57, %c0_58, %c0_59] : memref<4x32x128xbf16, #tpu.memory_space<vmem>>, vector<1x32x128xbf16>
      %102 = vector.shape_cast %101 : vector<1x32x128xbf16> to vector<32x128xbf16>
      %cst_60 = arith.constant dense<0.000000e+00> : vector<16x128xf32>
      %103 = tpu.matmul %100, %102, %cst_60 {dimension_numbers = #tpu.dot_dimension_numbers<[1], [0], [0], [1], [0, 0, 1, 1], [], []>} : vector<16x32xbf16>, vector<32x128xbf16>, vector<16x128xf32> -> vector<16x128xf32>
      %104 = arith.addf %59, %103 : vector<16x128xf32>
      %c1 = arith.constant 1 : index
      %c0_61 = arith.constant 0 : index
      %c0_62 = arith.constant 0 : index
      %105 = vector.load %arg5[%c1, %c0_61, %c0_62] : memref<4x32x128xbf16, #tpu.memory_space<vmem>>, vector<1x32x128xbf16>
      %106 = vector.shape_cast %105 : vector<1x32x128xbf16> to vector<32x128xbf16>
      %cst_63 = arith.constant dense<0.000000e+00> : vector<16x32xf32>
      %107 = tpu.matmul %52, %106, %cst_63 {dimension_numbers = #tpu.dot_dimension_numbers<[1], [1], [0], [0], [0, 0, 1, 0], [], []>} : vector<16x128xbf16>, vector<32x128xbf16>, vector<16x32xf32> -> vector<16x32xf32>
      %c1_64 = arith.constant 1 : index
      %c0_65 = arith.constant 0 : index
      %c0_66 = arith.constant 0 : index
      %108 = vector.load %arg8[%c1_64, %c0_65, %c0_66] : memref<4x1x32xf32, #tpu.memory_space<vmem>>, vector<1x1x32xf32>
      %109 = vector.shape_cast %108 : vector<1x1x32xf32> to vector<1x32xf32>
      %110 = vector.broadcast %109 : vector<1x32xf32> to vector<16x32xf32>
      %111 = arith.addf %107, %110 : vector<16x32xf32>
      %cst_67 = arith.constant 0.176776692 : f32
      %112 = vector.broadcast %cst_67 : f32 to vector<16x32xf32>
      %113 = arith.mulf %111, %112 : vector<16x32xf32>
      %c1_68 = arith.constant 1 : index
      %c0_69 = arith.constant 0 : index
      %c0_70 = arith.constant 0 : index
      %114 = vector.load %arg6[%c1_68, %c0_69, %c0_70] : memref<4x32x128xbf16, #tpu.memory_space<vmem>>, vector<1x32x128xbf16>
      %115 = vector.shape_cast %114 : vector<1x32x128xbf16> to vector<32x128xbf16>
      %cst_71 = arith.constant dense<0.000000e+00> : vector<16x32xf32>
      %116 = tpu.matmul %52, %115, %cst_71 {dimension_numbers = #tpu.dot_dimension_numbers<[1], [1], [0], [0], [0, 0, 1, 0], [], []>} : vector<16x128xbf16>, vector<32x128xbf16>, vector<16x32xf32> -> vector<16x32xf32>
      %c1_72 = arith.constant 1 : index
      %c0_73 = arith.constant 0 : index
      %c0_74 = arith.constant 0 : index
      %117 = vector.load %arg9[%c1_72, %c0_73, %c0_74] : memref<4x1x32xf32, #tpu.memory_space<vmem>>, vector<1x1x32xf32>
      %118 = vector.shape_cast %117 : vector<1x1x32xf32> to vector<1x32xf32>
      %119 = vector.broadcast %118 : vector<1x32xf32> to vector<16x32xf32>
      %120 = arith.addf %116, %119 : vector<16x32xf32>
      %c1_75 = arith.constant 1 : index
      %c0_76 = arith.constant 0 : index
      %c0_77 = arith.constant 0 : index
      %121 = vector.load %arg7[%c1_75, %c0_76, %c0_77] : memref<4x32x128xbf16, #tpu.memory_space<vmem>>, vector<1x32x128xbf16>
      %122 = vector.shape_cast %121 : vector<1x32x128xbf16> to vector<32x128xbf16>
      %cst_78 = arith.constant dense<0.000000e+00> : vector<16x32xf32>
      %123 = tpu.matmul %52, %122, %cst_78 {dimension_numbers = #tpu.dot_dimension_numbers<[1], [1], [0], [0], [0, 0, 1, 0], [], []>} : vector<16x128xbf16>, vector<32x128xbf16>, vector<16x32xf32> -> vector<16x32xf32>
      %c1_79 = arith.constant 1 : index
      %c0_80 = arith.constant 0 : index
      %c0_81 = arith.constant 0 : index
      %124 = vector.load %arg10[%c1_79, %c0_80, %c0_81] : memref<4x1x32xf32, #tpu.memory_space<vmem>>, vector<1x1x32xf32>
      %125 = vector.shape_cast %124 : vector<1x1x32xf32> to vector<1x32xf32>
      %126 = vector.broadcast %125 : vector<1x32xf32> to vector<16x32xf32>
      %127 = arith.addf %123, %126 : vector<16x32xf32>
      %128 = arith.truncf %113 : vector<16x32xf32> to vector<16x32xbf16>
      %129 = arith.truncf %120 : vector<16x32xf32> to vector<16x32xbf16>
      %cst_82 = arith.constant dense<0.000000e+00> : vector<16x16xf32>
      %130 = tpu.matmul %128, %129, %cst_82 {dimension_numbers = #tpu.dot_dimension_numbers<[1], [1], [0], [0], [0, 0, 1, 0], [], []>} : vector<16x32xbf16>, vector<16x32xbf16>, vector<16x16xf32> -> vector<16x16xf32>
      %131 = arith.addf %130, %58 : vector<16x16xf32>
      %cst_83 = arith.constant dense<0xFF800000> : vector<16xf32>
      %132 = vector.multi_reduction <maximumf>, %131, %cst_83 [1] : vector<16x16xf32> to vector<16xf32>
      %133 = vector.shape_cast %132 : vector<16xf32> to vector<16x1xf32>
      %134 = vector.broadcast %133 : vector<16x1xf32> to vector<16x16xf32>
      %135 = arith.subf %131, %134 : vector<16x16xf32>
      %136 = math.exp %135 : vector<16x16xf32>
      %cst_84 = arith.constant dense<0.000000e+00> : vector<16xf32>
      %137 = vector.multi_reduction <add>, %136, %cst_84 [1] : vector<16x16xf32> to vector<16xf32>
      %138 = vector.shape_cast %137 : vector<16xf32> to vector<16x1xf32>
      %139 = arith.truncf %136 : vector<16x16xf32> to vector<16x16xbf16>
      %140 = arith.truncf %127 : vector<16x32xf32> to vector<16x32xbf16>
      %cst_85 = arith.constant dense<0.000000e+00> : vector<16x32xf32>
      %141 = tpu.matmul %139, %140, %cst_85 {dimension_numbers = #tpu.dot_dimension_numbers<[1], [0], [0], [1], [0, 0, 1, 1], [], []>} : vector<16x16xbf16>, vector<16x32xbf16>, vector<16x32xf32> -> vector<16x32xf32>
      %142 = tpu.reciprocal %138 {approx = true} : vector<16x1xf32> -> vector<16x1xf32>
      %143 = vector.broadcast %142 : vector<16x1xf32> to vector<16x32xf32>
      %144 = arith.mulf %141, %143 : vector<16x32xf32>
      %145 = arith.truncf %144 : vector<16x32xf32> to vector<16x32xbf16>
      %c1_86 = arith.constant 1 : index
      %c0_87 = arith.constant 0 : index
      %c0_88 = arith.constant 0 : index
      %146 = vector.load %arg11[%c1_86, %c0_87, %c0_88] : memref<4x32x128xbf16, #tpu.memory_space<vmem>>, vector<1x32x128xbf16>
      %147 = vector.shape_cast %146 : vector<1x32x128xbf16> to vector<32x128xbf16>
      %cst_89 = arith.constant dense<0.000000e+00> : vector<16x128xf32>
      %148 = tpu.matmul %145, %147, %cst_89 {dimension_numbers = #tpu.dot_dimension_numbers<[1], [0], [0], [1], [0, 0, 1, 1], [], []>} : vector<16x32xbf16>, vector<32x128xbf16>, vector<16x128xf32> -> vector<16x128xf32>
      %149 = arith.addf %104, %148 : vector<16x128xf32>
      %c2 = arith.constant 2 : index
      %c0_90 = arith.constant 0 : index
      %c0_91 = arith.constant 0 : index
      %150 = vector.load %arg5[%c2, %c0_90, %c0_91] : memref<4x32x128xbf16, #tpu.memory_space<vmem>>, vector<1x32x128xbf16>
      %151 = vector.shape_cast %150 : vector<1x32x128xbf16> to vector<32x128xbf16>
      %cst_92 = arith.constant dense<0.000000e+00> : vector<16x32xf32>
      %152 = tpu.matmul %52, %151, %cst_92 {dimension_numbers = #tpu.dot_dimension_numbers<[1], [1], [0], [0], [0, 0, 1, 0], [], []>} : vector<16x128xbf16>, vector<32x128xbf16>, vector<16x32xf32> -> vector<16x32xf32>
      %c2_93 = arith.constant 2 : index
      %c0_94 = arith.constant 0 : index
      %c0_95 = arith.constant 0 : index
      %153 = vector.load %arg8[%c2_93, %c0_94, %c0_95] : memref<4x1x32xf32, #tpu.memory_space<vmem>>, vector<1x1x32xf32>
      %154 = vector.shape_cast %153 : vector<1x1x32xf32> to vector<1x32xf32>
      %155 = vector.broadcast %154 : vector<1x32xf32> to vector<16x32xf32>
      %156 = arith.addf %152, %155 : vector<16x32xf32>
      %cst_96 = arith.constant 0.176776692 : f32
      %157 = vector.broadcast %cst_96 : f32 to vector<16x32xf32>
      %158 = arith.mulf %156, %157 : vector<16x32xf32>
      %c2_97 = arith.constant 2 : index
      %c0_98 = arith.constant 0 : index
      %c0_99 = arith.constant 0 : index
      %159 = vector.load %arg6[%c2_97, %c0_98, %c0_99] : memref<4x32x128xbf16, #tpu.memory_space<vmem>>, vector<1x32x128xbf16>
      %160 = vector.shape_cast %159 : vector<1x32x128xbf16> to vector<32x128xbf16>
      %cst_100 = arith.constant dense<0.000000e+00> : vector<16x32xf32>
      %161 = tpu.matmul %52, %160, %cst_100 {dimension_numbers = #tpu.dot_dimension_numbers<[1], [1], [0], [0], [0, 0, 1, 0], [], []>} : vector<16x128xbf16>, vector<32x128xbf16>, vector<16x32xf32> -> vector<16x32xf32>
      %c2_101 = arith.constant 2 : index
      %c0_102 = arith.constant 0 : index
      %c0_103 = arith.constant 0 : index
      %162 = vector.load %arg9[%c2_101, %c0_102, %c0_103] : memref<4x1x32xf32, #tpu.memory_space<vmem>>, vector<1x1x32xf32>
      %163 = vector.shape_cast %162 : vector<1x1x32xf32> to vector<1x32xf32>
      %164 = vector.broadcast %163 : vector<1x32xf32> to vector<16x32xf32>
      %165 = arith.addf %161, %164 : vector<16x32xf32>
      %c2_104 = arith.constant 2 : index
      %c0_105 = arith.constant 0 : index
      %c0_106 = arith.constant 0 : index
      %166 = vector.load %arg7[%c2_104, %c0_105, %c0_106] : memref<4x32x128xbf16, #tpu.memory_space<vmem>>, vector<1x32x128xbf16>
      %167 = vector.shape_cast %166 : vector<1x32x128xbf16> to vector<32x128xbf16>
      %cst_107 = arith.constant dense<0.000000e+00> : vector<16x32xf32>
      %168 = tpu.matmul %52, %167, %cst_107 {dimension_numbers = #tpu.dot_dimension_numbers<[1], [1], [0], [0], [0, 0, 1, 0], [], []>} : vector<16x128xbf16>, vector<32x128xbf16>, vector<16x32xf32> -> vector<16x32xf32>
      %c2_108 = arith.constant 2 : index
      %c0_109 = arith.constant 0 : index
      %c0_110 = arith.constant 0 : index
      %169 = vector.load %arg10[%c2_108, %c0_109, %c0_110] : memref<4x1x32xf32, #tpu.memory_space<vmem>>, vector<1x1x32xf32>
      %170 = vector.shape_cast %169 : vector<1x1x32xf32> to vector<1x32xf32>
      %171 = vector.broadcast %170 : vector<1x32xf32> to vector<16x32xf32>
      %172 = arith.addf %168, %171 : vector<16x32xf32>
      %173 = arith.truncf %158 : vector<16x32xf32> to vector<16x32xbf16>
      %174 = arith.truncf %165 : vector<16x32xf32> to vector<16x32xbf16>
      %cst_111 = arith.constant dense<0.000000e+00> : vector<16x16xf32>
      %175 = tpu.matmul %173, %174, %cst_111 {dimension_numbers = #tpu.dot_dimension_numbers<[1], [1], [0], [0], [0, 0, 1, 0], [], []>} : vector<16x32xbf16>, vector<16x32xbf16>, vector<16x16xf32> -> vector<16x16xf32>
      %176 = arith.addf %175, %58 : vector<16x16xf32>
      %cst_112 = arith.constant dense<0xFF800000> : vector<16xf32>
      %177 = vector.multi_reduction <maximumf>, %176, %cst_112 [1] : vector<16x16xf32> to vector<16xf32>
      %178 = vector.shape_cast %177 : vector<16xf32> to vector<16x1xf32>
      %179 = vector.broadcast %178 : vector<16x1xf32> to vector<16x16xf32>
      %180 = arith.subf %176, %179 : vector<16x16xf32>
      %181 = math.exp %180 : vector<16x16xf32>
      %cst_113 = arith.constant dense<0.000000e+00> : vector<16xf32>
      %182 = vector.multi_reduction <add>, %181, %cst_113 [1] : vector<16x16xf32> to vector<16xf32>
      %183 = vector.shape_cast %182 : vector<16xf32> to vector<16x1xf32>
      %184 = arith.truncf %181 : vector<16x16xf32> to vector<16x16xbf16>
      %185 = arith.truncf %172 : vector<16x32xf32> to vector<16x32xbf16>
      %cst_114 = arith.constant dense<0.000000e+00> : vector<16x32xf32>
      %186 = tpu.matmul %184, %185, %cst_114 {dimension_numbers = #tpu.dot_dimension_numbers<[1], [0], [0], [1], [0, 0, 1, 1], [], []>} : vector<16x16xbf16>, vector<16x32xbf16>, vector<16x32xf32> -> vector<16x32xf32>
      %187 = tpu.reciprocal %183 {approx = true} : vector<16x1xf32> -> vector<16x1xf32>
      %188 = vector.broadcast %187 : vector<16x1xf32> to vector<16x32xf32>
      %189 = arith.mulf %186, %188 : vector<16x32xf32>
      %190 = arith.truncf %189 : vector<16x32xf32> to vector<16x32xbf16>
      %c2_115 = arith.constant 2 : index
      %c0_116 = arith.constant 0 : index
      %c0_117 = arith.constant 0 : index
      %191 = vector.load %arg11[%c2_115, %c0_116, %c0_117] : memref<4x32x128xbf16, #tpu.memory_space<vmem>>, vector<1x32x128xbf16>
      %192 = vector.shape_cast %191 : vector<1x32x128xbf16> to vector<32x128xbf16>
      %cst_118 = arith.constant dense<0.000000e+00> : vector<16x128xf32>
      %193 = tpu.matmul %190, %192, %cst_118 {dimension_numbers = #tpu.dot_dimension_numbers<[1], [0], [0], [1], [0, 0, 1, 1], [], []>} : vector<16x32xbf16>, vector<32x128xbf16>, vector<16x128xf32> -> vector<16x128xf32>
      %194 = arith.addf %149, %193 : vector<16x128xf32>
      %c3 = arith.constant 3 : index
      %c0_119 = arith.constant 0 : index
      %c0_120 = arith.constant 0 : index
      %195 = vector.load %arg5[%c3, %c0_119, %c0_120] : memref<4x32x128xbf16, #tpu.memory_space<vmem>>, vector<1x32x128xbf16>
      %196 = vector.shape_cast %195 : vector<1x32x128xbf16> to vector<32x128xbf16>
      %cst_121 = arith.constant dense<0.000000e+00> : vector<16x32xf32>
      %197 = tpu.matmul %52, %196, %cst_121 {dimension_numbers = #tpu.dot_dimension_numbers<[1], [1], [0], [0], [0, 0, 1, 0], [], []>} : vector<16x128xbf16>, vector<32x128xbf16>, vector<16x32xf32> -> vector<16x32xf32>
      %c3_122 = arith.constant 3 : index
      %c0_123 = arith.constant 0 : index
      %c0_124 = arith.constant 0 : index
      %198 = vector.load %arg8[%c3_122, %c0_123, %c0_124] : memref<4x1x32xf32, #tpu.memory_space<vmem>>, vector<1x1x32xf32>
      %199 = vector.shape_cast %198 : vector<1x1x32xf32> to vector<1x32xf32>
      %200 = vector.broadcast %199 : vector<1x32xf32> to vector<16x32xf32>
      %201 = arith.addf %197, %200 : vector<16x32xf32>
      %cst_125 = arith.constant 0.176776692 : f32
      %202 = vector.broadcast %cst_125 : f32 to vector<16x32xf32>
      %203 = arith.mulf %201, %202 : vector<16x32xf32>
      %c3_126 = arith.constant 3 : index
      %c0_127 = arith.constant 0 : index
      %c0_128 = arith.constant 0 : index
      %204 = vector.load %arg6[%c3_126, %c0_127, %c0_128] : memref<4x32x128xbf16, #tpu.memory_space<vmem>>, vector<1x32x128xbf16>
      %205 = vector.shape_cast %204 : vector<1x32x128xbf16> to vector<32x128xbf16>
      %cst_129 = arith.constant dense<0.000000e+00> : vector<16x32xf32>
      %206 = tpu.matmul %52, %205, %cst_129 {dimension_numbers = #tpu.dot_dimension_numbers<[1], [1], [0], [0], [0, 0, 1, 0], [], []>} : vector<16x128xbf16>, vector<32x128xbf16>, vector<16x32xf32> -> vector<16x32xf32>
      %c3_130 = arith.constant 3 : index
      %c0_131 = arith.constant 0 : index
      %c0_132 = arith.constant 0 : index
      %207 = vector.load %arg9[%c3_130, %c0_131, %c0_132] : memref<4x1x32xf32, #tpu.memory_space<vmem>>, vector<1x1x32xf32>
      %208 = vector.shape_cast %207 : vector<1x1x32xf32> to vector<1x32xf32>
      %209 = vector.broadcast %208 : vector<1x32xf32> to vector<16x32xf32>
      %210 = arith.addf %206, %209 : vector<16x32xf32>
      %c3_133 = arith.constant 3 : index
      %c0_134 = arith.constant 0 : index
      %c0_135 = arith.constant 0 : index
      %211 = vector.load %arg7[%c3_133, %c0_134, %c0_135] : memref<4x32x128xbf16, #tpu.memory_space<vmem>>, vector<1x32x128xbf16>
      %212 = vector.shape_cast %211 : vector<1x32x128xbf16> to vector<32x128xbf16>
      %cst_136 = arith.constant dense<0.000000e+00> : vector<16x32xf32>
      %213 = tpu.matmul %52, %212, %cst_136 {dimension_numbers = #tpu.dot_dimension_numbers<[1], [1], [0], [0], [0, 0, 1, 0], [], []>} : vector<16x128xbf16>, vector<32x128xbf16>, vector<16x32xf32> -> vector<16x32xf32>
      %c3_137 = arith.constant 3 : index
      %c0_138 = arith.constant 0 : index
      %c0_139 = arith.constant 0 : index
      %214 = vector.load %arg10[%c3_137, %c0_138, %c0_139] : memref<4x1x32xf32, #tpu.memory_space<vmem>>, vector<1x1x32xf32>
      %215 = vector.shape_cast %214 : vector<1x1x32xf32> to vector<1x32xf32>
      %216 = vector.broadcast %215 : vector<1x32xf32> to vector<16x32xf32>
      %217 = arith.addf %213, %216 : vector<16x32xf32>
      %218 = arith.truncf %203 : vector<16x32xf32> to vector<16x32xbf16>
      %219 = arith.truncf %210 : vector<16x32xf32> to vector<16x32xbf16>
      %cst_140 = arith.constant dense<0.000000e+00> : vector<16x16xf32>
      %220 = tpu.matmul %218, %219, %cst_140 {dimension_numbers = #tpu.dot_dimension_numbers<[1], [1], [0], [0], [0, 0, 1, 0], [], []>} : vector<16x32xbf16>, vector<16x32xbf16>, vector<16x16xf32> -> vector<16x16xf32>
      %221 = arith.addf %220, %58 : vector<16x16xf32>
      %cst_141 = arith.constant dense<0xFF800000> : vector<16xf32>
      %222 = vector.multi_reduction <maximumf>, %221, %cst_141 [1] : vector<16x16xf32> to vector<16xf32>
      %223 = vector.shape_cast %222 : vector<16xf32> to vector<16x1xf32>
      %224 = vector.broadcast %223 : vector<16x1xf32> to vector<16x16xf32>
      %225 = arith.subf %221, %224 : vector<16x16xf32>
      %226 = math.exp %225 : vector<16x16xf32>
      %cst_142 = arith.constant dense<0.000000e+00> : vector<16xf32>
      %227 = vector.multi_reduction <add>, %226, %cst_142 [1] : vector<16x16xf32> to vector<16xf32>
      %228 = vector.shape_cast %227 : vector<16xf32> to vector<16x1xf32>
      %229 = arith.truncf %226 : vector<16x16xf32> to vector<16x16xbf16>
      %230 = arith.truncf %217 : vector<16x32xf32> to vector<16x32xbf16>
      %cst_143 = arith.constant dense<0.000000e+00> : vector<16x32xf32>
      %231 = tpu.matmul %229, %230, %cst_143 {dimension_numbers = #tpu.dot_dimension_numbers<[1], [0], [0], [1], [0, 0, 1, 1], [], []>} : vector<16x16xbf16>, vector<16x32xbf16>, vector<16x32xf32> -> vector<16x32xf32>
      %232 = tpu.reciprocal %228 {approx = true} : vector<16x1xf32> -> vector<16x1xf32>
      %233 = vector.broadcast %232 : vector<16x1xf32> to vector<16x32xf32>
      %234 = arith.mulf %231, %233 : vector<16x32xf32>
      %235 = arith.truncf %234 : vector<16x32xf32> to vector<16x32xbf16>
      %c3_144 = arith.constant 3 : index
      %c0_145 = arith.constant 0 : index
      %c0_146 = arith.constant 0 : index
      %236 = vector.load %arg11[%c3_144, %c0_145, %c0_146] : memref<4x32x128xbf16, #tpu.memory_space<vmem>>, vector<1x32x128xbf16>
      %237 = vector.shape_cast %236 : vector<1x32x128xbf16> to vector<32x128xbf16>
      %cst_147 = arith.constant dense<0.000000e+00> : vector<16x128xf32>
      %238 = tpu.matmul %235, %237, %cst_147 {dimension_numbers = #tpu.dot_dimension_numbers<[1], [0], [0], [1], [0, 0, 1, 1], [], []>} : vector<16x32xbf16>, vector<32x128xbf16>, vector<16x128xf32> -> vector<16x128xf32>
      %239 = arith.addf %194, %238 : vector<16x128xf32>
      %240 = arith.addf %27, %239 : vector<16x128xf32>
      %c0_148 = arith.constant 0 : index
      %c0_149 = arith.constant 0 : index
      %241 = vector.load %arg12[%c0_148, %c0_149] : memref<1x128xf32, #tpu.memory_space<vmem>>, vector<1x128xf32>
      %242 = vector.broadcast %241 : vector<1x128xf32> to vector<16x128xf32>
      %243 = arith.addf %240, %242 : vector<16x128xf32>
      %c0_150 = arith.constant 0 : index
      %c0_151 = arith.constant 0 : index
      %244 = vector.load %arg22[%c0_150, %c0_151] : memref<16x128xf32, #tpu.memory_space<vmem>>, vector<16x128xf32>
      tpu.vector_store %arg22[%c0_150, %c0_151], %243 {strides = array<i32>} : memref<16x128xf32, #tpu.memory_space<vmem>>, vector<16x128xf32>,
      %c0_152 = arith.constant 0 : index
      %c0_153 = arith.constant 0 : index
      %245 = vector.load %arg13[%c0_152, %c0_153] : memref<1x128xf32, #tpu.memory_space<vmem>>, vector<1x128xf32>
      %c0_154 = arith.constant 0 : index
      %c0_155 = arith.constant 0 : index
      %246 = vector.load %arg14[%c0_154, %c0_155] : memref<1x128xf32, #tpu.memory_space<vmem>>, vector<1x128xf32>
      %cst_156 = arith.constant dense<0.000000e+00> : vector<16xf32>
      %247 = vector.multi_reduction <add>, %243, %cst_156 [1] : vector<16x128xf32> to vector<16xf32>
      %248 = vector.shape_cast %247 : vector<16xf32> to vector<16x1xf32>
      %cst_157 = arith.constant 1.280000e+02 : f32
      %249 = vector.broadcast %cst_157 : f32 to vector<16x1xf32>
      %250 = arith.divf %248, %249 : vector<16x1xf32>
      %251 = vector.broadcast %250 : vector<16x1xf32> to vector<16x128xf32>
      %252 = arith.subf %243, %251 : vector<16x128xf32>
      %253 = arith.mulf %252, %252 : vector<16x128xf32>
      %cst_158 = arith.constant dense<0.000000e+00> : vector<16xf32>
      %254 = vector.multi_reduction <add>, %253, %cst_158 [1] : vector<16x128xf32> to vector<16xf32>
      %255 = vector.shape_cast %254 : vector<16xf32> to vector<16x1xf32>
      %cst_159 = arith.constant 1.280000e+02 : f32
      %256 = vector.broadcast %cst_159 : f32 to vector<16x1xf32>
      %257 = arith.divf %255, %256 : vector<16x1xf32>
      %258 = vector.broadcast %250 : vector<16x1xf32> to vector<16x128xf32>
      %259 = arith.subf %243, %258 : vector<16x128xf32>
      %cst_160 = arith.constant 9.99999974E-6 : f32
      %260 = vector.broadcast %cst_160 : f32 to vector<16x1xf32>
      %261 = arith.addf %257, %260 : vector<16x1xf32>
      %262 = math.rsqrt %261 : vector<16x1xf32>
      %263 = vector.broadcast %262 : vector<16x1xf32> to vector<16x128xf32>
      %264 = arith.mulf %259, %263 : vector<16x128xf32>
      %265 = vector.broadcast %245 : vector<1x128xf32> to vector<16x128xf32>
      %266 = arith.mulf %264, %265 : vector<16x128xf32>
      %267 = vector.broadcast %246 : vector<1x128xf32> to vector<16x128xf32>
      %268 = arith.addf %266, %267 : vector<16x128xf32>
      %269 = arith.truncf %268 : vector<16x128xf32> to vector<16x128xbf16>
      %c0_161 = arith.constant 0 : index
      %c0_162 = arith.constant 0 : index
      %270 = vector.load %arg23[%c0_161, %c0_162] : memref<16x128xbf16, #tpu.memory_space<vmem>>, vector<16x128xbf16>
      tpu.vector_store %arg23[%c0_161, %c0_162], %269 {strides = array<i32>} : memref<16x128xbf16, #tpu.memory_space<vmem>>, vector<16x128xbf16>,
      %cst_163 = arith.constant 0.000000e+00 : f32
      %271 = vector.broadcast %cst_163 : f32 to vector<16x128xf32>
      %c0_164 = arith.constant 0 : index
      %c0_165 = arith.constant 0 : index
      %272 = vector.load %arg24[%c0_164, %c0_165] : memref<16x128xf32, #tpu.memory_space<vmem>>, vector<16x128xf32>
      tpu.vector_store %arg24[%c0_164, %c0_165], %271 {strides = array<i32>} : memref<16x128xf32, #tpu.memory_space<vmem>>, vector<16x128xf32>,
    } else {
    }
    %c0 = arith.constant 0 : index
    %c0_1 = arith.constant 0 : index
    %3 = vector.load %arg23[%c0, %c0_1] : memref<16x128xbf16, #tpu.memory_space<vmem>>, vector<16x128xbf16>
    %c0_2 = arith.constant 0 : index
    %c0_3 = arith.constant 0 : index
    %4 = vector.load %arg15[%c0_2, %c0_3] : memref<128x128xbf16, #tpu.memory_space<vmem>>, vector<128x128xbf16>
    %cst = arith.constant dense<0.000000e+00> : vector<16x128xf32>
    %5 = tpu.matmul %3, %4, %cst {dimension_numbers = #tpu.dot_dimension_numbers<[1], [0], [0], [1], [0, 0, 1, 1], [], []>} : vector<16x128xbf16>, vector<128x128xbf16>, vector<16x128xf32> -> vector<16x128xf32>
    %c0_4 = arith.constant 0 : index
    %c0_5 = arith.constant 0 : index
    %6 = vector.load %arg16[%c0_4, %c0_5] : memref<1x128xf32, #tpu.memory_space<vmem>>, vector<1x128xf32>
    %7 = vector.broadcast %6 : vector<1x128xf32> to vector<16x128xf32>
    %8 = arith.addf %5, %7 : vector<16x128xf32>
    %cst_6 = arith.constant 1.702000e+00 : f32
    %9 = vector.broadcast %cst_6 : f32 to vector<16x128xf32>
    %10 = arith.mulf %9, %8 : vector<16x128xf32>
    %11 = arith.negf %10 : vector<16x128xf32>
    %12 = math.exp %11 : vector<16x128xf32>
    %cst_7 = arith.constant 1.000000e+00 : f32
    %13 = vector.broadcast %cst_7 : f32 to vector<16x128xf32>
    %14 = arith.addf %13, %12 : vector<16x128xf32>
    %15 = arith.divf %13, %14 : vector<16x128xf32>
    %16 = arith.mulf %8, %15 : vector<16x128xf32>
    %c0_8 = arith.constant 0 : index
    %c0_9 = arith.constant 0 : index
    %17 = vector.load %arg24[%c0_8, %c0_9] : memref<16x128xf32, #tpu.memory_space<vmem>>, vector<16x128xf32>
    %18 = arith.truncf %16 : vector<16x128xf32> to vector<16x128xbf16>
    %c0_10 = arith.constant 0 : index
    %c0_11 = arith.constant 0 : index
    %19 = vector.load %arg17[%c0_10, %c0_11] : memref<128x128xbf16, #tpu.memory_space<vmem>>, vector<128x128xbf16>
    %cst_12 = arith.constant dense<0.000000e+00> : vector<16x128xf32>
    %20 = tpu.matmul %18, %19, %cst_12 {dimension_numbers = #tpu.dot_dimension_numbers<[1], [0], [0], [1], [0, 0, 1, 1], [], []>} : vector<16x128xbf16>, vector<128x128xbf16>, vector<16x128xf32> -> vector<16x128xf32>
    %21 = arith.addf %17, %20 : vector<16x128xf32>
    %c0_13 = arith.constant 0 : index
    %c0_14 = arith.constant 0 : index
    %22 = vector.load %arg24[%c0_13, %c0_14] : memref<16x128xf32, #tpu.memory_space<vmem>>, vector<16x128xf32>
    tpu.vector_store %arg24[%c0_13, %c0_14], %21 {strides = array<i32>} : memref<16x128xf32, #tpu.memory_space<vmem>>, vector<16x128xf32>,
    %c3_i32 = arith.constant 3 : i32
    %23 = arith.cmpi eq, %arg1, %c3_i32 : i32
    %24 = arith.extui %23 : i1 to i32
    %c0_i32_15 = arith.constant 0 : i32
    %25 = arith.cmpi ne, %24, %c0_i32_15 : i32
    scf.if %25 {
      %c0_16 = arith.constant 0 : index
      %c0_17 = arith.constant 0 : index
      %26 = vector.load %arg22[%c0_16, %c0_17] : memref<16x128xf32, #tpu.memory_space<vmem>>, vector<16x128xf32>
      %c0_18 = arith.constant 0 : index
      %c0_19 = arith.constant 0 : index
      %27 = vector.load %arg24[%c0_18, %c0_19] : memref<16x128xf32, #tpu.memory_space<vmem>>, vector<16x128xf32>
      %28 = arith.addf %26, %27 : vector<16x128xf32>
      %c0_20 = arith.constant 0 : index
      %c0_21 = arith.constant 0 : index
      %29 = vector.load %arg18[%c0_20, %c0_21] : memref<1x128xf32, #tpu.memory_space<vmem>>, vector<1x128xf32>
      %30 = vector.broadcast %29 : vector<1x128xf32> to vector<16x128xf32>
      %31 = arith.addf %28, %30 : vector<16x128xf32>
      %c0_22 = arith.constant 0 : index
      %c0_23 = arith.constant 0 : index
      %c0_24 = arith.constant 0 : index
      %32 = vector.load %arg21[%c0_22, %c0_23, %c0_24] : memref<1x16x128xf32, #tpu.memory_space<vmem>>, vector<1x16x128xf32>
      %33 = vector.shape_cast %32 : vector<1x16x128xf32> to vector<16x128xf32>
      %34 = vector.shape_cast %31 : vector<16x128xf32> to vector<1x16x128xf32>
      tpu.vector_store %arg21[%c0_22, %c0_23, %c0_24], %34 {strides = array<i32>} : memref<1x16x128xf32, #tpu.memory_space<vmem>>, vector<1x16x128xf32>,
    } else {
    }
    return
  }
  func.func @transform_0(%arg0: i32, %arg1: i32) -> (i32, i32, i32) {
    %c0_i32 = arith.constant 0 : i32
    %c0_i32_0 = arith.constant 0 : i32
    %c0_i32_1 = arith.constant 0 : i32
    return %arg0, %c0_i32, %c0_i32_0 : i32, i32, i32
  }
  func.func @transform_1(%arg0: i32, %arg1: i32) -> (i32, i32) {
    %c0_i32 = arith.constant 0 : i32
    %c0_i32_0 = arith.constant 0 : i32
    %c0_i32_1 = arith.constant 0 : i32
    return %c0_i32, %c0_i32_0 : i32, i32
  }
  func.func @transform_2(%arg0: i32, %arg1: i32) -> (i32, i32) {
    %c0_i32 = arith.constant 0 : i32
    %c0_i32_0 = arith.constant 0 : i32
    %c0_i32_1 = arith.constant 0 : i32
    return %c0_i32, %c0_i32_0 : i32, i32
  }
  func.func @transform_3(%arg0: i32, %arg1: i32) -> (i32, i32, i32) {
    %c0_i32 = arith.constant 0 : i32
    %c0_i32_0 = arith.constant 0 : i32
    %c0_i32_1 = arith.constant 0 : i32
    %c0_i32_2 = arith.constant 0 : i32
    return %c0_i32, %c0_i32_0, %c0_i32_1 : i32, i32, i32
  }
  func.func @transform_4(%arg0: i32, %arg1: i32) -> (i32, i32, i32) {
    %c0_i32 = arith.constant 0 : i32
    %c0_i32_0 = arith.constant 0 : i32
    %c0_i32_1 = arith.constant 0 : i32
    %c0_i32_2 = arith.constant 0 : i32
    return %c0_i32, %c0_i32_0, %c0_i32_1 : i32, i32, i32
  }
  func.func @transform_5(%arg0: i32, %arg1: i32) -> (i32, i32, i32) {
    %c0_i32 = arith.constant 0 : i32
    %c0_i32_0 = arith.constant 0 : i32
    %c0_i32_1 = arith.constant 0 : i32
    %c0_i32_2 = arith.constant 0 : i32
    return %c0_i32, %c0_i32_0, %c0_i32_1 : i32, i32, i32
  }
  func.func @transform_6(%arg0: i32, %arg1: i32) -> (i32, i32, i32) {
    %c0_i32 = arith.constant 0 : i32
    %c0_i32_0 = arith.constant 0 : i32
    %c0_i32_1 = arith.constant 0 : i32
    %c0_i32_2 = arith.constant 0 : i32
    return %c0_i32, %c0_i32_0, %c0_i32_1 : i32, i32, i32
  }
  func.func @transform_7(%arg0: i32, %arg1: i32) -> (i32, i32, i32) {
    %c0_i32 = arith.constant 0 : i32
    %c0_i32_0 = arith.constant 0 : i32
    %c0_i32_1 = arith.constant 0 : i32
    %c0_i32_2 = arith.constant 0 : i32
    return %c0_i32, %c0_i32_0, %c0_i32_1 : i32, i32, i32
  }
  func.func @transform_8(%arg0: i32, %arg1: i32) -> (i32, i32, i32) {
    %c0_i32 = arith.constant 0 : i32
    %c0_i32_0 = arith.constant 0 : i32
    %c0_i32_1 = arith.constant 0 : i32
    %c0_i32_2 = arith.constant 0 : i32
    return %c0_i32, %c0_i32_0, %c0_i32_1 : i32, i32, i32
  }
  func.func @transform_9(%arg0: i32, %arg1: i32) -> (i32, i32, i32) {
    %c0_i32 = arith.constant 0 : i32
    %c0_i32_0 = arith.constant 0 : i32
    %c0_i32_1 = arith.constant 0 : i32
    %c0_i32_2 = arith.constant 0 : i32
    return %c0_i32, %c0_i32_0, %c0_i32_1 : i32, i32, i32
  }
  func.func @transform_10(%arg0: i32, %arg1: i32) -> (i32, i32) {
    %c0_i32 = arith.constant 0 : i32
    %c0_i32_0 = arith.constant 0 : i32
    %c0_i32_1 = arith.constant 0 : i32
    return %c0_i32, %c0_i32_0 : i32, i32
  }
  func.func @transform_11(%arg0: i32, %arg1: i32) -> (i32, i32) {
    %c0_i32 = arith.constant 0 : i32
    %c0_i32_0 = arith.constant 0 : i32
    %c0_i32_1 = arith.constant 0 : i32
    return %c0_i32, %c0_i32_0 : i32, i32
  }
  func.func @transform_12(%arg0: i32, %arg1: i32) -> (i32, i32) {
    %c0_i32 = arith.constant 0 : i32
    %c0_i32_0 = arith.constant 0 : i32
    %c0_i32_1 = arith.constant 0 : i32
    return %c0_i32, %c0_i32_0 : i32, i32
  }
  func.func @transform_13(%arg0: i32, %arg1: i32) -> (i32, i32) {
    %c0_i32 = arith.constant 0 : i32
    %c0_i32_0 = arith.constant 0 : i32
    return %c0_i32, %arg1 : i32, i32
  }
  func.func @transform_14(%arg0: i32, %arg1: i32) -> (i32, i32) {
    %c0_i32 = arith.constant 0 : i32
    %c0_i32_0 = arith.constant 0 : i32
    return %c0_i32, %arg1 : i32, i32
  }
  func.func @transform_15(%arg0: i32, %arg1: i32) -> (i32, i32) {
    %c0_i32 = arith.constant 0 : i32
    %c0_i32_0 = arith.constant 0 : i32
    return %arg1, %c0_i32 : i32, i32
  }
  func.func @transform_16(%arg0: i32, %arg1: i32) -> (i32, i32) {
    %c0_i32 = arith.constant 0 : i32
    %c0_i32_0 = arith.constant 0 : i32
    %c0_i32_1 = arith.constant 0 : i32
    return %c0_i32, %c0_i32_0 : i32, i32
  }
  func.func @transform_17(%arg0: i32, %arg1: i32) -> (i32, i32) {
    %c0_i32 = arith.constant 0 : i32
    %c0_i32_0 = arith.constant 0 : i32
    %c0_i32_1 = arith.constant 0 : i32
    return %c0_i32, %c0_i32_0 : i32, i32
  }
  func.func @transform_18(%arg0: i32, %arg1: i32) -> (i32, i32) {
    %c0_i32 = arith.constant 0 : i32
    %c0_i32_0 = arith.constant 0 : i32
    %c0_i32_1 = arith.constant 0 : i32
    return %c0_i32, %c0_i32_0 : i32, i32
  }
  func.func @transform_19(%arg0: i32, %arg1: i32) -> (i32, i32, i32) {
    %c0_i32 = arith.constant 0 : i32
    %c0_i32_0 = arith.constant 0 : i32
    %c0_i32_1 = arith.constant 0 : i32
    return %arg0, %c0_i32, %c0_i32_0 : i32, i32, i32
  }
}

module attributes {stable_mosaic.version = 11 : i64} {
  func.func @clip_layer_kernel(%arg0: i32, %arg1: i32, %arg2: memref<1x16x128xf32, #tpu.memory_space<vmem>>, %arg3: memref<1x128xf32, #tpu.memory_space<vmem>>, %arg4: memref<1x128xf32, #tpu.memory_space<vmem>>, %arg5: memref<4x32x128xbf16, #tpu.memory_space<vmem>>, %arg6: memref<4x32x128xbf16, #tpu.memory_space<vmem>>, %arg7: memref<4x32x128xbf16, #tpu.memory_space<vmem>>, %arg8: memref<4x1x32xf32, #tpu.memory_space<vmem>>, %arg9: memref<4x1x32xf32, #tpu.memory_space<vmem>>, %arg10: memref<4x1x32xf32, #tpu.memory_space<vmem>>, %arg11: memref<4x32x128xbf16, #tpu.memory_space<vmem>>, %arg12: memref<1x128xf32, #tpu.memory_space<vmem>>, %arg13: memref<1x128xf32, #tpu.memory_space<vmem>>, %arg14: memref<1x128xf32, #tpu.memory_space<vmem>>, %arg15: memref<128x128xbf16, #tpu.memory_space<vmem>>, %arg16: memref<1x128xf32, #tpu.memory_space<vmem>>, %arg17: memref<128x128xbf16, #tpu.memory_space<vmem>>, %arg18: memref<1x128xf32, #tpu.memory_space<vmem>>, %arg19: memref<1x128xf32, #tpu.memory_space<vmem>>, %arg20: memref<1x128xf32, #tpu.memory_space<vmem>>, %arg21: memref<1x16x128xf32, #tpu.memory_space<vmem>>, %arg22: memref<16x128xf32, #tpu.memory_space<vmem>>, %arg23: memref<16x128xbf16, #tpu.memory_space<vmem>>, %arg24: memref<16x128xf32, #tpu.memory_space<vmem>>) attributes {dimension_semantics = [#tpu.dimension_semantics<parallel>, #tpu.dimension_semantics<arbitrary>], iteration_bounds = array<i64: 2, 4>, scalar_prefetch = 0 : i64, scratch_operands = 3 : i64, tpu.core_type = #tpu.core_type<tc>, window_params = [{transform_indices = @transform_0, window_bounds = array<i64: 1, 16, 128>}, {pipeline_mode = #tpu.pipeline_mode<synchronous>, transform_indices = @transform_1, window_bounds = array<i64: 1, 128>}, {pipeline_mode = #tpu.pipeline_mode<synchronous>, transform_indices = @transform_2, window_bounds = array<i64: 1, 128>}, {pipeline_mode = #tpu.pipeline_mode<synchronous>, transform_indices = @transform_3, window_bounds = array<i64: 4, 32, 128>}, {pipeline_mode = #tpu.pipeline_mode<synchronous>, transform_indices = @transform_4, window_bounds = array<i64: 4, 32, 128>}, {pipeline_mode = #tpu.pipeline_mode<synchronous>, transform_indices = @transform_5, window_bounds = array<i64: 4, 32, 128>}, {pipeline_mode = #tpu.pipeline_mode<synchronous>, transform_indices = @transform_6, window_bounds = array<i64: 4, 1, 32>}, {pipeline_mode = #tpu.pipeline_mode<synchronous>, transform_indices = @transform_7, window_bounds = array<i64: 4, 1, 32>}, {pipeline_mode = #tpu.pipeline_mode<synchronous>, transform_indices = @transform_8, window_bounds = array<i64: 4, 1, 32>}, {pipeline_mode = #tpu.pipeline_mode<synchronous>, transform_indices = @transform_9, window_bounds = array<i64: 4, 32, 128>}, {pipeline_mode = #tpu.pipeline_mode<synchronous>, transform_indices = @transform_10, window_bounds = array<i64: 1, 128>}, {pipeline_mode = #tpu.pipeline_mode<synchronous>, transform_indices = @transform_11, window_bounds = array<i64: 1, 128>}, {pipeline_mode = #tpu.pipeline_mode<synchronous>, transform_indices = @transform_12, window_bounds = array<i64: 1, 128>}, {transform_indices = @transform_13, window_bounds = array<i64: 128, 128>}, {transform_indices = @transform_14, window_bounds = array<i64: 1, 128>}, {transform_indices = @transform_15, window_bounds = array<i64: 128, 128>}, {pipeline_mode = #tpu.pipeline_mode<synchronous>, transform_indices = @transform_16, window_bounds = array<i64: 1, 128>}, {pipeline_mode = #tpu.pipeline_mode<synchronous>, transform_indices = @transform_17, window_bounds = array<i64: 1, 128>}, {pipeline_mode = #tpu.pipeline_mode<synchronous>, transform_indices = @transform_18, window_bounds = array<i64: 1, 128>}, {transform_indices = @transform_19, window_bounds = array<i64: 1, 16, 128>}]} {
    %c0_i32 = arith.constant 0 : i32
    %0 = arith.cmpi eq, %arg1, %c0_i32 : i32
    %1 = arith.extui %0 : i1 to i32
    %c0_i32_0 = arith.constant 0 : i32
    %2 = arith.cmpi ne, %1, %c0_i32_0 : i32
    scf.if %2 {
      %c0_16 = arith.constant 0 : index
      %c0_17 = arith.constant 0 : index
      %c0_18 = arith.constant 0 : index
      %26 = vector.load %arg2[%c0_16, %c0_17, %c0_18] : memref<1x16x128xf32, #tpu.memory_space<vmem>>, vector<1x16x128xf32>
      %27 = vector.shape_cast %26 : vector<1x16x128xf32> to vector<16x128xf32>
      %c0_19 = arith.constant 0 : index
      %c0_20 = arith.constant 0 : index
      %28 = vector.load %arg3[%c0_19, %c0_20] : memref<1x128xf32, #tpu.memory_space<vmem>>, vector<1x128xf32>
      %c0_21 = arith.constant 0 : index
      %c0_22 = arith.constant 0 : index
      %29 = vector.load %arg4[%c0_21, %c0_22] : memref<1x128xf32, #tpu.memory_space<vmem>>, vector<1x128xf32>
      %cst_23 = arith.constant dense<0.000000e+00> : vector<16xf32>
      %30 = vector.multi_reduction <add>, %27, %cst_23 [1] : vector<16x128xf32> to vector<16xf32>
      %31 = vector.shape_cast %30 : vector<16xf32> to vector<16x1xf32>
      %cst_24 = arith.constant 1.280000e+02 : f32
      %32 = vector.broadcast %cst_24 : f32 to vector<16x1xf32>
      %33 = arith.divf %31, %32 : vector<16x1xf32>
      %34 = vector.broadcast %33 : vector<16x1xf32> to vector<16x128xf32>
      %35 = arith.subf %27, %34 : vector<16x128xf32>
      %36 = arith.mulf %35, %35 : vector<16x128xf32>
      %cst_25 = arith.constant dense<0.000000e+00> : vector<16xf32>
      %37 = vector.multi_reduction <add>, %36, %cst_25 [1] : vector<16x128xf32> to vector<16xf32>
      %38 = vector.shape_cast %37 : vector<16xf32> to vector<16x1xf32>
      %cst_26 = arith.constant 1.280000e+02 : f32
      %39 = vector.broadcast %cst_26 : f32 to vector<16x1xf32>
      %40 = arith.divf %38, %39 : vector<16x1xf32>
      %41 = vector.broadcast %33 : vector<16x1xf32> to vector<16x128xf32>
      %42 = arith.subf %27, %41 : vector<16x128xf32>
      %cst_27 = arith.constant 9.99999974E-6 : f32
      %43 = vector.broadcast %cst_27 : f32 to vector<16x1xf32>
      %44 = arith.addf %40, %43 : vector<16x1xf32>
      %45 = math.rsqrt %44 : vector<16x1xf32>
      %46 = vector.broadcast %45 : vector<16x1xf32> to vector<16x128xf32>
      %47 = arith.mulf %42, %46 : vector<16x128xf32>
      %48 = vector.broadcast %28 : vector<1x128xf32> to vector<16x128xf32>
      %49 = arith.mulf %47, %48 : vector<16x128xf32>
      %50 = vector.broadcast %29 : vector<1x128xf32> to vector<16x128xf32>
      %51 = arith.addf %49, %50 : vector<16x128xf32>
      %52 = arith.truncf %51 : vector<16x128xf32> to vector<16x128xbf16>
      %53 = tpu.iota {dimensions = array<i32: 0>} : vector<16x16xi32>
      %54 = tpu.iota {dimensions = array<i32: 1>} : vector<16x16xi32>
      %55 = arith.cmpi sle, %54, %53 : vector<16x16xi32>
      %cst_28 = arith.constant 0.000000e+00 : f32
      %cst_29 = arith.constant -1.000000e+30 : f32
      %56 = vector.broadcast %cst_28 : f32 to vector<16x16xf32>
      %57 = vector.broadcast %cst_29 : f32 to vector<16x16xf32>
      %58 = arith.select %55, %56, %57 : vector<16x16xi1>, vector<16x16xf32>
      %cst_30 = arith.constant 0.000000e+00 : f32
      %59 = vector.broadcast %cst_30 : f32 to vector<16x128xf32>
      %c0_31 = arith.constant 0 : index
      %c0_32 = arith.constant 0 : index
      %c0_33 = arith.constant 0 : index
      %60 = vector.load %arg5[%c0_31, %c0_32, %c0_33] : memref<4x32x128xbf16, #tpu.memory_space<vmem>>, vector<1x32x128xbf16>
      %61 = vector.shape_cast %60 : vector<1x32x128xbf16> to vector<32x128xbf16>
      %cst_34 = arith.constant dense<0.000000e+00> : vector<16x32xf32>
      %62 = tpu.matmul %52, %61, %cst_34 {dimension_numbers = #tpu.dot_dimension_numbers<[1], [1], [0], [0], [0, 0, 1, 0], [], []>} : vector<16x128xbf16>, vector<32x128xbf16>, vector<16x32xf32> -> vector<16x32xf32>
      %c0_35 = arith.constant 0 : index
      %c0_36 = arith.constant 0 : index
      %c0_37 = arith.constant 0 : index
      %63 = vector.load %arg8[%c0_35, %c0_36, %c0_37] : memref<4x1x32xf32, #tpu.memory_space<vmem>>, vector<1x1x32xf32>
      %64 = vector.shape_cast %63 : vector<1x1x32xf32> to vector<1x32xf32>
      %65 = vector.broadcast %64 : vector<1x32xf32> to vector<16x32xf32>
      %66 = arith.addf %62, %65 : vector<16x32xf32>
      %cst_38 = arith.constant 0.176776692 : f32
      %67 = vector.broadcast %cst_38 : f32 to vector<16x32xf32>
      %68 = arith.mulf %66, %67 : vector<16x32xf32>
      %c0_39 = arith.constant 0 : index
      %c0_40 = arith.constant 0 : index
      %c0_41 = arith.constant 0 : index
      %69 = vector.load %arg6[%c0_39, %c0_40, %c0_41] : memref<4x32x128xbf16, #tpu.memory_space<vmem>>, vector<1x32x128xbf16>
      %70 = vector.shape_cast %69 : vector<1x32x128xbf16> to vector<32x128xbf16>
      %cst_42 = arith.constant dense<0.000000e+00> : vector<16x32xf32>
      %71 = tpu.matmul %52, %70, %cst_42 {dimension_numbers = #tpu.dot_dimension_numbers<[1], [1], [0], [0], [0, 0, 1, 0], [], []>} : vector<16x128xbf16>, vector<32x128xbf16>, vector<16x32xf32> -> vector<16x32xf32>
      %c0_43 = arith.constant 0 : index
      %c0_44 = arith.constant 0 : index
      %c0_45 = arith.constant 0 : index
      %72 = vector.load %arg9[%c0_43, %c0_44, %c0_45] : memref<4x1x32xf32, #tpu.memory_space<vmem>>, vector<1x1x32xf32>
      %73 = vector.shape_cast %72 : vector<1x1x32xf32> to vector<1x32xf32>
      %74 = vector.broadcast %73 : vector<1x32xf32> to vector<16x32xf32>
      %75 = arith.addf %71, %74 : vector<16x32xf32>
      %c0_46 = arith.constant 0 : index
      %c0_47 = arith.constant 0 : index
      %c0_48 = arith.constant 0 : index
      %76 = vector.load %arg7[%c0_46, %c0_47, %c0_48] : memref<4x32x128xbf16, #tpu.memory_space<vmem>>, vector<1x32x128xbf16>
      %77 = vector.shape_cast %76 : vector<1x32x128xbf16> to vector<32x128xbf16>
      %cst_49 = arith.constant dense<0.000000e+00> : vector<16x32xf32>
      %78 = tpu.matmul %52, %77, %cst_49 {dimension_numbers = #tpu.dot_dimension_numbers<[1], [1], [0], [0], [0, 0, 1, 0], [], []>} : vector<16x128xbf16>, vector<32x128xbf16>, vector<16x32xf32> -> vector<16x32xf32>
      %c0_50 = arith.constant 0 : index
      %c0_51 = arith.constant 0 : index
      %c0_52 = arith.constant 0 : index
      %79 = vector.load %arg10[%c0_50, %c0_51, %c0_52] : memref<4x1x32xf32, #tpu.memory_space<vmem>>, vector<1x1x32xf32>
      %80 = vector.shape_cast %79 : vector<1x1x32xf32> to vector<1x32xf32>
      %81 = vector.broadcast %80 : vector<1x32xf32> to vector<16x32xf32>
      %82 = arith.addf %78, %81 : vector<16x32xf32>
      %83 = arith.truncf %68 : vector<16x32xf32> to vector<16x32xbf16>
      %84 = arith.truncf %75 : vector<16x32xf32> to vector<16x32xbf16>
      %cst_53 = arith.constant dense<0.000000e+00> : vector<16x16xf32>
      %85 = tpu.matmul %83, %84, %cst_53 {dimension_numbers = #tpu.dot_dimension_numbers<[1], [1], [0], [0], [0, 0, 1, 0], [], []>} : vector<16x32xbf16>, vector<16x32xbf16>, vector<16x16xf32> -> vector<16x16xf32>
      %86 = arith.addf %85, %58 : vector<16x16xf32>
      %cst_54 = arith.constant dense<0xFF800000> : vector<16xf32>
      %87 = vector.multi_reduction <maximumf>, %86, %cst_54 [1] : vector<16x16xf32> to vector<16xf32>
      %88 = vector.shape_cast %87 : vector<16xf32> to vector<16x1xf32>
      %89 = vector.broadcast %88 : vector<16x1xf32> to vector<16x16xf32>
      %90 = arith.subf %86, %89 : vector<16x16xf32>
      %91 = math.exp %90 : vector<16x16xf32>
      %cst_55 = arith.constant dense<0.000000e+00> : vector<16xf32>
      %92 = vector.multi_reduction <add>, %91, %cst_55 [1] : vector<16x16xf32> to vector<16xf32>
      %93 = vector.shape_cast %92 : vector<16xf32> to vector<16x1xf32>
      %94 = arith.truncf %91 : vector<16x16xf32> to vector<16x16xbf16>
      %95 = arith.truncf %82 : vector<16x32xf32> to vector<16x32xbf16>
      %cst_56 = arith.constant dense<0.000000e+00> : vector<16x32xf32>
      %96 = tpu.matmul %94, %95, %cst_56 {dimension_numbers = #tpu.dot_dimension_numbers<[1], [0], [0], [1], [0, 0, 1, 1], [], []>} : vector<16x16xbf16>, vector<16x32xbf16>, vector<16x32xf32> -> vector<16x32xf32>
      %97 = tpu.reciprocal %93 {approx = true} : vector<16x1xf32> -> vector<16x1xf32>
      %98 = vector.broadcast %97 : vector<16x1xf32> to vector<16x32xf32>
      %99 = arith.mulf %96, %98 : vector<16x32xf32>
      %100 = arith.truncf %99 : vector<16x32xf32> to vector<16x32xbf16>
      %c0_57 = arith.constant 0 : index
      %c0_58 = arith.constant 0 : index
      %c0_59 = arith.constant 0 : index
      %101 = vector.load %arg11[%c0_57, %c0_58, %c0_59] : memref<4x32x128xbf16, #tpu.memory_space<vmem>>, vector<1x32x128xbf16>
      %102 = vector.shape_cast %101 : vector<1x32x128xbf16> to vector<32x128xbf16>
      %cst_60 = arith.constant dense<0.000000e+00> : vector<16x128xf32>
      %103 = tpu.matmul %100, %102, %cst_60 {dimension_numbers = #tpu.dot_dimension_numbers<[1], [0], [0], [1], [0, 0, 1, 1], [], []>} : vector<16x32xbf16>, vector<32x128xbf16>, vector<16x128xf32> -> vector<16x128xf32>
      %104 = arith.addf %59, %103 : vector<16x128xf32>
      %c1 = arith.constant 1 : index
      %c0_61 = arith.constant 0 : index
      %c0_62 = arith.constant 0 : index
      %105 = vector.load %arg5[%c1, %c0_61, %c0_62] : memref<4x32x128xbf16, #tpu.memory_space<vmem>>, vector<1x32x128xbf16>
      %106 = vector.shape_cast %105 : vector<1x32x128xbf16> to vector<32x128xbf16>
      %cst_63 = arith.constant dense<0.000000e+00> : vector<16x32xf32>
      %107 = tpu.matmul %52, %106, %cst_63 {dimension_numbers = #tpu.dot_dimension_numbers<[1], [1], [0], [0], [0, 0, 1, 0], [], []>} : vector<16x128xbf16>, vector<32x128xbf16>, vector<16x32xf32> -> vector<16x32xf32>
      %c1_64 = arith.constant 1 : index
      %c0_65 = arith.constant 0 : index
      %c0_66 = arith.constant 0 : index
      %108 = vector.load %arg8[%c1_64, %c0_65, %c0_66] : memref<4x1x32xf32, #tpu.memory_space<vmem>>, vector<1x1x32xf32>
      %109 = vector.shape_cast %108 : vector<1x1x32xf32> to vector<1x32xf32>
      %110 = vector.broadcast %109 : vector<1x32xf32> to vector<16x32xf32>
      %111 = arith.addf %107, %110 : vector<16x32xf32>
      %cst_67 = arith.constant 0.176776692 : f32
      %112 = vector.broadcast %cst_67 : f32 to vector<16x32xf32>
      %113 = arith.mulf %111, %112 : vector<16x32xf32>
      %c1_68 = arith.constant 1 : index
      %c0_69 = arith.constant 0 : index
      %c0_70 = arith.constant 0 : index
      %114 = vector.load %arg6[%c1_68, %c0_69, %c0_70] : memref<4x32x128xbf16, #tpu.memory_space<vmem>>, vector<1x32x128xbf16>
      %115 = vector.shape_cast %114 : vector<1x32x128xbf16> to vector<32x128xbf16>
      %cst_71 = arith.constant dense<0.000000e+00> : vector<16x32xf32>
      %116 = tpu.matmul %52, %115, %cst_71 {dimension_numbers = #tpu.dot_dimension_numbers<[1], [1], [0], [0], [0, 0, 1, 0], [], []>} : vector<16x128xbf16>, vector<32x128xbf16>, vector<16x32xf32> -> vector<16x32xf32>
      %c1_72 = arith.constant 1 : index
      %c0_73 = arith.constant 0 : index
      %c0_74 = arith.constant 0 : index
      %117 = vector.load %arg9[%c1_72, %c0_73, %c0_74] : memref<4x1x32xf32, #tpu.memory_space<vmem>>, vector<1x1x32xf32>
      %118 = vector.shape_cast %117 : vector<1x1x32xf32> to vector<1x32xf32>
      %119 = vector.broadcast %118 : vector<1x32xf32> to vector<16x32xf32>
      %120 = arith.addf %116, %119 : vector<16x32xf32>
      %c1_75 = arith.constant 1 : index
      %c0_76 = arith.constant 0 : index
      %c0_77 = arith.constant 0 : index
      %121 = vector.load %arg7[%c1_75, %c0_76, %c0_77] : memref<4x32x128xbf16, #tpu.memory_space<vmem>>, vector<1x32x128xbf16>
      %122 = vector.shape_cast %121 : vector<1x32x128xbf16> to vector<32x128xbf16>
      %cst_78 = arith.constant dense<0.000000e+00> : vector<16x32xf32>
      %123 = tpu.matmul %52, %122, %cst_78 {dimension_numbers = #tpu.dot_dimension_numbers<[1], [1], [0], [0], [0, 0, 1, 0], [], []>} : vector<16x128xbf16>, vector<32x128xbf16>, vector<16x32xf32> -> vector<16x32xf32>
      %c1_79 = arith.constant 1 : index
      %c0_80 = arith.constant 0 : index
      %c0_81 = arith.constant 0 : index
      %124 = vector.load %arg10[%c1_79, %c0_80, %c0_81] : memref<4x1x32xf32, #tpu.memory_space<vmem>>, vector<1x1x32xf32>
      %125 = vector.shape_cast %124 : vector<1x1x32xf32> to vector<1x32xf32>
      %126 = vector.broadcast %125 : vector<1x32xf32> to vector<16x32xf32>
      %127 = arith.addf %123, %126 : vector<16x32xf32>
      %128 = arith.truncf %113 : vector<16x32xf32> to vector<16x32xbf16>
      %129 = arith.truncf %120 : vector<16x32xf32> to vector<16x32xbf16>
      %cst_82 = arith.constant dense<0.000000e+00> : vector<16x16xf32>
      %130 = tpu.matmul %128, %129, %cst_82 {dimension_numbers = #tpu.dot_dimension_numbers<[1], [1], [0], [0], [0, 0, 1, 0], [], []>} : vector<16x32xbf16>, vector<16x32xbf16>, vector<16x16xf32> -> vector<16x16xf32>
      %131 = arith.addf %130, %58 : vector<16x16xf32>
      %cst_83 = arith.constant dense<0xFF800000> : vector<16xf32>
      %132 = vector.multi_reduction <maximumf>, %131, %cst_83 [1] : vector<16x16xf32> to vector<16xf32>
      %133 = vector.shape_cast %132 : vector<16xf32> to vector<16x1xf32>
      %134 = vector.broadcast %133 : vector<16x1xf32> to vector<16x16xf32>
      %135 = arith.subf %131, %134 : vector<16x16xf32>
      %136 = math.exp %135 : vector<16x16xf32>
      %cst_84 = arith.constant dense<0.000000e+00> : vector<16xf32>
      %137 = vector.multi_reduction <add>, %136, %cst_84 [1] : vector<16x16xf32> to vector<16xf32>
      %138 = vector.shape_cast %137 : vector<16xf32> to vector<16x1xf32>
      %139 = arith.truncf %136 : vector<16x16xf32> to vector<16x16xbf16>
      %140 = arith.truncf %127 : vector<16x32xf32> to vector<16x32xbf16>
      %cst_85 = arith.constant dense<0.000000e+00> : vector<16x32xf32>
      %141 = tpu.matmul %139, %140, %cst_85 {dimension_numbers = #tpu.dot_dimension_numbers<[1], [0], [0], [1], [0, 0, 1, 1], [], []>} : vector<16x16xbf16>, vector<16x32xbf16>, vector<16x32xf32> -> vector<16x32xf32>
      %142 = tpu.reciprocal %138 {approx = true} : vector<16x1xf32> -> vector<16x1xf32>
      %143 = vector.broadcast %142 : vector<16x1xf32> to vector<16x32xf32>
      %144 = arith.mulf %141, %143 : vector<16x32xf32>
      %145 = arith.truncf %144 : vector<16x32xf32> to vector<16x32xbf16>
      %c1_86 = arith.constant 1 : index
      %c0_87 = arith.constant 0 : index
      %c0_88 = arith.constant 0 : index
      %146 = vector.load %arg11[%c1_86, %c0_87, %c0_88] : memref<4x32x128xbf16, #tpu.memory_space<vmem>>, vector<1x32x128xbf16>
      %147 = vector.shape_cast %146 : vector<1x32x128xbf16> to vector<32x128xbf16>
      %cst_89 = arith.constant dense<0.000000e+00> : vector<16x128xf32>
      %148 = tpu.matmul %145, %147, %cst_89 {dimension_numbers = #tpu.dot_dimension_numbers<[1], [0], [0], [1], [0, 0, 1, 1], [], []>} : vector<16x32xbf16>, vector<32x128xbf16>, vector<16x128xf32> -> vector<16x128xf32>
      %149 = arith.addf %104, %148 : vector<16x128xf32>
      %c2 = arith.constant 2 : index
      %c0_90 = arith.constant 0 : index
      %c0_91 = arith.constant 0 : index
      %150 = vector.load %arg5[%c2, %c0_90, %c0_91] : memref<4x32x128xbf16, #tpu.memory_space<vmem>>, vector<1x32x128xbf16>
      %151 = vector.shape_cast %150 : vector<1x32x128xbf16> to vector<32x128xbf16>
      %cst_92 = arith.constant dense<0.000000e+00> : vector<16x32xf32>
      %152 = tpu.matmul %52, %151, %cst_92 {dimension_numbers = #tpu.dot_dimension_numbers<[1], [1], [0], [0], [0, 0, 1, 0], [], []>} : vector<16x128xbf16>, vector<32x128xbf16>, vector<16x32xf32> -> vector<16x32xf32>
      %c2_93 = arith.constant 2 : index
      %c0_94 = arith.constant 0 : index
      %c0_95 = arith.constant 0 : index
      %153 = vector.load %arg8[%c2_93, %c0_94, %c0_95] : memref<4x1x32xf32, #tpu.memory_space<vmem>>, vector<1x1x32xf32>
      %154 = vector.shape_cast %153 : vector<1x1x32xf32> to vector<1x32xf32>
      %155 = vector.broadcast %154 : vector<1x32xf32> to vector<16x32xf32>
      %156 = arith.addf %152, %155 : vector<16x32xf32>
      %cst_96 = arith.constant 0.176776692 : f32
      %157 = vector.broadcast %cst_96 : f32 to vector<16x32xf32>
      %158 = arith.mulf %156, %157 : vector<16x32xf32>
      %c2_97 = arith.constant 2 : index
      %c0_98 = arith.constant 0 : index
      %c0_99 = arith.constant 0 : index
      %159 = vector.load %arg6[%c2_97, %c0_98, %c0_99] : memref<4x32x128xbf16, #tpu.memory_space<vmem>>, vector<1x32x128xbf16>
      %160 = vector.shape_cast %159 : vector<1x32x128xbf16> to vector<32x128xbf16>
      %cst_100 = arith.constant dense<0.000000e+00> : vector<16x32xf32>
      %161 = tpu.matmul %52, %160, %cst_100 {dimension_numbers = #tpu.dot_dimension_numbers<[1], [1], [0], [0], [0, 0, 1, 0], [], []>} : vector<16x128xbf16>, vector<32x128xbf16>, vector<16x32xf32> -> vector<16x32xf32>
      %c2_101 = arith.constant 2 : index
      %c0_102 = arith.constant 0 : index
      %c0_103 = arith.constant 0 : index
      %162 = vector.load %arg9[%c2_101, %c0_102, %c0_103] : memref<4x1x32xf32, #tpu.memory_space<vmem>>, vector<1x1x32xf32>
      %163 = vector.shape_cast %162 : vector<1x1x32xf32> to vector<1x32xf32>
      %164 = vector.broadcast %163 : vector<1x32xf32> to vector<16x32xf32>
      %165 = arith.addf %161, %164 : vector<16x32xf32>
      %c2_104 = arith.constant 2 : index
      %c0_105 = arith.constant 0 : index
      %c0_106 = arith.constant 0 : index
      %166 = vector.load %arg7[%c2_104, %c0_105, %c0_106] : memref<4x32x128xbf16, #tpu.memory_space<vmem>>, vector<1x32x128xbf16>
      %167 = vector.shape_cast %166 : vector<1x32x128xbf16> to vector<32x128xbf16>
      %cst_107 = arith.constant dense<0.000000e+00> : vector<16x32xf32>
      %168 = tpu.matmul %52, %167, %cst_107 {dimension_numbers = #tpu.dot_dimension_numbers<[1], [1], [0], [0], [0, 0, 1, 0], [], []>} : vector<16x128xbf16>, vector<32x128xbf16>, vector<16x32xf32> -> vector<16x32xf32>
      %c2_108 = arith.constant 2 : index
      %c0_109 = arith.constant 0 : index
      %c0_110 = arith.constant 0 : index
      %169 = vector.load %arg10[%c2_108, %c0_109, %c0_110] : memref<4x1x32xf32, #tpu.memory_space<vmem>>, vector<1x1x32xf32>
      %170 = vector.shape_cast %169 : vector<1x1x32xf32> to vector<1x32xf32>
      %171 = vector.broadcast %170 : vector<1x32xf32> to vector<16x32xf32>
      %172 = arith.addf %168, %171 : vector<16x32xf32>
      %173 = arith.truncf %158 : vector<16x32xf32> to vector<16x32xbf16>
      %174 = arith.truncf %165 : vector<16x32xf32> to vector<16x32xbf16>
      %cst_111 = arith.constant dense<0.000000e+00> : vector<16x16xf32>
      %175 = tpu.matmul %173, %174, %cst_111 {dimension_numbers = #tpu.dot_dimension_numbers<[1], [1], [0], [0], [0, 0, 1, 0], [], []>} : vector<16x32xbf16>, vector<16x32xbf16>, vector<16x16xf32> -> vector<16x16xf32>
      %176 = arith.addf %175, %58 : vector<16x16xf32>
      %cst_112 = arith.constant dense<0xFF800000> : vector<16xf32>
      %177 = vector.multi_reduction <maximumf>, %176, %cst_112 [1] : vector<16x16xf32> to vector<16xf32>
      %178 = vector.shape_cast %177 : vector<16xf32> to vector<16x1xf32>
      %179 = vector.broadcast %178 : vector<16x1xf32> to vector<16x16xf32>
      %180 = arith.subf %176, %179 : vector<16x16xf32>
      %181 = math.exp %180 : vector<16x16xf32>
      %cst_113 = arith.constant dense<0.000000e+00> : vector<16xf32>
      %182 = vector.multi_reduction <add>, %181, %cst_113 [1] : vector<16x16xf32> to vector<16xf32>
      %183 = vector.shape_cast %182 : vector<16xf32> to vector<16x1xf32>
      %184 = arith.truncf %181 : vector<16x16xf32> to vector<16x16xbf16>
      %185 = arith.truncf %172 : vector<16x32xf32> to vector<16x32xbf16>
      %cst_114 = arith.constant dense<0.000000e+00> : vector<16x32xf32>
      %186 = tpu.matmul %184, %185, %cst_114 {dimension_numbers = #tpu.dot_dimension_numbers<[1], [0], [0], [1], [0, 0, 1, 1], [], []>} : vector<16x16xbf16>, vector<16x32xbf16>, vector<16x32xf32> -> vector<16x32xf32>
      %187 = tpu.reciprocal %183 {approx = true} : vector<16x1xf32> -> vector<16x1xf32>
      %188 = vector.broadcast %187 : vector<16x1xf32> to vector<16x32xf32>
      %189 = arith.mulf %186, %188 : vector<16x32xf32>
      %190 = arith.truncf %189 : vector<16x32xf32> to vector<16x32xbf16>
      %c2_115 = arith.constant 2 : index
      %c0_116 = arith.constant 0 : index
      %c0_117 = arith.constant 0 : index
      %191 = vector.load %arg11[%c2_115, %c0_116, %c0_117] : memref<4x32x128xbf16, #tpu.memory_space<vmem>>, vector<1x32x128xbf16>
      %192 = vector.shape_cast %191 : vector<1x32x128xbf16> to vector<32x128xbf16>
      %cst_118 = arith.constant dense<0.000000e+00> : vector<16x128xf32>
      %193 = tpu.matmul %190, %192, %cst_118 {dimension_numbers = #tpu.dot_dimension_numbers<[1], [0], [0], [1], [0, 0, 1, 1], [], []>} : vector<16x32xbf16>, vector<32x128xbf16>, vector<16x128xf32> -> vector<16x128xf32>
      %194 = arith.addf %149, %193 : vector<16x128xf32>
      %c3 = arith.constant 3 : index
      %c0_119 = arith.constant 0 : index
      %c0_120 = arith.constant 0 : index
      %195 = vector.load %arg5[%c3, %c0_119, %c0_120] : memref<4x32x128xbf16, #tpu.memory_space<vmem>>, vector<1x32x128xbf16>
      %196 = vector.shape_cast %195 : vector<1x32x128xbf16> to vector<32x128xbf16>
      %cst_121 = arith.constant dense<0.000000e+00> : vector<16x32xf32>
      %197 = tpu.matmul %52, %196, %cst_121 {dimension_numbers = #tpu.dot_dimension_numbers<[1], [1], [0], [0], [0, 0, 1, 0], [], []>} : vector<16x128xbf16>, vector<32x128xbf16>, vector<16x32xf32> -> vector<16x32xf32>
      %c3_122 = arith.constant 3 : index
      %c0_123 = arith.constant 0 : index
      %c0_124 = arith.constant 0 : index
      %198 = vector.load %arg8[%c3_122, %c0_123, %c0_124] : memref<4x1x32xf32, #tpu.memory_space<vmem>>, vector<1x1x32xf32>
      %199 = vector.shape_cast %198 : vector<1x1x32xf32> to vector<1x32xf32>
      %200 = vector.broadcast %199 : vector<1x32xf32> to vector<16x32xf32>
      %201 = arith.addf %197, %200 : vector<16x32xf32>
      %cst_125 = arith.constant 0.176776692 : f32
      %202 = vector.broadcast %cst_125 : f32 to vector<16x32xf32>
      %203 = arith.mulf %201, %202 : vector<16x32xf32>
      %c3_126 = arith.constant 3 : index
      %c0_127 = arith.constant 0 : index
      %c0_128 = arith.constant 0 : index
      %204 = vector.load %arg6[%c3_126, %c0_127, %c0_128] : memref<4x32x128xbf16, #tpu.memory_space<vmem>>, vector<1x32x128xbf16>
      %205 = vector.shape_cast %204 : vector<1x32x128xbf16> to vector<32x128xbf16>
      %cst_129 = arith.constant dense<0.000000e+00> : vector<16x32xf32>
      %206 = tpu.matmul %52, %205, %cst_129 {dimension_numbers = #tpu.dot_dimension_numbers<[1], [1], [0], [0], [0, 0, 1, 0], [], []>} : vector<16x128xbf16>, vector<32x128xbf16>, vector<16x32xf32> -> vector<16x32xf32>
      %c3_130 = arith.constant 3 : index
      %c0_131 = arith.constant 0 : index
      %c0_132 = arith.constant 0 : index
      %207 = vector.load %arg9[%c3_130, %c0_131, %c0_132] : memref<4x1x32xf32, #tpu.memory_space<vmem>>, vector<1x1x32xf32>
      %208 = vector.shape_cast %207 : vector<1x1x32xf32> to vector<1x32xf32>
      %209 = vector.broadcast %208 : vector<1x32xf32> to vector<16x32xf32>
      %210 = arith.addf %206, %209 : vector<16x32xf32>
      %c3_133 = arith.constant 3 : index
      %c0_134 = arith.constant 0 : index
      %c0_135 = arith.constant 0 : index
      %211 = vector.load %arg7[%c3_133, %c0_134, %c0_135] : memref<4x32x128xbf16, #tpu.memory_space<vmem>>, vector<1x32x128xbf16>
      %212 = vector.shape_cast %211 : vector<1x32x128xbf16> to vector<32x128xbf16>
      %cst_136 = arith.constant dense<0.000000e+00> : vector<16x32xf32>
      %213 = tpu.matmul %52, %212, %cst_136 {dimension_numbers = #tpu.dot_dimension_numbers<[1], [1], [0], [0], [0, 0, 1, 0], [], []>} : vector<16x128xbf16>, vector<32x128xbf16>, vector<16x32xf32> -> vector<16x32xf32>
      %c3_137 = arith.constant 3 : index
      %c0_138 = arith.constant 0 : index
      %c0_139 = arith.constant 0 : index
      %214 = vector.load %arg10[%c3_137, %c0_138, %c0_139] : memref<4x1x32xf32, #tpu.memory_space<vmem>>, vector<1x1x32xf32>
      %215 = vector.shape_cast %214 : vector<1x1x32xf32> to vector<1x32xf32>
      %216 = vector.broadcast %215 : vector<1x32xf32> to vector<16x32xf32>
      %217 = arith.addf %213, %216 : vector<16x32xf32>
      %218 = arith.truncf %203 : vector<16x32xf32> to vector<16x32xbf16>
      %219 = arith.truncf %210 : vector<16x32xf32> to vector<16x32xbf16>
      %cst_140 = arith.constant dense<0.000000e+00> : vector<16x16xf32>
      %220 = tpu.matmul %218, %219, %cst_140 {dimension_numbers = #tpu.dot_dimension_numbers<[1], [1], [0], [0], [0, 0, 1, 0], [], []>} : vector<16x32xbf16>, vector<16x32xbf16>, vector<16x16xf32> -> vector<16x16xf32>
      %221 = arith.addf %220, %58 : vector<16x16xf32>
      %cst_141 = arith.constant dense<0xFF800000> : vector<16xf32>
      %222 = vector.multi_reduction <maximumf>, %221, %cst_141 [1] : vector<16x16xf32> to vector<16xf32>
      %223 = vector.shape_cast %222 : vector<16xf32> to vector<16x1xf32>
      %224 = vector.broadcast %223 : vector<16x1xf32> to vector<16x16xf32>
      %225 = arith.subf %221, %224 : vector<16x16xf32>
      %226 = math.exp %225 : vector<16x16xf32>
      %cst_142 = arith.constant dense<0.000000e+00> : vector<16xf32>
      %227 = vector.multi_reduction <add>, %226, %cst_142 [1] : vector<16x16xf32> to vector<16xf32>
      %228 = vector.shape_cast %227 : vector<16xf32> to vector<16x1xf32>
      %229 = arith.truncf %226 : vector<16x16xf32> to vector<16x16xbf16>
      %230 = arith.truncf %217 : vector<16x32xf32> to vector<16x32xbf16>
      %cst_143 = arith.constant dense<0.000000e+00> : vector<16x32xf32>
      %231 = tpu.matmul %229, %230, %cst_143 {dimension_numbers = #tpu.dot_dimension_numbers<[1], [0], [0], [1], [0, 0, 1, 1], [], []>} : vector<16x16xbf16>, vector<16x32xbf16>, vector<16x32xf32> -> vector<16x32xf32>
      %232 = tpu.reciprocal %228 {approx = true} : vector<16x1xf32> -> vector<16x1xf32>
      %233 = vector.broadcast %232 : vector<16x1xf32> to vector<16x32xf32>
      %234 = arith.mulf %231, %233 : vector<16x32xf32>
      %235 = arith.truncf %234 : vector<16x32xf32> to vector<16x32xbf16>
      %c3_144 = arith.constant 3 : index
      %c0_145 = arith.constant 0 : index
      %c0_146 = arith.constant 0 : index
      %236 = vector.load %arg11[%c3_144, %c0_145, %c0_146] : memref<4x32x128xbf16, #tpu.memory_space<vmem>>, vector<1x32x128xbf16>
      %237 = vector.shape_cast %236 : vector<1x32x128xbf16> to vector<32x128xbf16>
      %cst_147 = arith.constant dense<0.000000e+00> : vector<16x128xf32>
      %238 = tpu.matmul %235, %237, %cst_147 {dimension_numbers = #tpu.dot_dimension_numbers<[1], [0], [0], [1], [0, 0, 1, 1], [], []>} : vector<16x32xbf16>, vector<32x128xbf16>, vector<16x128xf32> -> vector<16x128xf32>
      %239 = arith.addf %194, %238 : vector<16x128xf32>
      %240 = arith.addf %27, %239 : vector<16x128xf32>
      %c0_148 = arith.constant 0 : index
      %c0_149 = arith.constant 0 : index
      %241 = vector.load %arg12[%c0_148, %c0_149] : memref<1x128xf32, #tpu.memory_space<vmem>>, vector<1x128xf32>
      %242 = vector.broadcast %241 : vector<1x128xf32> to vector<16x128xf32>
      %243 = arith.addf %240, %242 : vector<16x128xf32>
      %c0_150 = arith.constant 0 : index
      %c0_151 = arith.constant 0 : index
      %244 = vector.load %arg22[%c0_150, %c0_151] : memref<16x128xf32, #tpu.memory_space<vmem>>, vector<16x128xf32>
      tpu.vector_store %arg22[%c0_150, %c0_151], %243 {strides = array<i32>} : memref<16x128xf32, #tpu.memory_space<vmem>>, vector<16x128xf32>,
      %c0_152 = arith.constant 0 : index
      %c0_153 = arith.constant 0 : index
      %245 = vector.load %arg13[%c0_152, %c0_153] : memref<1x128xf32, #tpu.memory_space<vmem>>, vector<1x128xf32>
      %c0_154 = arith.constant 0 : index
      %c0_155 = arith.constant 0 : index
      %246 = vector.load %arg14[%c0_154, %c0_155] : memref<1x128xf32, #tpu.memory_space<vmem>>, vector<1x128xf32>
      %cst_156 = arith.constant dense<0.000000e+00> : vector<16xf32>
      %247 = vector.multi_reduction <add>, %243, %cst_156 [1] : vector<16x128xf32> to vector<16xf32>
      %248 = vector.shape_cast %247 : vector<16xf32> to vector<16x1xf32>
      %cst_157 = arith.constant 1.280000e+02 : f32
      %249 = vector.broadcast %cst_157 : f32 to vector<16x1xf32>
      %250 = arith.divf %248, %249 : vector<16x1xf32>
      %251 = vector.broadcast %250 : vector<16x1xf32> to vector<16x128xf32>
      %252 = arith.subf %243, %251 : vector<16x128xf32>
      %253 = arith.mulf %252, %252 : vector<16x128xf32>
      %cst_158 = arith.constant dense<0.000000e+00> : vector<16xf32>
      %254 = vector.multi_reduction <add>, %253, %cst_158 [1] : vector<16x128xf32> to vector<16xf32>
      %255 = vector.shape_cast %254 : vector<16xf32> to vector<16x1xf32>
      %cst_159 = arith.constant 1.280000e+02 : f32
      %256 = vector.broadcast %cst_159 : f32 to vector<16x1xf32>
      %257 = arith.divf %255, %256 : vector<16x1xf32>
      %258 = vector.broadcast %250 : vector<16x1xf32> to vector<16x128xf32>
      %259 = arith.subf %243, %258 : vector<16x128xf32>
      %cst_160 = arith.constant 9.99999974E-6 : f32
      %260 = vector.broadcast %cst_160 : f32 to vector<16x1xf32>
      %261 = arith.addf %257, %260 : vector<16x1xf32>
      %262 = math.rsqrt %261 : vector<16x1xf32>
      %263 = vector.broadcast %262 : vector<16x1xf32> to vector<16x128xf32>
      %264 = arith.mulf %259, %263 : vector<16x128xf32>
      %265 = vector.broadcast %245 : vector<1x128xf32> to vector<16x128xf32>
      %266 = arith.mulf %264, %265 : vector<16x128xf32>
      %267 = vector.broadcast %246 : vector<1x128xf32> to vector<16x128xf32>
      %268 = arith.addf %266, %267 : vector<16x128xf32>
      %269 = arith.truncf %268 : vector<16x128xf32> to vector<16x128xbf16>
      %c0_161 = arith.constant 0 : index
      %c0_162 = arith.constant 0 : index
      %270 = vector.load %arg23[%c0_161, %c0_162] : memref<16x128xbf16, #tpu.memory_space<vmem>>, vector<16x128xbf16>
      tpu.vector_store %arg23[%c0_161, %c0_162], %269 {strides = array<i32>} : memref<16x128xbf16, #tpu.memory_space<vmem>>, vector<16x128xbf16>,
      %cst_163 = arith.constant 0.000000e+00 : f32
      %271 = vector.broadcast %cst_163 : f32 to vector<16x128xf32>
      %c0_164 = arith.constant 0 : index
      %c0_165 = arith.constant 0 : index
      %272 = vector.load %arg24[%c0_164, %c0_165] : memref<16x128xf32, #tpu.memory_space<vmem>>, vector<16x128xf32>
      tpu.vector_store %arg24[%c0_164, %c0_165], %271 {strides = array<i32>} : memref<16x128xf32, #tpu.memory_space<vmem>>, vector<16x128xf32>,
    } else {
    }
    %c0 = arith.constant 0 : index
    %c0_1 = arith.constant 0 : index
    %3 = vector.load %arg23[%c0, %c0_1] : memref<16x128xbf16, #tpu.memory_space<vmem>>, vector<16x128xbf16>
    %c0_2 = arith.constant 0 : index
    %c0_3 = arith.constant 0 : index
    %4 = vector.load %arg15[%c0_2, %c0_3] : memref<128x128xbf16, #tpu.memory_space<vmem>>, vector<128x128xbf16>
    %cst = arith.constant dense<0.000000e+00> : vector<16x128xf32>
    %5 = tpu.matmul %3, %4, %cst {dimension_numbers = #tpu.dot_dimension_numbers<[1], [0], [0], [1], [0, 0, 1, 1], [], []>} : vector<16x128xbf16>, vector<128x128xbf16>, vector<16x128xf32> -> vector<16x128xf32>
    %c0_4 = arith.constant 0 : index
    %c0_5 = arith.constant 0 : index
    %6 = vector.load %arg16[%c0_4, %c0_5] : memref<1x128xf32, #tpu.memory_space<vmem>>, vector<1x128xf32>
    %7 = vector.broadcast %6 : vector<1x128xf32> to vector<16x128xf32>
    %8 = arith.addf %5, %7 : vector<16x128xf32>
    %cst_6 = arith.constant 1.702000e+00 : f32
    %9 = vector.broadcast %cst_6 : f32 to vector<16x128xf32>
    %10 = arith.mulf %9, %8 : vector<16x128xf32>
    %11 = arith.negf %10 : vector<16x128xf32>
    %12 = math.exp %11 : vector<16x128xf32>
    %cst_7 = arith.constant 1.000000e+00 : f32
    %13 = vector.broadcast %cst_7 : f32 to vector<16x128xf32>
    %14 = arith.addf %13, %12 : vector<16x128xf32>
    %15 = arith.divf %13, %14 : vector<16x128xf32>
    %16 = arith.mulf %8, %15 : vector<16x128xf32>
    %c0_8 = arith.constant 0 : index
    %c0_9 = arith.constant 0 : index
    %17 = vector.load %arg24[%c0_8, %c0_9] : memref<16x128xf32, #tpu.memory_space<vmem>>, vector<16x128xf32>
    %18 = arith.truncf %16 : vector<16x128xf32> to vector<16x128xbf16>
    %c0_10 = arith.constant 0 : index
    %c0_11 = arith.constant 0 : index
    %19 = vector.load %arg17[%c0_10, %c0_11] : memref<128x128xbf16, #tpu.memory_space<vmem>>, vector<128x128xbf16>
    %cst_12 = arith.constant dense<0.000000e+00> : vector<16x128xf32>
    %20 = tpu.matmul %18, %19, %cst_12 {dimension_numbers = #tpu.dot_dimension_numbers<[1], [0], [0], [1], [0, 0, 1, 1], [], []>} : vector<16x128xbf16>, vector<128x128xbf16>, vector<16x128xf32> -> vector<16x128xf32>
    %21 = arith.addf %17, %20 : vector<16x128xf32>
    %c0_13 = arith.constant 0 : index
    %c0_14 = arith.constant 0 : index
    %22 = vector.load %arg24[%c0_13, %c0_14] : memref<16x128xf32, #tpu.memory_space<vmem>>, vector<16x128xf32>
    tpu.vector_store %arg24[%c0_13, %c0_14], %21 {strides = array<i32>} : memref<16x128xf32, #tpu.memory_space<vmem>>, vector<16x128xf32>,
    %c3_i32 = arith.constant 3 : i32
    %23 = arith.cmpi eq, %arg1, %c3_i32 : i32
    %24 = arith.extui %23 : i1 to i32
    %c0_i32_15 = arith.constant 0 : i32
    %25 = arith.cmpi ne, %24, %c0_i32_15 : i32
    scf.if %25 {
      %c0_16 = arith.constant 0 : index
      %c0_17 = arith.constant 0 : index
      %26 = vector.load %arg22[%c0_16, %c0_17] : memref<16x128xf32, #tpu.memory_space<vmem>>, vector<16x128xf32>
      %c0_18 = arith.constant 0 : index
      %c0_19 = arith.constant 0 : index
      %27 = vector.load %arg24[%c0_18, %c0_19] : memref<16x128xf32, #tpu.memory_space<vmem>>, vector<16x128xf32>
      %28 = arith.addf %26, %27 : vector<16x128xf32>
      %c0_20 = arith.constant 0 : index
      %c0_21 = arith.constant 0 : index
      %29 = vector.load %arg18[%c0_20, %c0_21] : memref<1x128xf32, #tpu.memory_space<vmem>>, vector<1x128xf32>
      %30 = vector.broadcast %29 : vector<1x128xf32> to vector<16x128xf32>
      %31 = arith.addf %28, %30 : vector<16x128xf32>
      %c0_22 = arith.constant 0 : index
      %c0_23 = arith.constant 0 : index
      %32 = vector.load %arg19[%c0_22, %c0_23] : memref<1x128xf32, #tpu.memory_space<vmem>>, vector<1x128xf32>
      %c0_24 = arith.constant 0 : index
      %c0_25 = arith.constant 0 : index
      %33 = vector.load %arg20[%c0_24, %c0_25] : memref<1x128xf32, #tpu.memory_space<vmem>>, vector<1x128xf32>
      %cst_26 = arith.constant dense<0.000000e+00> : vector<16xf32>
      %34 = vector.multi_reduction <add>, %31, %cst_26 [1] : vector<16x128xf32> to vector<16xf32>
      %35 = vector.shape_cast %34 : vector<16xf32> to vector<16x1xf32>
      %cst_27 = arith.constant 1.280000e+02 : f32
      %36 = vector.broadcast %cst_27 : f32 to vector<16x1xf32>
      %37 = arith.divf %35, %36 : vector<16x1xf32>
      %38 = vector.broadcast %37 : vector<16x1xf32> to vector<16x128xf32>
      %39 = arith.subf %31, %38 : vector<16x128xf32>
      %40 = arith.mulf %39, %39 : vector<16x128xf32>
      %cst_28 = arith.constant dense<0.000000e+00> : vector<16xf32>
      %41 = vector.multi_reduction <add>, %40, %cst_28 [1] : vector<16x128xf32> to vector<16xf32>
      %42 = vector.shape_cast %41 : vector<16xf32> to vector<16x1xf32>
      %cst_29 = arith.constant 1.280000e+02 : f32
      %43 = vector.broadcast %cst_29 : f32 to vector<16x1xf32>
      %44 = arith.divf %42, %43 : vector<16x1xf32>
      %45 = vector.broadcast %37 : vector<16x1xf32> to vector<16x128xf32>
      %46 = arith.subf %31, %45 : vector<16x128xf32>
      %cst_30 = arith.constant 9.99999974E-6 : f32
      %47 = vector.broadcast %cst_30 : f32 to vector<16x1xf32>
      %48 = arith.addf %44, %47 : vector<16x1xf32>
      %49 = math.rsqrt %48 : vector<16x1xf32>
      %50 = vector.broadcast %49 : vector<16x1xf32> to vector<16x128xf32>
      %51 = arith.mulf %46, %50 : vector<16x128xf32>
      %52 = vector.broadcast %32 : vector<1x128xf32> to vector<16x128xf32>
      %53 = arith.mulf %51, %52 : vector<16x128xf32>
      %54 = vector.broadcast %33 : vector<1x128xf32> to vector<16x128xf32>
      %55 = arith.addf %53, %54 : vector<16x128xf32>
      %c0_31 = arith.constant 0 : index
      %c0_32 = arith.constant 0 : index
      %c0_33 = arith.constant 0 : index
      %56 = vector.load %arg21[%c0_31, %c0_32, %c0_33] : memref<1x16x128xf32, #tpu.memory_space<vmem>>, vector<1x16x128xf32>
      %57 = vector.shape_cast %56 : vector<1x16x128xf32> to vector<16x128xf32>
      %58 = vector.shape_cast %55 : vector<16x128xf32> to vector<1x16x128xf32>
      tpu.vector_store %arg21[%c0_31, %c0_32, %c0_33], %58 {strides = array<i32>} : memref<1x16x128xf32, #tpu.memory_space<vmem>>, vector<1x16x128xf32>,
    } else {
    }
    return
  }
  func.func @transform_0(%arg0: i32, %arg1: i32) -> (i32, i32, i32) {
    %c0_i32 = arith.constant 0 : i32
    %c0_i32_0 = arith.constant 0 : i32
    %c0_i32_1 = arith.constant 0 : i32
    return %arg0, %c0_i32, %c0_i32_0 : i32, i32, i32
  }
  func.func @transform_1(%arg0: i32, %arg1: i32) -> (i32, i32) {
    %c0_i32 = arith.constant 0 : i32
    %c0_i32_0 = arith.constant 0 : i32
    %c0_i32_1 = arith.constant 0 : i32
    return %c0_i32, %c0_i32_0 : i32, i32
  }
  func.func @transform_2(%arg0: i32, %arg1: i32) -> (i32, i32) {
    %c0_i32 = arith.constant 0 : i32
    %c0_i32_0 = arith.constant 0 : i32
    %c0_i32_1 = arith.constant 0 : i32
    return %c0_i32, %c0_i32_0 : i32, i32
  }
  func.func @transform_3(%arg0: i32, %arg1: i32) -> (i32, i32, i32) {
    %c0_i32 = arith.constant 0 : i32
    %c0_i32_0 = arith.constant 0 : i32
    %c0_i32_1 = arith.constant 0 : i32
    %c0_i32_2 = arith.constant 0 : i32
    return %c0_i32, %c0_i32_0, %c0_i32_1 : i32, i32, i32
  }
  func.func @transform_4(%arg0: i32, %arg1: i32) -> (i32, i32, i32) {
    %c0_i32 = arith.constant 0 : i32
    %c0_i32_0 = arith.constant 0 : i32
    %c0_i32_1 = arith.constant 0 : i32
    %c0_i32_2 = arith.constant 0 : i32
    return %c0_i32, %c0_i32_0, %c0_i32_1 : i32, i32, i32
  }
  func.func @transform_5(%arg0: i32, %arg1: i32) -> (i32, i32, i32) {
    %c0_i32 = arith.constant 0 : i32
    %c0_i32_0 = arith.constant 0 : i32
    %c0_i32_1 = arith.constant 0 : i32
    %c0_i32_2 = arith.constant 0 : i32
    return %c0_i32, %c0_i32_0, %c0_i32_1 : i32, i32, i32
  }
  func.func @transform_6(%arg0: i32, %arg1: i32) -> (i32, i32, i32) {
    %c0_i32 = arith.constant 0 : i32
    %c0_i32_0 = arith.constant 0 : i32
    %c0_i32_1 = arith.constant 0 : i32
    %c0_i32_2 = arith.constant 0 : i32
    return %c0_i32, %c0_i32_0, %c0_i32_1 : i32, i32, i32
  }
  func.func @transform_7(%arg0: i32, %arg1: i32) -> (i32, i32, i32) {
    %c0_i32 = arith.constant 0 : i32
    %c0_i32_0 = arith.constant 0 : i32
    %c0_i32_1 = arith.constant 0 : i32
    %c0_i32_2 = arith.constant 0 : i32
    return %c0_i32, %c0_i32_0, %c0_i32_1 : i32, i32, i32
  }
  func.func @transform_8(%arg0: i32, %arg1: i32) -> (i32, i32, i32) {
    %c0_i32 = arith.constant 0 : i32
    %c0_i32_0 = arith.constant 0 : i32
    %c0_i32_1 = arith.constant 0 : i32
    %c0_i32_2 = arith.constant 0 : i32
    return %c0_i32, %c0_i32_0, %c0_i32_1 : i32, i32, i32
  }
  func.func @transform_9(%arg0: i32, %arg1: i32) -> (i32, i32, i32) {
    %c0_i32 = arith.constant 0 : i32
    %c0_i32_0 = arith.constant 0 : i32
    %c0_i32_1 = arith.constant 0 : i32
    %c0_i32_2 = arith.constant 0 : i32
    return %c0_i32, %c0_i32_0, %c0_i32_1 : i32, i32, i32
  }
  func.func @transform_10(%arg0: i32, %arg1: i32) -> (i32, i32) {
    %c0_i32 = arith.constant 0 : i32
    %c0_i32_0 = arith.constant 0 : i32
    %c0_i32_1 = arith.constant 0 : i32
    return %c0_i32, %c0_i32_0 : i32, i32
  }
  func.func @transform_11(%arg0: i32, %arg1: i32) -> (i32, i32) {
    %c0_i32 = arith.constant 0 : i32
    %c0_i32_0 = arith.constant 0 : i32
    %c0_i32_1 = arith.constant 0 : i32
    return %c0_i32, %c0_i32_0 : i32, i32
  }
  func.func @transform_12(%arg0: i32, %arg1: i32) -> (i32, i32) {
    %c0_i32 = arith.constant 0 : i32
    %c0_i32_0 = arith.constant 0 : i32
    %c0_i32_1 = arith.constant 0 : i32
    return %c0_i32, %c0_i32_0 : i32, i32
  }
  func.func @transform_13(%arg0: i32, %arg1: i32) -> (i32, i32) {
    %c0_i32 = arith.constant 0 : i32
    %c0_i32_0 = arith.constant 0 : i32
    return %c0_i32, %arg1 : i32, i32
  }
  func.func @transform_14(%arg0: i32, %arg1: i32) -> (i32, i32) {
    %c0_i32 = arith.constant 0 : i32
    %c0_i32_0 = arith.constant 0 : i32
    return %c0_i32, %arg1 : i32, i32
  }
  func.func @transform_15(%arg0: i32, %arg1: i32) -> (i32, i32) {
    %c0_i32 = arith.constant 0 : i32
    %c0_i32_0 = arith.constant 0 : i32
    return %arg1, %c0_i32 : i32, i32
  }
  func.func @transform_16(%arg0: i32, %arg1: i32) -> (i32, i32) {
    %c0_i32 = arith.constant 0 : i32
    %c0_i32_0 = arith.constant 0 : i32
    %c0_i32_1 = arith.constant 0 : i32
    return %c0_i32, %c0_i32_0 : i32, i32
  }
  func.func @transform_17(%arg0: i32, %arg1: i32) -> (i32, i32) {
    %c0_i32 = arith.constant 0 : i32
    %c0_i32_0 = arith.constant 0 : i32
    %c0_i32_1 = arith.constant 0 : i32
    return %c0_i32, %c0_i32_0 : i32, i32
  }
  func.func @transform_18(%arg0: i32, %arg1: i32) -> (i32, i32) {
    %c0_i32 = arith.constant 0 : i32
    %c0_i32_0 = arith.constant 0 : i32
    %c0_i32_1 = arith.constant 0 : i32
    return %c0_i32, %c0_i32_0 : i32, i32
  }
  func.func @transform_19(%arg0: i32, %arg1: i32) -> (i32, i32, i32) {
    %c0_i32 = arith.constant 0 : i32
    %c0_i32_0 = arith.constant 0 : i32
    %c0_i32_1 = arith.constant 0 : i32
    return %arg0, %c0_i32, %c0_i32_0 : i32, i32, i32
  }
}

</mosaic_0001>

<llo_original>
// kernel: clip_forward.3
$region0: #{clip_forward.3}
  #allocation0 [shape = 'u32[]', space=smem, size = 0x4, offset = 0x4, fixed_abs, tag = 'smem constant byte address 0x4 - core index']
  #allocation1 [shape = 'u32[144,128]{1,0:T(1,128)}', space=vmem, size = 0x12000, scoped, tag = 'internal scratch']
  #allocation2 [shape = 'f32[16,128]{1,0:T(8,128)}', space=vmem, size = 0x2000, scoped, tag = 'scratch operand']
  #allocation3 [shape = 'bf16[16,128]{1,0:T(16,128)(2,1)}', space=vmem, size = 0x1000, scoped, tag = 'scratch operand']
  #allocation4 [shape = 'f32[16,128]{1,0:T(8,128)}', space=vmem, size = 0x2000, scoped, tag = 'scratch operand']
  %s0 = inlined_call_operand.vmem [shape: f32[2,16,128], index: 0, kind: input, shape index: {}]
  %s1 = inlined_call_operand.vmem [shape: f32[1,128], index: 1, kind: input, shape index: {}]
  %s2 = inlined_call_operand.vmem [shape: f32[1,128], index: 2, kind: input, shape index: {}]
  %s3 = inlined_call_operand.vmem [shape: bf16[4,32,128], index: 3, kind: input, shape index: {}]
  %s4 = inlined_call_operand.vmem [shape: bf16[4,32,128], index: 4, kind: input, shape index: {}]
  %s5 = inlined_call_operand.vmem [shape: bf16[4,32,128], index: 5, kind: input, shape index: {}]
  %s6 = inlined_call_operand.vmem [shape: f32[4,1,32], index: 6, kind: input, shape index: {}]
  %s7 = inlined_call_operand.vmem [shape: f32[4,1,32], index: 7, kind: input, shape index: {}]
  %s8 = inlined_call_operand.vmem [shape: f32[4,1,32], index: 8, kind: input, shape index: {}]
  %s9 = inlined_call_operand.vmem [shape: bf16[4,32,128], index: 9, kind: input, shape index: {}]
  %s10 = inlined_call_operand.vmem [shape: f32[1,128], index: 10, kind: input, shape index: {}]
  %s11 = inlined_call_operand.vmem [shape: f32[1,128], index: 11, kind: input, shape index: {}]
  %s12 = inlined_call_operand.vmem [shape: f32[1,128], index: 12, kind: input, shape index: {}]
  %s13 = inlined_call_operand.vmem [shape: bf16[128,512], index: 13, kind: input, shape index: {}]
  %s14 = inlined_call_operand.vmem [shape: f32[1,512], index: 14, kind: input, shape index: {}]
  %s15 = inlined_call_operand.vmem [shape: bf16[512,128], index: 15, kind: input, shape index: {}]
  %s16 = inlined_call_operand.vmem [shape: f32[1,128], index: 16, kind: input, shape index: {}]
  %s17 = inlined_call_operand.vmem [shape: f32[1,128], index: 17, kind: input, shape index: {}]
  %s18 = inlined_call_operand.vmem [shape: f32[1,128], index: 18, kind: input, shape index: {}]
  %s19 = inlined_call_operand.vmem [shape: f32[2,16,128], index: 19, kind: output, shape index: {}]
  %s20 = sld [smem:[#allocation0]]
  $region158: #{clip_forward.3} parent=0
    _
  %s22 = ssub.s32 1, %s20
  %s23 = scalar_select 0, %s22, %s20
  $region1: #{clip_forward.3} parent=0
    #allocation5 [shape = 'u8[65536]{0}', space=vmem, size = 0x10000, scoped, tag = 'input window, operand 13']
    loop: start=0, step=1, limit=10
    $region2: #{clip_forward.3} parent=1 // loop_pre_header
      _
    $region3: #{clip_forward.3} parent=1 // loop_header
      %s25 = sphi 0, %s29
      %p26 = scmp.ge.s32.totalorder %s25, 10
      %s32 = sphi 0, %s44
      %s33 = sphi 0, %s40
      %s34 = sphi 0, %s32
      %s35 = sphi 0, %s33
      %s36 = sphi 0, %s34
      %s37 = sphi 0, %s35
      %s47 = sphi 0, %s49
      %s50 = sphi 0, %s47
      %s51 = sphi 0, %s50
      %s67 = sphi 0, %s51
      %s71 = sphi 0, %s71
      %s73 = sphi 0, %s71
      %s74 = sphi 0, %s73
      %s88 = sphi 0, %s74
      %s92 = sphi 0, %s92
      %s94 = sphi 0, %s92
      %s95 = sphi 0, %s94
      %s109 = sphi 0, %s95
      %s113 = sphi 0, %s113
      %s115 = sphi 0, %s113
      %s116 = sphi 0, %s115
      %s130 = sphi 0, %s116
      %s134 = sphi 0, %s134
      %s136 = sphi 0, %s134
      %s137 = sphi 0, %s136
      %s151 = sphi 0, %s137
      %s155 = sphi 0, %s155
      %s157 = sphi 0, %s155
      %s158 = sphi 0, %s157
      %s172 = sphi 0, %s158
      %s176 = sphi 0, %s176
      %s178 = sphi 0, %s176
      %s179 = sphi 0, %s178
      %s193 = sphi 0, %s179
      %s197 = sphi 0, %s197
      %s199 = sphi 0, %s197
      %s200 = sphi 0, %s199
      %s214 = sphi 0, %s200
      %s218 = sphi 0, %s218
      %s220 = sphi 0, %s218
      %s221 = sphi 0, %s220
      %s235 = sphi 0, %s221
      %s239 = sphi 0, %s239
      %s241 = sphi 0, %s239
      %s242 = sphi 0, %s241
      %s256 = sphi 0, %s242
      %s260 = sphi 0, %s260
      %s262 = sphi 0, %s260
      %s263 = sphi 0, %s262
      %s277 = sphi 0, %s263
      %s281 = sphi 0, %s281
      %s283 = sphi 0, %s281
      %s284 = sphi 0, %s283
      %s298 = sphi 0, %s284
      %s302 = sphi 0, %s302
      %s304 = sphi 0, %s302
      %s305 = sphi 0, %s304
      %s319 = sphi 0, %s305
      %s325 = sphi 0, %s327
      %s328 = sphi 0, %s325
      %s329 = sphi 0, %s328
      %s345 = sphi 0, %s329
      %s351 = sphi 0, %s353
      %s354 = sphi 0, %s351
      %s355 = sphi 0, %s354
      %s371 = sphi 0, %s355
      %s377 = sphi 0, %s379
      %s380 = sphi 0, %s377
      %s381 = sphi 0, %s380
      %s397 = sphi 0, %s381
      %s401 = sphi 0, %s401
      %s403 = sphi 0, %s401
      %s404 = sphi 0, %s403
      %s418 = sphi 0, %s404
      %s422 = sphi 0, %s422
      %s424 = sphi 0, %s422
      %s425 = sphi 0, %s424
      %s439 = sphi 0, %s425
      %s443 = sphi 0, %s443
      %s445 = sphi 0, %s443
      %s446 = sphi 0, %s445
      %s460 = sphi 0, %s446
      %s466 = sphi 0, %s468
      %s469 = sphi 0, %s466
      %s470 = sphi 0, %s469
      %s486 = sphi 0, %s470
    $region4: #{clip_forward.3} parent=1 // loop_header_branch
      %28 = sbr.rel (%p26) target = $region8
    $region5: #{clip_forward.3} parent=1 // loop_body
      %s30 = ssub.s32 %s25, 1
      %s31 = ssub.s32 %s25, 2
      %s38 = sadd.s32 1, %s33
      %p39 = scmp.ge.s32.totalorder %s38, 4
      %s40 = scalar_select %p39, 0, %s38
      %s41 = sadd.s32 1, %s32
      %s42 = scalar_select %p39, %s41, %s32
      %p43 = scmp.ge.s32.totalorder %s42, 2
      %s44 = scalar_select %p43, 0, %s42
      %s45 = ssub.s32 %s32, %s44
      %p46 = scmp.eq.s32.totalorder %s45, 0
      %s48 = sadd.s32 %s47, 1
      %s49 = scalar_select %p46, %s47, %s48
      %p52 = pneg %p46
      %p53 = scmp.eq.s32.totalorder %s25, 7
      %p54 = por %p52, %p53
      %p55 = scmp.ne.s32.totalorder %s47, %s50
      %p56 = scmp.eq.s32.totalorder %s25, 0
      %p57 = por %p55, %p56
      %p58 = scmp.ne.s32.totalorder %s47, %s50
      %p59 = scmp.eq.s32.totalorder %s30, 7
      %p60 = por %p58, %p59
      %p61 = scmp.ne.s32.totalorder %s50, %s51
      %p62 = scmp.eq.s32.totalorder %s30, 0
      %p63 = por %p61, %p62
      %p64 = scmp.ne.s32.totalorder %s50, %s51
      %p65 = scmp.eq.s32.totalorder %s31, 7
      %p66 = por %p64, %p65
      %p68 = scmp.ne.s32.totalorder %s51, %s67
      %p69 = scmp.eq.s32.totalorder %s31, 0
      %p70 = por %p68, %p69
      %s72 = sadd.s32 %s71, 1
      %p75 = scmp.eq.s32.totalorder %s25, 7
      %p76 = scmp.ne.s32.totalorder %s71, %s73
      %p77 = scmp.eq.s32.totalorder %s25, 0
      %p78 = por %p76, %p77
      %p79 = scmp.ne.s32.totalorder %s71, %s73
      %p80 = scmp.eq.s32.totalorder %s30, 7
      %p81 = por %p79, %p80
      %p82 = scmp.ne.s32.totalorder %s73, %s74
      %p83 = scmp.eq.s32.totalorder %s30, 0
      %p84 = por %p82, %p83
      %p85 = scmp.ne.s32.totalorder %s73, %s74
      %p86 = scmp.eq.s32.totalorder %s31, 7
      %p87 = por %p85, %p86
      %p89 = scmp.ne.s32.totalorder %s74, %s88
      %p90 = scmp.eq.s32.totalorder %s31, 0
      %p91 = por %p89, %p90
      %s93 = sadd.s32 %s92, 1
      %p96 = scmp.eq.s32.totalorder %s25, 7
      %p97 = scmp.ne.s32.totalorder %s92, %s94
      %p98 = scmp.eq.s32.totalorder %s25, 0
      %p99 = por %p97, %p98
      %p100 = scmp.ne.s32.totalorder %s92, %s94
      %p101 = scmp.eq.s32.totalorder %s30, 7
      %p102 = por %p100, %p101
      %p103 = scmp.ne.s32.totalorder %s94, %s95
      %p104 = scmp.eq.s32.totalorder %s30, 0
      %p105 = por %p103, %p104
      %p106 = scmp.ne.s32.totalorder %s94, %s95
      %p107 = scmp.eq.s32.totalorder %s31, 7
      %p108 = por %p106, %p107
      %p110 = scmp.ne.s32.totalorder %s95, %s109
      %p111 = scmp.eq.s32.totalorder %s31, 0
      %p112 = por %p110, %p111
      %s114 = sadd.s32 %s113, 1
      %p117 = scmp.eq.s32.totalorder %s25, 7
      %p118 = scmp.ne.s32.totalorder %s113, %s115
      %p119 = scmp.eq.s32.totalorder %s25, 0
      %p120 = por %p118, %p119
      %p121 = scmp.ne.s32.totalorder %s113, %s115
      %p122 = scmp.eq.s32.totalorder %s30, 7
      %p123 = por %p121, %p122
      %p124 = scmp.ne.s32.totalorder %s115, %s116
      %p125 = scmp.eq.s32.totalorder %s30, 0
      %p126 = por %p124, %p125
      %p127 = scmp.ne.s32.totalorder %s115, %s116
      %p128 = scmp.eq.s32.totalorder %s31, 7
      %p129 = por %p127, %p128
      %p131 = scmp.ne.s32.totalorder %s116, %s130
      %p132 = scmp.eq.s32.totalorder %s31, 0
      %p133 = por %p131, %p132
      %s135 = sadd.s32 %s134, 1
      %p138 = scmp.eq.s32.totalorder %s25, 7
      %p139 = scmp.ne.s32.totalorder %s134, %s136
      %p140 = scmp.eq.s32.totalorder %s25, 0
      %p141 = por %p139, %p140
      %p142 = scmp.ne.s32.totalorder %s134, %s136
      %p143 = scmp.eq.s32.totalorder %s30, 7
      %p144 = por %p142, %p143
      %p145 = scmp.ne.s32.totalorder %s136, %s137
      %p146 = scmp.eq.s32.totalorder %s30, 0
      %p147 = por %p145, %p146
      %p148 = scmp.ne.s32.totalorder %s136, %s137
      %p149 = scmp.eq.s32.totalorder %s31, 7
      %p150 = por %p148, %p149
      %p152 = scmp.ne.s32.totalorder %s137, %s151
      %p153 = scmp.eq.s32.totalorder %s31, 0
      %p154 = por %p152, %p153
      %s156 = sadd.s32 %s155, 1
      %p159 = scmp.eq.s32.totalorder %s25, 7
      %p160 = scmp.ne.s32.totalorder %s155, %s157
      %p161 = scmp.eq.s32.totalorder %s25, 0
      %p162 = por %p160, %p161
      %p163 = scmp.ne.s32.totalorder %s155, %s157
      %p164 = scmp.eq.s32.totalorder %s30, 7
      %p165 = por %p163, %p164
      %p166 = scmp.ne.s32.totalorder %s157, %s158
      %p167 = scmp.eq.s32.totalorder %s30, 0
      %p168 = por %p166, %p167
      %p169 = scmp.ne.s32.totalorder %s157, %s158
      %p170 = scmp.eq.s32.totalorder %s31, 7
      %p171 = por %p169, %p170
      %p173 = scmp.ne.s32.totalorder %s158, %s172
      %p174 = scmp.eq.s32.totalorder %s31, 0
      %p175 = por %p173, %p174
      %s177 = sadd.s32 %s176, 1
      %p180 = scmp.eq.s32.totalorder %s25, 7
      %p181 = scmp.ne.s32.totalorder %s176, %s178
      %p182 = scmp.eq.s32.totalorder %s25, 0
      %p183 = por %p181, %p182
      %p184 = scmp.ne.s32.totalorder %s176, %s178
      %p185 = scmp.eq.s32.totalorder %s30, 7
      %p186 = por %p184, %p185
      %p187 = scmp.ne.s32.totalorder %s178, %s179
      %p188 = scmp.eq.s32.totalorder %s30, 0
      %p189 = por %p187, %p188
      %p190 = scmp.ne.s32.totalorder %s178, %s179
      %p191 = scmp.eq.s32.totalorder %s31, 7
      %p192 = por %p190, %p191
      %p194 = scmp.ne.s32.totalorder %s179, %s193
      %p195 = scmp.eq.s32.totalorder %s31, 0
      %p196 = por %p194, %p195
      %s198 = sadd.s32 %s197, 1
      %p201 = scmp.eq.s32.totalorder %s25, 7
      %p202 = scmp.ne.s32.totalorder %s197, %s199
      %p203 = scmp.eq.s32.totalorder %s25, 0
      %p204 = por %p202, %p203
      %p205 = scmp.ne.s32.totalorder %s197, %s199
      %p206 = scmp.eq.s32.totalorder %s30, 7
      %p207 = por %p205, %p206
      %p208 = scmp.ne.s32.totalorder %s199, %s200
      %p209 = scmp.eq.s32.totalorder %s30, 0
      %p210 = por %p208, %p209
      %p211 = scmp.ne.s32.totalorder %s199, %s200
      %p212 = scmp.eq.s32.totalorder %s31, 7
      %p213 = por %p211, %p212
      %p215 = scmp.ne.s32.totalorder %s200, %s214
      %p216 = scmp.eq.s32.totalorder %s31, 0
      %p217 = por %p215, %p216
      %s219 = sadd.s32 %s218, 1
      %p222 = scmp.eq.s32.totalorder %s25, 7
      %p223 = scmp.ne.s32.totalorder %s218, %s220
      %p224 = scmp.eq.s32.totalorder %s25, 0
      %p225 = por %p223, %p224
      %p226 = scmp.ne.s32.totalorder %s218, %s220
      %p227 = scmp.eq.s32.totalorder %s30, 7
      %p228 = por %p226, %p227
      %p229 = scmp.ne.s32.totalorder %s220, %s221
      %p230 = scmp.eq.s32.totalorder %s30, 0
      %p231 = por %p229, %p230
      %p232 = scmp.ne.s32.totalorder %s220, %s221
      %p233 = scmp.eq.s32.totalorder %s31, 7
      %p234 = por %p232, %p233
      %p236 = scmp.ne.s32.totalorder %s221, %s235
      %p237 = scmp.eq.s32.totalorder %s31, 0
      %p238 = por %p236, %p237
      %s240 = sadd.s32 %s239, 1
      %p243 = scmp.eq.s32.totalorder %s25, 7
      %p244 = scmp.ne.s32.totalorder %s239, %s241
      %p245 = scmp.eq.s32.totalorder %s25, 0
      %p246 = por %p244, %p245
      %p247 = scmp.ne.s32.totalorder %s239, %s241
      %p248 = scmp.eq.s32.totalorder %s30, 7
      %p249 = por %p247, %p248
      %p250 = scmp.ne.s32.totalorder %s241, %s242
      %p251 = scmp.eq.s32.totalorder %s30, 0
      %p252 = por %p250, %p251
      %p253 = scmp.ne.s32.totalorder %s241, %s242
      %p254 = scmp.eq.s32.totalorder %s31, 7
      %p255 = por %p253, %p254
      %p257 = scmp.ne.s32.totalorder %s242, %s256
      %p258 = scmp.eq.s32.totalorder %s31, 0
      %p259 = por %p257, %p258
      %s261 = sadd.s32 %s260, 1
      %p264 = scmp.eq.s32.totalorder %s25, 7
      %p265 = scmp.ne.s32.totalorder %s260, %s262
      %p266 = scmp.eq.s32.totalorder %s25, 0
      %p267 = por %p265, %p266
      %p268 = scmp.ne.s32.totalorder %s260, %s262
      %p269 = scmp.eq.s32.totalorder %s30, 7
      %p270 = por %p268, %p269
      %p271 = scmp.ne.s32.totalorder %s262, %s263
      %p272 = scmp.eq.s32.totalorder %s30, 0
      %p273 = por %p271, %p272
      %p274 = scmp.ne.s32.totalorder %s262, %s263
      %p275 = scmp.eq.s32.totalorder %s31, 7
      %p276 = por %p274, %p275
      %p278 = scmp.ne.s32.totalorder %s263, %s277
      %p279 = scmp.eq.s32.totalorder %s31, 0
      %p280 = por %p278, %p279
      %s282 = sadd.s32 %s281, 1
      %p285 = scmp.eq.s32.totalorder %s25, 7
      %p286 = scmp.ne.s32.totalorder %s281, %s283
      %p287 = scmp.eq.s32.totalorder %s25, 0
      %p288 = por %p286, %p287
      %p289 = scmp.ne.s32.totalorder %s281, %s283
      %p290 = scmp.eq.s32.totalorder %s30, 7
      %p291 = por %p289, %p290
      %p292 = scmp.ne.s32.totalorder %s283, %s284
      %p293 = scmp.eq.s32.totalorder %s30, 0
      %p294 = por %p292, %p293
      %p295 = scmp.ne.s32.totalorder %s283, %s284
      %p296 = scmp.eq.s32.totalorder %s31, 7
      %p297 = por %p295, %p296
      %p299 = scmp.ne.s32.totalorder %s284, %s298
      %p300 = scmp.eq.s32.totalorder %s31, 0
      %p301 = por %p299, %p300
      %s303 = sadd.s32 %s302, 1
      %p306 = scmp.eq.s32.totalorder %s25, 7
      %p307 = scmp.ne.s32.totalorder %s302, %s304
      %p308 = scmp.eq.s32.totalorder %s25, 0
      %p309 = por %p307, %p308
      %p310 = scmp.ne.s32.totalorder %s302, %s304
      %p311 = scmp.eq.s32.totalorder %s30, 7
      %p312 = por %p310, %p311
      %p313 = scmp.ne.s32.totalorder %s304, %s305
      %p314 = scmp.eq.s32.totalorder %s30, 0
      %p315 = por %p313, %p314
      %p316 = scmp.ne.s32.totalorder %s304, %s305
      %p317 = scmp.eq.s32.totalorder %s31, 7
      %p318 = por %p316, %p317
      %p320 = scmp.ne.s32.totalorder %s305, %s319
      %p321 = scmp.eq.s32.totalorder %s31, 0
      %p322 = por %p320, %p321
      %s323 = ssub.s32 %s33, %s40
      %p324 = scmp.eq.s32.totalorder %s323, 0
      %s326 = sadd.s32 %s325, 1
      %s327 = scalar_select %p324, %s325, %s326
      %p330 = pneg %p324
      %p331 = scmp.eq.s32.totalorder %s25, 7
      %p332 = por %p330, %p331
      %p333 = scmp.ne.s32.totalorder %s325, %s328
      %p334 = scmp.eq.s32.totalorder %s25, 0
      %p335 = por %p333, %p334
      %p336 = scmp.ne.s32.totalorder %s325, %s328
      %p337 = scmp.eq.s32.totalorder %s30, 7
      %p338 = por %p336, %p337
      %p339 = scmp.ne.s32.totalorder %s328, %s329
      %p340 = scmp.eq.s32.totalorder %s30, 0
      %p341 = por %p339, %p340
      %p342 = scmp.ne.s32.totalorder %s328, %s329
      %p343 = scmp.eq.s32.totalorder %s31, 7
      %p344 = por %p342, %p343
      %p346 = scmp.ne.s32.totalorder %s329, %s345
      %p347 = scmp.eq.s32.totalorder %s31, 0
      %p348 = por %p346, %p347
      %s349 = ssub.s32 %s33, %s40
      %p350 = scmp.eq.s32.totalorder %s349, 0
      %s352 = sadd.s32 %s351, 1
      %s353 = scalar_select %p350, %s351, %s352
      %p356 = pneg %p350
      %p357 = scmp.eq.s32.totalorder %s25, 7
      %p358 = por %p356, %p357
      %p359 = scmp.ne.s32.totalorder %s351, %s354
      %p360 = scmp.eq.s32.totalorder %s25, 0
      %p361 = por %p359, %p360
      %p362 = scmp.ne.s32.totalorder %s351, %s354
      %p363 = scmp.eq.s32.totalorder %s30, 7
      %p364 = por %p362, %p363
      %p365 = scmp.ne.s32.totalorder %s354, %s355
      %p366 = scmp.eq.s32.totalorder %s30, 0
      %p367 = por %p365, %p366
      %p368 = scmp.ne.s32.totalorder %s354, %s355
      %p369 = scmp.eq.s32.totalorder %s31, 7
      %p370 = por %p368, %p369
      %p372 = scmp.ne.s32.totalorder %s355, %s371
      %p373 = scmp.eq.s32.totalorder %s31, 0
      %p374 = por %p372, %p373
      %s375 = ssub.s32 %s33, %s40
      %p376 = scmp.eq.s32.totalorder %s375, 0
      %s378 = sadd.s32 %s377, 1
      %s379 = scalar_select %p376, %s377, %s378
      %p382 = pneg %p376
      %p383 = scmp.eq.s32.totalorder %s25, 7
      %p384 = por %p382, %p383
      %p385 = scmp.ne.s32.totalorder %s377, %s380
      %p386 = scmp.eq.s32.totalorder %s25, 0
      %p387 = por %p385, %p386
      %p388 = scmp.ne.s32.totalorder %s377, %s380
      %p389 = scmp.eq.s32.totalorder %s30, 7
      %p390 = por %p388, %p389
      %p391 = scmp.ne.s32.totalorder %s380, %s381
      %p392 = scmp.eq.s32.totalorder %s30, 0
      %p393 = por %p391, %p392
      %p394 = scmp.ne.s32.totalorder %s380, %s381
      %p395 = scmp.eq.s32.totalorder %s31, 7
      %p396 = por %p394, %p395
      %p398 = scmp.ne.s32.totalorder %s381, %s397
      %p399 = scmp.eq.s32.totalorder %s31, 0
      %p400 = por %p398, %p399
      %s402 = sadd.s32 %s401, 1
      %p405 = scmp.eq.s32.totalorder %s25, 7
      %p406 = scmp.ne.s32.totalorder %s401, %s403
      %p407 = scmp.eq.s32.totalorder %s25, 0
      %p408 = por %p406, %p407
      %p409 = scmp.ne.s32.totalorder %s401, %s403
      %p410 = scmp.eq.s32.totalorder %s30, 7
      %p411 = por %p409, %p410
      %p412 = scmp.ne.s32.totalorder %s403, %s404
      %p413 = scmp.eq.s32.totalorder %s30, 0
      %p414 = por %p412, %p413
      %p415 = scmp.ne.s32.totalorder %s403, %s404
      %p416 = scmp.eq.s32.totalorder %s31, 7
      %p417 = por %p415, %p416
      %p419 = scmp.ne.s32.totalorder %s404, %s418
      %p420 = scmp.eq.s32.totalorder %s31, 0
      %p421 = por %p419, %p420
      %s423 = sadd.s32 %s422, 1
      %p426 = scmp.eq.s32.totalorder %s25, 7
      %p427 = scmp.ne.s32.totalorder %s422, %s424
      %p428 = scmp.eq.s32.totalorder %s25, 0
      %p429 = por %p427, %p428
      %p430 = scmp.ne.s32.totalorder %s422, %s424
      %p431 = scmp.eq.s32.totalorder %s30, 7
      %p432 = por %p430, %p431
      %p433 = scmp.ne.s32.totalorder %s424, %s425
      %p434 = scmp.eq.s32.totalorder %s30, 0
      %p435 = por %p433, %p434
      %p436 = scmp.ne.s32.totalorder %s424, %s425
      %p437 = scmp.eq.s32.totalorder %s31, 7
      %p438 = por %p436, %p437
      %p440 = scmp.ne.s32.totalorder %s425, %s439
      %p441 = scmp.eq.s32.totalorder %s31, 0
      %p442 = por %p440, %p441
      %s444 = sadd.s32 %s443, 1
      %p447 = scmp.eq.s32.totalorder %s25, 7
      %p448 = scmp.ne.s32.totalorder %s443, %s445
      %p449 = scmp.eq.s32.totalorder %s25, 0
      %p450 = por %p448, %p449
      %p451 = scmp.ne.s32.totalorder %s443, %s445
      %p452 = scmp.eq.s32.totalorder %s30, 7
      %p453 = por %p451, %p452
      %p454 = scmp.ne.s32.totalorder %s445, %s446
      %p455 = scmp.eq.s32.totalorder %s30, 0
      %p456 = por %p454, %p455
      %p457 = scmp.ne.s32.totalorder %s445, %s446
      %p458 = scmp.eq.s32.totalorder %s31, 7
      %p459 = por %p457, %p458
      %p461 = scmp.ne.s32.totalorder %s446, %s460
      %p462 = scmp.eq.s32.totalorder %s31, 0
      %p463 = por %p461, %p462
      %s464 = ssub.s32 %s32, %s44
      %p465 = scmp.eq.s32.totalorder %s464, 0
      %s467 = sadd.s32 %s466, 1
      %s468 = scalar_select %p465, %s466, %s467
      %p471 = pneg %p465
      %p472 = scmp.eq.s32.totalorder %s25, 7
      %p473 = por %p471, %p472
      %p474 = scmp.ne.s32.totalorder %s466, %s469
      %p475 = scmp.eq.s32.totalorder %s25, 0
      %p476 = por %p474, %p475
      %p477 = scmp.ne.s32.totalorder %s466, %s469
      %p478 = scmp.eq.s32.totalorder %s30, 7
      %p479 = por %p477, %p478
      %p480 = scmp.ne.s32.totalorder %s469, %s470
      %p481 = scmp.eq.s32.totalorder %s30, 0
      %p482 = por %p480, %p481
      %p483 = scmp.ne.s32.totalorder %s469, %s470
      %p484 = scmp.eq.s32.totalorder %s31, 7
      %p485 = por %p483, %p484
      %p487 = scmp.ne.s32.totalorder %s470, %s486
      %p488 = scmp.eq.s32.totalorder %s31, 0
      %p489 = por %p487, %p488
      %p490 = scmp.le.s32.totalorder 1, %s25
      %p491 = scmp.lt.s32.totalorder %s25, 9
      %p492 = pnand %p490, %p491
      %p493 = pneg %p492
      // Predicated region
      $region9: #{clip_forward.3} parent=5 // pred_check
        _
      $region10: #{clip_forward.3} parent=5 // pred_check_branch
        %495 = sbr.rel (%p492) target = $region12
      $region11: #{clip_forward.3} parent=5 // pred_region
        %s496 = ssub.s32 %s25, 1
        // Predicated region
        $region13: #{clip_forward.3} parent=11 // pred_check
          %p497 = pneg %p84
        $region14: #{clip_forward.3} parent=11 // pred_check_branch
          %499 = sbr.rel (%p497) target = $region16
        $region15: #{clip_forward.3} parent=11 // pred_region
          _
        $region16: #{clip_forward.3} parent=11 // pred_fallthru
          _
        // Predicated region
        $region17: #{clip_forward.3} parent=11 // pred_check
          %p500 = pneg %p105
        $region18: #{clip_forward.3} parent=11 // pred_check_branch
          %502 = sbr.rel (%p500) target = $region20
        $region19: #{clip_forward.3} parent=11 // pred_region
          _
        $region20: #{clip_forward.3} parent=11 // pred_fallthru
          _
        // Predicated region
        $region21: #{clip_forward.3} parent=11 // pred_check
          %p503 = pneg %p126
        $region22: #{clip_forward.3} parent=11 // pred_check_branch
          %505 = sbr.rel (%p503) target = $region24
        $region23: #{clip_forward.3} parent=11 // pred_region
          _
        $region24: #{clip_forward.3} parent=11 // pred_fallthru
          _
        // Predicated region
        $region25: #{clip_forward.3} parent=11 // pred_check
          %p506 = pneg %p147
        $region26: #{clip_forward.3} parent=11 // pred_check_branch
          %508 = sbr.rel (%p506) target = $region28
        $region27: #{clip_forward.3} parent=11 // pred_region
          _
        $region28: #{clip_forward.3} parent=11 // pred_fallthru
          _
        // Predicated region
        $region29: #{clip_forward.3} parent=11 // pred_check
          %p509 = pneg %p168
        $region30: #{clip_forward.3} parent=11 // pred_check_branch
          %511 = sbr.rel (%p509) target = $region32
        $region31: #{clip_forward.3} parent=11 // pred_region
          _
        $region32: #{clip_forward.3} parent=11 // pred_fallthru
          _
        // Predicated region
        $region33: #{clip_forward.3} parent=11 // pred_check
          %p512 = pneg %p189
        $region34: #{clip_forward.3} parent=11 // pred_check_branch
          %514 = sbr.rel (%p512) target = $region36
        $region35: #{clip_forward.3} parent=11 // pred_region
          _
        $region36: #{clip_forward.3} parent=11 // pred_fallthru
          _
        // Predicated region
        $region37: #{clip_forward.3} parent=11 // pred_check
          %p515 = pneg %p210
        $region38: #{clip_forward.3} parent=11 // pred_check_branch
          %517 = sbr.rel (%p515) target = $region40
        $region39: #{clip_forward.3} parent=11 // pred_region
          _
        $region40: #{clip_forward.3} parent=11 // pred_fallthru
          _
        // Predicated region
        $region41: #{clip_forward.3} parent=11 // pred_check
          %p518 = pneg %p231
        $region42: #{clip_forward.3} parent=11 // pred_check_branch
          %520 = sbr.rel (%p518) target = $region44
        $region43: #{clip_forward.3} parent=11 // pred_region
          _
        $region44: #{clip_forward.3} parent=11 // pred_fallthru
          _
        // Predicated region
        $region45: #{clip_forward.3} parent=11 // pred_check
          %p521 = pneg %p252
        $region46: #{clip_forward.3} parent=11 // pred_check_branch
          %523 = sbr.rel (%p521) target = $region48
        $region47: #{clip_forward.3} parent=11 // pred_region
          _
        $region48: #{clip_forward.3} parent=11 // pred_fallthru
          _
        // Predicated region
        $region49: #{clip_forward.3} parent=11 // pred_check
          %p524 = pneg %p273
        $region50: #{clip_forward.3} parent=11 // pred_check_branch
          %526 = sbr.rel (%p524) target = $region52
        $region51: #{clip_forward.3} parent=11 // pred_region
          _
        $region52: #{clip_forward.3} parent=11 // pred_fallthru
          _
        // Predicated region
        $region53: #{clip_forward.3} parent=11 // pred_check
          %p527 = pneg %p294
        $region54: #{clip_forward.3} parent=11 // pred_check_branch
          %529 = sbr.rel (%p527) target = $region56
        $region55: #{clip_forward.3} parent=11 // pred_region
          _
        $region56: #{clip_forward.3} parent=11 // pred_fallthru
          _
        // Predicated region
        $region57: #{clip_forward.3} parent=11 // pred_check
          %p530 = pneg %p315
        $region58: #{clip_forward.3} parent=11 // pred_check_branch
          %532 = sbr.rel (%p530) target = $region60
        $region59: #{clip_forward.3} parent=11 // pred_region
          _
        $region60: #{clip_forward.3} parent=11 // pred_fallthru
          _
        // Predicated region
        $region61: #{clip_forward.3} parent=11 // pred_check
          %p533 = pneg %p414
        $region62: #{clip_forward.3} parent=11 // pred_check_branch
          %535 = sbr.rel (%p533) target = $region64
        $region63: #{clip_forward.3} parent=11 // pred_region
          _
        $region64: #{clip_forward.3} parent=11 // pred_fallthru
          _
        // Predicated region
        $region65: #{clip_forward.3} parent=11 // pred_check
          %p536 = pneg %p435
        $region66: #{clip_forward.3} parent=11 // pred_check_branch
          %538 = sbr.rel (%p536) target = $region68
        $region67: #{clip_forward.3} parent=11 // pred_region
          _
        $region68: #{clip_forward.3} parent=11 // pred_fallthru
          _
        // Predicated region
        $region69: #{clip_forward.3} parent=11 // pred_check
          %p539 = pneg %p456
        $region70: #{clip_forward.3} parent=11 // pred_check_branch
          %541 = sbr.rel (%p539) target = $region72
        $region71: #{clip_forward.3} parent=11 // pred_region
          _
        $region72: #{clip_forward.3} parent=11 // pred_fallthru
          _
      $region12: #{clip_forward.3} parent=5 // pred_fallthru
        _
      %p542 = scmp.lt.s32.totalorder %s25, 8
      // Predicated region
      $region73: #{clip_forward.3} parent=5 // pred_check
        %p543 = pneg %p542
      $region74: #{clip_forward.3} parent=5 // pred_check_branch
        %545 = sbr.rel (%p543) target = $region76
      $region75: #{clip_forward.3} parent=5 // pred_region
        // Predicated region
        $region77: #{clip_forward.3} parent=75 // pred_check
          %p546 = pneg %p57
        $region78: #{clip_forward.3} parent=75 // pred_check_branch
          %548 = sbr.rel (%p546) target = $region80
        $region79: #{clip_forward.3} parent=75 // pred_region
          %p549 = scmp.lt.s32.totalorder %s32, 1
          %s550 = scalar_select %p549, %s32, 1
          %s551 = smul.addr %s550, 2
          %s552 = smul.addr %s551, 8
          %s553 = scalar_lea.vmem %s0, %s552
        $region80: #{clip_forward.3} parent=75 // pred_fallthru
          _
        // Predicated region
        $region81: #{clip_forward.3} parent=75 // pred_check
          %p554 = pneg %p335
        $region82: #{clip_forward.3} parent=75 // pred_check_branch
          %556 = sbr.rel (%p554) target = $region84
        $region83: #{clip_forward.3} parent=75 // pred_region
          %s557 = sand.u32 %s325, 1
          %s558 = sand.u32 %s325, 1
          %s559 = smul.addr %s558, 64
          %s560 = scalar_lea.vmem [#allocation5], %s559
          %s561 = smul.addr %s33, 4
          %s562 = scalar_lea.vmem %s13, %s561
          // Predicated region
          $region85: #{clip_forward.3} parent=83 // pred_check
            _
          $region86: #{clip_forward.3} parent=83 // pred_check_branch
            %564 = sbr.rel (0) target = $region88
          $region87: #{clip_forward.3} parent=83 // pred_region
            // Predicated region
            $region89: #{clip_forward.3} parent=87 // pred_check
              _
            $region90: #{clip_forward.3} parent=87 // pred_check_branch
              %566 = sbr.rel target = $region92
            $region91: #{clip_forward.3} parent=87 // pred_region
              // Predicated region
              $region104: #{clip_forward.3} parent=91 // pred_check
                _
              $region105: #{clip_forward.3} parent=91 // pred_check_branch
                %611 = sbr.rel (0) target = $region107
              $region106: #{clip_forward.3} parent=91 // pred_region
                loop: start=0, step=1, limit=1
                $region108: #{clip_forward.3} parent=106 // loop_pre_header
                  _
                $region109: #{clip_forward.3} parent=106 // loop_header
                  %s613 = sphi 0, %s617
                  %p614 = scmp.ge.s32.totalorder %s613, 1
                  %s618 = sphi %s562, %s562
                  %s619 = sphi %s560, %s560
                $region110: #{clip_forward.3} parent=106 // loop_header_branch
                  %616 = sbr.rel (%p614) target = $region114
                $region111: #{clip_forward.3} parent=106 // loop_body
                  _
                $region112: #{clip_forward.3} parent=106 // loop_footer
                  %s617 = sadd.s32 1, %s613
                $region113: #{clip_forward.3} parent=106 // loop_footer_branch
                  %612 = sbr.rel target = $region109
                $region114: #{clip_forward.3} parent=106 // loop_exit
                  _
                loop: start=0, step=1, limit=1
                $region115: #{clip_forward.3} parent=106 // loop_pre_header
                  _
                $region116: #{clip_forward.3} parent=106 // loop_header
                  %s622 = sphi 0, %s626
                  %p623 = scmp.ge.s32.totalorder %s622, 1
                  %s627 = sphi %s562, %s562
                  %s628 = sphi %s560, %s560
                $region117: #{clip_forward.3} parent=106 // loop_header_branch
                  %625 = sbr.rel (%p623) target = $region121
                $region118: #{clip_forward.3} parent=106 // loop_body
                  %v629 = vld [vmem:[%s627] sm:$0xf]
                  %630 = vst [vmem:[%s628] sm:$0xf] %v629
                  %v631 = vld [vmem:[%s627 + $0x10] sm:$0xf]
                  %632 = vst [vmem:[%s628 + $0x4] sm:$0xf] %v631
                  %v633 = vld [vmem:[%s627 + $0x20] sm:$0xf]
                  %634 = vst [vmem:[%s628 + $0x8] sm:$0xf] %v633
                  %v635 = vld [vmem:[%s627 + $0x30] sm:$0xf]
                  %636 = vst [vmem:[%s628 + $0xc] sm:$0xf] %v635
                  %v637 = vld [vmem:[%s627 + $0x40] sm:$0xf]
                  %638 = vst [vmem:[%s628 + $0x10] sm:$0xf] %v637
                  %v639 = vld [vmem:[%s627 + $0x50] sm:$0xf]
                  %640 = vst [vmem:[%s628 + $0x14] sm:$0xf] %v639
                  %v641 = vld [vmem:[%s627 + $0x60] sm:$0xf]
                  %642 = vst [vmem:[%s628 + $0x18] sm:$0xf] %v641
                  %v643 = vld [vmem:[%s627 + $0x70] sm:$0xf]
                  %644 = vst [vmem:[%s628 + $0x1c] sm:$0xf] %v643
                  %v645 = vld [vmem:[%s627 + $0x80] sm:$0xf]
                  %646 = vst [vmem:[%s628 + $0x20] sm:$0xf] %v645
                  %v647 = vld [vmem:[%s627 + $0x90] sm:$0xf]
                  %648 = vst [vmem:[%s628 + $0x24] sm:$0xf] %v647
                  %v649 = vld [vmem:[%s627 + $0xa0] sm:$0xf]
                  %650 = vst [vmem:[%s628 + $0x28] sm:$0xf] %v649
                  %v651 = vld [vmem:[%s627 + $0xb0] sm:$0xf]
                  %652 = vst [vmem:[%s628 + $0x2c] sm:$0xf] %v651
                  %v653 = vld [vmem:[%s627 + $0xc0] sm:$0xf]
                  %654 = vst [vmem:[%s628 + $0x30] sm:$0xf] %v653
                  %v655 = vld [vmem:[%s627 + $0xd0] sm:$0xf]
                  %656 = vst [vmem:[%s628 + $0x34] sm:$0xf] %v655
                  %v657 = vld [vmem:[%s627 + $0xe0] sm:$0xf]
                  %658 = vst [vmem:[%s628 + $0x38] sm:$0xf] %v657
                  %v659 = vld [vmem:[%s627 + $0xf0] sm:$0xf]
                  %660 = vst [vmem:[%s628 + $0x3c] sm:$0xf] %v659
                $region119: #{clip_forward.3} parent=106 // loop_footer
                  %s626 = sadd.s32 1, %s622
                $region120: #{clip_forward.3} parent=106 // loop_footer_branch
                  %621 = sbr.rel target = $region116
                $region121: #{clip_forward.3} parent=106 // loop_exit
                  _
              $region107: #{clip_forward.3} parent=91 // pred_fallthru
                _
            $region92: #{clip_forward.3} parent=87 // pred_fallthru
              _
            // Predicated region
            $region93: #{clip_forward.3} parent=87 // pred_check
              _
            $region94: #{clip_forward.3} parent=87 // pred_check_branch
              %568 = sbr.rel (0) target = $region96
            $region95: #{clip_forward.3} parent=87 // pred_region
              loop: start=0, step=1, limit=1
              $region97: #{clip_forward.3} parent=95 // loop_pre_header
                _
              $region98: #{clip_forward.3} parent=95 // loop_header
                %s571 = sphi 0, %s575
                %p572 = scmp.ge.s32.totalorder %s571, 1
                %s576 = sphi %s562, %s562
                %s577 = sphi %s560, %s560
              $region99: #{clip_forward.3} parent=95 // loop_header_branch
                %574 = sbr.rel (%p572) target = $region103
              $region100: #{clip_forward.3} parent=95 // loop_body
                %v578 = vld [vmem:[%s576] sm:$0xf]
                %579 = vst [vmem:[%s577] sm:$0xf] %v578
                %v580 = vld [vmem:[%s576 + $0x10] sm:$0xf]
                %581 = vst [vmem:[%s577 + $0x4] sm:$0xf] %v580
                %v582 = vld [vmem:[%s576 + $0x20] sm:$0xf]
                %583 = vst [vmem:[%s577 + $0x8] sm:$0xf] %v582
                %v584 = vld [vmem:[%s576 + $0x30] sm:$0xf]
                %585 = vst [vmem:[%s577 + $0xc] sm:$0xf] %v584
                %v586 = vld [vmem:[%s576 + $0x40] sm:$0xf]
                %587 = vst [vmem:[%s577 + $0x10] sm:$0xf] %v586
                %v588 = vld [vmem:[%s576 + $0x50] sm:$0xf]
                %589 = vst [vmem:[%s577 + $0x14] sm:$0xf] %v588
                %v590 = vld [vmem:[%s576 + $0x60] sm:$0xf]
                %591 = vst [vmem:[%s577 + $0x18] sm:$0xf] %v590
                %v592 = vld [vmem:[%s576 + $0x70] sm:$0xf]
                %593 = vst [vmem:[%s577 + $0x1c] sm:$0xf] %v592
                %v594 = vld [vmem:[%s576 + $0x80] sm:$0xf]
                %595 = vst [vmem:[%s577 + $0x20] sm:$0xf] %v594
                %v596 = vld [vmem:[%s576 + $0x90] sm:$0xf]
                %597 = vst [vmem:[%s577 + $0x24] sm:$0xf] %v596
                %v598 = vld [vmem:[%s576 + $0xa0] sm:$0xf]
                %599 = vst [vmem:[%s577 + $0x28] sm:$0xf] %v598
                %v600 = vld [vmem:[%s576 + $0xb0] sm:$0xf]
                %601 = vst [vmem:[%s577 + $0x2c] sm:$0xf] %v600
                %v602 = vld [vmem:[%s576 + $0xc0] sm:$0xf]
                %603 = vst [vmem:[%s577 + $0x30] sm:$0xf] %v602
                %v604 = vld [vmem:[%s576 + $0xd0] sm:$0xf]
                %605 = vst [vmem:[%s577 + $0x34] sm:$0xf] %v604
                %v606 = vld [vmem:[%s576 + $0xe0] sm:$0xf]
                %607 = vst [vmem:[%s577 + $0x38] sm:$0xf] %v606
                %v608 = vld [vmem:[%s576 + $0xf0] sm:$0xf]
                %609 = vst [vmem:[%s577 + $0x3c] sm:$0xf] %v608
              $region101: #{clip_forward.3} parent=95 // loop_footer
                %s575 = sadd.s32 1, %s571
              $region102: #{clip_forward.3} parent=95 // loop_footer_branch
                %570 = sbr.rel target = $region98
              $region103: #{clip_forward.3} parent=95 // loop_exit
                _
            $region96: #{clip_forward.3} parent=87 // pred_fallthru
              _
          $region88: #{clip_forward.3} parent=83 // pred_fallthru
            _
          %661 = vnop
        $region84: #{clip_forward.3} parent=75 // pred_fallthru
          _
        // Predicated region
        $region122: #{clip_forward.3} parent=75 // pred_check
          %p662 = pneg %p361
        $region123: #{clip_forward.3} parent=75 // pred_check_branch
          %664 = sbr.rel (%p662) target = $region125
        $region124: #{clip_forward.3} parent=75 // pred_region
          %p665 = scmp.lt.s32.totalorder %s33, 3
          %s666 = scalar_select %p665, %s33, 3
          %s667 = scalar_lea.vmem %s14, %s666
        $region125: #{clip_forward.3} parent=75 // pred_fallthru
          _
        // Predicated region
        $region126: #{clip_forward.3} parent=75 // pred_check
          %p668 = pneg %p387
        $region127: #{clip_forward.3} parent=75 // pred_check_branch
          %670 = sbr.rel (%p668) target = $region129
        $region128: #{clip_forward.3} parent=75 // pred_region
          %s671 = smul.u32 16, %s33
          %p672 = scmp.lt.s32.totalorder %s671, 63
          %s673 = scalar_select %p672, %s671, 63
          %s674 = smul.addr %s673, 4
          %s675 = scalar_lea.vmem %s15, %s674
          %s676 = smul.u32 16, %s33
        $region129: #{clip_forward.3} parent=75 // pred_fallthru
          _
      $region76: #{clip_forward.3} parent=5 // pred_fallthru
        _
      %p677 = scmp.le.s32.totalorder 1, %s25
      %p678 = scmp.lt.s32.totalorder %s25, 9
      %p679 = pnand %p677, %p678
      %p680 = pneg %p679
      // Predicated region
      $region130: #{clip_forward.3} parent=5 // pred_check
        _
      $region131: #{clip_forward.3} parent=5 // pred_check_branch
        %682 = sbr.rel (%p679) target = $region133
      $region132: #{clip_forward.3} parent=5 // pred_region
        %s683 = ssub.s32 %s25, 1
        %s684 = sand.u32 %s328, 1
        %s685 = sand.u32 %s328, 1
        %s686 = smul.addr %s685, 64
        %s687 = scalar_lea.vmem [#allocation5], %s686
        // Predicated region
        $region134: #{clip_forward.3} parent=132 // pred_check
          %p688 = pneg %p341
        $region135: #{clip_forward.3} parent=132 // pred_check_branch
          %690 = sbr.rel (%p688) target = $region137
        $region136: #{clip_forward.3} parent=132 // pred_region
          _
        $region137: #{clip_forward.3} parent=132 // pred_fallthru
          _
        %p691 = scmp.lt.s32.totalorder %s34, 1
        %s692 = scalar_select %p691, %s34, 1
        %s693 = smul.addr %s692, 2
        %s694 = smul.addr %s693, 8
        %s695 = scalar_lea.vmem %s0, %s694
        %p696 = pneg %p63
        %p697 = pneg %p60
        %p698 = pneg %p84
        %p699 = pneg %p81
        %p700 = pneg %p105
        %p701 = pneg %p102
        %p702 = pneg %p126
        %p703 = pneg %p123
        %p704 = pneg %p147
        %p705 = pneg %p144
        %p706 = pneg %p168
        %p707 = pneg %p165
        %p708 = pneg %p189
        %p709 = pneg %p186
        %p710 = pneg %p210
        %p711 = pneg %p207
        %p712 = pneg %p231
        %p713 = pneg %p228
        %p714 = pneg %p252
        %p715 = pneg %p249
        %p716 = pneg %p273
        %p717 = pneg %p270
        %p718 = pneg %p294
        %p719 = pneg %p291
        %p720 = pneg %p315
        %p721 = pneg %p312
        %s722 = sand.u32 %s328, 1
        %s723 = sand.u32 %s328, 1
        %s724 = smul.addr %s723, 64
        %s725 = scalar_lea.vmem [#allocation5], %s724
        %p726 = pneg %p341
        %p727 = pneg %p338
        %p728 = scmp.lt.s32.totalorder %s35, 3
        %s729 = scalar_select %p728, %s35, 3
        %s730 = scalar_lea.vmem %s14, %s729
        %p731 = pneg %p367
        %p732 = pneg %p364
        %s733 = smul.u32 16, %s35
        %p734 = scmp.lt.s32.totalorder %s733, 63
        %s735 = scalar_select %p734, %s733, 63
        %s736 = smul.addr %s735, 4
        %s737 = scalar_lea.vmem %s15, %s736
        %p738 = pneg %p393
        %p739 = pneg %p390
        %p740 = pneg %p414
        %p741 = pneg %p411
        %p742 = pneg %p435
        %p743 = pneg %p432
        %p744 = pneg %p456
        %p745 = pneg %p453
        %p746 = pneg %p482
        %p747 = pneg %p479
        %p748 = scmp.lt.s32.totalorder %s34, 1
        %s749 = scalar_select %p748, %s34, 1
        %s750 = smul.addr %s749, 2
        %s751 = smul.addr %s750, 8
        %s752 = scalar_lea.vmem %s19, %s751
        %p753 = scmp.lt.s32.totalorder %s34, 1
        %s754 = scalar_select %p753, %s34, 1
        %s755 = smul.addr %s754, 2
        %s756 = smul.addr %s755, 8
        %s757 = scalar_lea.vmem %s0, %s756
        %p758 = scmp.lt.s32.totalorder %s35, 3
        %s759 = scalar_select %p758, %s35, 3
        %s760 = scalar_lea.vmem %s14, %s759
        %s761 = smul.u32 16, %s35
        %p762 = scmp.lt.s32.totalorder %s761, 63
        %s763 = scalar_select %p762, %s761, 63
        %s764 = smul.addr %s763, 4
        %s765 = scalar_lea.vmem %s15, %s764
        %s766 = smul.u32 16, %s35
        %p767 = scmp.lt.s32.totalorder %s34, 1
        %s768 = scalar_select %p767, %s34, 1
        %s769 = smul.addr %s768, 2
        %s770 = smul.addr %s769, 8
        %s771 = scalar_lea.vmem %s19, %s770
        %p773 = scmp.eq.s32.totalorder %s35, 0
        // Predicated region
        $region138: #{clip_forward.3} parent=132 // pred_check
          %p774 = pneg %p773
        $region139: #{clip_forward.3} parent=132 // pred_check_branch
          %776 = sbr.rel (%p774) target = $region141
        $region140: #{clip_forward.3} parent=132 // pred_region
          %v777 = vld [vmem:[%s757] sm:$0xff]
          %v778 = vld [vmem:[%s757 + $0x8] sm:$0xff]
          %v779 = vld [vmem:[%s1] sm:$0x1]
          %v780 = vld [vmem:[%s2] sm:$0x1]
          %781 = vadd.xlane.f32.xlu0 %v777
          %v782 = vpop.xlane.xlu0 %781
          %783 = vadd.xlane.f32.xlu0 %v778
          %v784 = vpop.xlane.xlu0 %783
          %v785 = vrcp.pop 128.0
          %v786 = vmul.f32 %v782, %v785
          %v787 = vmul.f32 %v784, %v785
          %v788 = vsub.f32 %v777, %v786
          %v789 = vsub.f32 %v778, %v787
          %v790 = vmul.f32 %v788, %v788
          %v791 = vmul.f32 %v789, %v789
          %792 = vadd.xlane.f32.xlu0 %v790
          %v793 = vpop.xlane.xlu0 %792
          %794 = vadd.xlane.f32.xlu0 %v791
          %v795 = vpop.xlane.xlu0 %794
          %v796 = vmul.f32 %v793, %v785
          %v797 = vmul.f32 %v795, %v785
          %v798 = vadd.f32 %v796, 1e-05
          %v799 = vadd.f32 %v797, 1e-05
          %v800 = vrsqrt.pop %v798
          %v801 = vrsqrt.pop %v799
          %v802 = vmul.f32 %v788, %v800
          %v803 = vmul.f32 %v789, %v801
          %v805 = vlaneseq
          %v806 = vshrl.u32 %v805, 7
          %v807 = vsub.s32 0, %v806
          %v808 = vrot.slane %v779, %v807
          %v810 = vmul.f32 %v802, %v808
          %v811 = vmul.f32 %v803, %v808
          %v813 = vlaneseq
          %v814 = vshrl.u32 %v813, 7
          %v815 = vsub.s32 0, %v814
          %v816 = vrot.slane %v780, %v815
          %v818 = vadd.f32 %v810, %v816
          %v819 = vadd.f32 %v811, %v816
          %v820 = vpack.c.bf16 %v819, %v818
          %v821 = vlaneseq
          %v822 = vshrl.u32 %v821, 7
          %v823 = vadd.s32 %v822, 8
          %v824 = vlaneseq
          %v825 = vand.u32 %v824, 127
          %vm826 = vcmp.le.s32.totalorder %v825, %v822
          %vm827 = vcmp.le.s32.totalorder %v825, %v823
          %v828 = vsel %vm826, 0.0, -1e+30
          %v829 = vsel %vm827, 0.0, -1e+30
          %v830 = vld [vmem:[%s3] sm:$0xf]
          %v831 = vld [vmem:[%s3 + $0x4] sm:$0xf]
          %v832 = vld [vmem:[%s3 + $0x8] sm:$0xf]
          %v833 = vld [vmem:[%s3 + $0xc] sm:$0xf]
          %v834 = vld [vmem:[%s6] sm:$0x1]
          %v836 = vlaneseq
          %v837 = vshrl.u32 %v836, 7
          %v838 = vsub.s32 0, %v837
          %v839 = vrot.slane %v834, %v838
          %v845 = vunpack.c.l.b16 %v830
          %v846 = vunpack.c.l.b16 %v831
          %v847 = vunpack.c.l.b16 %v832
          %v848 = vunpack.c.l.b16 %v833
          %v849 = vpack.c.b16 %v846, %v845
          %v850 = vpack.c.b16 %v848, %v847
          %853 = vmatprep.subr.bf16.mxu0 0
          %854 = vmatpush1.bf16.xpose.msra.mxu0 %v849
          %855 = vmatprep.subr.bf16.mxu0 0
          %856 = vmatpush1.bf16.xpose.msra.mxu0 %v850
          %857 = vmatprep.subr.bf16.mxu0 0
          %858 = vmatpush1.bf16.xpose.msra.mxu0 0
          %859 = vmatprep.subr.bf16.mxu0 0
          %860 = vmatpush1.bf16.xpose.msra.mxu0 0
          %861 = vmatprep.subr.bf16.mxu0 0
          %862 = vmatpush1.bf16.xpose.msra.mxu0 0
          %863 = vmatprep.subr.bf16.mxu0 0
          %864 = vmatpush1.bf16.xpose.msra.mxu0 0
          %865 = vmatprep.subr.bf16.mxu0 0
          %866 = vmatpush1.bf16.xpose.msra.mxu0 0
          %867 = vmatprep.subr.bf16.mxu0 0
          %868 = vmatpush1.bf16.xpose.msra.mxu0 0
          %869 = vmatprep.subr.bf16.mxu0 0
          %870 = vmatpush1.bf16.xpose.msra.mxu0 0
          %871 = vmatprep.subr.bf16.mxu0 0
          %872 = vmatpush1.bf16.xpose.msra.mxu0 0
          %873 = vmatprep.subr.bf16.mxu0 0
          %874 = vmatpush1.bf16.xpose.msra.mxu0 0
          %875 = vmatprep.subr.bf16.mxu0 0
          %876 = vmatpush1.bf16.xpose.msra.mxu0 0
          %877 = vmatprep.subr.bf16.mxu0 0
          %878 = vmatpush1.bf16.xpose.msra.mxu0 0
          %879 = vmatprep.subr.bf16.mxu0 0
          %880 = vmatpush1.bf16.xpose.msra.mxu0 0
          %881 = vmatprep.subr.bf16.mxu0 0
          %882 = vmatpush1.bf16.xpose.msra.mxu0 0
          %883 = vmatprep.subr.bf16.mxu0 0
          %884 = vmatpush1.bf16.xpose.msra.mxu0 0
          %885 = vmatprep.mubr.bf16.mxu0 0
          %886 = vmatmul.mubr.bf16.gmra.mrb[0].mxu0 %v820
          %v887 = vpop.f32.mrb[0].mxu0
          %v888 = vadd.f32 %v839, %v887
          %v889 = vpop.f32.mrb[0].mxu0
          %v890 = vpop.f32.mrb[0].mxu0
          %v891 = vadd.f32 %v839, %v890
          %v892 = vpop.f32.mrb[0].mxu0
          %893 = vdwg.mxu0
          %v894 = vmul.f32 %v888, 0.17677669
          %v895 = vmul.f32 %v891, 0.17677669
          %v896 = vld [vmem:[%s4] sm:$0xf]
          %v897 = vld [vmem:[%s4 + $0x4] sm:$0xf]
          %v898 = vld [vmem:[%s4 + $0x8] sm:$0xf]
          %v899 = vld [vmem:[%s4 + $0xc] sm:$0xf]
          %v900 = vld [vmem:[%s7] sm:$0x1]
          %v902 = vlaneseq
          %v903 = vshrl.u32 %v902, 7
          %v904 = vsub.s32 0, %v903
          %v905 = vrot.slane %v900, %v904
          %v911 = vunpack.c.l.b16 %v896
          %v912 = vunpack.c.l.b16 %v897
          %v913 = vunpack.c.l.b16 %v898
          %v914 = vunpack.c.l.b16 %v899
          %v915 = vpack.c.b16 %v912, %v911
          %v916 = vpack.c.b16 %v914, %v913
          %919 = vmatprep.subr.bf16.mxu0 0
          %920 = vmatpush1.bf16.xpose.msra.mxu0 %v915
          %921 = vmatprep.subr.bf16.mxu0 0
          %922 = vmatpush1.bf16.xpose.msra.mxu0 %v916
          %923 = vmatprep.subr.bf16.mxu0 0
          %924 = vmatpush1.bf16.xpose.msra.mxu0 0
          %925 = vmatprep.subr.bf16.mxu0 0
          %926 = vmatpush1.bf16.xpose.msra.mxu0 0
          %927 = vmatprep.subr.bf16.mxu0 0
          %928 = vmatpush1.bf16.xpose.msra.mxu0 0
          %929 = vmatprep.subr.bf16.mxu0 0
          %930 = vmatpush1.bf16.xpose.msra.mxu0 0
          %931 = vmatprep.subr.bf16.mxu0 0
          %932 = vmatpush1.bf16.xpose.msra.mxu0 0
          %933 = vmatprep.subr.bf16.mxu0 0
          %934 = vmatpush1.bf16.xpose.msra.mxu0 0
          %935 = vmatprep.subr.bf16.mxu0 0
          %936 = vmatpush1.bf16.xpose.msra.mxu0 0
          %937 = vmatprep.subr.bf16.mxu0 0
          %938 = vmatpush1.bf16.xpose.msra.mxu0 0
          %939 = vmatprep.subr.bf16.mxu0 0
          %940 = vmatpush1.bf16.xpose.msra.mxu0 0
          %941 = vmatprep.subr.bf16.mxu0 0
          %942 = vmatpush1.bf16.xpose.msra.mxu0 0
          %943 = vmatprep.subr.bf16.mxu0 0
          %944 = vmatpush1.bf16.xpose.msra.mxu0 0
          %945 = vmatprep.subr.bf16.mxu0 0
          %946 = vmatpush1.bf16.xpose.msra.mxu0 0
          %947 = vmatprep.subr.bf16.mxu0 0
          %948 = vmatpush1.bf16.xpose.msra.mxu0 0
          %949 = vmatprep.subr.bf16.mxu0 0
          %950 = vmatpush1.bf16.xpose.msra.mxu0 0
          %951 = vmatprep.mubr.bf16.mxu0 0
          %952 = vmatmul.mubr.bf16.gmra.mrb[0].mxu0 %v820
          %v953 = vpop.f32.mrb[0].mxu0
          %v954 = vadd.f32 %v905, %v953
          %v955 = vpop.f32.mrb[0].mxu0
          %v956 = vpop.f32.mrb[0].mxu0
          %v957 = vadd.f32 %v905, %v956
          %v958 = vpop.f32.mrb[0].mxu0
          %959 = vdwg.mxu0
          %v960 = vld [vmem:[%s5] sm:$0xf]
          %v961 = vld [vmem:[%s5 + $0x4] sm:$0xf]
          %v962 = vld [vmem:[%s5 + $0x8] sm:$0xf]
          %v963 = vld [vmem:[%s5 + $0xc] sm:$0xf]
          %v964 = vld [vmem:[%s8] sm:$0x1]
          %v966 = vlaneseq
          %v967 = vshrl.u32 %v966, 7
          %v968 = vsub.s32 0, %v967
          %v969 = vrot.slane %v964, %v968
          %v975 = vunpack.c.l.b16 %v960
          %v976 = vunpack.c.l.b16 %v961
          %v977 = vunpack.c.l.b16 %v962
          %v978 = vunpack.c.l.b16 %v963
          %v979 = vpack.c.b16 %v976, %v975
          %v980 = vpack.c.b16 %v978, %v977
          %983 = vmatprep.subr.bf16.mxu0 0
          %984 = vmatpush1.bf16.xpose.msra.mxu0 %v979
          %985 = vmatprep.subr.bf16.mxu0 0
          %986 = vmatpush1.bf16.xpose.msra.mxu0 %v980
          %987 = vmatprep.subr.bf16.mxu0 0
          %988 = vmatpush1.bf16.xpose.msra.mxu0 0
          %989 = vmatprep.subr.bf16.mxu0 0
          %990 = vmatpush1.bf16.xpose.msra.mxu0 0
          %991 = vmatprep.subr.bf16.mxu0 0
          %992 = vmatpush1.bf16.xpose.msra.mxu0 0
          %993 = vmatprep.subr.bf16.mxu0 0
          %994 = vmatpush1.bf16.xpose.msra.mxu0 0
          %995 = vmatprep.subr.bf16.mxu0 0
          %996 = vmatpush1.bf16.xpose.msra.mxu0 0
          %997 = vmatprep.subr.bf16.mxu0 0
          %998 = vmatpush1.bf16.xpose.msra.mxu0 0
          %999 = vmatprep.subr.bf16.mxu0 0
          %1000 = vmatpush1.bf16.xpose.msra.mxu0 0
          %1001 = vmatprep.subr.bf16.mxu0 0
          %1002 = vmatpush1.bf16.xpose.msra.mxu0 0
          %1003 = vmatprep.subr.bf16.mxu0 0
          %1004 = vmatpush1.bf16.xpose.msra.mxu0 0
          %1005 = vmatprep.subr.bf16.mxu0 0
          %1006 = vmatpush1.bf16.xpose.msra.mxu0 0
          %1007 = vmatprep.subr.bf16.mxu0 0
          %1008 = vmatpush1.bf16.xpose.msra.mxu0 0
          %1009 = vmatprep.subr.bf16.mxu0 0
          %1010 = vmatpush1.bf16.xpose.msra.mxu0 0
          %1011 = vmatprep.subr.bf16.mxu0 0
          %1012 = vmatpush1.bf16.xpose.msra.mxu0 0
          %1013 = vmatprep.subr.bf16.mxu0 0
          %1014 = vmatpush1.bf16.xpose.msra.mxu0 0
          %1015 = vmatprep.mubr.bf16.mxu0 0
          %1016 = vmatmul.mubr.bf16.gmra.mrb[0].mxu0 %v820
          %v1017 = vpop.f32.mrb[0].mxu0
          %v1018 = vadd.f32 %v969, %v1017
          %v1019 = vpop.f32.mrb[0].mxu0
          %v1020 = vpop.f32.mrb[0].mxu0
          %v1021 = vadd.f32 %v969, %v1020
          %v1022 = vpop.f32.mrb[0].mxu0
          %1023 = vdwg.mxu0
          %v1024 = vpack.c.bf16 %v895, %v894
          %v1025 = vpack.c.bf16 %v957, %v954
          %vm1026 = vcmask 261120
          %v1028 = vsel %vm1026, %v1024, 0
          %v1031 = vsel %vm1026, %v1025, 0
          %1033 = vmatprep.subr.bf16.mxu0 0
          %1034 = vmatpush1.bf16.xpose.msra.mxu0 %v1031
          %1035 = vmatprep.subr.bf16.mxu0 0
          %1036 = vmatpush1.bf16.xpose.msra.mxu0 0
          %1037 = vmatprep.subr.bf16.mxu0 0
          %1038 = vmatpush1.bf16.xpose.msra.mxu0 0
          %1039 = vmatprep.subr.bf16.mxu0 0
          %1040 = vmatpush1.bf16.xpose.msra.mxu0 0
          %1041 = vmatprep.subr.bf16.mxu0 0
          %1042 = vmatpush1.bf16.xpose.msra.mxu0 0
          %1043 = vmatprep.subr.bf16.mxu0 0
          %1044 = vmatpush1.bf16.xpose.msra.mxu0 0
          %1045 = vmatprep.subr.bf16.mxu0 0
          %1046 = vmatpush1.bf16.xpose.msra.mxu0 0
          %1047 = vmatprep.subr.bf16.mxu0 0
          %1048 = vmatpush1.bf16.xpose.msra.mxu0 0
          %1049 = vmatprep.subr.bf16.mxu0 0
          %1050 = vmatpush1.bf16.xpose.msra.mxu0 0
          %1051 = vmatprep.subr.bf16.mxu0 0
          %1052 = vmatpush1.bf16.xpose.msra.mxu0 0
          %1053 = vmatprep.subr.bf16.mxu0 0
          %1054 = vmatpush1.bf16.xpose.msra.mxu0 0
          %1055 = vmatprep.subr.bf16.mxu0 0
          %1056 = vmatpush1.bf16.xpose.msra.mxu0 0
          %1057 = vmatprep.subr.bf16.mxu0 0
          %1058 = vmatpush1.bf16.xpose.msra.mxu0 0
          %1059 = vmatprep.subr.bf16.mxu0 0
          %1060 = vmatpush1.bf16.xpose.msra.mxu0 0
          %1061 = vmatprep.subr.bf16.mxu0 0
          %1062 = vmatpush1.bf16.xpose.msra.mxu0 0
          %1063 = vmatprep.subr.bf16.mxu0 0
          %1064 = vmatpush1.bf16.xpose.msra.mxu0 0
          %1065 = vmatprep.mubr.bf16.mxu0 0
          %1066 = vmatmul.mubr.bf16.gmra.mrb[0].mxu0 %v1028
          %v1067 = vpop.f32.mrb[0].mxu0
          %v1068 = vadd.f32 %v828, %v1067
          %v1069 = vpop.f32.mrb[0].mxu0
          %v1070 = vpop.f32.mrb[0].mxu0
          %v1071 = vadd.f32 %v829, %v1070
          %v1072 = vpop.f32.mrb[0].mxu0
          %1073 = vdwg.mxu0
          %vm1074 = vcmask 130048
          %v1075 = vsel %vm1074, %v1068, -inf
          %1076 = vmax.xlane.f32.xlu0 %v1075
          %v1077 = vpop.xlane.xlu0 %1076
          %v1078 = vsel %vm1074, %v1071, -inf
          %1079 = vmax.xlane.f32.xlu0 %v1078
          %v1080 = vpop.xlane.xlu0 %1079
          %v1081 = vsub.f32 %v1068, %v1077
          %v1082 = vsub.f32 %v1071, %v1080
          %v1083 = vmul.f32 %v1081, 1.442695
          %v1084 = vpow.pop %v1083
          %v1085 = vmul.f32 %v1082, 1.442695
          %v1086 = vpow.pop %v1085
          %v1087 = vsel %vm1074, %v1084, 0.0
          %1088 = vadd.xlane.f32.xlu0 %v1087
          %v1089 = vpop.xlane.xlu0 %1088
          %v1090 = vsel %vm1074, %v1086, 0.0
          %1091 = vadd.xlane.f32.xlu0 %v1090
          %v1092 = vpop.xlane.xlu0 %1091
          %v1093 = vpack.c.bf16 %v1086, %v1084
          %v1094 = vpack.c.bf16 %v1021, %v1018
          %v1096 = vsel %vm1074, %v1093, 0
          %1098 = vmatprep.subr.bf16.mxu0 0
          %1099 = vmatpush1.bf16.msra.mxu0 %v1094
          %1100 = vmatprep.subr.bf16.mxu0 0
          %1101 = vmatpush1.bf16.msra.mxu0 0
          %1102 = vmatprep.subr.bf16.mxu0 0
          %1103 = vmatpush1.bf16.msra.mxu0 0
          %1104 = vmatprep.subr.bf16.mxu0 0
          %1105 = vmatpush1.bf16.msra.mxu0 0
          %1106 = vmatprep.subr.bf16.mxu0 0
          %1107 = vmatpush1.bf16.msra.mxu0 0
          %1108 = vmatprep.subr.bf16.mxu0 0
          %1109 = vmatpush1.bf16.msra.mxu0 0
          %1110 = vmatprep.subr.bf16.mxu0 0
          %1111 = vmatpush1.bf16.msra.mxu0 0
          %1112 = vmatprep.subr.bf16.mxu0 0
          %1113 = vmatpush1.bf16.msra.mxu0 0
          %1114 = vmatprep.subr.bf16.mxu0 0
          %1115 = vmatpush1.bf16.msra.mxu0 0
          %1116 = vmatprep.subr.bf16.mxu0 0
          %1117 = vmatpush1.bf16.msra.mxu0 0
          %1118 = vmatprep.subr.bf16.mxu0 0
          %1119 = vmatpush1.bf16.msra.mxu0 0
          %1120 = vmatprep.subr.bf16.mxu0 0
          %1121 = vmatpush1.bf16.msra.mxu0 0
          %1122 = vmatprep.subr.bf16.mxu0 0
          %1123 = vmatpush1.bf16.msra.mxu0 0
          %1124 = vmatprep.subr.bf16.mxu0 0
          %1125 = vmatpush1.bf16.msra.mxu0 0
          %1126 = vmatprep.subr.bf16.mxu0 0
          %1127 = vmatpush1.bf16.msra.mxu0 0
          %1128 = vmatprep.subr.bf16.mxu0 0
          %1129 = vmatpush1.bf16.msra.mxu0 0
          %1130 = vmatprep.mubr.bf16.mxu0 0
          %1131 = vmatmul.mubr.bf16.gmra.mrb[0].mxu0 %v1096
          %v1132 = vpop.f32.mrb[0].mxu0
          %v1133 = vadd.f32 0.0, %v1132
          %v1134 = vpop.f32.mrb[0].mxu0
          %v1135 = vpop.f32.mrb[0].mxu0
          %v1136 = vadd.f32 0.0, %v1135
          %v1137 = vpop.f32.mrb[0].mxu0
          %1138 = vdwg.mxu0
          %v1139 = vrcp.pop %v1089
          %v1140 = vrcp.pop %v1092
          %v1141 = vmul.f32 %v1133, %v1139
          %v1142 = vmul.f32 %v1136, %v1140
          %v1143 = vpack.c.bf16 %v1142, %v1141
          %v1144 = vld [vmem:[%s9] sm:$0xf]
          %v1145 = vld [vmem:[%s9 + $0x4] sm:$0xf]
          %v1146 = vld [vmem:[%s9 + $0x8] sm:$0xf]
          %v1147 = vld [vmem:[%s9 + $0xc] sm:$0xf]
          %s1148 = scalar_lea.vmem %s3, 16
          %v1149 = vld [vmem:[%s1148] sm:$0xf]
          %v1150 = vld [vmem:[%s1148 + $0x4] sm:$0xf]
          %v1151 = vld [vmem:[%s1148 + $0x8] sm:$0xf]
          %v1152 = vld [vmem:[%s1148 + $0xc] sm:$0xf]
          %s1153 = scalar_lea.vmem %s6, 1
          %v1154 = vld [vmem:[%s1153] sm:$0x1]
          %v1156 = vlaneseq
          %v1157 = vshrl.u32 %v1156, 7
          %v1158 = vsub.s32 0, %v1157
          %v1159 = vrot.slane %v1154, %v1158
          %v1165 = vunpack.c.l.b16 %v1149
          %v1166 = vunpack.c.l.b16 %v1150
          %v1167 = vunpack.c.l.b16 %v1151
          %v1168 = vunpack.c.l.b16 %v1152
          %v1169 = vpack.c.b16 %v1166, %v1165
          %v1170 = vpack.c.b16 %v1168, %v1167
          %1173 = vmatprep.subr.bf16.mxu0 0
          %1174 = vmatpush1.bf16.xpose.msra.mxu0 %v1169
          %1175 = vmatprep.subr.bf16.mxu0 0
          %1176 = vmatpush1.bf16.xpose.msra.mxu0 %v1170
          %1177 = vmatprep.subr.bf16.mxu0 0
          %1178 = vmatpush1.bf16.xpose.msra.mxu0 0
          %1179 = vmatprep.subr.bf16.mxu0 0
          %1180 = vmatpush1.bf16.xpose.msra.mxu0 0
          %1181 = vmatprep.subr.bf16.mxu0 0
          %1182 = vmatpush1.bf16.xpose.msra.mxu0 0
          %1183 = vmatprep.subr.bf16.mxu0 0
          %1184 = vmatpush1.bf16.xpose.msra.mxu0 0
          %1185 = vmatprep.subr.bf16.mxu0 0
          %1186 = vmatpush1.bf16.xpose.msra.mxu0 0
          %1187 = vmatprep.subr.bf16.mxu0 0
          %1188 = vmatpush1.bf16.xpose.msra.mxu0 0
          %1189 = vmatprep.subr.bf16.mxu0 0
          %1190 = vmatpush1.bf16.xpose.msra.mxu0 0
          %1191 = vmatprep.subr.bf16.mxu0 0
          %1192 = vmatpush1.bf16.xpose.msra.mxu0 0
          %1193 = vmatprep.subr.bf16.mxu0 0
          %1194 = vmatpush1.bf16.xpose.msra.mxu0 0
          %1195 = vmatprep.subr.bf16.mxu0 0
          %1196 = vmatpush1.bf16.xpose.msra.mxu0 0
          %1197 = vmatprep.subr.bf16.mxu0 0
          %1198 = vmatpush1.bf16.xpose.msra.mxu0 0
          %1199 = vmatprep.subr.bf16.mxu0 0
          %1200 = vmatpush1.bf16.xpose.msra.mxu0 0
          %1201 = vmatprep.subr.bf16.mxu0 0
          %1202 = vmatpush1.bf16.xpose.msra.mxu0 0
          %1203 = vmatprep.subr.bf16.mxu0 0
          %1204 = vmatpush1.bf16.xpose.msra.mxu0 0
          %1205 = vmatprep.mubr.bf16.mxu0 0
          %1206 = vmatmul.mubr.bf16.gmra.mrb[0].mxu0 %v820
          %v1207 = vpop.f32.mrb[0].mxu0
          %v1208 = vadd.f32 %v1159, %v1207
          %v1209 = vpop.f32.mrb[0].mxu0
          %v1210 = vpop.f32.mrb[0].mxu0
          %v1211 = vadd.f32 %v1159, %v1210
          %v1212 = vpop.f32.mrb[0].mxu0
          %1213 = vdwg.mxu0
          %v1214 = vmul.f32 %v1208, 0.17677669
          %v1215 = vmul.f32 %v1211, 0.17677669
          %s1216 = scalar_lea.vmem %s4, 16
          %v1217 = vld [vmem:[%s1216] sm:$0xf]
          %v1218 = vld [vmem:[%s1216 + $0x4] sm:$0xf]
          %v1219 = vld [vmem:[%s1216 + $0x8] sm:$0xf]
          %v1220 = vld [vmem:[%s1216 + $0xc] sm:$0xf]
          %s1221 = scalar_lea.vmem %s7, 1
          %v1222 = vld [vmem:[%s1221] sm:$0x1]
          %v1224 = vlaneseq
          %v1225 = vshrl.u32 %v1224, 7
          %v1226 = vsub.s32 0, %v1225
          %v1227 = vrot.slane %v1222, %v1226
          %v1233 = vunpack.c.l.b16 %v1217
          %v1234 = vunpack.c.l.b16 %v1218
          %v1235 = vunpack.c.l.b16 %v1219
          %v1236 = vunpack.c.l.b16 %v1220
          %v1237 = vpack.c.b16 %v1234, %v1233
          %v1238 = vpack.c.b16 %v1236, %v1235
          %1241 = vmatprep.subr.bf16.mxu0 0
          %1242 = vmatpush1.bf16.xpose.msra.mxu0 %v1237
          %1243 = vmatprep.subr.bf16.mxu0 0
          %1244 = vmatpush1.bf16.xpose.msra.mxu0 %v1238
          %1245 = vmatprep.subr.bf16.mxu0 0
          %1246 = vmatpush1.bf16.xpose.msra.mxu0 0
          %1247 = vmatprep.subr.bf16.mxu0 0
          %1248 = vmatpush1.bf16.xpose.msra.mxu0 0
          %1249 = vmatprep.subr.bf16.mxu0 0
          %1250 = vmatpush1.bf16.xpose.msra.mxu0 0
          %1251 = vmatprep.subr.bf16.mxu0 0
          %1252 = vmatpush1.bf16.xpose.msra.mxu0 0
          %1253 = vmatprep.subr.bf16.mxu0 0
          %1254 = vmatpush1.bf16.xpose.msra.mxu0 0
          %1255 = vmatprep.subr.bf16.mxu0 0
          %1256 = vmatpush1.bf16.xpose.msra.mxu0 0
          %1257 = vmatprep.subr.bf16.mxu0 0
          %1258 = vmatpush1.bf16.xpose.msra.mxu0 0
          %1259 = vmatprep.subr.bf16.mxu0 0
          %1260 = vmatpush1.bf16.xpose.msra.mxu0 0
          %1261 = vmatprep.subr.bf16.mxu0 0
          %1262 = vmatpush1.bf16.xpose.msra.mxu0 0
          %1263 = vmatprep.subr.bf16.mxu0 0
          %1264 = vmatpush1.bf16.xpose.msra.mxu0 0
          %1265 = vmatprep.subr.bf16.mxu0 0
          %1266 = vmatpush1.bf16.xpose.msra.mxu0 0
          %1267 = vmatprep.subr.bf16.mxu0 0
          %1268 = vmatpush1.bf16.xpose.msra.mxu0 0
          %1269 = vmatprep.subr.bf16.mxu0 0
          %1270 = vmatpush1.bf16.xpose.msra.mxu0 0
          %1271 = vmatprep.subr.bf16.mxu0 0
          %1272 = vmatpush1.bf16.xpose.msra.mxu0 0
          %1273 = vmatprep.mubr.bf16.mxu0 0
          %1274 = vmatmul.mubr.bf16.gmra.mrb[0].mxu0 %v820
          %v1275 = vpop.f32.mrb[0].mxu0
          %v1276 = vadd.f32 %v1227, %v1275
          %v1277 = vpop.f32.mrb[0].mxu0
          %v1278 = vpop.f32.mrb[0].mxu0
          %v1279 = vadd.f32 %v1227, %v1278
          %v1280 = vpop.f32.mrb[0].mxu0
          %1281 = vdwg.mxu0
          %s1282 = scalar_lea.vmem %s5, 16
          %v1283 = vld [vmem:[%s1282] sm:$0xf]
          %v1284 = vld [vmem:[%s1282 + $0x4] sm:$0xf]
          %v1285 = vld [vmem:[%s1282 + $0x8] sm:$0xf]
          %v1286 = vld [vmem:[%s1282 + $0xc] sm:$0xf]
          %s1287 = scalar_lea.vmem %s8, 1
          %v1288 = vld [vmem:[%s1287] sm:$0x1]
          %v1290 = vlaneseq
          %v1291 = vshrl.u32 %v1290, 7
          %v1292 = vsub.s32 0, %v1291
          %v1293 = vrot.slane %v1288, %v1292
          %v1299 = vunpack.c.l.b16 %v1283
          %v1300 = vunpack.c.l.b16 %v1284
          %v1301 = vunpack.c.l.b16 %v1285
          %v1302 = vunpack.c.l.b16 %v1286
          %v1303 = vpack.c.b16 %v1300, %v1299
          %v1304 = vpack.c.b16 %v1302, %v1301
          %1307 = vmatprep.subr.bf16.mxu0 0
          %1308 = vmatpush1.bf16.xpose.msra.mxu0 %v1303
          %1309 = vmatprep.subr.bf16.mxu0 0
          %1310 = vmatpush1.bf16.xpose.msra.mxu0 %v1304
          %1311 = vmatprep.subr.bf16.mxu0 0
          %1312 = vmatpush1.bf16.xpose.msra.mxu0 0
          %1313 = vmatprep.subr.bf16.mxu0 0
          %1314 = vmatpush1.bf16.xpose.msra.mxu0 0
          %1315 = vmatprep.subr.bf16.mxu0 0
          %1316 = vmatpush1.bf16.xpose.msra.mxu0 0
          %1317 = vmatprep.subr.bf16.mxu0 0
          %1318 = vmatpush1.bf16.xpose.msra.mxu0 0
          %1319 = vmatprep.subr.bf16.mxu0 0
          %1320 = vmatpush1.bf16.xpose.msra.mxu0 0
          %1321 = vmatprep.subr.bf16.mxu0 0
          %1322 = vmatpush1.bf16.xpose.msra.mxu0 0
          %1323 = vmatprep.subr.bf16.mxu0 0
          %1324 = vmatpush1.bf16.xpose.msra.mxu0 0
          %1325 = vmatprep.subr.bf16.mxu0 0
          %1326 = vmatpush1.bf16.xpose.msra.mxu0 0
          %1327 = vmatprep.subr.bf16.mxu0 0
          %1328 = vmatpush1.bf16.xpose.msra.mxu0 0
          %1329 = vmatprep.subr.bf16.mxu0 0
          %1330 = vmatpush1.bf16.xpose.msra.mxu0 0
          %1331 = vmatprep.subr.bf16.mxu0 0
          %1332 = vmatpush1.bf16.xpose.msra.mxu0 0
          %1333 = vmatprep.subr.bf16.mxu0 0
          %1334 = vmatpush1.bf16.xpose.msra.mxu0 0
          %1335 = vmatprep.subr.bf16.mxu0 0
          %1336 = vmatpush1.bf16.xpose.msra.mxu0 0
          %1337 = vmatprep.subr.bf16.mxu0 0
          %1338 = vmatpush1.bf16.xpose.msra.mxu0 0
          %1339 = vmatprep.mubr.bf16.mxu0 0
          %1340 = vmatmul.mubr.bf16.gmra.mrb[0].mxu0 %v820
          %v1341 = vpop.f32.mrb[0].mxu0
          %v1342 = vadd.f32 %v1293, %v1341
          %v1343 = vpop.f32.mrb[0].mxu0
          %v1344 = vpop.f32.mrb[0].mxu0
          %v1345 = vadd.f32 %v1293, %v1344
          %v1346 = vpop.f32.mrb[0].mxu0
          %1347 = vdwg.mxu0
          %v1348 = vpack.c.bf16 %v1215, %v1214
          %v1349 = vpack.c.bf16 %v1279, %v1276
          %v1351 = vsel %vm1026, %v1348, 0
          %v1354 = vsel %vm1026, %v1349, 0
          %1356 = vmatprep.subr.bf16.mxu0 0
          %1357 = vmatpush1.bf16.xpose.msra.mxu0 %v1354
          %1358 = vmatprep.subr.bf16.mxu0 0
          %1359 = vmatpush1.bf16.xpose.msra.mxu0 0
          %1360 = vmatprep.subr.bf16.mxu0 0
          %1361 = vmatpush1.bf16.xpose.msra.mxu0 0
          %1362 = vmatprep.subr.bf16.mxu0 0
          %1363 = vmatpush1.bf16.xpose.msra.mxu0 0
          %1364 = vmatprep.subr.bf16.mxu0 0
          %1365 = vmatpush1.bf16.xpose.msra.mxu0 0
          %1366 = vmatprep.subr.bf16.mxu0 0
          %1367 = vmatpush1.bf16.xpose.msra.mxu0 0
          %1368 = vmatprep.subr.bf16.mxu0 0
          %1369 = vmatpush1.bf16.xpose.msra.mxu0 0
          %1370 = vmatprep.subr.bf16.mxu0 0
          %1371 = vmatpush1.bf16.xpose.msra.mxu0 0
          %1372 = vmatprep.subr.bf16.mxu0 0
          %1373 = vmatpush1.bf16.xpose.msra.mxu0 0
          %1374 = vmatprep.subr.bf16.mxu0 0
          %1375 = vmatpush1.bf16.xpose.msra.mxu0 0
          %1376 = vmatprep.subr.bf16.mxu0 0
          %1377 = vmatpush1.bf16.xpose.msra.mxu0 0
          %1378 = vmatprep.subr.bf16.mxu0 0
          %1379 = vmatpush1.bf16.xpose.msra.mxu0 0
          %1380 = vmatprep.subr.bf16.mxu0 0
          %1381 = vmatpush1.bf16.xpose.msra.mxu0 0
          %1382 = vmatprep.subr.bf16.mxu0 0
          %1383 = vmatpush1.bf16.xpose.msra.mxu0 0
          %1384 = vmatprep.subr.bf16.mxu0 0
          %1385 = vmatpush1.bf16.xpose.msra.mxu0 0
          %1386 = vmatprep.subr.bf16.mxu0 0
          %1387 = vmatpush1.bf16.xpose.msra.mxu0 0
          %1388 = vmatprep.mubr.bf16.mxu0 0
          %1389 = vmatmul.mubr.bf16.gmra.mrb[0].mxu0 %v1351
          %v1390 = vpop.f32.mrb[0].mxu0
          %v1391 = vadd.f32 %v828, %v1390
          %v1392 = vpop.f32.mrb[0].mxu0
          %v1393 = vpop.f32.mrb[0].mxu0
          %v1394 = vadd.f32 %v829, %v1393
          %v1395 = vpop.f32.mrb[0].mxu0
          %1396 = vdwg.mxu0
          %v1397 = vsel %vm1074, %v1391, -inf
          %1398 = vmax.xlane.f32.xlu0 %v1397
          %v1399 = vpop.xlane.xlu0 %1398
          %v1400 = vsel %vm1074, %v1394, -inf
          %1401 = vmax.xlane.f32.xlu0 %v1400
          %v1402 = vpop.xlane.xlu0 %1401
          %v1403 = vsub.f32 %v1391, %v1399
          %v1404 = vsub.f32 %v1394, %v1402
          %v1405 = vmul.f32 %v1403, 1.442695
          %v1406 = vpow.pop %v1405
          %v1407 = vmul.f32 %v1404, 1.442695
          %v1408 = vpow.pop %v1407
          %v1409 = vsel %vm1074, %v1406, 0.0
          %1410 = vadd.xlane.f32.xlu0 %v1409
          %v1411 = vpop.xlane.xlu0 %1410
          %v1412 = vsel %vm1074, %v1408, 0.0
          %1413 = vadd.xlane.f32.xlu0 %v1412
          %v1414 = vpop.xlane.xlu0 %1413
          %v1415 = vpack.c.bf16 %v1408, %v1406
          %v1416 = vpack.c.bf16 %v1345, %v1342
          %v1418 = vsel %vm1074, %v1415, 0
          %1420 = vmatprep.subr.bf16.mxu0 0
          %1421 = vmatpush1.bf16.msra.mxu0 %v1416
          %1422 = vmatprep.subr.bf16.mxu0 0
          %1423 = vmatpush1.bf16.msra.mxu0 0
          %1424 = vmatprep.subr.bf16.mxu0 0
          %1425 = vmatpush1.bf16.msra.mxu0 0
          %1426 = vmatprep.subr.bf16.mxu0 0
          %1427 = vmatpush1.bf16.msra.mxu0 0
          %1428 = vmatprep.subr.bf16.mxu0 0
          %1429 = vmatpush1.bf16.msra.mxu0 0
          %1430 = vmatprep.subr.bf16.mxu0 0
          %1431 = vmatpush1.bf16.msra.mxu0 0
          %1432 = vmatprep.subr.bf16.mxu0 0
          %1433 = vmatpush1.bf16.msra.mxu0 0
          %1434 = vmatprep.subr.bf16.mxu0 0
          %1435 = vmatpush1.bf16.msra.mxu0 0
          %1436 = vmatprep.subr.bf16.mxu0 0
          %1437 = vmatpush1.bf16.msra.mxu0 0
          %1438 = vmatprep.subr.bf16.mxu0 0
          %1439 = vmatpush1.bf16.msra.mxu0 0
          %1440 = vmatprep.subr.bf16.mxu0 0
          %1441 = vmatpush1.bf16.msra.mxu0 0
          %1442 = vmatprep.subr.bf16.mxu0 0
          %1443 = vmatpush1.bf16.msra.mxu0 0
          %1444 = vmatprep.subr.bf16.mxu0 0
          %1445 = vmatpush1.bf16.msra.mxu0 0
          %1446 = vmatprep.subr.bf16.mxu0 0
          %1447 = vmatpush1.bf16.msra.mxu0 0
          %1448 = vmatprep.subr.bf16.mxu0 0
          %1449 = vmatpush1.bf16.msra.mxu0 0
          %1450 = vmatprep.subr.bf16.mxu0 0
          %1451 = vmatpush1.bf16.msra.mxu0 0
          %1452 = vmatprep.mubr.bf16.mxu0 0
          %1453 = vmatmul.mubr.bf16.gmra.mrb[0].mxu0 %v1418
          %v1454 = vpop.f32.mrb[0].mxu0
          %v1455 = vadd.f32 0.0, %v1454
          %v1456 = vpop.f32.mrb[0].mxu0
          %v1457 = vpop.f32.mrb[0].mxu0
          %v1458 = vadd.f32 0.0, %v1457
          %v1459 = vpop.f32.mrb[0].mxu0
          %1460 = vdwg.mxu0
          %v1461 = vrcp.pop %v1411
          %v1462 = vrcp.pop %v1414
          %v1463 = vmul.f32 %v1455, %v1461
          %v1464 = vmul.f32 %v1458, %v1462
          %v1465 = vpack.c.bf16 %v1464, %v1463
          %s1466 = scalar_lea.vmem %s9, 16
          %v1467 = vld [vmem:[%s1466] sm:$0xf]
          %v1468 = vld [vmem:[%s1466 + $0x4] sm:$0xf]
          %v1469 = vld [vmem:[%s1466 + $0x8] sm:$0xf]
          %v1470 = vld [vmem:[%s1466 + $0xc] sm:$0xf]
          %v1475 = vunpack.c.l.b16 %v1467
          %v1476 = vunpack.c.l.b16 %v1468
          %v1477 = vunpack.c.l.b16 %v1469
          %v1478 = vunpack.c.l.b16 %v1470
          %v1479 = vpack.c.b16 %v1476, %v1475
          %v1480 = vpack.c.b16 %v1478, %v1477
          %v1484 = vsel %vm1026, %v1465, 0
          %1486 = vmatprep.subr.bf16.mxu0 0
          %1487 = vmatpush1.bf16.msra.mxu0 %v1479
          %1488 = vmatprep.subr.bf16.mxu0 0
          %1489 = vmatpush1.bf16.msra.mxu0 %v1480
          %1490 = vmatprep.subr.bf16.mxu0 0
          %1491 = vmatpush1.bf16.msra.mxu0 0
          %1492 = vmatprep.subr.bf16.mxu0 0
          %1493 = vmatpush1.bf16.msra.mxu0 0
          %1494 = vmatprep.subr.bf16.mxu0 0
          %1495 = vmatpush1.bf16.msra.mxu0 0
          %1496 = vmatprep.subr.bf16.mxu0 0
          %1497 = vmatpush1.bf16.msra.mxu0 0
          %1498 = vmatprep.subr.bf16.mxu0 0
          %1499 = vmatpush1.bf16.msra.mxu0 0
          %1500 = vmatprep.subr.bf16.mxu0 0
          %1501 = vmatpush1.bf16.msra.mxu0 0
          %1502 = vmatprep.subr.bf16.mxu0 0
          %1503 = vmatpush1.bf16.msra.mxu0 0
          %1504 = vmatprep.subr.bf16.mxu0 0
          %1505 = vmatpush1.bf16.msra.mxu0 0
          %1506 = vmatprep.subr.bf16.mxu0 0
          %1507 = vmatpush1.bf16.msra.mxu0 0
          %1508 = vmatprep.subr.bf16.mxu0 0
          %1509 = vmatpush1.bf16.msra.mxu0 0
          %1510 = vmatprep.subr.bf16.mxu0 0
          %1511 = vmatpush1.bf16.msra.mxu0 0
          %1512 = vmatprep.subr.bf16.mxu0 0
          %1513 = vmatpush1.bf16.msra.mxu0 0
          %1514 = vmatprep.subr.bf16.mxu0 0
          %1515 = vmatpush1.bf16.msra.mxu0 0
          %1516 = vmatprep.subr.bf16.mxu0 0
          %1517 = vmatpush1.bf16.msra.mxu0 0
          %1518 = vmatprep.mubr.bf16.mxu0 0
          %1519 = vmatmul.mubr.bf16.gmra.mrb[0].mxu0 %v1484
          %v1520 = vpop.f32.mrb[0].mxu0
          %v1521 = vadd.f32 0.0, %v1520
          %v1522 = vpop.f32.mrb[0].mxu0
          %v1523 = vpop.f32.mrb[0].mxu0
          %v1524 = vadd.f32 0.0, %v1523
          %v1525 = vpop.f32.mrb[0].mxu0
          %1526 = vdwg.mxu0
          %v1531 = vunpack.c.l.b16 %v1144
          %v1532 = vunpack.c.l.b16 %v1145
          %v1533 = vunpack.c.l.b16 %v1146
          %v1534 = vunpack.c.l.b16 %v1147
          %v1535 = vpack.c.b16 %v1532, %v1531
          %v1536 = vpack.c.b16 %v1534, %v1533
          %v1540 = vsel %vm1026, %v1143, 0
          %1542 = vmatprep.subr.bf16.mxu0 0
          %1543 = vmatpush1.bf16.msra.mxu0 %v1535
          %1544 = vmatprep.subr.bf16.mxu0 0
          %1545 = vmatpush1.bf16.msra.mxu0 %v1536
          %1546 = vmatprep.subr.bf16.mxu0 0
          %1547 = vmatpush1.bf16.msra.mxu0 0
          %1548 = vmatprep.subr.bf16.mxu0 0
          %1549 = vmatpush1.bf16.msra.mxu0 0
          %1550 = vmatprep.subr.bf16.mxu0 0
          %1551 = vmatpush1.bf16.msra.mxu0 0
          %1552 = vmatprep.subr.bf16.mxu0 0
          %1553 = vmatpush1.bf16.msra.mxu0 0
          %1554 = vmatprep.subr.bf16.mxu0 0
          %1555 = vmatpush1.bf16.msra.mxu0 0
          %1556 = vmatprep.subr.bf16.mxu0 0
          %1557 = vmatpush1.bf16.msra.mxu0 0
          %1558 = vmatprep.subr.bf16.mxu0 0
          %1559 = vmatpush1.bf16.msra.mxu0 0
          %1560 = vmatprep.subr.bf16.mxu0 0
          %1561 = vmatpush1.bf16.msra.mxu0 0
          %1562 = vmatprep.subr.bf16.mxu0 0
          %1563 = vmatpush1.bf16.msra.mxu0 0
          %1564 = vmatprep.subr.bf16.mxu0 0
          %1565 = vmatpush1.bf16.msra.mxu0 0
          %1566 = vmatprep.subr.bf16.mxu0 0
          %1567 = vmatpush1.bf16.msra.mxu0 0
          %1568 = vmatprep.subr.bf16.mxu0 0
          %1569 = vmatpush1.bf16.msra.mxu0 0
          %1570 = vmatprep.subr.bf16.mxu0 0
          %1571 = vmatpush1.bf16.msra.mxu0 0
          %1572 = vmatprep.subr.bf16.mxu0 0
          %1573 = vmatpush1.bf16.msra.mxu0 0
          %1574 = vmatprep.mubr.bf16.mxu0 0
          %1575 = vmatmul.mubr.bf16.gmra.mrb[0].mxu0 %v1540
          %v1576 = vpop.f32.mrb[0].mxu0
          %v1577 = vadd.f32 %v1521, %v1576
          %v1578 = vpop.f32.mrb[0].mxu0
          %v1579 = vpop.f32.mrb[0].mxu0
          %v1580 = vadd.f32 %v1524, %v1579
          %v1581 = vpop.f32.mrb[0].mxu0
          %1582 = vdwg.mxu0
          %s1583 = scalar_lea.vmem %s3, 32
          %v1584 = vld [vmem:[%s1583] sm:$0xf]
          %v1585 = vld [vmem:[%s1583 + $0x4] sm:$0xf]
          %v1586 = vld [vmem:[%s1583 + $0x8] sm:$0xf]
          %v1587 = vld [vmem:[%s1583 + $0xc] sm:$0xf]
          %s1588 = scalar_lea.vmem %s6, 2
          %v1589 = vld [vmem:[%s1588] sm:$0x1]
          %v1591 = vlaneseq
          %v1592 = vshrl.u32 %v1591, 7
          %v1593 = vsub.s32 0, %v1592
          %v1594 = vrot.slane %v1589, %v1593
          %v1600 = vunpack.c.l.b16 %v1584
          %v1601 = vunpack.c.l.b16 %v1585
          %v1602 = vunpack.c.l.b16 %v1586
          %v1603 = vunpack.c.l.b16 %v1587
          %v1604 = vpack.c.b16 %v1601, %v1600
          %v1605 = vpack.c.b16 %v1603, %v1602
          %1608 = vmatprep.subr.bf16.mxu0 0
          %1609 = vmatpush1.bf16.xpose.msra.mxu0 %v1604
          %1610 = vmatprep.subr.bf16.mxu0 0
          %1611 = vmatpush1.bf16.xpose.msra.mxu0 %v1605
          %1612 = vmatprep.subr.bf16.mxu0 0
          %1613 = vmatpush1.bf16.xpose.msra.mxu0 0
          %1614 = vmatprep.subr.bf16.mxu0 0
          %1615 = vmatpush1.bf16.xpose.msra.mxu0 0
          %1616 = vmatprep.subr.bf16.mxu0 0
          %1617 = vmatpush1.bf16.xpose.msra.mxu0 0
          %1618 = vmatprep.subr.bf16.mxu0 0
          %1619 = vmatpush1.bf16.xpose.msra.mxu0 0
          %1620 = vmatprep.subr.bf16.mxu0 0
          %1621 = vmatpush1.bf16.xpose.msra.mxu0 0
          %1622 = vmatprep.subr.bf16.mxu0 0
          %1623 = vmatpush1.bf16.xpose.msra.mxu0 0
          %1624 = vmatprep.subr.bf16.mxu0 0
          %1625 = vmatpush1.bf16.xpose.msra.mxu0 0
          %1626 = vmatprep.subr.bf16.mxu0 0
          %1627 = vmatpush1.bf16.xpose.msra.mxu0 0
          %1628 = vmatprep.subr.bf16.mxu0 0
          %1629 = vmatpush1.bf16.xpose.msra.mxu0 0
          %1630 = vmatprep.subr.bf16.mxu0 0
          %1631 = vmatpush1.bf16.xpose.msra.mxu0 0
          %1632 = vmatprep.subr.bf16.mxu0 0
          %1633 = vmatpush1.bf16.xpose.msra.mxu0 0
          %1634 = vmatprep.subr.bf16.mxu0 0
          %1635 = vmatpush1.bf16.xpose.msra.mxu0 0
          %1636 = vmatprep.subr.bf16.mxu0 0
          %1637 = vmatpush1.bf16.xpose.msra.mxu0 0
          %1638 = vmatprep.subr.bf16.mxu0 0
          %1639 = vmatpush1.bf16.xpose.msra.mxu0 0
          %1640 = vmatprep.mubr.bf16.mxu0 0
          %1641 = vmatmul.mubr.bf16.gmra.mrb[0].mxu0 %v820
          %v1642 = vpop.f32.mrb[0].mxu0
          %v1643 = vadd.f32 %v1594, %v1642
          %v1644 = vpop.f32.mrb[0].mxu0
          %v1645 = vpop.f32.mrb[0].mxu0
          %v1646 = vadd.f32 %v1594, %v1645
          %v1647 = vpop.f32.mrb[0].mxu0
          %1648 = vdwg.mxu0
          %v1649 = vmul.f32 %v1643, 0.17677669
          %v1650 = vmul.f32 %v1646, 0.17677669
          %s1651 = scalar_lea.vmem %s4, 32
          %v1652 = vld [vmem:[%s1651] sm:$0xf]
          %v1653 = vld [vmem:[%s1651 + $0x4] sm:$0xf]
          %v1654 = vld [vmem:[%s1651 + $0x8] sm:$0xf]
          %v1655 = vld [vmem:[%s1651 + $0xc] sm:$0xf]
          %s1656 = scalar_lea.vmem %s7, 2
          %v1657 = vld [vmem:[%s1656] sm:$0x1]
          %v1659 = vlaneseq
          %v1660 = vshrl.u32 %v1659, 7
          %v1661 = vsub.s32 0, %v1660
          %v1662 = vrot.slane %v1657, %v1661
          %v1668 = vunpack.c.l.b16 %v1652
          %v1669 = vunpack.c.l.b16 %v1653
          %v1670 = vunpack.c.l.b16 %v1654
          %v1671 = vunpack.c.l.b16 %v1655
          %v1672 = vpack.c.b16 %v1669, %v1668
          %v1673 = vpack.c.b16 %v1671, %v1670
          %1676 = vmatprep.subr.bf16.mxu0 0
          %1677 = vmatpush1.bf16.xpose.msra.mxu0 %v1672
          %1678 = vmatprep.subr.bf16.mxu0 0
          %1679 = vmatpush1.bf16.xpose.msra.mxu0 %v1673
          %1680 = vmatprep.subr.bf16.mxu0 0
          %1681 = vmatpush1.bf16.xpose.msra.mxu0 0
          %1682 = vmatprep.subr.bf16.mxu0 0
          %1683 = vmatpush1.bf16.xpose.msra.mxu0 0
          %1684 = vmatprep.subr.bf16.mxu0 0
          %1685 = vmatpush1.bf16.xpose.msra.mxu0 0
          %1686 = vmatprep.subr.bf16.mxu0 0
          %1687 = vmatpush1.bf16.xpose.msra.mxu0 0
          %1688 = vmatprep.subr.bf16.mxu0 0
          %1689 = vmatpush1.bf16.xpose.msra.mxu0 0
          %1690 = vmatprep.subr.bf16.mxu0 0
          %1691 = vmatpush1.bf16.xpose.msra.mxu0 0
          %1692 = vmatprep.subr.bf16.mxu0 0
          %1693 = vmatpush1.bf16.xpose.msra.mxu0 0
          %1694 = vmatprep.subr.bf16.mxu0 0
          %1695 = vmatpush1.bf16.xpose.msra.mxu0 0
          %1696 = vmatprep.subr.bf16.mxu0 0
          %1697 = vmatpush1.bf16.xpose.msra.mxu0 0
          %1698 = vmatprep.subr.bf16.mxu0 0
          %1699 = vmatpush1.bf16.xpose.msra.mxu0 0
          %1700 = vmatprep.subr.bf16.mxu0 0
          %1701 = vmatpush1.bf16.xpose.msra.mxu0 0
          %1702 = vmatprep.subr.bf16.mxu0 0
          %1703 = vmatpush1.bf16.xpose.msra.mxu0 0
          %1704 = vmatprep.subr.bf16.mxu0 0
          %1705 = vmatpush1.bf16.xpose.msra.mxu0 0
          %1706 = vmatprep.subr.bf16.mxu0 0
          %1707 = vmatpush1.bf16.xpose.msra.mxu0 0
          %1708 = vmatprep.mubr.bf16.mxu0 0
          %1709 = vmatmul.mubr.bf16.gmra.mrb[0].mxu0 %v820
          %v1710 = vpop.f32.mrb[0].mxu0
          %v1711 = vadd.f32 %v1662, %v1710
          %v1712 = vpop.f32.mrb[0].mxu0
          %v1713 = vpop.f32.mrb[0].mxu0
          %v1714 = vadd.f32 %v1662, %v1713
          %v1715 = vpop.f32.mrb[0].mxu0
          %1716 = vdwg.mxu0
          %s1717 = scalar_lea.vmem %s5, 32
          %v1718 = vld [vmem:[%s1717] sm:$0xf]
          %v1719 = vld [vmem:[%s1717 + $0x4] sm:$0xf]
          %v1720 = vld [vmem:[%s1717 + $0x8] sm:$0xf]
          %v1721 = vld [vmem:[%s1717 + $0xc] sm:$0xf]
          %s1722 = scalar_lea.vmem %s8, 2
          %v1723 = vld [vmem:[%s1722] sm:$0x1]
          %v1725 = vlaneseq
          %v1726 = vshrl.u32 %v1725, 7
          %v1727 = vsub.s32 0, %v1726
          %v1728 = vrot.slane %v1723, %v1727
          %v1734 = vunpack.c.l.b16 %v1718
          %v1735 = vunpack.c.l.b16 %v1719
          %v1736 = vunpack.c.l.b16 %v1720
          %v1737 = vunpack.c.l.b16 %v1721
          %v1738 = vpack.c.b16 %v1735, %v1734
          %v1739 = vpack.c.b16 %v1737, %v1736
          %1742 = vmatprep.subr.bf16.mxu0 0
          %1743 = vmatpush1.bf16.xpose.msra.mxu0 %v1738
          %1744 = vmatprep.subr.bf16.mxu0 0
          %1745 = vmatpush1.bf16.xpose.msra.mxu0 %v1739
          %1746 = vmatprep.subr.bf16.mxu0 0
          %1747 = vmatpush1.bf16.xpose.msra.mxu0 0
          %1748 = vmatprep.subr.bf16.mxu0 0
          %1749 = vmatpush1.bf16.xpose.msra.mxu0 0
          %1750 = vmatprep.subr.bf16.mxu0 0
          %1751 = vmatpush1.bf16.xpose.msra.mxu0 0
          %1752 = vmatprep.subr.bf16.mxu0 0
          %1753 = vmatpush1.bf16.xpose.msra.mxu0 0
          %1754 = vmatprep.subr.bf16.mxu0 0
          %1755 = vmatpush1.bf16.xpose.msra.mxu0 0
          %1756 = vmatprep.subr.bf16.mxu0 0
          %1757 = vmatpush1.bf16.xpose.msra.mxu0 0
          %1758 = vmatprep.subr.bf16.mxu0 0
          %1759 = vmatpush1.bf16.xpose.msra.mxu0 0
          %1760 = vmatprep.subr.bf16.mxu0 0
          %1761 = vmatpush1.bf16.xpose.msra.mxu0 0
          %1762 = vmatprep.subr.bf16.mxu0 0
          %1763 = vmatpush1.bf16.xpose.msra.mxu0 0
          %1764 = vmatprep.subr.bf16.mxu0 0
          %1765 = vmatpush1.bf16.xpose.msra.mxu0 0
          %1766 = vmatprep.subr.bf16.mxu0 0
          %1767 = vmatpush1.bf16.xpose.msra.mxu0 0
          %1768 = vmatprep.subr.bf16.mxu0 0
          %1769 = vmatpush1.bf16.xpose.msra.mxu0 0
          %1770 = vmatprep.subr.bf16.mxu0 0
          %1771 = vmatpush1.bf16.xpose.msra.mxu0 0
          %1772 = vmatprep.subr.bf16.mxu0 0
          %1773 = vmatpush1.bf16.xpose.msra.mxu0 0
          %1774 = vmatprep.mubr.bf16.mxu0 0
          %1775 = vmatmul.mubr.bf16.gmra.mrb[0].mxu0 %v820
          %v1776 = vpop.f32.mrb[0].mxu0
          %v1777 = vadd.f32 %v1728, %v1776
          %v1778 = vpop.f32.mrb[0].mxu0
          %v1779 = vpop.f32.mrb[0].mxu0
          %v1780 = vadd.f32 %v1728, %v1779
          %v1781 = vpop.f32.mrb[0].mxu0
          %1782 = vdwg.mxu0
          %v1783 = vpack.c.bf16 %v1650, %v1649
          %v1784 = vpack.c.bf16 %v1714, %v1711
          %v1786 = vsel %vm1026, %v1783, 0
          %v1789 = vsel %vm1026, %v1784, 0
          %1791 = vmatprep.subr.bf16.mxu0 0
          %1792 = vmatpush1.bf16.xpose.msra.mxu0 %v1789
          %1793 = vmatprep.subr.bf16.mxu0 0
          %1794 = vmatpush1.bf16.xpose.msra.mxu0 0
          %1795 = vmatprep.subr.bf16.mxu0 0
          %1796 = vmatpush1.bf16.xpose.msra.mxu0 0
          %1797 = vmatprep.subr.bf16.mxu0 0
          %1798 = vmatpush1.bf16.xpose.msra.mxu0 0
          %1799 = vmatprep.subr.bf16.mxu0 0
          %1800 = vmatpush1.bf16.xpose.msra.mxu0 0
          %1801 = vmatprep.subr.bf16.mxu0 0
          %1802 = vmatpush1.bf16.xpose.msra.mxu0 0
          %1803 = vmatprep.subr.bf16.mxu0 0
          %1804 = vmatpush1.bf16.xpose.msra.mxu0 0
          %1805 = vmatprep.subr.bf16.mxu0 0
          %1806 = vmatpush1.bf16.xpose.msra.mxu0 0
          %1807 = vmatprep.subr.bf16.mxu0 0
          %1808 = vmatpush1.bf16.xpose.msra.mxu0 0
          %1809 = vmatprep.subr.bf16.mxu0 0
          %1810 = vmatpush1.bf16.xpose.msra.mxu0 0
          %1811 = vmatprep.subr.bf16.mxu0 0
          %1812 = vmatpush1.bf16.xpose.msra.mxu0 0
          %1813 = vmatprep.subr.bf16.mxu0 0
          %1814 = vmatpush1.bf16.xpose.msra.mxu0 0
          %1815 = vmatprep.subr.bf16.mxu0 0
          %1816 = vmatpush1.bf16.xpose.msra.mxu0 0
          %1817 = vmatprep.subr.bf16.mxu0 0
          %1818 = vmatpush1.bf16.xpose.msra.mxu0 0
          %1819 = vmatprep.subr.bf16.mxu0 0
          %1820 = vmatpush1.bf16.xpose.msra.mxu0 0
          %1821 = vmatprep.subr.bf16.mxu0 0
          %1822 = vmatpush1.bf16.xpose.msra.mxu0 0
          %1823 = vmatprep.mubr.bf16.mxu0 0
          %1824 = vmatmul.mubr.bf16.gmra.mrb[0].mxu0 %v1786
          %v1825 = vpop.f32.mrb[0].mxu0
          %v1826 = vadd.f32 %v828, %v1825
          %v1827 = vpop.f32.mrb[0].mxu0
          %v1828 = vpop.f32.mrb[0].mxu0
          %v1829 = vadd.f32 %v829, %v1828
          %v1830 = vpop.f32.mrb[0].mxu0
          %1831 = vdwg.mxu0
          %v1832 = vsel %vm1074, %v1826, -inf
          %1833 = vmax.xlane.f32.xlu0 %v1832
          %v1834 = vpop.xlane.xlu0 %1833
          %v1835 = vsel %vm1074, %v1829, -inf
          %1836 = vmax.xlane.f32.xlu0 %v1835
          %v1837 = vpop.xlane.xlu0 %1836
          %v1838 = vsub.f32 %v1826, %v1834
          %v1839 = vsub.f32 %v1829, %v1837
          %v1840 = vmul.f32 %v1838, 1.442695
          %v1841 = vpow.pop %v1840
          %v1842 = vmul.f32 %v1839, 1.442695
          %v1843 = vpow.pop %v1842
          %v1844 = vsel %vm1074, %v1841, 0.0
          %1845 = vadd.xlane.f32.xlu0 %v1844
          %v1846 = vpop.xlane.xlu0 %1845
          %v1847 = vsel %vm1074, %v1843, 0.0
          %1848 = vadd.xlane.f32.xlu0 %v1847
          %v1849 = vpop.xlane.xlu0 %1848
          %v1850 = vpack.c.bf16 %v1843, %v1841
          %v1851 = vpack.c.bf16 %v1780, %v1777
          %v1853 = vsel %vm1074, %v1850, 0
          %1855 = vmatprep.subr.bf16.mxu0 0
          %1856 = vmatpush1.bf16.msra.mxu0 %v1851
          %1857 = vmatprep.subr.bf16.mxu0 0
          %1858 = vmatpush1.bf16.msra.mxu0 0
          %1859 = vmatprep.subr.bf16.mxu0 0
          %1860 = vmatpush1.bf16.msra.mxu0 0
          %1861 = vmatprep.subr.bf16.mxu0 0
          %1862 = vmatpush1.bf16.msra.mxu0 0
          %1863 = vmatprep.subr.bf16.mxu0 0
          %1864 = vmatpush1.bf16.msra.mxu0 0
          %1865 = vmatprep.subr.bf16.mxu0 0
          %1866 = vmatpush1.bf16.msra.mxu0 0
          %1867 = vmatprep.subr.bf16.mxu0 0
          %1868 = vmatpush1.bf16.msra.mxu0 0
          %1869 = vmatprep.subr.bf16.mxu0 0
          %1870 = vmatpush1.bf16.msra.mxu0 0
          %1871 = vmatprep.subr.bf16.mxu0 0
          %1872 = vmatpush1.bf16.msra.mxu0 0
          %1873 = vmatprep.subr.bf16.mxu0 0
          %1874 = vmatpush1.bf16.msra.mxu0 0
          %1875 = vmatprep.subr.bf16.mxu0 0
          %1876 = vmatpush1.bf16.msra.mxu0 0
          %1877 = vmatprep.subr.bf16.mxu0 0
          %1878 = vmatpush1.bf16.msra.mxu0 0
          %1879 = vmatprep.subr.bf16.mxu0 0
          %1880 = vmatpush1.bf16.msra.mxu0 0
          %1881 = vmatprep.subr.bf16.mxu0 0
          %1882 = vmatpush1.bf16.msra.mxu0 0
          %1883 = vmatprep.subr.bf16.mxu0 0
          %1884 = vmatpush1.bf16.msra.mxu0 0
          %1885 = vmatprep.subr.bf16.mxu0 0
          %1886 = vmatpush1.bf16.msra.mxu0 0
          %1887 = vmatprep.mubr.bf16.mxu0 0
          %1888 = vmatmul.mubr.bf16.gmra.mrb[0].mxu0 %v1853
          %v1889 = vpop.f32.mrb[0].mxu0
          %v1890 = vadd.f32 0.0, %v1889
          %v1891 = vpop.f32.mrb[0].mxu0
          %v1892 = vpop.f32.mrb[0].mxu0
          %v1893 = vadd.f32 0.0, %v1892
          %v1894 = vpop.f32.mrb[0].mxu0
          %1895 = vdwg.mxu0
          %v1896 = vrcp.pop %v1846
          %v1897 = vrcp.pop %v1849
          %v1898 = vmul.f32 %v1890, %v1896
          %v1899 = vmul.f32 %v1893, %v1897
          %v1900 = vpack.c.bf16 %v1899, %v1898
          %s1901 = scalar_lea.vmem %s9, 32
          %v1902 = vld [vmem:[%s1901] sm:$0xf]
          %v1903 = vld [vmem:[%s1901 + $0x4] sm:$0xf]
          %v1904 = vld [vmem:[%s1901 + $0x8] sm:$0xf]
          %v1905 = vld [vmem:[%s1901 + $0xc] sm:$0xf]
          %v1910 = vunpack.c.l.b16 %v1902
          %v1911 = vunpack.c.l.b16 %v1903
          %v1912 = vunpack.c.l.b16 %v1904
          %v1913 = vunpack.c.l.b16 %v1905
          %v1914 = vpack.c.b16 %v1911, %v1910
          %v1915 = vpack.c.b16 %v1913, %v1912
          %v1919 = vsel %vm1026, %v1900, 0
          %1921 = vmatprep.subr.bf16.mxu0 0
          %1922 = vmatpush1.bf16.msra.mxu0 %v1914
          %1923 = vmatprep.subr.bf16.mxu0 0
          %1924 = vmatpush1.bf16.msra.mxu0 %v1915
          %1925 = vmatprep.subr.bf16.mxu0 0
          %1926 = vmatpush1.bf16.msra.mxu0 0
          %1927 = vmatprep.subr.bf16.mxu0 0
          %1928 = vmatpush1.bf16.msra.mxu0 0
          %1929 = vmatprep.subr.bf16.mxu0 0
          %1930 = vmatpush1.bf16.msra.mxu0 0
          %1931 = vmatprep.subr.bf16.mxu0 0
          %1932 = vmatpush1.bf16.msra.mxu0 0
          %1933 = vmatprep.subr.bf16.mxu0 0
          %1934 = vmatpush1.bf16.msra.mxu0 0
          %1935 = vmatprep.subr.bf16.mxu0 0
          %1936 = vmatpush1.bf16.msra.mxu0 0
          %1937 = vmatprep.subr.bf16.mxu0 0
          %1938 = vmatpush1.bf16.msra.mxu0 0
          %1939 = vmatprep.subr.bf16.mxu0 0
          %1940 = vmatpush1.bf16.msra.mxu0 0
          %1941 = vmatprep.subr.bf16.mxu0 0
          %1942 = vmatpush1.bf16.msra.mxu0 0
          %1943 = vmatprep.subr.bf16.mxu0 0
          %1944 = vmatpush1.bf16.msra.mxu0 0
          %1945 = vmatprep.subr.bf16.mxu0 0
          %1946 = vmatpush1.bf16.msra.mxu0 0
          %1947 = vmatprep.subr.bf16.mxu0 0
          %1948 = vmatpush1.bf16.msra.mxu0 0
          %1949 = vmatprep.subr.bf16.mxu0 0
          %1950 = vmatpush1.bf16.msra.mxu0 0
          %1951 = vmatprep.subr.bf16.mxu0 0
          %1952 = vmatpush1.bf16.msra.mxu0 0
          %1953 = vmatprep.mubr.bf16.mxu0 0
          %1954 = vmatmul.mubr.bf16.gmra.mrb[0].mxu0 %v1919
          %v1955 = vpop.f32.mrb[0].mxu0
          %v1956 = vadd.f32 0.0, %v1955
          %v1957 = vpop.f32.mrb[0].mxu0
          %v1958 = vpop.f32.mrb[0].mxu0
          %v1959 = vadd.f32 0.0, %v1958
          %v1960 = vpop.f32.mrb[0].mxu0
          %1961 = vdwg.mxu0
          %v1962 = vadd.f32 %v1577, %v1956
          %v1963 = vadd.f32 %v1580, %v1959
          %s1964 = scalar_lea.vmem %s3, 48
          %v1965 = vld [vmem:[%s1964] sm:$0xf]
          %v1966 = vld [vmem:[%s1964 + $0x4] sm:$0xf]
          %v1967 = vld [vmem:[%s1964 + $0x8] sm:$0xf]
          %v1968 = vld [vmem:[%s1964 + $0xc] sm:$0xf]
          %s1969 = scalar_lea.vmem %s6, 3
          %v1970 = vld [vmem:[%s1969] sm:$0x1]
          %v1972 = vlaneseq
          %v1973 = vshrl.u32 %v1972, 7
          %v1974 = vsub.s32 0, %v1973
          %v1975 = vrot.slane %v1970, %v1974
          %v1981 = vunpack.c.l.b16 %v1965
          %v1982 = vunpack.c.l.b16 %v1966
          %v1983 = vunpack.c.l.b16 %v1967
          %v1984 = vunpack.c.l.b16 %v1968
          %v1985 = vpack.c.b16 %v1982, %v1981
          %v1986 = vpack.c.b16 %v1984, %v1983
          %1989 = vmatprep.subr.bf16.mxu0 0
          %1990 = vmatpush1.bf16.xpose.msra.mxu0 %v1985
          %1991 = vmatprep.subr.bf16.mxu0 0
          %1992 = vmatpush1.bf16.xpose.msra.mxu0 %v1986
          %1993 = vmatprep.subr.bf16.mxu0 0
          %1994 = vmatpush1.bf16.xpose.msra.mxu0 0
          %1995 = vmatprep.subr.bf16.mxu0 0
          %1996 = vmatpush1.bf16.xpose.msra.mxu0 0
          %1997 = vmatprep.subr.bf16.mxu0 0
          %1998 = vmatpush1.bf16.xpose.msra.mxu0 0
          %1999 = vmatprep.subr.bf16.mxu0 0
          %2000 = vmatpush1.bf16.xpose.msra.mxu0 0
          %2001 = vmatprep.subr.bf16.mxu0 0
          %2002 = vmatpush1.bf16.xpose.msra.mxu0 0
          %2003 = vmatprep.subr.bf16.mxu0 0
          %2004 = vmatpush1.bf16.xpose.msra.mxu0 0
          %2005 = vmatprep.subr.bf16.mxu0 0
          %2006 = vmatpush1.bf16.xpose.msra.mxu0 0
          %2007 = vmatprep.subr.bf16.mxu0 0
          %2008 = vmatpush1.bf16.xpose.msra.mxu0 0
          %2009 = vmatprep.subr.bf16.mxu0 0
          %2010 = vmatpush1.bf16.xpose.msra.mxu0 0
          %2011 = vmatprep.subr.bf16.mxu0 0
          %2012 = vmatpush1.bf16.xpose.msra.mxu0 0
          %2013 = vmatprep.subr.bf16.mxu0 0
          %2014 = vmatpush1.bf16.xpose.msra.mxu0 0
          %2015 = vmatprep.subr.bf16.mxu0 0
          %2016 = vmatpush1.bf16.xpose.msra.mxu0 0
          %2017 = vmatprep.subr.bf16.mxu0 0
          %2018 = vmatpush1.bf16.xpose.msra.mxu0 0
          %2019 = vmatprep.subr.bf16.mxu0 0
          %2020 = vmatpush1.bf16.xpose.msra.mxu0 0
          %2021 = vmatprep.mubr.bf16.mxu0 0
          %2022 = vmatmul.mubr.bf16.gmra.mrb[0].mxu0 %v820
          %v2023 = vpop.f32.mrb[0].mxu0
          %v2024 = vadd.f32 %v1975, %v2023
          %v2025 = vpop.f32.mrb[0].mxu0
          %v2026 = vpop.f32.mrb[0].mxu0
          %v2027 = vadd.f32 %v1975, %v2026
          %v2028 = vpop.f32.mrb[0].mxu0
          %2029 = vdwg.mxu0
          %v2030 = vmul.f32 %v2024, 0.17677669
          %v2031 = vmul.f32 %v2027, 0.17677669
          %s2032 = scalar_lea.vmem %s4, 48
          %v2033 = vld [vmem:[%s2032] sm:$0xf]
          %v2034 = vld [vmem:[%s2032 + $0x4] sm:$0xf]
          %v2035 = vld [vmem:[%s2032 + $0x8] sm:$0xf]
          %v2036 = vld [vmem:[%s2032 + $0xc] sm:$0xf]
          %s2037 = scalar_lea.vmem %s7, 3
          %v2038 = vld [vmem:[%s2037] sm:$0x1]
          %v2040 = vlaneseq
          %v2041 = vshrl.u32 %v2040, 7
          %v2042 = vsub.s32 0, %v2041
          %v2043 = vrot.slane %v2038, %v2042
          %v2049 = vunpack.c.l.b16 %v2033
          %v2050 = vunpack.c.l.b16 %v2034
          %v2051 = vunpack.c.l.b16 %v2035
          %v2052 = vunpack.c.l.b16 %v2036
          %v2053 = vpack.c.b16 %v2050, %v2049
          %v2054 = vpack.c.b16 %v2052, %v2051
          %2057 = vmatprep.subr.bf16.mxu0 0
          %2058 = vmatpush1.bf16.xpose.msra.mxu0 %v2053
          %2059 = vmatprep.subr.bf16.mxu0 0
          %2060 = vmatpush1.bf16.xpose.msra.mxu0 %v2054
          %2061 = vmatprep.subr.bf16.mxu0 0
          %2062 = vmatpush1.bf16.xpose.msra.mxu0 0
          %2063 = vmatprep.subr.bf16.mxu0 0
          %2064 = vmatpush1.bf16.xpose.msra.mxu0 0
          %2065 = vmatprep.subr.bf16.mxu0 0
          %2066 = vmatpush1.bf16.xpose.msra.mxu0 0
          %2067 = vmatprep.subr.bf16.mxu0 0
          %2068 = vmatpush1.bf16.xpose.msra.mxu0 0
          %2069 = vmatprep.subr.bf16.mxu0 0
          %2070 = vmatpush1.bf16.xpose.msra.mxu0 0
          %2071 = vmatprep.subr.bf16.mxu0 0
          %2072 = vmatpush1.bf16.xpose.msra.mxu0 0
          %2073 = vmatprep.subr.bf16.mxu0 0
          %2074 = vmatpush1.bf16.xpose.msra.mxu0 0
          %2075 = vmatprep.subr.bf16.mxu0 0
          %2076 = vmatpush1.bf16.xpose.msra.mxu0 0
          %2077 = vmatprep.subr.bf16.mxu0 0
          %2078 = vmatpush1.bf16.xpose.msra.mxu0 0
          %2079 = vmatprep.subr.bf16.mxu0 0
          %2080 = vmatpush1.bf16.xpose.msra.mxu0 0
          %2081 = vmatprep.subr.bf16.mxu0 0
          %2082 = vmatpush1.bf16.xpose.msra.mxu0 0
          %2083 = vmatprep.subr.bf16.mxu0 0
          %2084 = vmatpush1.bf16.xpose.msra.mxu0 0
          %2085 = vmatprep.subr.bf16.mxu0 0
          %2086 = vmatpush1.bf16.xpose.msra.mxu0 0
          %2087 = vmatprep.subr.bf16.mxu0 0
          %2088 = vmatpush1.bf16.xpose.msra.mxu0 0
          %2089 = vmatprep.mubr.bf16.mxu0 0
          %2090 = vmatmul.mubr.bf16.gmra.mrb[0].mxu0 %v820
          %v2091 = vpop.f32.mrb[0].mxu0
          %v2092 = vadd.f32 %v2043, %v2091
          %v2093 = vpop.f32.mrb[0].mxu0
          %v2094 = vpop.f32.mrb[0].mxu0
          %v2095 = vadd.f32 %v2043, %v2094
          %v2096 = vpop.f32.mrb[0].mxu0
          %2097 = vdwg.mxu0
          %s2098 = scalar_lea.vmem %s5, 48
          %v2099 = vld [vmem:[%s2098] sm:$0xf]
          %v2100 = vld [vmem:[%s2098 + $0x4] sm:$0xf]
          %v2101 = vld [vmem:[%s2098 + $0x8] sm:$0xf]
          %v2102 = vld [vmem:[%s2098 + $0xc] sm:$0xf]
          %s2103 = scalar_lea.vmem %s8, 3
          %v2104 = vld [vmem:[%s2103] sm:$0x1]
          %v2106 = vlaneseq
          %v2107 = vshrl.u32 %v2106, 7
          %v2108 = vsub.s32 0, %v2107
          %v2109 = vrot.slane %v2104, %v2108
          %v2115 = vunpack.c.l.b16 %v2099
          %v2116 = vunpack.c.l.b16 %v2100
          %v2117 = vunpack.c.l.b16 %v2101
          %v2118 = vunpack.c.l.b16 %v2102
          %v2119 = vpack.c.b16 %v2116, %v2115
          %v2120 = vpack.c.b16 %v2118, %v2117
          %2123 = vmatprep.subr.bf16.mxu0 0
          %2124 = vmatpush1.bf16.xpose.msra.mxu0 %v2119
          %2125 = vmatprep.subr.bf16.mxu0 0
          %2126 = vmatpush1.bf16.xpose.msra.mxu0 %v2120
          %2127 = vmatprep.subr.bf16.mxu0 0
          %2128 = vmatpush1.bf16.xpose.msra.mxu0 0
          %2129 = vmatprep.subr.bf16.mxu0 0
          %2130 = vmatpush1.bf16.xpose.msra.mxu0 0
          %2131 = vmatprep.subr.bf16.mxu0 0
          %2132 = vmatpush1.bf16.xpose.msra.mxu0 0
          %2133 = vmatprep.subr.bf16.mxu0 0
          %2134 = vmatpush1.bf16.xpose.msra.mxu0 0
          %2135 = vmatprep.subr.bf16.mxu0 0
          %2136 = vmatpush1.bf16.xpose.msra.mxu0 0
          %2137 = vmatprep.subr.bf16.mxu0 0
          %2138 = vmatpush1.bf16.xpose.msra.mxu0 0
          %2139 = vmatprep.subr.bf16.mxu0 0
          %2140 = vmatpush1.bf16.xpose.msra.mxu0 0
          %2141 = vmatprep.subr.bf16.mxu0 0
          %2142 = vmatpush1.bf16.xpose.msra.mxu0 0
          %2143 = vmatprep.subr.bf16.mxu0 0
          %2144 = vmatpush1.bf16.xpose.msra.mxu0 0
          %2145 = vmatprep.subr.bf16.mxu0 0
          %2146 = vmatpush1.bf16.xpose.msra.mxu0 0
          %2147 = vmatprep.subr.bf16.mxu0 0
          %2148 = vmatpush1.bf16.xpose.msra.mxu0 0
          %2149 = vmatprep.subr.bf16.mxu0 0
          %2150 = vmatpush1.bf16.xpose.msra.mxu0 0
          %2151 = vmatprep.subr.bf16.mxu0 0
          %2152 = vmatpush1.bf16.xpose.msra.mxu0 0
          %2153 = vmatprep.subr.bf16.mxu0 0
          %2154 = vmatpush1.bf16.xpose.msra.mxu0 0
          %2155 = vmatprep.mubr.bf16.mxu0 0
          %2156 = vmatmul.mubr.bf16.gmra.mrb[0].mxu0 %v820
          %v2157 = vpop.f32.mrb[0].mxu0
          %v2158 = vadd.f32 %v2109, %v2157
          %v2159 = vpop.f32.mrb[0].mxu0
          %v2160 = vpop.f32.mrb[0].mxu0
          %v2161 = vadd.f32 %v2109, %v2160
          %v2162 = vpop.f32.mrb[0].mxu0
          %2163 = vdwg.mxu0
          %v2164 = vpack.c.bf16 %v2031, %v2030
          %v2165 = vpack.c.bf16 %v2095, %v2092
          %v2167 = vsel %vm1026, %v2164, 0
          %v2170 = vsel %vm1026, %v2165, 0
          %2172 = vmatprep.subr.bf16.mxu0 0
          %2173 = vmatpush1.bf16.xpose.msra.mxu0 %v2170
          %2174 = vmatprep.subr.bf16.mxu0 0
          %2175 = vmatpush1.bf16.xpose.msra.mxu0 0
          %2176 = vmatprep.subr.bf16.mxu0 0
          %2177 = vmatpush1.bf16.xpose.msra.mxu0 0
          %2178 = vmatprep.subr.bf16.mxu0 0
          %2179 = vmatpush1.bf16.xpose.msra.mxu0 0
          %2180 = vmatprep.subr.bf16.mxu0 0
          %2181 = vmatpush1.bf16.xpose.msra.mxu0 0
          %2182 = vmatprep.subr.bf16.mxu0 0
          %2183 = vmatpush1.bf16.xpose.msra.mxu0 0
          %2184 = vmatprep.subr.bf16.mxu0 0
          %2185 = vmatpush1.bf16.xpose.msra.mxu0 0
          %2186 = vmatprep.subr.bf16.mxu0 0
          %2187 = vmatpush1.bf16.xpose.msra.mxu0 0
          %2188 = vmatprep.subr.bf16.mxu0 0
          %2189 = vmatpush1.bf16.xpose.msra.mxu0 0
          %2190 = vmatprep.subr.bf16.mxu0 0
          %2191 = vmatpush1.bf16.xpose.msra.mxu0 0
          %2192 = vmatprep.subr.bf16.mxu0 0
          %2193 = vmatpush1.bf16.xpose.msra.mxu0 0
          %2194 = vmatprep.subr.bf16.mxu0 0
          %2195 = vmatpush1.bf16.xpose.msra.mxu0 0
          %2196 = vmatprep.subr.bf16.mxu0 0
          %2197 = vmatpush1.bf16.xpose.msra.mxu0 0
          %2198 = vmatprep.subr.bf16.mxu0 0
          %2199 = vmatpush1.bf16.xpose.msra.mxu0 0
          %2200 = vmatprep.subr.bf16.mxu0 0
          %2201 = vmatpush1.bf16.xpose.msra.mxu0 0
          %2202 = vmatprep.subr.bf16.mxu0 0
          %2203 = vmatpush1.bf16.xpose.msra.mxu0 0
          %2204 = vmatprep.mubr.bf16.mxu0 0
          %2205 = vmatmul.mubr.bf16.gmra.mrb[0].mxu0 %v2167
          %v2206 = vpop.f32.mrb[0].mxu0
          %v2207 = vadd.f32 %v828, %v2206
          %v2208 = vpop.f32.mrb[0].mxu0
          %v2209 = vpop.f32.mrb[0].mxu0
          %v2210 = vadd.f32 %v829, %v2209
          %v2211 = vpop.f32.mrb[0].mxu0
          %2212 = vdwg.mxu0
          %v2213 = vsel %vm1074, %v2207, -inf
          %2214 = vmax.xlane.f32.xlu0 %v2213
          %v2215 = vpop.xlane.xlu0 %2214
          %v2216 = vsel %vm1074, %v2210, -inf
          %2217 = vmax.xlane.f32.xlu0 %v2216
          %v2218 = vpop.xlane.xlu0 %2217
          %v2219 = vsub.f32 %v2207, %v2215
          %v2220 = vsub.f32 %v2210, %v2218
          %v2221 = vmul.f32 %v2219, 1.442695
          %v2222 = vpow.pop %v2221
          %v2223 = vmul.f32 %v2220, 1.442695
          %v2224 = vpow.pop %v2223
          %v2225 = vsel %vm1074, %v2222, 0.0
          %2226 = vadd.xlane.f32.xlu0 %v2225
          %v2227 = vpop.xlane.xlu0 %2226
          %v2228 = vsel %vm1074, %v2224, 0.0
          %2229 = vadd.xlane.f32.xlu0 %v2228
          %v2230 = vpop.xlane.xlu0 %2229
          %v2231 = vpack.c.bf16 %v2224, %v2222
          %v2232 = vpack.c.bf16 %v2161, %v2158
          %v2234 = vsel %vm1074, %v2231, 0
          %2236 = vmatprep.subr.bf16.mxu0 0
          %2237 = vmatpush1.bf16.msra.mxu0 %v2232
          %2238 = vmatprep.subr.bf16.mxu0 0
          %2239 = vmatpush1.bf16.msra.mxu0 0
          %2240 = vmatprep.subr.bf16.mxu0 0
          %2241 = vmatpush1.bf16.msra.mxu0 0
          %2242 = vmatprep.subr.bf16.mxu0 0
          %2243 = vmatpush1.bf16.msra.mxu0 0
          %2244 = vmatprep.subr.bf16.mxu0 0
          %2245 = vmatpush1.bf16.msra.mxu0 0
          %2246 = vmatprep.subr.bf16.mxu0 0
          %2247 = vmatpush1.bf16.msra.mxu0 0
          %2248 = vmatprep.subr.bf16.mxu0 0
          %2249 = vmatpush1.bf16.msra.mxu0 0
          %2250 = vmatprep.subr.bf16.mxu0 0
          %2251 = vmatpush1.bf16.msra.mxu0 0
          %2252 = vmatprep.subr.bf16.mxu0 0
          %2253 = vmatpush1.bf16.msra.mxu0 0
          %2254 = vmatprep.subr.bf16.mxu0 0
          %2255 = vmatpush1.bf16.msra.mxu0 0
          %2256 = vmatprep.subr.bf16.mxu0 0
          %2257 = vmatpush1.bf16.msra.mxu0 0
          %2258 = vmatprep.subr.bf16.mxu0 0
          %2259 = vmatpush1.bf16.msra.mxu0 0
          %2260 = vmatprep.subr.bf16.mxu0 0
          %2261 = vmatpush1.bf16.msra.mxu0 0
          %2262 = vmatprep.subr.bf16.mxu0 0
          %2263 = vmatpush1.bf16.msra.mxu0 0
          %2264 = vmatprep.subr.bf16.mxu0 0
          %2265 = vmatpush1.bf16.msra.mxu0 0
          %2266 = vmatprep.subr.bf16.mxu0 0
          %2267 = vmatpush1.bf16.msra.mxu0 0
          %2268 = vmatprep.mubr.bf16.mxu0 0
          %2269 = vmatmul.mubr.bf16.gmra.mrb[0].mxu0 %v2234
          %v2270 = vpop.f32.mrb[0].mxu0
          %v2271 = vadd.f32 0.0, %v2270
          %v2272 = vpop.f32.mrb[0].mxu0
          %v2273 = vpop.f32.mrb[0].mxu0
          %v2274 = vadd.f32 0.0, %v2273
          %v2275 = vpop.f32.mrb[0].mxu0
          %2276 = vdwg.mxu0
          %v2277 = vrcp.pop %v2227
          %v2278 = vrcp.pop %v2230
          %v2279 = vmul.f32 %v2271, %v2277
          %v2280 = vmul.f32 %v2274, %v2278
          %v2281 = vpack.c.bf16 %v2280, %v2279
          %s2282 = scalar_lea.vmem %s9, 48
          %v2283 = vld [vmem:[%s2282] sm:$0xf]
          %v2284 = vld [vmem:[%s2282 + $0x4] sm:$0xf]
          %v2285 = vld [vmem:[%s2282 + $0x8] sm:$0xf]
          %v2286 = vld [vmem:[%s2282 + $0xc] sm:$0xf]
          %v2291 = vunpack.c.l.b16 %v2283
          %v2292 = vunpack.c.l.b16 %v2284
          %v2293 = vunpack.c.l.b16 %v2285
          %v2294 = vunpack.c.l.b16 %v2286
          %v2295 = vpack.c.b16 %v2292, %v2291
          %v2296 = vpack.c.b16 %v2294, %v2293
          %v2300 = vsel %vm1026, %v2281, 0
          %2302 = vmatprep.subr.bf16.mxu0 0
          %2303 = vmatpush1.bf16.msra.mxu0 %v2295
          %2304 = vmatprep.subr.bf16.mxu0 0
          %2305 = vmatpush1.bf16.msra.mxu0 %v2296
          %2306 = vmatprep.subr.bf16.mxu0 0
          %2307 = vmatpush1.bf16.msra.mxu0 0
          %2308 = vmatprep.subr.bf16.mxu0 0
          %2309 = vmatpush1.bf16.msra.mxu0 0
          %2310 = vmatprep.subr.bf16.mxu0 0
          %2311 = vmatpush1.bf16.msra.mxu0 0
          %2312 = vmatprep.subr.bf16.mxu0 0
          %2313 = vmatpush1.bf16.msra.mxu0 0
          %2314 = vmatprep.subr.bf16.mxu0 0
          %2315 = vmatpush1.bf16.msra.mxu0 0
          %2316 = vmatprep.subr.bf16.mxu0 0
          %2317 = vmatpush1.bf16.msra.mxu0 0
          %2318 = vmatprep.subr.bf16.mxu0 0
          %2319 = vmatpush1.bf16.msra.mxu0 0
          %2320 = vmatprep.subr.bf16.mxu0 0
          %2321 = vmatpush1.bf16.msra.mxu0 0
          %2322 = vmatprep.subr.bf16.mxu0 0
          %2323 = vmatpush1.bf16.msra.mxu0 0
          %2324 = vmatprep.subr.bf16.mxu0 0
          %2325 = vmatpush1.bf16.msra.mxu0 0
          %2326 = vmatprep.subr.bf16.mxu0 0
          %2327 = vmatpush1.bf16.msra.mxu0 0
          %2328 = vmatprep.subr.bf16.mxu0 0
          %2329 = vmatpush1.bf16.msra.mxu0 0
          %2330 = vmatprep.subr.bf16.mxu0 0
          %2331 = vmatpush1.bf16.msra.mxu0 0
          %2332 = vmatprep.subr.bf16.mxu0 0
          %2333 = vmatpush1.bf16.msra.mxu0 0
          %2334 = vmatprep.mubr.bf16.mxu0 0
          %2335 = vmatmul.mubr.bf16.gmra.mrb[0].mxu0 %v2300
          %v2336 = vpop.f32.mrb[0].mxu0
          %v2337 = vadd.f32 0.0, %v2336
          %v2338 = vpop.f32.mrb[0].mxu0
          %v2339 = vpop.f32.mrb[0].mxu0
          %v2340 = vadd.f32 0.0, %v2339
          %v2341 = vpop.f32.mrb[0].mxu0
          %2342 = vdwg.mxu0
          %v2343 = vadd.f32 %v1962, %v2337
          %v2344 = vadd.f32 %v1963, %v2340
          %v2345 = vadd.f32 %v777, %v2343
          %v2346 = vadd.f32 %v778, %v2344
          %v2347 = vld [vmem:[%s10] sm:$0x1]
          %v2349 = vlaneseq
          %v2350 = vshrl.u32 %v2349, 7
          %v2351 = vsub.s32 0, %v2350
          %v2352 = vrot.slane %v2347, %v2351
          %v2354 = vadd.f32 %v2345, %v2352
          %v2355 = vadd.f32 %v2346, %v2352
          %2356 = vst [vmem:[#allocation2] sm:$0xff] %v2354
          %2357 = vst [vmem:[#allocation2 + $0x8] sm:$0xff] %v2355
          %v2358 = vld [vmem:[%s11] sm:$0x1]
          %v2359 = vld [vmem:[%s12] sm:$0x1]
          %2360 = vadd.xlane.f32.xlu0 %v2354
          %v2361 = vpop.xlane.xlu0 %2360
          %2362 = vadd.xlane.f32.xlu0 %v2355
          %v2363 = vpop.xlane.xlu0 %2362
          %v2364 = vmul.f32 %v2361, %v785
          %v2365 = vmul.f32 %v2363, %v785
          %v2366 = vsub.f32 %v2354, %v2364
          %v2367 = vsub.f32 %v2355, %v2365
          %v2368 = vmul.f32 %v2366, %v2366
          %v2369 = vmul.f32 %v2367, %v2367
          %2370 = vadd.xlane.f32.xlu0 %v2368
          %v2371 = vpop.xlane.xlu0 %2370
          %2372 = vadd.xlane.f32.xlu0 %v2369
          %v2373 = vpop.xlane.xlu0 %2372
          %v2374 = vmul.f32 %v2371, %v785
          %v2375 = vmul.f32 %v2373, %v785
          %v2376 = vadd.f32 %v2374, 1e-05
          %v2377 = vadd.f32 %v2375, 1e-05
          %v2378 = vrsqrt.pop %v2376
          %v2379 = vrsqrt.pop %v2377
          %v2380 = vmul.f32 %v2366, %v2378
          %v2381 = vmul.f32 %v2367, %v2379
          %v2383 = vlaneseq
          %v2384 = vshrl.u32 %v2383, 7
          %v2385 = vsub.s32 0, %v2384
          %v2386 = vrot.slane %v2358, %v2385
          %v2388 = vmul.f32 %v2380, %v2386
          %v2389 = vmul.f32 %v2381, %v2386
          %v2391 = vlaneseq
          %v2392 = vshrl.u32 %v2391, 7
          %v2393 = vsub.s32 0, %v2392
          %v2394 = vrot.slane %v2359, %v2393
          %v2396 = vadd.f32 %v2388, %v2394
          %v2397 = vadd.f32 %v2389, %v2394
          %v2398 = vpack.c.bf16 %v2397, %v2396
          %2399 = vst [vmem:[#allocation3] sm:$0xff] %v2398
          %2400 = vst [vmem:[#allocation4] sm:$0xff] 0.0
          %2401 = vst [vmem:[#allocation4 + $0x8] sm:$0xff] 0.0
        $region141: #{clip_forward.3} parent=132 // pred_fallthru
          _
        %v2402 = vld [vmem:[#allocation3] sm:$0xff]
        %v2403 = vld [vmem:[%s687] sm:$0xf]
        %v2404 = vld [vmem:[%s687 + $0x4] sm:$0xf]
        %v2405 = vld [vmem:[%s687 + $0x8] sm:$0xf]
        %v2406 = vld [vmem:[%s687 + $0xc] sm:$0xf]
        %v2407 = vld [vmem:[%s687 + $0x10] sm:$0xf]
        %v2408 = vld [vmem:[%s687 + $0x14] sm:$0xf]
        %v2409 = vld [vmem:[%s687 + $0x18] sm:$0xf]
        %v2410 = vld [vmem:[%s687 + $0x1c] sm:$0xf]
        %v2411 = vld [vmem:[%s687 + $0x20] sm:$0xf]
        %v2412 = vld [vmem:[%s687 + $0x24] sm:$0xf]
        %v2413 = vld [vmem:[%s687 + $0x28] sm:$0xf]
        %v2414 = vld [vmem:[%s687 + $0x2c] sm:$0xf]
        %v2415 = vld [vmem:[%s687 + $0x30] sm:$0xf]
        %v2416 = vld [vmem:[%s687 + $0x34] sm:$0xf]
        %v2417 = vld [vmem:[%s687 + $0x38] sm:$0xf]
        %v2418 = vld [vmem:[%s687 + $0x3c] sm:$0xf]
        %v2419 = vld [vmem:[%s760] sm:$0x1]
        %v2421 = vlaneseq
        %v2422 = vshrl.u32 %v2421, 7
        %v2423 = vsub.s32 0, %v2422
        %v2424 = vrot.slane %v2419, %v2423
        %v2442 = vunpack.c.l.b16 %v2403
        %v2443 = vunpack.c.l.b16 %v2404
        %v2444 = vunpack.c.l.b16 %v2405
        %v2445 = vunpack.c.l.b16 %v2406
        %v2446 = vunpack.c.l.b16 %v2407
        %v2447 = vunpack.c.l.b16 %v2408
        %v2448 = vunpack.c.l.b16 %v2409
        %v2449 = vunpack.c.l.b16 %v2410
        %v2450 = vunpack.c.l.b16 %v2411
        %v2451 = vunpack.c.l.b16 %v2412
        %v2452 = vunpack.c.l.b16 %v2413
        %v2453 = vunpack.c.l.b16 %v2414
        %v2454 = vunpack.c.l.b16 %v2415
        %v2455 = vunpack.c.l.b16 %v2416
        %v2456 = vunpack.c.l.b16 %v2417
        %v2457 = vunpack.c.l.b16 %v2418
        %v2458 = vpack.c.b16 %v2443, %v2442
        %v2459 = vpack.c.b16 %v2445, %v2444
        %v2460 = vpack.c.b16 %v2447, %v2446
        %v2461 = vpack.c.b16 %v2449, %v2448
        %v2462 = vpack.c.b16 %v2451, %v2450
        %v2463 = vpack.c.b16 %v2453, %v2452
        %v2464 = vpack.c.b16 %v2455, %v2454
        %v2465 = vpack.c.b16 %v2457, %v2456
        %2474 = vmatprep.subr.bf16.mxu0 0
        %2475 = vmatpush1.bf16.msra.mxu0 %v2458
        %2476 = vmatprep.subr.bf16.mxu0 0
        %2477 = vmatpush1.bf16.msra.mxu0 %v2459
        %2478 = vmatprep.subr.bf16.mxu0 0
        %2479 = vmatpush1.bf16.msra.mxu0 %v2460
        %2480 = vmatprep.subr.bf16.mxu0 0
        %2481 = vmatpush1.bf16.msra.mxu0 %v2461
        %2482 = vmatprep.subr.bf16.mxu0 0
        %2483 = vmatpush1.bf16.msra.mxu0 %v2462
        %2484 = vmatprep.subr.bf16.mxu0 0
        %2485 = vmatpush1.bf16.msra.mxu0 %v2463
        %2486 = vmatprep.subr.bf16.mxu0 0
        %2487 = vmatpush1.bf16.msra.mxu0 %v2464
        %2488 = vmatprep.subr.bf16.mxu0 0
        %2489 = vmatpush1.bf16.msra.mxu0 %v2465
        %2490 = vmatprep.subr.bf16.mxu0 0
        %2491 = vmatpush1.bf16.msra.mxu0 0
        %2492 = vmatprep.subr.bf16.mxu0 0
        %2493 = vmatpush1.bf16.msra.mxu0 0
        %2494 = vmatprep.subr.bf16.mxu0 0
        %2495 = vmatpush1.bf16.msra.mxu0 0
        %2496 = vmatprep.subr.bf16.mxu0 0
        %2497 = vmatpush1.bf16.msra.mxu0 0
        %2498 = vmatprep.subr.bf16.mxu0 0
        %2499 = vmatpush1.bf16.msra.mxu0 0
        %2500 = vmatprep.subr.bf16.mxu0 0
        %2501 = vmatpush1.bf16.msra.mxu0 0
        %2502 = vmatprep.subr.bf16.mxu0 0
        %2503 = vmatpush1.bf16.msra.mxu0 0
        %2504 = vmatprep.subr.bf16.mxu0 0
        %2505 = vmatpush1.bf16.msra.mxu0 0
        %2506 = vmatprep.mubr.bf16.mxu0 0
        %2507 = vmatmul.mubr.bf16.gmra.mrb[0].mxu0 %v2402
        %v2508 = vpop.f32.mrb[0].mxu0
        %v2509 = vadd.f32 %v2424, %v2508
        %v2510 = vpop.f32.mrb[0].mxu0
        %v2511 = vpop.f32.mrb[0].mxu0
        %v2512 = vadd.f32 %v2424, %v2511
        %v2513 = vpop.f32.mrb[0].mxu0
        %2514 = vdwg.mxu0
        %v2515 = vmul.f32 %v2509, 1.702
        %v2516 = vmul.f32 %v2512, 1.702
        %v2517 = vxor.u32 %v2515, 2147483648
        %v2518 = vxor.u32 %v2516, 2147483648
        %v2519 = vmul.f32 %v2517, 1.442695
        %v2520 = vpow.pop %v2519
        %v2521 = vmul.f32 %v2518, 1.442695
        %v2522 = vpow.pop %v2521
        %v2523 = vadd.f32 %v2520, 1.0
        %v2524 = vadd.f32 %v2522, 1.0
        %v2525 = vrcp.pop %v2523
        %v2526 = vmul.f32 1.0, %v2525
        %v2527 = vrcp.pop %v2524
        %v2528 = vmul.f32 1.0, %v2527
        %v2529 = vmul.f32 %v2509, %v2526
        %v2530 = vmul.f32 %v2512, %v2528
        %v2531 = vld [vmem:[#allocation4] sm:$0xff]
        %v2532 = vld [vmem:[#allocation4 + $0x8] sm:$0xff]
        %v2533 = vpack.c.bf16 %v2530, %v2529
        %v2534 = vld [vmem:[%s765] sm:$0xf]
        %v2535 = vld [vmem:[%s765 + $0x4] sm:$0xf]
        %v2536 = vld [vmem:[%s765 + $0x8] sm:$0xf]
        %v2537 = vld [vmem:[%s765 + $0xc] sm:$0xf]
        %v2538 = vld [vmem:[%s765 + $0x10] sm:$0xf]
        %v2539 = vld [vmem:[%s765 + $0x14] sm:$0xf]
        %v2540 = vld [vmem:[%s765 + $0x18] sm:$0xf]
        %v2541 = vld [vmem:[%s765 + $0x1c] sm:$0xf]
        %v2542 = vld [vmem:[%s765 + $0x20] sm:$0xf]
        %v2543 = vld [vmem:[%s765 + $0x24] sm:$0xf]
        %v2544 = vld [vmem:[%s765 + $0x28] sm:$0xf]
        %v2545 = vld [vmem:[%s765 + $0x2c] sm:$0xf]
        %v2546 = vld [vmem:[%s765 + $0x30] sm:$0xf]
        %v2547 = vld [vmem:[%s765 + $0x34] sm:$0xf]
        %v2548 = vld [vmem:[%s765 + $0x38] sm:$0xf]
        %v2549 = vld [vmem:[%s765 + $0x3c] sm:$0xf]
        %v2566 = vunpack.c.l.b16 %v2534
        %v2567 = vunpack.c.l.b16 %v2535
        %v2568 = vunpack.c.l.b16 %v2536
        %v2569 = vunpack.c.l.b16 %v2537
        %v2570 = vunpack.c.l.b16 %v2538
        %v2571 = vunpack.c.l.b16 %v2539
        %v2572 = vunpack.c.l.b16 %v2540
        %v2573 = vunpack.c.l.b16 %v2541
        %v2574 = vunpack.c.l.b16 %v2542
        %v2575 = vunpack.c.l.b16 %v2543
        %v2576 = vunpack.c.l.b16 %v2544
        %v2577 = vunpack.c.l.b16 %v2545
        %v2578 = vunpack.c.l.b16 %v2546
        %v2579 = vunpack.c.l.b16 %v2547
        %v2580 = vunpack.c.l.b16 %v2548
        %v2581 = vunpack.c.l.b16 %v2549
        %v2582 = vpack.c.b16 %v2567, %v2566
        %v2583 = vpack.c.b16 %v2569, %v2568
        %v2584 = vpack.c.b16 %v2571, %v2570
        %v2585 = vpack.c.b16 %v2573, %v2572
        %v2586 = vpack.c.b16 %v2575, %v2574
        %v2587 = vpack.c.b16 %v2577, %v2576
        %v2588 = vpack.c.b16 %v2579, %v2578
        %v2589 = vpack.c.b16 %v2581, %v2580
        %2598 = vmatprep.subr.bf16.mxu0 0
        %2599 = vmatpush1.bf16.msra.mxu0 %v2582
        %2600 = vmatprep.subr.bf16.mxu0 0
        %2601 = vmatpush1.bf16.msra.mxu0 %v2583
        %2602 = vmatprep.subr.bf16.mxu0 0
        %2603 = vmatpush1.bf16.msra.mxu0 %v2584
        %2604 = vmatprep.subr.bf16.mxu0 0
        %2605 = vmatpush1.bf16.msra.mxu0 %v2585
        %2606 = vmatprep.subr.bf16.mxu0 0
        %2607 = vmatpush1.bf16.msra.mxu0 %v2586
        %2608 = vmatprep.subr.bf16.mxu0 0
        %2609 = vmatpush1.bf16.msra.mxu0 %v2587
        %2610 = vmatprep.subr.bf16.mxu0 0
        %2611 = vmatpush1.bf16.msra.mxu0 %v2588
        %2612 = vmatprep.subr.bf16.mxu0 0
        %2613 = vmatpush1.bf16.msra.mxu0 %v2589
        %2614 = vmatprep.subr.bf16.mxu0 0
        %2615 = vmatpush1.bf16.msra.mxu0 0
        %2616 = vmatprep.subr.bf16.mxu0 0
        %2617 = vmatpush1.bf16.msra.mxu0 0
        %2618 = vmatprep.subr.bf16.mxu0 0
        %2619 = vmatpush1.bf16.msra.mxu0 0
        %2620 = vmatprep.subr.bf16.mxu0 0
        %2621 = vmatpush1.bf16.msra.mxu0 0
        %2622 = vmatprep.subr.bf16.mxu0 0
        %2623 = vmatpush1.bf16.msra.mxu0 0
        %2624 = vmatprep.subr.bf16.mxu0 0
        %2625 = vmatpush1.bf16.msra.mxu0 0
        %2626 = vmatprep.subr.bf16.mxu0 0
        %2627 = vmatpush1.bf16.msra.mxu0 0
        %2628 = vmatprep.subr.bf16.mxu0 0
        %2629 = vmatpush1.bf16.msra.mxu0 0
        %2630 = vmatprep.mubr.bf16.mxu0 0
        %2631 = vmatmul.mubr.bf16.gmra.mrb[0].mxu0 %v2533
        %v2632 = vpop.f32.mrb[0].mxu0
        %v2633 = vadd.f32 0.0, %v2632
        %v2634 = vpop.f32.mrb[0].mxu0
        %v2635 = vpop.f32.mrb[0].mxu0
        %v2636 = vadd.f32 0.0, %v2635
        %v2637 = vpop.f32.mrb[0].mxu0
        %2638 = vdwg.mxu0
        %v2639 = vadd.f32 %v2531, %v2633
        %v2640 = vadd.f32 %v2532, %v2636
        %2641 = vst [vmem:[#allocation4] sm:$0xff] %v2639
        %2642 = vst [vmem:[#allocation4 + $0x8] sm:$0xff] %v2640
        %p2643 = scmp.eq.s32.totalorder %s35, 3
        // Predicated region
        $region142: #{clip_forward.3} parent=132 // pred_check
          %p2644 = pneg %p2643
        $region143: #{clip_forward.3} parent=132 // pred_check_branch
          %2646 = sbr.rel (%p2644) target = $region145
        $region144: #{clip_forward.3} parent=132 // pred_region
          %v2647 = vld [vmem:[#allocation2] sm:$0xff]
          %v2648 = vld [vmem:[#allocation2 + $0x8] sm:$0xff]
          %v2649 = vld [vmem:[#allocation4] sm:$0xff]
          %v2650 = vld [vmem:[#allocation4 + $0x8] sm:$0xff]
          %v2651 = vadd.f32 %v2647, %v2649
          %v2652 = vadd.f32 %v2648, %v2650
          %v2653 = vld [vmem:[%s16] sm:$0x1]
          %v2655 = vlaneseq
          %v2656 = vshrl.u32 %v2655, 7
          %v2657 = vsub.s32 0, %v2656
          %v2658 = vrot.slane %v2653, %v2657
          %v2660 = vadd.f32 %v2651, %v2658
          %v2661 = vadd.f32 %v2652, %v2658
          %v2662 = vld [vmem:[%s17] sm:$0x1]
          %v2663 = vld [vmem:[%s18] sm:$0x1]
          %2664 = vadd.xlane.f32.xlu0 %v2660
          %v2665 = vpop.xlane.xlu0 %2664
          %2666 = vadd.xlane.f32.xlu0 %v2661
          %v2667 = vpop.xlane.xlu0 %2666
          %v2668 = vrcp.pop 128.0
          %v2669 = vmul.f32 %v2665, %v2668
          %v2670 = vmul.f32 %v2667, %v2668
          %v2671 = vsub.f32 %v2660, %v2669
          %v2672 = vsub.f32 %v2661, %v2670
          %v2673 = vmul.f32 %v2671, %v2671
          %v2674 = vmul.f32 %v2672, %v2672
          %2675 = vadd.xlane.f32.xlu0 %v2673
          %v2676 = vpop.xlane.xlu0 %2675
          %2677 = vadd.xlane.f32.xlu0 %v2674
          %v2678 = vpop.xlane.xlu0 %2677
          %v2679 = vmul.f32 %v2676, %v2668
          %v2680 = vmul.f32 %v2678, %v2668
          %v2681 = vadd.f32 %v2679, 1e-05
          %v2682 = vadd.f32 %v2680, 1e-05
          %v2683 = vrsqrt.pop %v2681
          %v2684 = vrsqrt.pop %v2682
          %v2685 = vmul.f32 %v2671, %v2683
          %v2686 = vmul.f32 %v2672, %v2684
          %v2688 = vlaneseq
          %v2689 = vshrl.u32 %v2688, 7
          %v2690 = vsub.s32 0, %v2689
          %v2691 = vrot.slane %v2662, %v2690
          %v2693 = vmul.f32 %v2685, %v2691
          %v2694 = vmul.f32 %v2686, %v2691
          %v2696 = vlaneseq
          %v2697 = vshrl.u32 %v2696, 7
          %v2698 = vsub.s32 0, %v2697
          %v2699 = vrot.slane %v2663, %v2698
          %v2701 = vadd.f32 %v2693, %v2699
          %v2702 = vadd.f32 %v2694, %v2699
          %2703 = vst [vmem:[%s771] sm:$0xff] %v2701
          %2704 = vst [vmem:[%s771 + $0x8] sm:$0xff] %v2702
        $region145: #{clip_forward.3} parent=132 // pred_fallthru
          _
        %p2705 = scmp.lt.s32.totalorder %s34, 1
        %s2706 = scalar_select %p2705, %s34, 1
        %s2707 = smul.addr %s2706, 2
        %s2708 = smul.addr %s2707, 8
        %s2709 = scalar_lea.vmem %s19, %s2708
        // Predicated region
        $region146: #{clip_forward.3} parent=132 // pred_check
          %p2710 = pneg %p479
        $region147: #{clip_forward.3} parent=132 // pred_check_branch
          %2712 = sbr.rel (%p2710) target = $region149
        $region148: #{clip_forward.3} parent=132 // pred_region
          _
        $region149: #{clip_forward.3} parent=132 // pred_fallthru
          _
      $region133: #{clip_forward.3} parent=5 // pred_fallthru
        _
      %p2713 = scmp.le.s32.totalorder 2, %s25
      // Predicated region
      $region150: #{clip_forward.3} parent=5 // pred_check
        %p2714 = pneg %p2713
      $region151: #{clip_forward.3} parent=5 // pred_check_branch
        %2716 = sbr.rel (%p2714) target = $region153
      $region152: #{clip_forward.3} parent=5 // pred_region
        %s2717 = ssub.s32 %s25, 2
        // Predicated region
        $region154: #{clip_forward.3} parent=152 // pred_check
          %p2718 = pneg %p485
        $region155: #{clip_forward.3} parent=152 // pred_check_branch
          %2720 = sbr.rel (%p2718) target = $region157
        $region156: #{clip_forward.3} parent=152 // pred_region
          %p2721 = scmp.lt.s32.totalorder %s36, 1
          %s2722 = scalar_select %p2721, %s36, 1
          %s2723 = smul.addr %s2722, 2
          %s2724 = smul.addr %s2723, 8
          %s2725 = scalar_lea.vmem %s19, %s2724
        $region157: #{clip_forward.3} parent=152 // pred_fallthru
          _
      $region153: #{clip_forward.3} parent=5 // pred_fallthru
        _
    $region6: #{clip_forward.3} parent=1 // loop_footer
      %s29 = sadd.s32 1, %s25
    $region7: #{clip_forward.3} parent=1 // loop_footer_branch
      %24 = sbr.rel target = $region3
    $region8: #{clip_forward.3} parent=1 // loop_exit
      _

// kernel: clip_forward.2
$region0: #{clip_forward.2}
  #allocation0 [shape = 'u32[]', space=smem, size = 0x4, offset = 0x4, fixed_abs, tag = 'smem constant byte address 0x4 - core index']
  #allocation1 [shape = 'u32[144,128]{1,0:T(1,128)}', space=vmem, size = 0x12000, scoped, tag = 'internal scratch']
  #allocation2 [shape = 'f32[16,128]{1,0:T(8,128)}', space=vmem, size = 0x2000, scoped, tag = 'scratch operand']
  #allocation3 [shape = 'bf16[16,128]{1,0:T(16,128)(2,1)}', space=vmem, size = 0x1000, scoped, tag = 'scratch operand']
  #allocation4 [shape = 'f32[16,128]{1,0:T(8,128)}', space=vmem, size = 0x2000, scoped, tag = 'scratch operand']
  %s0 = inlined_call_operand.vmem [shape: f32[2,16,128], index: 0, kind: input, shape index: {}]
  %s1 = inlined_call_operand.vmem [shape: f32[1,128], index: 1, kind: input, shape index: {}]
  %s2 = inlined_call_operand.hbm [shape: f32[1,128], index: 2, kind: input, shape index: {}]
  %s3 = inlined_call_operand.hbm [shape: bf16[4,32,128], index: 3, kind: input, shape index: {}]
  %s4 = inlined_call_operand.hbm [shape: bf16[4,32,128], index: 4, kind: input, shape index: {}]
  %s5 = inlined_call_operand.hbm [shape: bf16[4,32,128], index: 5, kind: input, shape index: {}]
  %s6 = inlined_call_operand.hbm [shape: f32[4,1,32], index: 6, kind: input, shape index: {}]
  %s7 = inlined_call_operand.hbm [shape: f32[4,1,32], index: 7, kind: input, shape index: {}]
  %s8 = inlined_call_operand.hbm [shape: f32[4,1,32], index: 8, kind: input, shape index: {}]
  %s9 = inlined_call_operand.hbm [shape: bf16[4,32,128], index: 9, kind: input, shape index: {}]
  %s10 = inlined_call_operand.hbm [shape: f32[1,128], index: 10, kind: input, shape index: {}]
  %s11 = inlined_call_operand.vmem [shape: f32[1,128], index: 11, kind: input, shape index: {}]
  %s12 = inlined_call_operand.vmem [shape: f32[1,128], index: 12, kind: input, shape index: {}]
  %s13 = inlined_call_operand.vmem [shape: bf16[128,512], index: 13, kind: input, shape index: {}]
  %s14 = inlined_call_operand.hbm [shape: f32[1,512], index: 14, kind: input, shape index: {}]
  %s15 = inlined_call_operand.vmem [shape: bf16[512,128], index: 15, kind: input, shape index: {}]
  %s16 = inlined_call_operand.hbm [shape: f32[1,128], index: 16, kind: input, shape index: {}]
  %s17 = inlined_call_operand.vmem [shape: f32[1,128], index: 17, kind: input, shape index: {}]
  %s18 = inlined_call_operand.vmem [shape: f32[1,128], index: 18, kind: input, shape index: {}]
  %s19 = inlined_call_operand.vmem [shape: f32[2,16,128], index: 19, kind: output, shape index: {}]
  %s20 = sld [smem:[#allocation0]]
  $region202: #{clip_forward.2} parent=0
    _
  %s22 = ssub.s32 1, %s20
  %s23 = scalar_select 0, %s22, %s20
  $region1: #{clip_forward.2} parent=0
    #allocation5 [shape = 'u8[512]{0}', space=vmem, size = 0x400, scoped, tag = 'input window, operand 2, single buffered']
    #allocation6 [shape = 's32[2]{0}', space=sflag, size = 0x8, scoped, tag = 'scoped memory for clip_forward.2']
    #allocation7 [shape = 'u8[32768]{0}', space=vmem, size = 0x8000, scoped, tag = 'input window, operand 3, single buffered']
    #allocation8 [shape = 's32[1]{0}', space=sflag, size = 0x4, scoped, tag = 'scoped memory for clip_forward.2']
    #allocation9 [shape = 'u8[32768]{0}', space=vmem, size = 0x8000, scoped, tag = 'input window, operand 4, single buffered']
    #allocation10 [shape = 'u8[32768]{0}', space=vmem, size = 0x8000, scoped, tag = 'input window, operand 5, single buffered']
    #allocation11 [shape = 's32[1]{0}', space=sflag, size = 0x4, scoped, tag = 'scoped memory for clip_forward.2']
    #allocation12 [shape = 'u8[2048]{0}', space=vmem, size = 0x800, scoped, tag = 'input window, operand 6, single buffered']
    #allocation13 [shape = 'u8[2048]{0}', space=vmem, size = 0x800, scoped, tag = 'input window, operand 7, single buffered']
    #allocation14 [shape = 's32[1]{0}', space=sflag, size = 0x4, scoped, tag = 'scoped memory for clip_forward.2']
    #allocation15 [shape = 'u8[2048]{0}', space=vmem, size = 0x800, scoped, tag = 'input window, operand 8, single buffered']
    #allocation16 [shape = 'u8[32768]{0}', space=vmem, size = 0x8000, scoped, tag = 'input window, operand 9, single buffered']
    #allocation17 [shape = 's32[1]{0}', space=sflag, size = 0x4, scoped, tag = 'scoped memory for clip_forward.2']
    #allocation18 [shape = 'u8[512]{0}', space=vmem, size = 0x400, scoped, tag = 'input window, operand 10, single buffered']
    #allocation19 [shape = 'u8[65536]{0}', space=vmem, size = 0x10000, scoped, tag = 'input window, operand 13']
    #allocation20 [shape = 'u8[1024]{0}', space=vmem, size = 0x400, scoped, tag = 'input window, operand 14']
    #allocation21 [shape = 's32[2]{0}', space=sflag, size = 0x8, scoped, tag = 'scoped memory for clip_forward.2']
    #allocation22 [shape = 'u8[512]{0}', space=vmem, size = 0x400, scoped, tag = 'input window, operand 16, single buffered']
    %24 = vsyncpa [#allocation6], 0
    %25 = vsyncpa [#allocation8], 0
    %26 = vsyncpa [#allocation11], 0
    %27 = vsyncpa [#allocation14], 0
    %28 = vsyncpa [#allocation17], 0
    %29 = vsyncpa [#allocation21], 0
    %s30 = scalar_lea.sflag [#allocation21], 1
    %31 = vsyncpa %s30, 0
    loop: start=0, step=1, limit=10
    $region2: #{clip_forward.2} parent=1 // loop_pre_header
      _
    $region3: #{clip_forward.2} parent=1 // loop_header
      %s33 = sphi 0, %s37
      %p34 = scmp.ge.s32.totalorder %s33, 10
      %s40 = sphi 0, %s52
      %s41 = sphi 0, %s48
      %s42 = sphi 0, %s40
      %s43 = sphi 0, %s41
      %s44 = sphi 0, %s42
      %s45 = sphi 0, %s43
      %s55 = sphi 0, %s57
      %s58 = sphi 0, %s55
      %s59 = sphi 0, %s58
      %s75 = sphi 0, %s59
      %s79 = sphi 0, %s79
      %s81 = sphi 0, %s79
      %s82 = sphi 0, %s81
      %s96 = sphi 0, %s82
      %s100 = sphi 0, %s100
      %s102 = sphi 0, %s100
      %s103 = sphi 0, %s102
      %s117 = sphi 0, %s103
      %s121 = sphi 0, %s121
      %s123 = sphi 0, %s121
      %s124 = sphi 0, %s123
      %s138 = sphi 0, %s124
      %s142 = sphi 0, %s142
      %s144 = sphi 0, %s142
      %s145 = sphi 0, %s144
      %s159 = sphi 0, %s145
      %s163 = sphi 0, %s163
      %s165 = sphi 0, %s163
      %s166 = sphi 0, %s165
      %s180 = sphi 0, %s166
      %s184 = sphi 0, %s184
      %s186 = sphi 0, %s184
      %s187 = sphi 0, %s186
      %s201 = sphi 0, %s187
      %s205 = sphi 0, %s205
      %s207 = sphi 0, %s205
      %s208 = sphi 0, %s207
      %s222 = sphi 0, %s208
      %s226 = sphi 0, %s226
      %s228 = sphi 0, %s226
      %s229 = sphi 0, %s228
      %s243 = sphi 0, %s229
      %s247 = sphi 0, %s247
      %s249 = sphi 0, %s247
      %s250 = sphi 0, %s249
      %s264 = sphi 0, %s250
      %s268 = sphi 0, %s268
      %s270 = sphi 0, %s268
      %s271 = sphi 0, %s270
      %s285 = sphi 0, %s271
      %s289 = sphi 0, %s289
      %s291 = sphi 0, %s289
      %s292 = sphi 0, %s291
      %s306 = sphi 0, %s292
      %s310 = sphi 0, %s310
      %s312 = sphi 0, %s310
      %s313 = sphi 0, %s312
      %s327 = sphi 0, %s313
      %s333 = sphi 0, %s335
      %s336 = sphi 0, %s333
      %s337 = sphi 0, %s336
      %s353 = sphi 0, %s337
      %s359 = sphi 0, %s361
      %s362 = sphi 0, %s359
      %s363 = sphi 0, %s362
      %s379 = sphi 0, %s363
      %s385 = sphi 0, %s387
      %s388 = sphi 0, %s385
      %s389 = sphi 0, %s388
      %s405 = sphi 0, %s389
      %s409 = sphi 0, %s409
      %s411 = sphi 0, %s409
      %s412 = sphi 0, %s411
      %s426 = sphi 0, %s412
      %s430 = sphi 0, %s430
      %s432 = sphi 0, %s430
      %s433 = sphi 0, %s432
      %s447 = sphi 0, %s433
      %s451 = sphi 0, %s451
      %s453 = sphi 0, %s451
      %s454 = sphi 0, %s453
      %s468 = sphi 0, %s454
      %s474 = sphi 0, %s476
      %s477 = sphi 0, %s474
      %s478 = sphi 0, %s477
      %s494 = sphi 0, %s478
    $region4: #{clip_forward.2} parent=1 // loop_header_branch
      %36 = sbr.rel (%p34) target = $region8
    $region5: #{clip_forward.2} parent=1 // loop_body
      %s38 = ssub.s32 %s33, 1
      %s39 = ssub.s32 %s33, 2
      %s46 = sadd.s32 1, %s41
      %p47 = scmp.ge.s32.totalorder %s46, 4
      %s48 = scalar_select %p47, 0, %s46
      %s49 = sadd.s32 1, %s40
      %s50 = scalar_select %p47, %s49, %s40
      %p51 = scmp.ge.s32.totalorder %s50, 2
      %s52 = scalar_select %p51, 0, %s50
      %s53 = ssub.s32 %s40, %s52
      %p54 = scmp.eq.s32.totalorder %s53, 0
      %s56 = sadd.s32 %s55, 1
      %s57 = scalar_select %p54, %s55, %s56
      %p60 = pneg %p54
      %p61 = scmp.eq.s32.totalorder %s33, 7
      %p62 = por %p60, %p61
      %p63 = scmp.ne.s32.totalorder %s55, %s58
      %p64 = scmp.eq.s32.totalorder %s33, 0
      %p65 = por %p63, %p64
      %p66 = scmp.ne.s32.totalorder %s55, %s58
      %p67 = scmp.eq.s32.totalorder %s38, 7
      %p68 = por %p66, %p67
      %p69 = scmp.ne.s32.totalorder %s58, %s59
      %p70 = scmp.eq.s32.totalorder %s38, 0
      %p71 = por %p69, %p70
      %p72 = scmp.ne.s32.totalorder %s58, %s59
      %p73 = scmp.eq.s32.totalorder %s39, 7
      %p74 = por %p72, %p73
      %p76 = scmp.ne.s32.totalorder %s59, %s75
      %p77 = scmp.eq.s32.totalorder %s39, 0
      %p78 = por %p76, %p77
      %s80 = sadd.s32 %s79, 1
      %p83 = scmp.eq.s32.totalorder %s33, 7
      %p84 = scmp.ne.s32.totalorder %s79, %s81
      %p85 = scmp.eq.s32.totalorder %s33, 0
      %p86 = por %p84, %p85
      %p87 = scmp.ne.s32.totalorder %s79, %s81
      %p88 = scmp.eq.s32.totalorder %s38, 7
      %p89 = por %p87, %p88
      %p90 = scmp.ne.s32.totalorder %s81, %s82
      %p91 = scmp.eq.s32.totalorder %s38, 0
      %p92 = por %p90, %p91
      %p93 = scmp.ne.s32.totalorder %s81, %s82
      %p94 = scmp.eq.s32.totalorder %s39, 7
      %p95 = por %p93, %p94
      %p97 = scmp.ne.s32.totalorder %s82, %s96
      %p98 = scmp.eq.s32.totalorder %s39, 0
      %p99 = por %p97, %p98
      %s101 = sadd.s32 %s100, 1
      %p104 = scmp.eq.s32.totalorder %s33, 7
      %p105 = scmp.ne.s32.totalorder %s100, %s102
      %p106 = scmp.eq.s32.totalorder %s33, 0
      %p107 = por %p105, %p106
      %p108 = scmp.ne.s32.totalorder %s100, %s102
      %p109 = scmp.eq.s32.totalorder %s38, 7
      %p110 = por %p108, %p109
      %p111 = scmp.ne.s32.totalorder %s102, %s103
      %p112 = scmp.eq.s32.totalorder %s38, 0
      %p113 = por %p111, %p112
      %p114 = scmp.ne.s32.totalorder %s102, %s103
      %p115 = scmp.eq.s32.totalorder %s39, 7
      %p116 = por %p114, %p115
      %p118 = scmp.ne.s32.totalorder %s103, %s117
      %p119 = scmp.eq.s32.totalorder %s39, 0
      %p120 = por %p118, %p119
      %s122 = sadd.s32 %s121, 1
      %p125 = scmp.eq.s32.totalorder %s33, 7
      %p126 = scmp.ne.s32.totalorder %s121, %s123
      %p127 = scmp.eq.s32.totalorder %s33, 0
      %p128 = por %p126, %p127
      %p129 = scmp.ne.s32.totalorder %s121, %s123
      %p130 = scmp.eq.s32.totalorder %s38, 7
      %p131 = por %p129, %p130
      %p132 = scmp.ne.s32.totalorder %s123, %s124
      %p133 = scmp.eq.s32.totalorder %s38, 0
      %p134 = por %p132, %p133
      %p135 = scmp.ne.s32.totalorder %s123, %s124
      %p136 = scmp.eq.s32.totalorder %s39, 7
      %p137 = por %p135, %p136
      %p139 = scmp.ne.s32.totalorder %s124, %s138
      %p140 = scmp.eq.s32.totalorder %s39, 0
      %p141 = por %p139, %p140
      %s143 = sadd.s32 %s142, 1
      %p146 = scmp.eq.s32.totalorder %s33, 7
      %p147 = scmp.ne.s32.totalorder %s142, %s144
      %p148 = scmp.eq.s32.totalorder %s33, 0
      %p149 = por %p147, %p148
      %p150 = scmp.ne.s32.totalorder %s142, %s144
      %p151 = scmp.eq.s32.totalorder %s38, 7
      %p152 = por %p150, %p151
      %p153 = scmp.ne.s32.totalorder %s144, %s145
      %p154 = scmp.eq.s32.totalorder %s38, 0
      %p155 = por %p153, %p154
      %p156 = scmp.ne.s32.totalorder %s144, %s145
      %p157 = scmp.eq.s32.totalorder %s39, 7
      %p158 = por %p156, %p157
      %p160 = scmp.ne.s32.totalorder %s145, %s159
      %p161 = scmp.eq.s32.totalorder %s39, 0
      %p162 = por %p160, %p161
      %s164 = sadd.s32 %s163, 1
      %p167 = scmp.eq.s32.totalorder %s33, 7
      %p168 = scmp.ne.s32.totalorder %s163, %s165
      %p169 = scmp.eq.s32.totalorder %s33, 0
      %p170 = por %p168, %p169
      %p171 = scmp.ne.s32.totalorder %s163, %s165
      %p172 = scmp.eq.s32.totalorder %s38, 7
      %p173 = por %p171, %p172
      %p174 = scmp.ne.s32.totalorder %s165, %s166
      %p175 = scmp.eq.s32.totalorder %s38, 0
      %p176 = por %p174, %p175
      %p177 = scmp.ne.s32.totalorder %s165, %s166
      %p178 = scmp.eq.s32.totalorder %s39, 7
      %p179 = por %p177, %p178
      %p181 = scmp.ne.s32.totalorder %s166, %s180
      %p182 = scmp.eq.s32.totalorder %s39, 0
      %p183 = por %p181, %p182
      %s185 = sadd.s32 %s184, 1
      %p188 = scmp.eq.s32.totalorder %s33, 7
      %p189 = scmp.ne.s32.totalorder %s184, %s186
      %p190 = scmp.eq.s32.totalorder %s33, 0
      %p191 = por %p189, %p190
      %p192 = scmp.ne.s32.totalorder %s184, %s186
      %p193 = scmp.eq.s32.totalorder %s38, 7
      %p194 = por %p192, %p193
      %p195 = scmp.ne.s32.totalorder %s186, %s187
      %p196 = scmp.eq.s32.totalorder %s38, 0
      %p197 = por %p195, %p196
      %p198 = scmp.ne.s32.totalorder %s186, %s187
      %p199 = scmp.eq.s32.totalorder %s39, 7
      %p200 = por %p198, %p199
      %p202 = scmp.ne.s32.totalorder %s187, %s201
      %p203 = scmp.eq.s32.totalorder %s39, 0
      %p204 = por %p202, %p203
      %s206 = sadd.s32 %s205, 1
      %p209 = scmp.eq.s32.totalorder %s33, 7
      %p210 = scmp.ne.s32.totalorder %s205, %s207
      %p211 = scmp.eq.s32.totalorder %s33, 0
      %p212 = por %p210, %p211
      %p213 = scmp.ne.s32.totalorder %s205, %s207
      %p214 = scmp.eq.s32.totalorder %s38, 7
      %p215 = por %p213, %p214
      %p216 = scmp.ne.s32.totalorder %s207, %s208
      %p217 = scmp.eq.s32.totalorder %s38, 0
      %p218 = por %p216, %p217
      %p219 = scmp.ne.s32.totalorder %s207, %s208
      %p220 = scmp.eq.s32.totalorder %s39, 7
      %p221 = por %p219, %p220
      %p223 = scmp.ne.s32.totalorder %s208, %s222
      %p224 = scmp.eq.s32.totalorder %s39, 0
      %p225 = por %p223, %p224
      %s227 = sadd.s32 %s226, 1
      %p230 = scmp.eq.s32.totalorder %s33, 7
      %p231 = scmp.ne.s32.totalorder %s226, %s228
      %p232 = scmp.eq.s32.totalorder %s33, 0
      %p233 = por %p231, %p232
      %p234 = scmp.ne.s32.totalorder %s226, %s228
      %p235 = scmp.eq.s32.totalorder %s38, 7
      %p236 = por %p234, %p235
      %p237 = scmp.ne.s32.totalorder %s228, %s229
      %p238 = scmp.eq.s32.totalorder %s38, 0
      %p239 = por %p237, %p238
      %p240 = scmp.ne.s32.totalorder %s228, %s229
      %p241 = scmp.eq.s32.totalorder %s39, 7
      %p242 = por %p240, %p241
      %p244 = scmp.ne.s32.totalorder %s229, %s243
      %p245 = scmp.eq.s32.totalorder %s39, 0
      %p246 = por %p244, %p245
      %s248 = sadd.s32 %s247, 1
      %p251 = scmp.eq.s32.totalorder %s33, 7
      %p252 = scmp.ne.s32.totalorder %s247, %s249
      %p253 = scmp.eq.s32.totalorder %s33, 0
      %p254 = por %p252, %p253
      %p255 = scmp.ne.s32.totalorder %s247, %s249
      %p256 = scmp.eq.s32.totalorder %s38, 7
      %p257 = por %p255, %p256
      %p258 = scmp.ne.s32.totalorder %s249, %s250
      %p259 = scmp.eq.s32.totalorder %s38, 0
      %p260 = por %p258, %p259
      %p261 = scmp.ne.s32.totalorder %s249, %s250
      %p262 = scmp.eq.s32.totalorder %s39, 7
      %p263 = por %p261, %p262
      %p265 = scmp.ne.s32.totalorder %s250, %s264
      %p266 = scmp.eq.s32.totalorder %s39, 0
      %p267 = por %p265, %p266
      %s269 = sadd.s32 %s268, 1
      %p272 = scmp.eq.s32.totalorder %s33, 7
      %p273 = scmp.ne.s32.totalorder %s268, %s270
      %p274 = scmp.eq.s32.totalorder %s33, 0
      %p275 = por %p273, %p274
      %p276 = scmp.ne.s32.totalorder %s268, %s270
      %p277 = scmp.eq.s32.totalorder %s38, 7
      %p278 = por %p276, %p277
      %p279 = scmp.ne.s32.totalorder %s270, %s271
      %p280 = scmp.eq.s32.totalorder %s38, 0
      %p281 = por %p279, %p280
      %p282 = scmp.ne.s32.totalorder %s270, %s271
      %p283 = scmp.eq.s32.totalorder %s39, 7
      %p284 = por %p282, %p283
      %p286 = scmp.ne.s32.totalorder %s271, %s285
      %p287 = scmp.eq.s32.totalorder %s39, 0
      %p288 = por %p286, %p287
      %s290 = sadd.s32 %s289, 1
      %p293 = scmp.eq.s32.totalorder %s33, 7
      %p294 = scmp.ne.s32.totalorder %s289, %s291
      %p295 = scmp.eq.s32.totalorder %s33, 0
      %p296 = por %p294, %p295
      %p297 = scmp.ne.s32.totalorder %s289, %s291
      %p298 = scmp.eq.s32.totalorder %s38, 7
      %p299 = por %p297, %p298
      %p300 = scmp.ne.s32.totalorder %s291, %s292
      %p301 = scmp.eq.s32.totalorder %s38, 0
      %p302 = por %p300, %p301
      %p303 = scmp.ne.s32.totalorder %s291, %s292
      %p304 = scmp.eq.s32.totalorder %s39, 7
      %p305 = por %p303, %p304
      %p307 = scmp.ne.s32.totalorder %s292, %s306
      %p308 = scmp.eq.s32.totalorder %s39, 0
      %p309 = por %p307, %p308
      %s311 = sadd.s32 %s310, 1
      %p314 = scmp.eq.s32.totalorder %s33, 7
      %p315 = scmp.ne.s32.totalorder %s310, %s312
      %p316 = scmp.eq.s32.totalorder %s33, 0
      %p317 = por %p315, %p316
      %p318 = scmp.ne.s32.totalorder %s310, %s312
      %p319 = scmp.eq.s32.totalorder %s38, 7
      %p320 = por %p318, %p319
      %p321 = scmp.ne.s32.totalorder %s312, %s313
      %p322 = scmp.eq.s32.totalorder %s38, 0
      %p323 = por %p321, %p322
      %p324 = scmp.ne.s32.totalorder %s312, %s313
      %p325 = scmp.eq.s32.totalorder %s39, 7
      %p326 = por %p324, %p325
      %p328 = scmp.ne.s32.totalorder %s313, %s327
      %p329 = scmp.eq.s32.totalorder %s39, 0
      %p330 = por %p328, %p329
      %s331 = ssub.s32 %s41, %s48
      %p332 = scmp.eq.s32.totalorder %s331, 0
      %s334 = sadd.s32 %s333, 1
      %s335 = scalar_select %p332, %s333, %s334
      %p338 = pneg %p332
      %p339 = scmp.eq.s32.totalorder %s33, 7
      %p340 = por %p338, %p339
      %p341 = scmp.ne.s32.totalorder %s333, %s336
      %p342 = scmp.eq.s32.totalorder %s33, 0
      %p343 = por %p341, %p342
      %p344 = scmp.ne.s32.totalorder %s333, %s336
      %p345 = scmp.eq.s32.totalorder %s38, 7
      %p346 = por %p344, %p345
      %p347 = scmp.ne.s32.totalorder %s336, %s337
      %p348 = scmp.eq.s32.totalorder %s38, 0
      %p349 = por %p347, %p348
      %p350 = scmp.ne.s32.totalorder %s336, %s337
      %p351 = scmp.eq.s32.totalorder %s39, 7
      %p352 = por %p350, %p351
      %p354 = scmp.ne.s32.totalorder %s337, %s353
      %p355 = scmp.eq.s32.totalorder %s39, 0
      %p356 = por %p354, %p355
      %s357 = ssub.s32 %s41, %s48
      %p358 = scmp.eq.s32.totalorder %s357, 0
      %s360 = sadd.s32 %s359, 1
      %s361 = scalar_select %p358, %s359, %s360
      %p364 = pneg %p358
      %p365 = scmp.eq.s32.totalorder %s33, 7
      %p366 = por %p364, %p365
      %p367 = scmp.ne.s32.totalorder %s359, %s362
      %p368 = scmp.eq.s32.totalorder %s33, 0
      %p369 = por %p367, %p368
      %p370 = scmp.ne.s32.totalorder %s359, %s362
      %p371 = scmp.eq.s32.totalorder %s38, 7
      %p372 = por %p370, %p371
      %p373 = scmp.ne.s32.totalorder %s362, %s363
      %p374 = scmp.eq.s32.totalorder %s38, 0
      %p375 = por %p373, %p374
      %p376 = scmp.ne.s32.totalorder %s362, %s363
      %p377 = scmp.eq.s32.totalorder %s39, 7
      %p378 = por %p376, %p377
      %p380 = scmp.ne.s32.totalorder %s363, %s379
      %p381 = scmp.eq.s32.totalorder %s39, 0
      %p382 = por %p380, %p381
      %s383 = ssub.s32 %s41, %s48
      %p384 = scmp.eq.s32.totalorder %s383, 0
      %s386 = sadd.s32 %s385, 1
      %s387 = scalar_select %p384, %s385, %s386
      %p390 = pneg %p384
      %p391 = scmp.eq.s32.totalorder %s33, 7
      %p392 = por %p390, %p391
      %p393 = scmp.ne.s32.totalorder %s385, %s388
      %p394 = scmp.eq.s32.totalorder %s33, 0
      %p395 = por %p393, %p394
      %p396 = scmp.ne.s32.totalorder %s385, %s388
      %p397 = scmp.eq.s32.totalorder %s38, 7
      %p398 = por %p396, %p397
      %p399 = scmp.ne.s32.totalorder %s388, %s389
      %p400 = scmp.eq.s32.totalorder %s38, 0
      %p401 = por %p399, %p400
      %p402 = scmp.ne.s32.totalorder %s388, %s389
      %p403 = scmp.eq.s32.totalorder %s39, 7
      %p404 = por %p402, %p403
      %p406 = scmp.ne.s32.totalorder %s389, %s405
      %p407 = scmp.eq.s32.totalorder %s39, 0
      %p408 = por %p406, %p407
      %s410 = sadd.s32 %s409, 1
      %p413 = scmp.eq.s32.totalorder %s33, 7
      %p414 = scmp.ne.s32.totalorder %s409, %s411
      %p415 = scmp.eq.s32.totalorder %s33, 0
      %p416 = por %p414, %p415
      %p417 = scmp.ne.s32.totalorder %s409, %s411
      %p418 = scmp.eq.s32.totalorder %s38, 7
      %p419 = por %p417, %p418
      %p420 = scmp.ne.s32.totalorder %s411, %s412
      %p421 = scmp.eq.s32.totalorder %s38, 0
      %p422 = por %p420, %p421
      %p423 = scmp.ne.s32.totalorder %s411, %s412
      %p424 = scmp.eq.s32.totalorder %s39, 7
      %p425 = por %p423, %p424
      %p427 = scmp.ne.s32.totalorder %s412, %s426
      %p428 = scmp.eq.s32.totalorder %s39, 0
      %p429 = por %p427, %p428
      %s431 = sadd.s32 %s430, 1
      %p434 = scmp.eq.s32.totalorder %s33, 7
      %p435 = scmp.ne.s32.totalorder %s430, %s432
      %p436 = scmp.eq.s32.totalorder %s33, 0
      %p437 = por %p435, %p436
      %p438 = scmp.ne.s32.totalorder %s430, %s432
      %p439 = scmp.eq.s32.totalorder %s38, 7
      %p440 = por %p438, %p439
      %p441 = scmp.ne.s32.totalorder %s432, %s433
      %p442 = scmp.eq.s32.totalorder %s38, 0
      %p443 = por %p441, %p442
      %p444 = scmp.ne.s32.totalorder %s432, %s433
      %p445 = scmp.eq.s32.totalorder %s39, 7
      %p446 = por %p444, %p445
      %p448 = scmp.ne.s32.totalorder %s433, %s447
      %p449 = scmp.eq.s32.totalorder %s39, 0
      %p450 = por %p448, %p449
      %s452 = sadd.s32 %s451, 1
      %p455 = scmp.eq.s32.totalorder %s33, 7
      %p456 = scmp.ne.s32.totalorder %s451, %s453
      %p457 = scmp.eq.s32.totalorder %s33, 0
      %p458 = por %p456, %p457
      %p459 = scmp.ne.s32.totalorder %s451, %s453
      %p460 = scmp.eq.s32.totalorder %s38, 7
      %p461 = por %p459, %p460
      %p462 = scmp.ne.s32.totalorder %s453, %s454
      %p463 = scmp.eq.s32.totalorder %s38, 0
      %p464 = por %p462, %p463
      %p465 = scmp.ne.s32.totalorder %s453, %s454
      %p466 = scmp.eq.s32.totalorder %s39, 7
      %p467 = por %p465, %p466
      %p469 = scmp.ne.s32.totalorder %s454, %s468
      %p470 = scmp.eq.s32.totalorder %s39, 0
      %p471 = por %p469, %p470
      %s472 = ssub.s32 %s40, %s52
      %p473 = scmp.eq.s32.totalorder %s472, 0
      %s475 = sadd.s32 %s474, 1
      %s476 = scalar_select %p473, %s474, %s475
      %p479 = pneg %p473
      %p480 = scmp.eq.s32.totalorder %s33, 7
      %p481 = por %p479, %p480
      %p482 = scmp.ne.s32.totalorder %s474, %s477
      %p483 = scmp.eq.s32.totalorder %s33, 0
      %p484 = por %p482, %p483
      %p485 = scmp.ne.s32.totalorder %s474, %s477
      %p486 = scmp.eq.s32.totalorder %s38, 7
      %p487 = por %p485, %p486
      %p488 = scmp.ne.s32.totalorder %s477, %s478
      %p489 = scmp.eq.s32.totalorder %s38, 0
      %p490 = por %p488, %p489
      %p491 = scmp.ne.s32.totalorder %s477, %s478
      %p492 = scmp.eq.s32.totalorder %s39, 7
      %p493 = por %p491, %p492
      %p495 = scmp.ne.s32.totalorder %s478, %s494
      %p496 = scmp.eq.s32.totalorder %s39, 0
      %p497 = por %p495, %p496
      %p498 = scmp.le.s32.totalorder 1, %s33
      %p499 = scmp.lt.s32.totalorder %s33, 9
      %p500 = pnand %p498, %p499
      %p501 = pneg %p500
      // Predicated region
      $region9: #{clip_forward.2} parent=5 // pred_check
        _
      $region10: #{clip_forward.2} parent=5 // pred_check_branch
        %503 = sbr.rel (%p500) target = $region12
      $region11: #{clip_forward.2} parent=5 // pred_region
        %s504 = ssub.s32 %s33, 1
        // Predicated region
        $region13: #{clip_forward.2} parent=11 // pred_check
          %p505 = pneg %p92
        $region14: #{clip_forward.2} parent=11 // pred_check_branch
          %507 = sbr.rel (%p505) target = $region16
        $region15: #{clip_forward.2} parent=11 // pred_region
          _
        $region16: #{clip_forward.2} parent=11 // pred_fallthru
          _
        // Predicated region
        $region17: #{clip_forward.2} parent=11 // pred_check
          %p508 = pneg %p113
        $region18: #{clip_forward.2} parent=11 // pred_check_branch
          %510 = sbr.rel (%p508) target = $region20
        $region19: #{clip_forward.2} parent=11 // pred_region
          %s512 = ssub.s32 16, 16
          %513 = vsyncadd [#allocation6], %s512
          %s515 = sshll.u32 [#allocation5], 4
          %s516 = int_to_ptr.vmem [resolvable:$true] %s515
          %518 = dma.hbm_to_vmem [thread:$0]  %s2, 16, %s516, [#allocation6]
        $region20: #{clip_forward.2} parent=11 // pred_fallthru
          _
        // Predicated region
        $region21: #{clip_forward.2} parent=11 // pred_check
          %p519 = pneg %p134
        $region22: #{clip_forward.2} parent=11 // pred_check_branch
          %521 = sbr.rel (%p519) target = $region24
        $region23: #{clip_forward.2} parent=11 // pred_region
          %s523 = ssub.s32 1024, 1024
          %524 = vsyncadd [#allocation8], %s523
          %s525 = sshll.u32 [#allocation7], 4
          %s526 = int_to_ptr.vmem [resolvable:$true] %s525
          %531 = dma.hbm_to_vmem [thread:$0]  %s3, 1024, %s526, [#allocation8], 64, 64, 4
        $region24: #{clip_forward.2} parent=11 // pred_fallthru
          _
        // Predicated region
        $region25: #{clip_forward.2} parent=11 // pred_check
          %p532 = pneg %p155
        $region26: #{clip_forward.2} parent=11 // pred_check_branch
          %534 = sbr.rel (%p532) target = $region28
        $region27: #{clip_forward.2} parent=11 // pred_region
          %s536 = ssub.s32 1024, 1024
          %537 = vsyncadd [#allocation8], %s536
          %s538 = sshll.u32 [#allocation9], 4
          %s539 = int_to_ptr.vmem [resolvable:$true] %s538
          %544 = dma.hbm_to_vmem [thread:$0]  %s4, 1024, %s539, [#allocation8], 64, 64, 4
        $region28: #{clip_forward.2} parent=11 // pred_fallthru
          _
        // Predicated region
        $region29: #{clip_forward.2} parent=11 // pred_check
          %p545 = pneg %p176
        $region30: #{clip_forward.2} parent=11 // pred_check_branch
          %547 = sbr.rel (%p545) target = $region32
        $region31: #{clip_forward.2} parent=11 // pred_region
          %s549 = ssub.s32 1024, 1024
          %550 = vsyncadd [#allocation11], %s549
          %s551 = sshll.u32 [#allocation10], 4
          %s552 = int_to_ptr.vmem [resolvable:$true] %s551
          %557 = dma.hbm_to_vmem [thread:$0]  %s5, 1024, %s552, [#allocation11], 64, 64, 4
        $region32: #{clip_forward.2} parent=11 // pred_fallthru
          _
        // Predicated region
        $region33: #{clip_forward.2} parent=11 // pred_check
          %p558 = pneg %p197
        $region34: #{clip_forward.2} parent=11 // pred_check_branch
          %560 = sbr.rel (%p558) target = $region36
        $region35: #{clip_forward.2} parent=11 // pred_region
          %s562 = ssub.s32 64, 64
          %563 = vsyncadd [#allocation11], %s562
          %s564 = sshll.u32 [#allocation12], 4
          %s565 = int_to_ptr.vmem [resolvable:$true] %s564
          %570 = dma.hbm_to_vmem [thread:$0]  %s6, 64, %s565, [#allocation11], 16, 16, 1
        $region36: #{clip_forward.2} parent=11 // pred_fallthru
          _
        // Predicated region
        $region37: #{clip_forward.2} parent=11 // pred_check
          %p571 = pneg %p218
        $region38: #{clip_forward.2} parent=11 // pred_check_branch
          %573 = sbr.rel (%p571) target = $region40
        $region39: #{clip_forward.2} parent=11 // pred_region
          %s575 = ssub.s32 64, 64
          %576 = vsyncadd [#allocation14], %s575
          %s577 = sshll.u32 [#allocation13], 4
          %s578 = int_to_ptr.vmem [resolvable:$true] %s577
          %583 = dma.hbm_to_vmem [thread:$0]  %s7, 64, %s578, [#allocation14], 16, 16, 1
        $region40: #{clip_forward.2} parent=11 // pred_fallthru
          _
        // Predicated region
        $region41: #{clip_forward.2} parent=11 // pred_check
          %p584 = pneg %p239
        $region42: #{clip_forward.2} parent=11 // pred_check_branch
          %586 = sbr.rel (%p584) target = $region44
        $region43: #{clip_forward.2} parent=11 // pred_region
          %s588 = ssub.s32 64, 64
          %589 = vsyncadd [#allocation14], %s588
          %s590 = sshll.u32 [#allocation15], 4
          %s591 = int_to_ptr.vmem [resolvable:$true] %s590
          %596 = dma.hbm_to_vmem [thread:$0]  %s8, 64, %s591, [#allocation14], 16, 16, 1
        $region44: #{clip_forward.2} parent=11 // pred_fallthru
          _
        // Predicated region
        $region45: #{clip_forward.2} parent=11 // pred_check
          %p597 = pneg %p260
        $region46: #{clip_forward.2} parent=11 // pred_check_branch
          %599 = sbr.rel (%p597) target = $region48
        $region47: #{clip_forward.2} parent=11 // pred_region
          %s601 = ssub.s32 1024, 1024
          %602 = vsyncadd [#allocation17], %s601
          %s603 = sshll.u32 [#allocation16], 4
          %s604 = int_to_ptr.vmem [resolvable:$true] %s603
          %609 = dma.hbm_to_vmem [thread:$0]  %s9, 1024, %s604, [#allocation17], 64, 64, 4
        $region48: #{clip_forward.2} parent=11 // pred_fallthru
          _
        // Predicated region
        $region49: #{clip_forward.2} parent=11 // pred_check
          %p610 = pneg %p281
        $region50: #{clip_forward.2} parent=11 // pred_check_branch
          %612 = sbr.rel (%p610) target = $region52
        $region51: #{clip_forward.2} parent=11 // pred_region
          %s614 = ssub.s32 16, 16
          %615 = vsyncadd [#allocation17], %s614
          %s617 = sshll.u32 [#allocation18], 4
          %s618 = int_to_ptr.vmem [resolvable:$true] %s617
          %620 = dma.hbm_to_vmem [thread:$0]  %s10, 16, %s618, [#allocation17]
        $region52: #{clip_forward.2} parent=11 // pred_fallthru
          _
        // Predicated region
        $region53: #{clip_forward.2} parent=11 // pred_check
          %p621 = pneg %p302
        $region54: #{clip_forward.2} parent=11 // pred_check_branch
          %623 = sbr.rel (%p621) target = $region56
        $region55: #{clip_forward.2} parent=11 // pred_region
          _
        $region56: #{clip_forward.2} parent=11 // pred_fallthru
          _
        // Predicated region
        $region57: #{clip_forward.2} parent=11 // pred_check
          %p624 = pneg %p323
        $region58: #{clip_forward.2} parent=11 // pred_check_branch
          %626 = sbr.rel (%p624) target = $region60
        $region59: #{clip_forward.2} parent=11 // pred_region
          _
        $region60: #{clip_forward.2} parent=11 // pred_fallthru
          _
        // Predicated region
        $region61: #{clip_forward.2} parent=11 // pred_check
          %p627 = pneg %p422
        $region62: #{clip_forward.2} parent=11 // pred_check_branch
          %629 = sbr.rel (%p627) target = $region64
        $region63: #{clip_forward.2} parent=11 // pred_region
          %s631 = ssub.s32 16, 16
          %632 = vsyncadd [#allocation21], %s631
          %s634 = sshll.u32 [#allocation22], 4
          %s635 = int_to_ptr.vmem [resolvable:$true] %s634
          %637 = dma.hbm_to_vmem [thread:$0]  %s16, 16, %s635, [#allocation21]
        $region64: #{clip_forward.2} parent=11 // pred_fallthru
          _
        // Predicated region
        $region65: #{clip_forward.2} parent=11 // pred_check
          %p638 = pneg %p443
        $region66: #{clip_forward.2} parent=11 // pred_check_branch
          %640 = sbr.rel (%p638) target = $region68
        $region67: #{clip_forward.2} parent=11 // pred_region
          _
        $region68: #{clip_forward.2} parent=11 // pred_fallthru
          _
        // Predicated region
        $region69: #{clip_forward.2} parent=11 // pred_check
          %p641 = pneg %p464
        $region70: #{clip_forward.2} parent=11 // pred_check_branch
          %643 = sbr.rel (%p641) target = $region72
        $region71: #{clip_forward.2} parent=11 // pred_region
          _
        $region72: #{clip_forward.2} parent=11 // pred_fallthru
          _
      $region12: #{clip_forward.2} parent=5 // pred_fallthru
        _
      %p644 = scmp.lt.s32.totalorder %s33, 8
      // Predicated region
      $region73: #{clip_forward.2} parent=5 // pred_check
        %p645 = pneg %p644
      $region74: #{clip_forward.2} parent=5 // pred_check_branch
        %647 = sbr.rel (%p645) target = $region76
      $region75: #{clip_forward.2} parent=5 // pred_region
        // Predicated region
        $region77: #{clip_forward.2} parent=75 // pred_check
          %p648 = pneg %p65
        $region78: #{clip_forward.2} parent=75 // pred_check_branch
          %650 = sbr.rel (%p648) target = $region80
        $region79: #{clip_forward.2} parent=75 // pred_region
          %p651 = scmp.lt.s32.totalorder %s40, 1
          %s652 = scalar_select %p651, %s40, 1
          %s653 = smul.addr %s652, 2
          %s654 = smul.addr %s653, 8
          %s655 = scalar_lea.vmem %s0, %s654
        $region80: #{clip_forward.2} parent=75 // pred_fallthru
          _
        // Predicated region
        $region81: #{clip_forward.2} parent=75 // pred_check
          %p656 = pneg %p343
        $region82: #{clip_forward.2} parent=75 // pred_check_branch
          %658 = sbr.rel (%p656) target = $region84
        $region83: #{clip_forward.2} parent=75 // pred_region
          %s659 = sand.u32 %s333, 1
          %s660 = sand.u32 %s333, 1
          %s661 = smul.addr %s660, 64
          %s662 = scalar_lea.vmem [#allocation19], %s661
          %s663 = smul.addr %s41, 4
          %s664 = scalar_lea.vmem %s13, %s663
          // Predicated region
          $region85: #{clip_forward.2} parent=83 // pred_check
            _
          $region86: #{clip_forward.2} parent=83 // pred_check_branch
            %666 = sbr.rel (0) target = $region88
          $region87: #{clip_forward.2} parent=83 // pred_region
            // Predicated region
            $region89: #{clip_forward.2} parent=87 // pred_check
              _
            $region90: #{clip_forward.2} parent=87 // pred_check_branch
              %668 = sbr.rel target = $region92
            $region91: #{clip_forward.2} parent=87 // pred_region
              // Predicated region
              $region104: #{clip_forward.2} parent=91 // pred_check
                _
              $region105: #{clip_forward.2} parent=91 // pred_check_branch
                %713 = sbr.rel (0) target = $region107
              $region106: #{clip_forward.2} parent=91 // pred_region
                loop: start=0, step=1, limit=1
                $region108: #{clip_forward.2} parent=106 // loop_pre_header
                  _
                $region109: #{clip_forward.2} parent=106 // loop_header
                  %s715 = sphi 0, %s719
                  %p716 = scmp.ge.s32.totalorder %s715, 1
                  %s720 = sphi %s664, %s664
                  %s721 = sphi %s662, %s662
                $region110: #{clip_forward.2} parent=106 // loop_header_branch
                  %718 = sbr.rel (%p716) target = $region114
                $region111: #{clip_forward.2} parent=106 // loop_body
                  _
                $region112: #{clip_forward.2} parent=106 // loop_footer
                  %s719 = sadd.s32 1, %s715
                $region113: #{clip_forward.2} parent=106 // loop_footer_branch
                  %714 = sbr.rel target = $region109
                $region114: #{clip_forward.2} parent=106 // loop_exit
                  _
                loop: start=0, step=1, limit=1
                $region115: #{clip_forward.2} parent=106 // loop_pre_header
                  _
                $region116: #{clip_forward.2} parent=106 // loop_header
                  %s724 = sphi 0, %s728
                  %p725 = scmp.ge.s32.totalorder %s724, 1
                  %s729 = sphi %s664, %s664
                  %s730 = sphi %s662, %s662
                $region117: #{clip_forward.2} parent=106 // loop_header_branch
                  %727 = sbr.rel (%p725) target = $region121
                $region118: #{clip_forward.2} parent=106 // loop_body
                  %v731 = vld [vmem:[%s729] sm:$0xf]
                  %732 = vst [vmem:[%s730] sm:$0xf] %v731
                  %v733 = vld [vmem:[%s729 + $0x10] sm:$0xf]
                  %734 = vst [vmem:[%s730 + $0x4] sm:$0xf] %v733
                  %v735 = vld [vmem:[%s729 + $0x20] sm:$0xf]
                  %736 = vst [vmem:[%s730 + $0x8] sm:$0xf] %v735
                  %v737 = vld [vmem:[%s729 + $0x30] sm:$0xf]
                  %738 = vst [vmem:[%s730 + $0xc] sm:$0xf] %v737
                  %v739 = vld [vmem:[%s729 + $0x40] sm:$0xf]
                  %740 = vst [vmem:[%s730 + $0x10] sm:$0xf] %v739
                  %v741 = vld [vmem:[%s729 + $0x50] sm:$0xf]
                  %742 = vst [vmem:[%s730 + $0x14] sm:$0xf] %v741
                  %v743 = vld [vmem:[%s729 + $0x60] sm:$0xf]
                  %744 = vst [vmem:[%s730 + $0x18] sm:$0xf] %v743
                  %v745 = vld [vmem:[%s729 + $0x70] sm:$0xf]
                  %746 = vst [vmem:[%s730 + $0x1c] sm:$0xf] %v745
                  %v747 = vld [vmem:[%s729 + $0x80] sm:$0xf]
                  %748 = vst [vmem:[%s730 + $0x20] sm:$0xf] %v747
                  %v749 = vld [vmem:[%s729 + $0x90] sm:$0xf]
                  %750 = vst [vmem:[%s730 + $0x24] sm:$0xf] %v749
                  %v751 = vld [vmem:[%s729 + $0xa0] sm:$0xf]
                  %752 = vst [vmem:[%s730 + $0x28] sm:$0xf] %v751
                  %v753 = vld [vmem:[%s729 + $0xb0] sm:$0xf]
                  %754 = vst [vmem:[%s730 + $0x2c] sm:$0xf] %v753
                  %v755 = vld [vmem:[%s729 + $0xc0] sm:$0xf]
                  %756 = vst [vmem:[%s730 + $0x30] sm:$0xf] %v755
                  %v757 = vld [vmem:[%s729 + $0xd0] sm:$0xf]
                  %758 = vst [vmem:[%s730 + $0x34] sm:$0xf] %v757
                  %v759 = vld [vmem:[%s729 + $0xe0] sm:$0xf]
                  %760 = vst [vmem:[%s730 + $0x38] sm:$0xf] %v759
                  %v761 = vld [vmem:[%s729 + $0xf0] sm:$0xf]
                  %762 = vst [vmem:[%s730 + $0x3c] sm:$0xf] %v761
                $region119: #{clip_forward.2} parent=106 // loop_footer
                  %s728 = sadd.s32 1, %s724
                $region120: #{clip_forward.2} parent=106 // loop_footer_branch
                  %723 = sbr.rel target = $region116
                $region121: #{clip_forward.2} parent=106 // loop_exit
                  _
              $region107: #{clip_forward.2} parent=91 // pred_fallthru
                _
            $region92: #{clip_forward.2} parent=87 // pred_fallthru
              _
            // Predicated region
            $region93: #{clip_forward.2} parent=87 // pred_check
              _
            $region94: #{clip_forward.2} parent=87 // pred_check_branch
              %670 = sbr.rel (0) target = $region96
            $region95: #{clip_forward.2} parent=87 // pred_region
              loop: start=0, step=1, limit=1
              $region97: #{clip_forward.2} parent=95 // loop_pre_header
                _
              $region98: #{clip_forward.2} parent=95 // loop_header
                %s673 = sphi 0, %s677
                %p674 = scmp.ge.s32.totalorder %s673, 1
                %s678 = sphi %s664, %s664
                %s679 = sphi %s662, %s662
              $region99: #{clip_forward.2} parent=95 // loop_header_branch
                %676 = sbr.rel (%p674) target = $region103
              $region100: #{clip_forward.2} parent=95 // loop_body
                %v680 = vld [vmem:[%s678] sm:$0xf]
                %681 = vst [vmem:[%s679] sm:$0xf] %v680
                %v682 = vld [vmem:[%s678 + $0x10] sm:$0xf]
                %683 = vst [vmem:[%s679 + $0x4] sm:$0xf] %v682
                %v684 = vld [vmem:[%s678 + $0x20] sm:$0xf]
                %685 = vst [vmem:[%s679 + $0x8] sm:$0xf] %v684
                %v686 = vld [vmem:[%s678 + $0x30] sm:$0xf]
                %687 = vst [vmem:[%s679 + $0xc] sm:$0xf] %v686
                %v688 = vld [vmem:[%s678 + $0x40] sm:$0xf]
                %689 = vst [vmem:[%s679 + $0x10] sm:$0xf] %v688
                %v690 = vld [vmem:[%s678 + $0x50] sm:$0xf]
                %691 = vst [vmem:[%s679 + $0x14] sm:$0xf] %v690
                %v692 = vld [vmem:[%s678 + $0x60] sm:$0xf]
                %693 = vst [vmem:[%s679 + $0x18] sm:$0xf] %v692
                %v694 = vld [vmem:[%s678 + $0x70] sm:$0xf]
                %695 = vst [vmem:[%s679 + $0x1c] sm:$0xf] %v694
                %v696 = vld [vmem:[%s678 + $0x80] sm:$0xf]
                %697 = vst [vmem:[%s679 + $0x20] sm:$0xf] %v696
                %v698 = vld [vmem:[%s678 + $0x90] sm:$0xf]
                %699 = vst [vmem:[%s679 + $0x24] sm:$0xf] %v698
                %v700 = vld [vmem:[%s678 + $0xa0] sm:$0xf]
                %701 = vst [vmem:[%s679 + $0x28] sm:$0xf] %v700
                %v702 = vld [vmem:[%s678 + $0xb0] sm:$0xf]
                %703 = vst [vmem:[%s679 + $0x2c] sm:$0xf] %v702
                %v704 = vld [vmem:[%s678 + $0xc0] sm:$0xf]
                %705 = vst [vmem:[%s679 + $0x30] sm:$0xf] %v704
                %v706 = vld [vmem:[%s678 + $0xd0] sm:$0xf]
                %707 = vst [vmem:[%s679 + $0x34] sm:$0xf] %v706
                %v708 = vld [vmem:[%s678 + $0xe0] sm:$0xf]
                %709 = vst [vmem:[%s679 + $0x38] sm:$0xf] %v708
                %v710 = vld [vmem:[%s678 + $0xf0] sm:$0xf]
                %711 = vst [vmem:[%s679 + $0x3c] sm:$0xf] %v710
              $region101: #{clip_forward.2} parent=95 // loop_footer
                %s677 = sadd.s32 1, %s673
              $region102: #{clip_forward.2} parent=95 // loop_footer_branch
                %672 = sbr.rel target = $region98
              $region103: #{clip_forward.2} parent=95 // loop_exit
                _
            $region96: #{clip_forward.2} parent=87 // pred_fallthru
              _
          $region88: #{clip_forward.2} parent=83 // pred_fallthru
            _
          %763 = vnop
        $region84: #{clip_forward.2} parent=75 // pred_fallthru
          _
        // Predicated region
        $region122: #{clip_forward.2} parent=75 // pred_check
          %p764 = pneg %p369
        $region123: #{clip_forward.2} parent=75 // pred_check_branch
          %766 = sbr.rel (%p764) target = $region125
        $region124: #{clip_forward.2} parent=75 // pred_region
          %s767 = sand.u32 %s33, 1
          %s768 = scalar_lea.sflag [#allocation21], %s767
          %s769 = sand.u32 %s359, 1
          %s770 = scalar_lea.vmem [#allocation20], %s769
          %s772 = ssub.s32 16, 16
          %773 = vsyncadd %s768, %s772
          %s774 = smul.addr %s41, 16
          %s775 = scalar_lea.hbm %s14, %s774
          %s777 = sshll.u32 %s770, 4
          %s778 = int_to_ptr.vmem [resolvable:$true] %s777
          %780 = dma.hbm_to_vmem [thread:$0]  %s775, 16, %s778, %s768
        $region125: #{clip_forward.2} parent=75 // pred_fallthru
          _
        // Predicated region
        $region126: #{clip_forward.2} parent=75 // pred_check
          %p781 = pneg %p395
        $region127: #{clip_forward.2} parent=75 // pred_check_branch
          %783 = sbr.rel (%p781) target = $region129
        $region128: #{clip_forward.2} parent=75 // pred_region
          %s784 = smul.u32 16, %s41
          %p785 = scmp.lt.s32.totalorder %s784, 63
          %s786 = scalar_select %p785, %s784, 63
          %s787 = smul.addr %s786, 4
          %s788 = scalar_lea.vmem %s15, %s787
          %s789 = smul.u32 16, %s41
        $region129: #{clip_forward.2} parent=75 // pred_fallthru
          _
      $region76: #{clip_forward.2} parent=5 // pred_fallthru
        _
      %p790 = scmp.le.s32.totalorder 1, %s33
      %p791 = scmp.lt.s32.totalorder %s33, 9
      %p792 = pnand %p790, %p791
      %p793 = pneg %p792
      // Predicated region
      $region130: #{clip_forward.2} parent=5 // pred_check
        _
      $region131: #{clip_forward.2} parent=5 // pred_check_branch
        %795 = sbr.rel (%p792) target = $region133
      $region132: #{clip_forward.2} parent=5 // pred_region
        %s796 = ssub.s32 %s33, 1
        // Predicated region
        $region134: #{clip_forward.2} parent=132 // pred_check
          %p797 = pneg %p113
        $region135: #{clip_forward.2} parent=132 // pred_check_branch
          %799 = sbr.rel (%p797) target = $region137
        $region136: #{clip_forward.2} parent=132 // pred_region
          %800 = dma.done [#allocation6], 16
        $region137: #{clip_forward.2} parent=132 // pred_fallthru
          _
        // Predicated region
        $region138: #{clip_forward.2} parent=132 // pred_check
          %p801 = pneg %p134
        $region139: #{clip_forward.2} parent=132 // pred_check_branch
          %803 = sbr.rel (%p801) target = $region141
        $region140: #{clip_forward.2} parent=132 // pred_region
          %804 = dma.done [#allocation8], 1024
        $region141: #{clip_forward.2} parent=132 // pred_fallthru
          _
        // Predicated region
        $region142: #{clip_forward.2} parent=132 // pred_check
          %p805 = pneg %p155
        $region143: #{clip_forward.2} parent=132 // pred_check_branch
          %807 = sbr.rel (%p805) target = $region145
        $region144: #{clip_forward.2} parent=132 // pred_region
          %808 = dma.done [#allocation8], 1024
        $region145: #{clip_forward.2} parent=132 // pred_fallthru
          _
        // Predicated region
        $region146: #{clip_forward.2} parent=132 // pred_check
          %p809 = pneg %p176
        $region147: #{clip_forward.2} parent=132 // pred_check_branch
          %811 = sbr.rel (%p809) target = $region149
        $region148: #{clip_forward.2} parent=132 // pred_region
          %812 = dma.done [#allocation11], 1024
        $region149: #{clip_forward.2} parent=132 // pred_fallthru
          _
        // Predicated region
        $region150: #{clip_forward.2} parent=132 // pred_check
          %p813 = pneg %p197
        $region151: #{clip_forward.2} parent=132 // pred_check_branch
          %815 = sbr.rel (%p813) target = $region153
        $region152: #{clip_forward.2} parent=132 // pred_region
          %816 = dma.done [#allocation11], 64
        $region153: #{clip_forward.2} parent=132 // pred_fallthru
          _
        // Predicated region
        $region154: #{clip_forward.2} parent=132 // pred_check
          %p817 = pneg %p218
        $region155: #{clip_forward.2} parent=132 // pred_check_branch
          %819 = sbr.rel (%p817) target = $region157
        $region156: #{clip_forward.2} parent=132 // pred_region
          %820 = dma.done [#allocation14], 64
        $region157: #{clip_forward.2} parent=132 // pred_fallthru
          _
        // Predicated region
        $region158: #{clip_forward.2} parent=132 // pred_check
          %p821 = pneg %p239
        $region159: #{clip_forward.2} parent=132 // pred_check_branch
          %823 = sbr.rel (%p821) target = $region161
        $region160: #{clip_forward.2} parent=132 // pred_region
          %824 = dma.done [#allocation14], 64
        $region161: #{clip_forward.2} parent=132 // pred_fallthru
          _
        // Predicated region
        $region162: #{clip_forward.2} parent=132 // pred_check
          %p825 = pneg %p260
        $region163: #{clip_forward.2} parent=132 // pred_check_branch
          %827 = sbr.rel (%p825) target = $region165
        $region164: #{clip_forward.2} parent=132 // pred_region
          %828 = dma.done [#allocation17], 1024
        $region165: #{clip_forward.2} parent=132 // pred_fallthru
          _
        // Predicated region
        $region166: #{clip_forward.2} parent=132 // pred_check
          %p829 = pneg %p281
        $region167: #{clip_forward.2} parent=132 // pred_check_branch
          %831 = sbr.rel (%p829) target = $region169
        $region168: #{clip_forward.2} parent=132 // pred_region
          %832 = dma.done [#allocation17], 16
        $region169: #{clip_forward.2} parent=132 // pred_fallthru
          _
        %s833 = sand.u32 %s336, 1
        %s834 = sand.u32 %s336, 1
        %s835 = smul.addr %s834, 64
        %s836 = scalar_lea.vmem [#allocation19], %s835
        // Predicated region
        $region170: #{clip_forward.2} parent=132 // pred_check
          %p837 = pneg %p349
        $region171: #{clip_forward.2} parent=132 // pred_check_branch
          %839 = sbr.rel (%p837) target = $region173
        $region172: #{clip_forward.2} parent=132 // pred_region
          _
        $region173: #{clip_forward.2} parent=132 // pred_fallthru
          _
        %s840 = sand.u32 %s38, 1
        %s841 = scalar_lea.sflag [#allocation21], %s840
        %s842 = sand.u32 %s362, 1
        %s843 = scalar_lea.vmem [#allocation20], %s842
        // Predicated region
        $region174: #{clip_forward.2} parent=132 // pred_check
          %p844 = pneg %p375
        $region175: #{clip_forward.2} parent=132 // pred_check_branch
          %846 = sbr.rel (%p844) target = $region177
        $region176: #{clip_forward.2} parent=132 // pred_region
          %847 = dma.done %s841, 16
        $region177: #{clip_forward.2} parent=132 // pred_fallthru
          _
        // Predicated region
        $region178: #{clip_forward.2} parent=132 // pred_check
          %p848 = pneg %p422
        $region179: #{clip_forward.2} parent=132 // pred_check_branch
          %850 = sbr.rel (%p848) target = $region181
        $region180: #{clip_forward.2} parent=132 // pred_region
          %851 = dma.done [#allocation21], 16
        $region181: #{clip_forward.2} parent=132 // pred_fallthru
          _
        %p852 = scmp.lt.s32.totalorder %s42, 1
        %s853 = scalar_select %p852, %s42, 1
        %s854 = smul.addr %s853, 2
        %s855 = smul.addr %s854, 8
        %s856 = scalar_lea.vmem %s0, %s855
        %p857 = pneg %p71
        %p858 = pneg %p68
        %p859 = pneg %p92
        %p860 = pneg %p89
        %p861 = pneg %p113
        %p862 = pneg %p110
        %p863 = pneg %p134
        %p864 = pneg %p131
        %p865 = pneg %p155
        %p866 = pneg %p152
        %p867 = pneg %p176
        %p868 = pneg %p173
        %p869 = pneg %p197
        %p870 = pneg %p194
        %p871 = pneg %p218
        %p872 = pneg %p215
        %p873 = pneg %p239
        %p874 = pneg %p236
        %p875 = pneg %p260
        %p876 = pneg %p257
        %p877 = pneg %p281
        %p878 = pneg %p278
        %p879 = pneg %p302
        %p880 = pneg %p299
        %p881 = pneg %p323
        %p882 = pneg %p320
        %s883 = sand.u32 %s336, 1
        %s884 = sand.u32 %s336, 1
        %s885 = smul.addr %s884, 64
        %s886 = scalar_lea.vmem [#allocation19], %s885
        %p887 = pneg %p349
        %p888 = pneg %p346
        %s889 = sand.u32 %s38, 1
        %s890 = scalar_lea.sflag [#allocation21], %s889
        %s891 = sand.u32 %s362, 1
        %s892 = scalar_lea.vmem [#allocation20], %s891
        %p893 = pneg %p375
        %p894 = pneg %p372
        %s895 = smul.u32 16, %s43
        %p896 = scmp.lt.s32.totalorder %s895, 63
        %s897 = scalar_select %p896, %s895, 63
        %s898 = smul.addr %s897, 4
        %s899 = scalar_lea.vmem %s15, %s898
        %p900 = pneg %p401
        %p901 = pneg %p398
        %p902 = pneg %p422
        %p903 = pneg %p419
        %p904 = pneg %p443
        %p905 = pneg %p440
        %p906 = pneg %p464
        %p907 = pneg %p461
        %p908 = pneg %p490
        %p909 = pneg %p487
        %p910 = scmp.lt.s32.totalorder %s42, 1
        %s911 = scalar_select %p910, %s42, 1
        %s912 = smul.addr %s911, 2
        %s913 = smul.addr %s912, 8
        %s914 = scalar_lea.vmem %s19, %s913
        %p915 = scmp.lt.s32.totalorder %s42, 1
        %s916 = scalar_select %p915, %s42, 1
        %s917 = smul.addr %s916, 2
        %s918 = smul.addr %s917, 8
        %s919 = scalar_lea.vmem %s0, %s918
        %s920 = smul.u32 16, %s43
        %p921 = scmp.lt.s32.totalorder %s920, 63
        %s922 = scalar_select %p921, %s920, 63
        %s923 = smul.addr %s922, 4
        %s924 = scalar_lea.vmem %s15, %s923
        %s925 = smul.u32 16, %s43
        %p926 = scmp.lt.s32.totalorder %s42, 1
        %s927 = scalar_select %p926, %s42, 1
        %s928 = smul.addr %s927, 2
        %s929 = smul.addr %s928, 8
        %s930 = scalar_lea.vmem %s19, %s929
        %p932 = scmp.eq.s32.totalorder %s43, 0
        // Predicated region
        $region182: #{clip_forward.2} parent=132 // pred_check
          %p933 = pneg %p932
        $region183: #{clip_forward.2} parent=132 // pred_check_branch
          %935 = sbr.rel (%p933) target = $region185
        $region184: #{clip_forward.2} parent=132 // pred_region
          %v936 = vld [vmem:[%s919] sm:$0xff]
          %v937 = vld [vmem:[%s919 + $0x8] sm:$0xff]
          %v938 = vld [vmem:[%s1] sm:$0x1]
          %v939 = vld [vmem:[#allocation5] sm:$0x1]
          %940 = vadd.xlane.f32.xlu0 %v936
          %v941 = vpop.xlane.xlu0 %940
          %942 = vadd.xlane.f32.xlu0 %v937
          %v943 = vpop.xlane.xlu0 %942
          %v944 = vrcp.pop 128.0
          %v945 = vmul.f32 %v941, %v944
          %v946 = vmul.f32 %v943, %v944
          %v947 = vsub.f32 %v936, %v945
          %v948 = vsub.f32 %v937, %v946
          %v949 = vmul.f32 %v947, %v947
          %v950 = vmul.f32 %v948, %v948
          %951 = vadd.xlane.f32.xlu0 %v949
          %v952 = vpop.xlane.xlu0 %951
          %953 = vadd.xlane.f32.xlu0 %v950
          %v954 = vpop.xlane.xlu0 %953
          %v955 = vmul.f32 %v952, %v944
          %v956 = vmul.f32 %v954, %v944
          %v957 = vadd.f32 %v955, 1e-05
          %v958 = vadd.f32 %v956, 1e-05
          %v959 = vrsqrt.pop %v957
          %v960 = vrsqrt.pop %v958
          %v961 = vmul.f32 %v947, %v959
          %v962 = vmul.f32 %v948, %v960
          %v964 = vlaneseq
          %v965 = vshrl.u32 %v964, 7
          %v966 = vsub.s32 0, %v965
          %v967 = vrot.slane %v938, %v966
          %v969 = vmul.f32 %v961, %v967
          %v970 = vmul.f32 %v962, %v967
          %v972 = vlaneseq
          %v973 = vshrl.u32 %v972, 7
          %v974 = vsub.s32 0, %v973
          %v975 = vrot.slane %v939, %v974
          %v977 = vadd.f32 %v969, %v975
          %v978 = vadd.f32 %v970, %v975
          %v979 = vpack.c.bf16 %v978, %v977
          %v980 = vlaneseq
          %v981 = vshrl.u32 %v980, 7
          %v982 = vadd.s32 %v981, 8
          %v983 = vlaneseq
          %v984 = vand.u32 %v983, 127
          %vm985 = vcmp.le.s32.totalorder %v984, %v981
          %vm986 = vcmp.le.s32.totalorder %v984, %v982
          %v987 = vsel %vm985, 0.0, -1e+30
          %v988 = vsel %vm986, 0.0, -1e+30
          %v989 = vld [vmem:[#allocation7] sm:$0xf]
          %v990 = vld [vmem:[#allocation7 + $0x4] sm:$0xf]
          %v991 = vld [vmem:[#allocation7 + $0x8] sm:$0xf]
          %v992 = vld [vmem:[#allocation7 + $0xc] sm:$0xf]
          %v993 = vld [vmem:[#allocation12] sm:$0x1]
          %v995 = vlaneseq
          %v996 = vshrl.u32 %v995, 7
          %v997 = vsub.s32 0, %v996
          %v998 = vrot.slane %v993, %v997
          %v1004 = vunpack.c.l.b16 %v989
          %v1005 = vunpack.c.l.b16 %v990
          %v1006 = vunpack.c.l.b16 %v991
          %v1007 = vunpack.c.l.b16 %v992
          %v1008 = vpack.c.b16 %v1005, %v1004
          %v1009 = vpack.c.b16 %v1007, %v1006
          %1012 = vmatprep.subr.bf16.mxu0 0
          %1013 = vmatpush1.bf16.xpose.msra.mxu0 %v1008
          %1014 = vmatprep.subr.bf16.mxu0 0
          %1015 = vmatpush1.bf16.xpose.msra.mxu0 %v1009
          %1016 = vmatprep.subr.bf16.mxu0 0
          %1017 = vmatpush1.bf16.xpose.msra.mxu0 0
          %1018 = vmatprep.subr.bf16.mxu0 0
          %1019 = vmatpush1.bf16.xpose.msra.mxu0 0
          %1020 = vmatprep.subr.bf16.mxu0 0
          %1021 = vmatpush1.bf16.xpose.msra.mxu0 0
          %1022 = vmatprep.subr.bf16.mxu0 0
          %1023 = vmatpush1.bf16.xpose.msra.mxu0 0
          %1024 = vmatprep.subr.bf16.mxu0 0
          %1025 = vmatpush1.bf16.xpose.msra.mxu0 0
          %1026 = vmatprep.subr.bf16.mxu0 0
          %1027 = vmatpush1.bf16.xpose.msra.mxu0 0
          %1028 = vmatprep.subr.bf16.mxu0 0
          %1029 = vmatpush1.bf16.xpose.msra.mxu0 0
          %1030 = vmatprep.subr.bf16.mxu0 0
          %1031 = vmatpush1.bf16.xpose.msra.mxu0 0
          %1032 = vmatprep.subr.bf16.mxu0 0
          %1033 = vmatpush1.bf16.xpose.msra.mxu0 0
          %1034 = vmatprep.subr.bf16.mxu0 0
          %1035 = vmatpush1.bf16.xpose.msra.mxu0 0
          %1036 = vmatprep.subr.bf16.mxu0 0
          %1037 = vmatpush1.bf16.xpose.msra.mxu0 0
          %1038 = vmatprep.subr.bf16.mxu0 0
          %1039 = vmatpush1.bf16.xpose.msra.mxu0 0
          %1040 = vmatprep.subr.bf16.mxu0 0
          %1041 = vmatpush1.bf16.xpose.msra.mxu0 0
          %1042 = vmatprep.subr.bf16.mxu0 0
          %1043 = vmatpush1.bf16.xpose.msra.mxu0 0
          %1044 = vmatprep.mubr.bf16.mxu0 0
          %1045 = vmatmul.mubr.bf16.gmra.mrb[0].mxu0 %v979
          %v1046 = vpop.f32.mrb[0].mxu0
          %v1047 = vadd.f32 %v998, %v1046
          %v1048 = vpop.f32.mrb[0].mxu0
          %v1049 = vpop.f32.mrb[0].mxu0
          %v1050 = vadd.f32 %v998, %v1049
          %v1051 = vpop.f32.mrb[0].mxu0
          %1052 = vdwg.mxu0
          %v1053 = vmul.f32 %v1047, 0.17677669
          %v1054 = vmul.f32 %v1050, 0.17677669
          %v1055 = vld [vmem:[#allocation9] sm:$0xf]
          %v1056 = vld [vmem:[#allocation9 + $0x4] sm:$0xf]
          %v1057 = vld [vmem:[#allocation9 + $0x8] sm:$0xf]
          %v1058 = vld [vmem:[#allocation9 + $0xc] sm:$0xf]
          %v1059 = vld [vmem:[#allocation13] sm:$0x1]
          %v1061 = vlaneseq
          %v1062 = vshrl.u32 %v1061, 7
          %v1063 = vsub.s32 0, %v1062
          %v1064 = vrot.slane %v1059, %v1063
          %v1070 = vunpack.c.l.b16 %v1055
          %v1071 = vunpack.c.l.b16 %v1056
          %v1072 = vunpack.c.l.b16 %v1057
          %v1073 = vunpack.c.l.b16 %v1058
          %v1074 = vpack.c.b16 %v1071, %v1070
          %v1075 = vpack.c.b16 %v1073, %v1072
          %1078 = vmatprep.subr.bf16.mxu0 0
          %1079 = vmatpush1.bf16.xpose.msra.mxu0 %v1074
          %1080 = vmatprep.subr.bf16.mxu0 0
          %1081 = vmatpush1.bf16.xpose.msra.mxu0 %v1075
          %1082 = vmatprep.subr.bf16.mxu0 0
          %1083 = vmatpush1.bf16.xpose.msra.mxu0 0
          %1084 = vmatprep.subr.bf16.mxu0 0
          %1085 = vmatpush1.bf16.xpose.msra.mxu0 0
          %1086 = vmatprep.subr.bf16.mxu0 0
          %1087 = vmatpush1.bf16.xpose.msra.mxu0 0
          %1088 = vmatprep.subr.bf16.mxu0 0
          %1089 = vmatpush1.bf16.xpose.msra.mxu0 0
          %1090 = vmatprep.subr.bf16.mxu0 0
          %1091 = vmatpush1.bf16.xpose.msra.mxu0 0
          %1092 = vmatprep.subr.bf16.mxu0 0
          %1093 = vmatpush1.bf16.xpose.msra.mxu0 0
          %1094 = vmatprep.subr.bf16.mxu0 0
          %1095 = vmatpush1.bf16.xpose.msra.mxu0 0
          %1096 = vmatprep.subr.bf16.mxu0 0
          %1097 = vmatpush1.bf16.xpose.msra.mxu0 0
          %1098 = vmatprep.subr.bf16.mxu0 0
          %1099 = vmatpush1.bf16.xpose.msra.mxu0 0
          %1100 = vmatprep.subr.bf16.mxu0 0
          %1101 = vmatpush1.bf16.xpose.msra.mxu0 0
          %1102 = vmatprep.subr.bf16.mxu0 0
          %1103 = vmatpush1.bf16.xpose.msra.mxu0 0
          %1104 = vmatprep.subr.bf16.mxu0 0
          %1105 = vmatpush1.bf16.xpose.msra.mxu0 0
          %1106 = vmatprep.subr.bf16.mxu0 0
          %1107 = vmatpush1.bf16.xpose.msra.mxu0 0
          %1108 = vmatprep.subr.bf16.mxu0 0
          %1109 = vmatpush1.bf16.xpose.msra.mxu0 0
          %1110 = vmatprep.mubr.bf16.mxu0 0
          %1111 = vmatmul.mubr.bf16.gmra.mrb[0].mxu0 %v979
          %v1112 = vpop.f32.mrb[0].mxu0
          %v1113 = vadd.f32 %v1064, %v1112
          %v1114 = vpop.f32.mrb[0].mxu0
          %v1115 = vpop.f32.mrb[0].mxu0
          %v1116 = vadd.f32 %v1064, %v1115
          %v1117 = vpop.f32.mrb[0].mxu0
          %1118 = vdwg.mxu0
          %v1119 = vld [vmem:[#allocation10] sm:$0xf]
          %v1120 = vld [vmem:[#allocation10 + $0x4] sm:$0xf]
          %v1121 = vld [vmem:[#allocation10 + $0x8] sm:$0xf]
          %v1122 = vld [vmem:[#allocation10 + $0xc] sm:$0xf]
          %v1123 = vld [vmem:[#allocation15] sm:$0x1]
          %v1125 = vlaneseq
          %v1126 = vshrl.u32 %v1125, 7
          %v1127 = vsub.s32 0, %v1126
          %v1128 = vrot.slane %v1123, %v1127
          %v1134 = vunpack.c.l.b16 %v1119
          %v1135 = vunpack.c.l.b16 %v1120
          %v1136 = vunpack.c.l.b16 %v1121
          %v1137 = vunpack.c.l.b16 %v1122
          %v1138 = vpack.c.b16 %v1135, %v1134
          %v1139 = vpack.c.b16 %v1137, %v1136
          %1142 = vmatprep.subr.bf16.mxu0 0
          %1143 = vmatpush1.bf16.xpose.msra.mxu0 %v1138
          %1144 = vmatprep.subr.bf16.mxu0 0
          %1145 = vmatpush1.bf16.xpose.msra.mxu0 %v1139
          %1146 = vmatprep.subr.bf16.mxu0 0
          %1147 = vmatpush1.bf16.xpose.msra.mxu0 0
          %1148 = vmatprep.subr.bf16.mxu0 0
          %1149 = vmatpush1.bf16.xpose.msra.mxu0 0
          %1150 = vmatprep.subr.bf16.mxu0 0
          %1151 = vmatpush1.bf16.xpose.msra.mxu0 0
          %1152 = vmatprep.subr.bf16.mxu0 0
          %1153 = vmatpush1.bf16.xpose.msra.mxu0 0
          %1154 = vmatprep.subr.bf16.mxu0 0
          %1155 = vmatpush1.bf16.xpose.msra.mxu0 0
          %1156 = vmatprep.subr.bf16.mxu0 0
          %1157 = vmatpush1.bf16.xpose.msra.mxu0 0
          %1158 = vmatprep.subr.bf16.mxu0 0
          %1159 = vmatpush1.bf16.xpose.msra.mxu0 0
          %1160 = vmatprep.subr.bf16.mxu0 0
          %1161 = vmatpush1.bf16.xpose.msra.mxu0 0
          %1162 = vmatprep.subr.bf16.mxu0 0
          %1163 = vmatpush1.bf16.xpose.msra.mxu0 0
          %1164 = vmatprep.subr.bf16.mxu0 0
          %1165 = vmatpush1.bf16.xpose.msra.mxu0 0
          %1166 = vmatprep.subr.bf16.mxu0 0
          %1167 = vmatpush1.bf16.xpose.msra.mxu0 0
          %1168 = vmatprep.subr.bf16.mxu0 0
          %1169 = vmatpush1.bf16.xpose.msra.mxu0 0
          %1170 = vmatprep.subr.bf16.mxu0 0
          %1171 = vmatpush1.bf16.xpose.msra.mxu0 0
          %1172 = vmatprep.subr.bf16.mxu0 0
          %1173 = vmatpush1.bf16.xpose.msra.mxu0 0
          %1174 = vmatprep.mubr.bf16.mxu0 0
          %1175 = vmatmul.mubr.bf16.gmra.mrb[0].mxu0 %v979
          %v1176 = vpop.f32.mrb[0].mxu0
          %v1177 = vadd.f32 %v1128, %v1176
          %v1178 = vpop.f32.mrb[0].mxu0
          %v1179 = vpop.f32.mrb[0].mxu0
          %v1180 = vadd.f32 %v1128, %v1179
          %v1181 = vpop.f32.mrb[0].mxu0
          %1182 = vdwg.mxu0
          %v1183 = vpack.c.bf16 %v1054, %v1053
          %v1184 = vpack.c.bf16 %v1116, %v1113
          %vm1185 = vcmask 261120
          %v1187 = vsel %vm1185, %v1183, 0
          %v1190 = vsel %vm1185, %v1184, 0
          %1192 = vmatprep.subr.bf16.mxu0 0
          %1193 = vmatpush1.bf16.xpose.msra.mxu0 %v1190
          %1194 = vmatprep.subr.bf16.mxu0 0
          %1195 = vmatpush1.bf16.xpose.msra.mxu0 0
          %1196 = vmatprep.subr.bf16.mxu0 0
          %1197 = vmatpush1.bf16.xpose.msra.mxu0 0
          %1198 = vmatprep.subr.bf16.mxu0 0
          %1199 = vmatpush1.bf16.xpose.msra.mxu0 0
          %1200 = vmatprep.subr.bf16.mxu0 0
          %1201 = vmatpush1.bf16.xpose.msra.mxu0 0
          %1202 = vmatprep.subr.bf16.mxu0 0
          %1203 = vmatpush1.bf16.xpose.msra.mxu0 0
          %1204 = vmatprep.subr.bf16.mxu0 0
          %1205 = vmatpush1.bf16.xpose.msra.mxu0 0
          %1206 = vmatprep.subr.bf16.mxu0 0
          %1207 = vmatpush1.bf16.xpose.msra.mxu0 0
          %1208 = vmatprep.subr.bf16.mxu0 0
          %1209 = vmatpush1.bf16.xpose.msra.mxu0 0
          %1210 = vmatprep.subr.bf16.mxu0 0
          %1211 = vmatpush1.bf16.xpose.msra.mxu0 0
          %1212 = vmatprep.subr.bf16.mxu0 0
          %1213 = vmatpush1.bf16.xpose.msra.mxu0 0
          %1214 = vmatprep.subr.bf16.mxu0 0
          %1215 = vmatpush1.bf16.xpose.msra.mxu0 0
          %1216 = vmatprep.subr.bf16.mxu0 0
          %1217 = vmatpush1.bf16.xpose.msra.mxu0 0
          %1218 = vmatprep.subr.bf16.mxu0 0
          %1219 = vmatpush1.bf16.xpose.msra.mxu0 0
          %1220 = vmatprep.subr.bf16.mxu0 0
          %1221 = vmatpush1.bf16.xpose.msra.mxu0 0
          %1222 = vmatprep.subr.bf16.mxu0 0
          %1223 = vmatpush1.bf16.xpose.msra.mxu0 0
          %1224 = vmatprep.mubr.bf16.mxu0 0
          %1225 = vmatmul.mubr.bf16.gmra.mrb[0].mxu0 %v1187
          %v1226 = vpop.f32.mrb[0].mxu0
          %v1227 = vadd.f32 %v987, %v1226
          %v1228 = vpop.f32.mrb[0].mxu0
          %v1229 = vpop.f32.mrb[0].mxu0
          %v1230 = vadd.f32 %v988, %v1229
          %v1231 = vpop.f32.mrb[0].mxu0
          %1232 = vdwg.mxu0
          %vm1233 = vcmask 130048
          %v1234 = vsel %vm1233, %v1227, -inf
          %1235 = vmax.xlane.f32.xlu0 %v1234
          %v1236 = vpop.xlane.xlu0 %1235
          %v1237 = vsel %vm1233, %v1230, -inf
          %1238 = vmax.xlane.f32.xlu0 %v1237
          %v1239 = vpop.xlane.xlu0 %1238
          %v1240 = vsub.f32 %v1227, %v1236
          %v1241 = vsub.f32 %v1230, %v1239
          %v1242 = vmul.f32 %v1240, 1.442695
          %v1243 = vpow.pop %v1242
          %v1244 = vmul.f32 %v1241, 1.442695
          %v1245 = vpow.pop %v1244
          %v1246 = vsel %vm1233, %v1243, 0.0
          %1247 = vadd.xlane.f32.xlu0 %v1246
          %v1248 = vpop.xlane.xlu0 %1247
          %v1249 = vsel %vm1233, %v1245, 0.0
          %1250 = vadd.xlane.f32.xlu0 %v1249
          %v1251 = vpop.xlane.xlu0 %1250
          %v1252 = vpack.c.bf16 %v1245, %v1243
          %v1253 = vpack.c.bf16 %v1180, %v1177
          %v1255 = vsel %vm1233, %v1252, 0
          %1257 = vmatprep.subr.bf16.mxu0 0
          %1258 = vmatpush1.bf16.msra.mxu0 %v1253
          %1259 = vmatprep.subr.bf16.mxu0 0
          %1260 = vmatpush1.bf16.msra.mxu0 0
          %1261 = vmatprep.subr.bf16.mxu0 0
          %1262 = vmatpush1.bf16.msra.mxu0 0
          %1263 = vmatprep.subr.bf16.mxu0 0
          %1264 = vmatpush1.bf16.msra.mxu0 0
          %1265 = vmatprep.subr.bf16.mxu0 0
          %1266 = vmatpush1.bf16.msra.mxu0 0
          %1267 = vmatprep.subr.bf16.mxu0 0
          %1268 = vmatpush1.bf16.msra.mxu0 0
          %1269 = vmatprep.subr.bf16.mxu0 0
          %1270 = vmatpush1.bf16.msra.mxu0 0
          %1271 = vmatprep.subr.bf16.mxu0 0
          %1272 = vmatpush1.bf16.msra.mxu0 0
          %1273 = vmatprep.subr.bf16.mxu0 0
          %1274 = vmatpush1.bf16.msra.mxu0 0
          %1275 = vmatprep.subr.bf16.mxu0 0
          %1276 = vmatpush1.bf16.msra.mxu0 0
          %1277 = vmatprep.subr.bf16.mxu0 0
          %1278 = vmatpush1.bf16.msra.mxu0 0
          %1279 = vmatprep.subr.bf16.mxu0 0
          %1280 = vmatpush1.bf16.msra.mxu0 0
          %1281 = vmatprep.subr.bf16.mxu0 0
          %1282 = vmatpush1.bf16.msra.mxu0 0
          %1283 = vmatprep.subr.bf16.mxu0 0
          %1284 = vmatpush1.bf16.msra.mxu0 0
          %1285 = vmatprep.subr.bf16.mxu0 0
          %1286 = vmatpush1.bf16.msra.mxu0 0
          %1287 = vmatprep.subr.bf16.mxu0 0
          %1288 = vmatpush1.bf16.msra.mxu0 0
          %1289 = vmatprep.mubr.bf16.mxu0 0
          %1290 = vmatmul.mubr.bf16.gmra.mrb[0].mxu0 %v1255
          %v1291 = vpop.f32.mrb[0].mxu0
          %v1292 = vadd.f32 0.0, %v1291
          %v1293 = vpop.f32.mrb[0].mxu0
          %v1294 = vpop.f32.mrb[0].mxu0
          %v1295 = vadd.f32 0.0, %v1294
          %v1296 = vpop.f32.mrb[0].mxu0
          %1297 = vdwg.mxu0
          %v1298 = vrcp.pop %v1248
          %v1299 = vrcp.pop %v1251
          %v1300 = vmul.f32 %v1292, %v1298
          %v1301 = vmul.f32 %v1295, %v1299
          %v1302 = vpack.c.bf16 %v1301, %v1300
          %v1303 = vld [vmem:[#allocation16] sm:$0xf]
          %v1304 = vld [vmem:[#allocation16 + $0x4] sm:$0xf]
          %v1305 = vld [vmem:[#allocation16 + $0x8] sm:$0xf]
          %v1306 = vld [vmem:[#allocation16 + $0xc] sm:$0xf]
          %s1307 = scalar_lea.vmem [#allocation7], 16
          %v1308 = vld [vmem:[%s1307] sm:$0xf]
          %v1309 = vld [vmem:[%s1307 + $0x4] sm:$0xf]
          %v1310 = vld [vmem:[%s1307 + $0x8] sm:$0xf]
          %v1311 = vld [vmem:[%s1307 + $0xc] sm:$0xf]
          %s1312 = scalar_lea.vmem [#allocation12], 1
          %v1313 = vld [vmem:[%s1312] sm:$0x1]
          %v1315 = vlaneseq
          %v1316 = vshrl.u32 %v1315, 7
          %v1317 = vsub.s32 0, %v1316
          %v1318 = vrot.slane %v1313, %v1317
          %v1324 = vunpack.c.l.b16 %v1308
          %v1325 = vunpack.c.l.b16 %v1309
          %v1326 = vunpack.c.l.b16 %v1310
          %v1327 = vunpack.c.l.b16 %v1311
          %v1328 = vpack.c.b16 %v1325, %v1324
          %v1329 = vpack.c.b16 %v1327, %v1326
          %1332 = vmatprep.subr.bf16.mxu0 0
          %1333 = vmatpush1.bf16.xpose.msra.mxu0 %v1328
          %1334 = vmatprep.subr.bf16.mxu0 0
          %1335 = vmatpush1.bf16.xpose.msra.mxu0 %v1329
          %1336 = vmatprep.subr.bf16.mxu0 0
          %1337 = vmatpush1.bf16.xpose.msra.mxu0 0
          %1338 = vmatprep.subr.bf16.mxu0 0
          %1339 = vmatpush1.bf16.xpose.msra.mxu0 0
          %1340 = vmatprep.subr.bf16.mxu0 0
          %1341 = vmatpush1.bf16.xpose.msra.mxu0 0
          %1342 = vmatprep.subr.bf16.mxu0 0
          %1343 = vmatpush1.bf16.xpose.msra.mxu0 0
          %1344 = vmatprep.subr.bf16.mxu0 0
          %1345 = vmatpush1.bf16.xpose.msra.mxu0 0
          %1346 = vmatprep.subr.bf16.mxu0 0
          %1347 = vmatpush1.bf16.xpose.msra.mxu0 0
          %1348 = vmatprep.subr.bf16.mxu0 0
          %1349 = vmatpush1.bf16.xpose.msra.mxu0 0
          %1350 = vmatprep.subr.bf16.mxu0 0
          %1351 = vmatpush1.bf16.xpose.msra.mxu0 0
          %1352 = vmatprep.subr.bf16.mxu0 0
          %1353 = vmatpush1.bf16.xpose.msra.mxu0 0
          %1354 = vmatprep.subr.bf16.mxu0 0
          %1355 = vmatpush1.bf16.xpose.msra.mxu0 0
          %1356 = vmatprep.subr.bf16.mxu0 0
          %1357 = vmatpush1.bf16.xpose.msra.mxu0 0
          %1358 = vmatprep.subr.bf16.mxu0 0
          %1359 = vmatpush1.bf16.xpose.msra.mxu0 0
          %1360 = vmatprep.subr.bf16.mxu0 0
          %1361 = vmatpush1.bf16.xpose.msra.mxu0 0
          %1362 = vmatprep.subr.bf16.mxu0 0
          %1363 = vmatpush1.bf16.xpose.msra.mxu0 0
          %1364 = vmatprep.mubr.bf16.mxu0 0
          %1365 = vmatmul.mubr.bf16.gmra.mrb[0].mxu0 %v979
          %v1366 = vpop.f32.mrb[0].mxu0
          %v1367 = vadd.f32 %v1318, %v1366
          %v1368 = vpop.f32.mrb[0].mxu0
          %v1369 = vpop.f32.mrb[0].mxu0
          %v1370 = vadd.f32 %v1318, %v1369
          %v1371 = vpop.f32.mrb[0].mxu0
          %1372 = vdwg.mxu0
          %v1373 = vmul.f32 %v1367, 0.17677669
          %v1374 = vmul.f32 %v1370, 0.17677669
          %s1375 = scalar_lea.vmem [#allocation9], 16
          %v1376 = vld [vmem:[%s1375] sm:$0xf]
          %v1377 = vld [vmem:[%s1375 + $0x4] sm:$0xf]
          %v1378 = vld [vmem:[%s1375 + $0x8] sm:$0xf]
          %v1379 = vld [vmem:[%s1375 + $0xc] sm:$0xf]
          %s1380 = scalar_lea.vmem [#allocation13], 1
          %v1381 = vld [vmem:[%s1380] sm:$0x1]
          %v1383 = vlaneseq
          %v1384 = vshrl.u32 %v1383, 7
          %v1385 = vsub.s32 0, %v1384
          %v1386 = vrot.slane %v1381, %v1385
          %v1392 = vunpack.c.l.b16 %v1376
          %v1393 = vunpack.c.l.b16 %v1377
          %v1394 = vunpack.c.l.b16 %v1378
          %v1395 = vunpack.c.l.b16 %v1379
          %v1396 = vpack.c.b16 %v1393, %v1392
          %v1397 = vpack.c.b16 %v1395, %v1394
          %1400 = vmatprep.subr.bf16.mxu0 0
          %1401 = vmatpush1.bf16.xpose.msra.mxu0 %v1396
          %1402 = vmatprep.subr.bf16.mxu0 0
          %1403 = vmatpush1.bf16.xpose.msra.mxu0 %v1397
          %1404 = vmatprep.subr.bf16.mxu0 0
          %1405 = vmatpush1.bf16.xpose.msra.mxu0 0
          %1406 = vmatprep.subr.bf16.mxu0 0
          %1407 = vmatpush1.bf16.xpose.msra.mxu0 0
          %1408 = vmatprep.subr.bf16.mxu0 0
          %1409 = vmatpush1.bf16.xpose.msra.mxu0 0
          %1410 = vmatprep.subr.bf16.mxu0 0
          %1411 = vmatpush1.bf16.xpose.msra.mxu0 0
          %1412 = vmatprep.subr.bf16.mxu0 0
          %1413 = vmatpush1.bf16.xpose.msra.mxu0 0
          %1414 = vmatprep.subr.bf16.mxu0 0
          %1415 = vmatpush1.bf16.xpose.msra.mxu0 0
          %1416 = vmatprep.subr.bf16.mxu0 0
          %1417 = vmatpush1.bf16.xpose.msra.mxu0 0
          %1418 = vmatprep.subr.bf16.mxu0 0
          %1419 = vmatpush1.bf16.xpose.msra.mxu0 0
          %1420 = vmatprep.subr.bf16.mxu0 0
          %1421 = vmatpush1.bf16.xpose.msra.mxu0 0
          %1422 = vmatprep.subr.bf16.mxu0 0
          %1423 = vmatpush1.bf16.xpose.msra.mxu0 0
          %1424 = vmatprep.subr.bf16.mxu0 0
          %1425 = vmatpush1.bf16.xpose.msra.mxu0 0
          %1426 = vmatprep.subr.bf16.mxu0 0
          %1427 = vmatpush1.bf16.xpose.msra.mxu0 0
          %1428 = vmatprep.subr.bf16.mxu0 0
          %1429 = vmatpush1.bf16.xpose.msra.mxu0 0
          %1430 = vmatprep.subr.bf16.mxu0 0
          %1431 = vmatpush1.bf16.xpose.msra.mxu0 0
          %1432 = vmatprep.mubr.bf16.mxu0 0
          %1433 = vmatmul.mubr.bf16.gmra.mrb[0].mxu0 %v979
          %v1434 = vpop.f32.mrb[0].mxu0
          %v1435 = vadd.f32 %v1386, %v1434
          %v1436 = vpop.f32.mrb[0].mxu0
          %v1437 = vpop.f32.mrb[0].mxu0
          %v1438 = vadd.f32 %v1386, %v1437
          %v1439 = vpop.f32.mrb[0].mxu0
          %1440 = vdwg.mxu0
          %s1441 = scalar_lea.vmem [#allocation10], 16
          %v1442 = vld [vmem:[%s1441] sm:$0xf]
          %v1443 = vld [vmem:[%s1441 + $0x4] sm:$0xf]
          %v1444 = vld [vmem:[%s1441 + $0x8] sm:$0xf]
          %v1445 = vld [vmem:[%s1441 + $0xc] sm:$0xf]
          %s1446 = scalar_lea.vmem [#allocation15], 1
          %v1447 = vld [vmem:[%s1446] sm:$0x1]
          %v1449 = vlaneseq
          %v1450 = vshrl.u32 %v1449, 7
          %v1451 = vsub.s32 0, %v1450
          %v1452 = vrot.slane %v1447, %v1451
          %v1458 = vunpack.c.l.b16 %v1442
          %v1459 = vunpack.c.l.b16 %v1443
          %v1460 = vunpack.c.l.b16 %v1444
          %v1461 = vunpack.c.l.b16 %v1445
          %v1462 = vpack.c.b16 %v1459, %v1458
          %v1463 = vpack.c.b16 %v1461, %v1460
          %1466 = vmatprep.subr.bf16.mxu0 0
          %1467 = vmatpush1.bf16.xpose.msra.mxu0 %v1462
          %1468 = vmatprep.subr.bf16.mxu0 0
          %1469 = vmatpush1.bf16.xpose.msra.mxu0 %v1463
          %1470 = vmatprep.subr.bf16.mxu0 0
          %1471 = vmatpush1.bf16.xpose.msra.mxu0 0
          %1472 = vmatprep.subr.bf16.mxu0 0
          %1473 = vmatpush1.bf16.xpose.msra.mxu0 0
          %1474 = vmatprep.subr.bf16.mxu0 0
          %1475 = vmatpush1.bf16.xpose.msra.mxu0 0
          %1476 = vmatprep.subr.bf16.mxu0 0
          %1477 = vmatpush1.bf16.xpose.msra.mxu0 0
          %1478 = vmatprep.subr.bf16.mxu0 0
          %1479 = vmatpush1.bf16.xpose.msra.mxu0 0
          %1480 = vmatprep.subr.bf16.mxu0 0
          %1481 = vmatpush1.bf16.xpose.msra.mxu0 0
          %1482 = vmatprep.subr.bf16.mxu0 0
          %1483 = vmatpush1.bf16.xpose.msra.mxu0 0
          %1484 = vmatprep.subr.bf16.mxu0 0
          %1485 = vmatpush1.bf16.xpose.msra.mxu0 0
          %1486 = vmatprep.subr.bf16.mxu0 0
          %1487 = vmatpush1.bf16.xpose.msra.mxu0 0
          %1488 = vmatprep.subr.bf16.mxu0 0
          %1489 = vmatpush1.bf16.xpose.msra.mxu0 0
          %1490 = vmatprep.subr.bf16.mxu0 0
          %1491 = vmatpush1.bf16.xpose.msra.mxu0 0
          %1492 = vmatprep.subr.bf16.mxu0 0
          %1493 = vmatpush1.bf16.xpose.msra.mxu0 0
          %1494 = vmatprep.subr.bf16.mxu0 0
          %1495 = vmatpush1.bf16.xpose.msra.mxu0 0
          %1496 = vmatprep.subr.bf16.mxu0 0
          %1497 = vmatpush1.bf16.xpose.msra.mxu0 0
          %1498 = vmatprep.mubr.bf16.mxu0 0
          %1499 = vmatmul.mubr.bf16.gmra.mrb[0].mxu0 %v979
          %v1500 = vpop.f32.mrb[0].mxu0
          %v1501 = vadd.f32 %v1452, %v1500
          %v1502 = vpop.f32.mrb[0].mxu0
          %v1503 = vpop.f32.mrb[0].mxu0
          %v1504 = vadd.f32 %v1452, %v1503
          %v1505 = vpop.f32.mrb[0].mxu0
          %1506 = vdwg.mxu0
          %v1507 = vpack.c.bf16 %v1374, %v1373
          %v1508 = vpack.c.bf16 %v1438, %v1435
          %v1510 = vsel %vm1185, %v1507, 0
          %v1513 = vsel %vm1185, %v1508, 0
          %1515 = vmatprep.subr.bf16.mxu0 0
          %1516 = vmatpush1.bf16.xpose.msra.mxu0 %v1513
          %1517 = vmatprep.subr.bf16.mxu0 0
          %1518 = vmatpush1.bf16.xpose.msra.mxu0 0
          %1519 = vmatprep.subr.bf16.mxu0 0
          %1520 = vmatpush1.bf16.xpose.msra.mxu0 0
          %1521 = vmatprep.subr.bf16.mxu0 0
          %1522 = vmatpush1.bf16.xpose.msra.mxu0 0
          %1523 = vmatprep.subr.bf16.mxu0 0
          %1524 = vmatpush1.bf16.xpose.msra.mxu0 0
          %1525 = vmatprep.subr.bf16.mxu0 0
          %1526 = vmatpush1.bf16.xpose.msra.mxu0 0
          %1527 = vmatprep.subr.bf16.mxu0 0
          %1528 = vmatpush1.bf16.xpose.msra.mxu0 0
          %1529 = vmatprep.subr.bf16.mxu0 0
          %1530 = vmatpush1.bf16.xpose.msra.mxu0 0
          %1531 = vmatprep.subr.bf16.mxu0 0
          %1532 = vmatpush1.bf16.xpose.msra.mxu0 0
          %1533 = vmatprep.subr.bf16.mxu0 0
          %1534 = vmatpush1.bf16.xpose.msra.mxu0 0
          %1535 = vmatprep.subr.bf16.mxu0 0
          %1536 = vmatpush1.bf16.xpose.msra.mxu0 0
          %1537 = vmatprep.subr.bf16.mxu0 0
          %1538 = vmatpush1.bf16.xpose.msra.mxu0 0
          %1539 = vmatprep.subr.bf16.mxu0 0
          %1540 = vmatpush1.bf16.xpose.msra.mxu0 0
          %1541 = vmatprep.subr.bf16.mxu0 0
          %1542 = vmatpush1.bf16.xpose.msra.mxu0 0
          %1543 = vmatprep.subr.bf16.mxu0 0
          %1544 = vmatpush1.bf16.xpose.msra.mxu0 0
          %1545 = vmatprep.subr.bf16.mxu0 0
          %1546 = vmatpush1.bf16.xpose.msra.mxu0 0
          %1547 = vmatprep.mubr.bf16.mxu0 0
          %1548 = vmatmul.mubr.bf16.gmra.mrb[0].mxu0 %v1510
          %v1549 = vpop.f32.mrb[0].mxu0
          %v1550 = vadd.f32 %v987, %v1549
          %v1551 = vpop.f32.mrb[0].mxu0
          %v1552 = vpop.f32.mrb[0].mxu0
          %v1553 = vadd.f32 %v988, %v1552
          %v1554 = vpop.f32.mrb[0].mxu0
          %1555 = vdwg.mxu0
          %v1556 = vsel %vm1233, %v1550, -inf
          %1557 = vmax.xlane.f32.xlu0 %v1556
          %v1558 = vpop.xlane.xlu0 %1557
          %v1559 = vsel %vm1233, %v1553, -inf
          %1560 = vmax.xlane.f32.xlu0 %v1559
          %v1561 = vpop.xlane.xlu0 %1560
          %v1562 = vsub.f32 %v1550, %v1558
          %v1563 = vsub.f32 %v1553, %v1561
          %v1564 = vmul.f32 %v1562, 1.442695
          %v1565 = vpow.pop %v1564
          %v1566 = vmul.f32 %v1563, 1.442695
          %v1567 = vpow.pop %v1566
          %v1568 = vsel %vm1233, %v1565, 0.0
          %1569 = vadd.xlane.f32.xlu0 %v1568
          %v1570 = vpop.xlane.xlu0 %1569
          %v1571 = vsel %vm1233, %v1567, 0.0
          %1572 = vadd.xlane.f32.xlu0 %v1571
          %v1573 = vpop.xlane.xlu0 %1572
          %v1574 = vpack.c.bf16 %v1567, %v1565
          %v1575 = vpack.c.bf16 %v1504, %v1501
          %v1577 = vsel %vm1233, %v1574, 0
          %1579 = vmatprep.subr.bf16.mxu0 0
          %1580 = vmatpush1.bf16.msra.mxu0 %v1575
          %1581 = vmatprep.subr.bf16.mxu0 0
          %1582 = vmatpush1.bf16.msra.mxu0 0
          %1583 = vmatprep.subr.bf16.mxu0 0
          %1584 = vmatpush1.bf16.msra.mxu0 0
          %1585 = vmatprep.subr.bf16.mxu0 0
          %1586 = vmatpush1.bf16.msra.mxu0 0
          %1587 = vmatprep.subr.bf16.mxu0 0
          %1588 = vmatpush1.bf16.msra.mxu0 0
          %1589 = vmatprep.subr.bf16.mxu0 0
          %1590 = vmatpush1.bf16.msra.mxu0 0
          %1591 = vmatprep.subr.bf16.mxu0 0
          %1592 = vmatpush1.bf16.msra.mxu0 0
          %1593 = vmatprep.subr.bf16.mxu0 0
          %1594 = vmatpush1.bf16.msra.mxu0 0
          %1595 = vmatprep.subr.bf16.mxu0 0
          %1596 = vmatpush1.bf16.msra.mxu0 0
          %1597 = vmatprep.subr.bf16.mxu0 0
          %1598 = vmatpush1.bf16.msra.mxu0 0
          %1599 = vmatprep.subr.bf16.mxu0 0
          %1600 = vmatpush1.bf16.msra.mxu0 0
          %1601 = vmatprep.subr.bf16.mxu0 0
          %1602 = vmatpush1.bf16.msra.mxu0 0
          %1603 = vmatprep.subr.bf16.mxu0 0
          %1604 = vmatpush1.bf16.msra.mxu0 0
          %1605 = vmatprep.subr.bf16.mxu0 0
          %1606 = vmatpush1.bf16.msra.mxu0 0
          %1607 = vmatprep.subr.bf16.mxu0 0
          %1608 = vmatpush1.bf16.msra.mxu0 0
          %1609 = vmatprep.subr.bf16.mxu0 0
          %1610 = vmatpush1.bf16.msra.mxu0 0
          %1611 = vmatprep.mubr.bf16.mxu0 0
          %1612 = vmatmul.mubr.bf16.gmra.mrb[0].mxu0 %v1577
          %v1613 = vpop.f32.mrb[0].mxu0
          %v1614 = vadd.f32 0.0, %v1613
          %v1615 = vpop.f32.mrb[0].mxu0
          %v1616 = vpop.f32.mrb[0].mxu0
          %v1617 = vadd.f32 0.0, %v1616
          %v1618 = vpop.f32.mrb[0].mxu0
          %1619 = vdwg.mxu0
          %v1620 = vrcp.pop %v1570
          %v1621 = vrcp.pop %v1573
          %v1622 = vmul.f32 %v1614, %v1620
          %v1623 = vmul.f32 %v1617, %v1621
          %v1624 = vpack.c.bf16 %v1623, %v1622
          %s1625 = scalar_lea.vmem [#allocation16], 16
          %v1626 = vld [vmem:[%s1625] sm:$0xf]
          %v1627 = vld [vmem:[%s1625 + $0x4] sm:$0xf]
          %v1628 = vld [vmem:[%s1625 + $0x8] sm:$0xf]
          %v1629 = vld [vmem:[%s1625 + $0xc] sm:$0xf]
          %v1634 = vunpack.c.l.b16 %v1626
          %v1635 = vunpack.c.l.b16 %v1627
          %v1636 = vunpack.c.l.b16 %v1628
          %v1637 = vunpack.c.l.b16 %v1629
          %v1638 = vpack.c.b16 %v1635, %v1634
          %v1639 = vpack.c.b16 %v1637, %v1636
          %v1643 = vsel %vm1185, %v1624, 0
          %1645 = vmatprep.subr.bf16.mxu0 0
          %1646 = vmatpush1.bf16.msra.mxu0 %v1638
          %1647 = vmatprep.subr.bf16.mxu0 0
          %1648 = vmatpush1.bf16.msra.mxu0 %v1639
          %1649 = vmatprep.subr.bf16.mxu0 0
          %1650 = vmatpush1.bf16.msra.mxu0 0
          %1651 = vmatprep.subr.bf16.mxu0 0
          %1652 = vmatpush1.bf16.msra.mxu0 0
          %1653 = vmatprep.subr.bf16.mxu0 0
          %1654 = vmatpush1.bf16.msra.mxu0 0
          %1655 = vmatprep.subr.bf16.mxu0 0
          %1656 = vmatpush1.bf16.msra.mxu0 0
          %1657 = vmatprep.subr.bf16.mxu0 0
          %1658 = vmatpush1.bf16.msra.mxu0 0
          %1659 = vmatprep.subr.bf16.mxu0 0
          %1660 = vmatpush1.bf16.msra.mxu0 0
          %1661 = vmatprep.subr.bf16.mxu0 0
          %1662 = vmatpush1.bf16.msra.mxu0 0
          %1663 = vmatprep.subr.bf16.mxu0 0
          %1664 = vmatpush1.bf16.msra.mxu0 0
          %1665 = vmatprep.subr.bf16.mxu0 0
          %1666 = vmatpush1.bf16.msra.mxu0 0
          %1667 = vmatprep.subr.bf16.mxu0 0
          %1668 = vmatpush1.bf16.msra.mxu0 0
          %1669 = vmatprep.subr.bf16.mxu0 0
          %1670 = vmatpush1.bf16.msra.mxu0 0
          %1671 = vmatprep.subr.bf16.mxu0 0
          %1672 = vmatpush1.bf16.msra.mxu0 0
          %1673 = vmatprep.subr.bf16.mxu0 0
          %1674 = vmatpush1.bf16.msra.mxu0 0
          %1675 = vmatprep.subr.bf16.mxu0 0
          %1676 = vmatpush1.bf16.msra.mxu0 0
          %1677 = vmatprep.mubr.bf16.mxu0 0
          %1678 = vmatmul.mubr.bf16.gmra.mrb[0].mxu0 %v1643
          %v1679 = vpop.f32.mrb[0].mxu0
          %v1680 = vadd.f32 0.0, %v1679
          %v1681 = vpop.f32.mrb[0].mxu0
          %v1682 = vpop.f32.mrb[0].mxu0
          %v1683 = vadd.f32 0.0, %v1682
          %v1684 = vpop.f32.mrb[0].mxu0
          %1685 = vdwg.mxu0
          %v1690 = vunpack.c.l.b16 %v1303
          %v1691 = vunpack.c.l.b16 %v1304
          %v1692 = vunpack.c.l.b16 %v1305
          %v1693 = vunpack.c.l.b16 %v1306
          %v1694 = vpack.c.b16 %v1691, %v1690
          %v1695 = vpack.c.b16 %v1693, %v1692
          %v1699 = vsel %vm1185, %v1302, 0
          %1701 = vmatprep.subr.bf16.mxu0 0
          %1702 = vmatpush1.bf16.msra.mxu0 %v1694
          %1703 = vmatprep.subr.bf16.mxu0 0
          %1704 = vmatpush1.bf16.msra.mxu0 %v1695
          %1705 = vmatprep.subr.bf16.mxu0 0
          %1706 = vmatpush1.bf16.msra.mxu0 0
          %1707 = vmatprep.subr.bf16.mxu0 0
          %1708 = vmatpush1.bf16.msra.mxu0 0
          %1709 = vmatprep.subr.bf16.mxu0 0
          %1710 = vmatpush1.bf16.msra.mxu0 0
          %1711 = vmatprep.subr.bf16.mxu0 0
          %1712 = vmatpush1.bf16.msra.mxu0 0
          %1713 = vmatprep.subr.bf16.mxu0 0
          %1714 = vmatpush1.bf16.msra.mxu0 0
          %1715 = vmatprep.subr.bf16.mxu0 0
          %1716 = vmatpush1.bf16.msra.mxu0 0
          %1717 = vmatprep.subr.bf16.mxu0 0
          %1718 = vmatpush1.bf16.msra.mxu0 0
          %1719 = vmatprep.subr.bf16.mxu0 0
          %1720 = vmatpush1.bf16.msra.mxu0 0
          %1721 = vmatprep.subr.bf16.mxu0 0
          %1722 = vmatpush1.bf16.msra.mxu0 0
          %1723 = vmatprep.subr.bf16.mxu0 0
          %1724 = vmatpush1.bf16.msra.mxu0 0
          %1725 = vmatprep.subr.bf16.mxu0 0
          %1726 = vmatpush1.bf16.msra.mxu0 0
          %1727 = vmatprep.subr.bf16.mxu0 0
          %1728 = vmatpush1.bf16.msra.mxu0 0
          %1729 = vmatprep.subr.bf16.mxu0 0
          %1730 = vmatpush1.bf16.msra.mxu0 0
          %1731 = vmatprep.subr.bf16.mxu0 0
          %1732 = vmatpush1.bf16.msra.mxu0 0
          %1733 = vmatprep.mubr.bf16.mxu0 0
          %1734 = vmatmul.mubr.bf16.gmra.mrb[0].mxu0 %v1699
          %v1735 = vpop.f32.mrb[0].mxu0
          %v1736 = vadd.f32 %v1680, %v1735
          %v1737 = vpop.f32.mrb[0].mxu0
          %v1738 = vpop.f32.mrb[0].mxu0
          %v1739 = vadd.f32 %v1683, %v1738
          %v1740 = vpop.f32.mrb[0].mxu0
          %1741 = vdwg.mxu0
          %s1742 = scalar_lea.vmem [#allocation7], 32
          %v1743 = vld [vmem:[%s1742] sm:$0xf]
          %v1744 = vld [vmem:[%s1742 + $0x4] sm:$0xf]
          %v1745 = vld [vmem:[%s1742 + $0x8] sm:$0xf]
          %v1746 = vld [vmem:[%s1742 + $0xc] sm:$0xf]
          %s1747 = scalar_lea.vmem [#allocation12], 2
          %v1748 = vld [vmem:[%s1747] sm:$0x1]
          %v1750 = vlaneseq
          %v1751 = vshrl.u32 %v1750, 7
          %v1752 = vsub.s32 0, %v1751
          %v1753 = vrot.slane %v1748, %v1752
          %v1759 = vunpack.c.l.b16 %v1743
          %v1760 = vunpack.c.l.b16 %v1744
          %v1761 = vunpack.c.l.b16 %v1745
          %v1762 = vunpack.c.l.b16 %v1746
          %v1763 = vpack.c.b16 %v1760, %v1759
          %v1764 = vpack.c.b16 %v1762, %v1761
          %1767 = vmatprep.subr.bf16.mxu0 0
          %1768 = vmatpush1.bf16.xpose.msra.mxu0 %v1763
          %1769 = vmatprep.subr.bf16.mxu0 0
          %1770 = vmatpush1.bf16.xpose.msra.mxu0 %v1764
          %1771 = vmatprep.subr.bf16.mxu0 0
          %1772 = vmatpush1.bf16.xpose.msra.mxu0 0
          %1773 = vmatprep.subr.bf16.mxu0 0
          %1774 = vmatpush1.bf16.xpose.msra.mxu0 0
          %1775 = vmatprep.subr.bf16.mxu0 0
          %1776 = vmatpush1.bf16.xpose.msra.mxu0 0
          %1777 = vmatprep.subr.bf16.mxu0 0
          %1778 = vmatpush1.bf16.xpose.msra.mxu0 0
          %1779 = vmatprep.subr.bf16.mxu0 0
          %1780 = vmatpush1.bf16.xpose.msra.mxu0 0
          %1781 = vmatprep.subr.bf16.mxu0 0
          %1782 = vmatpush1.bf16.xpose.msra.mxu0 0
          %1783 = vmatprep.subr.bf16.mxu0 0
          %1784 = vmatpush1.bf16.xpose.msra.mxu0 0
          %1785 = vmatprep.subr.bf16.mxu0 0
          %1786 = vmatpush1.bf16.xpose.msra.mxu0 0
          %1787 = vmatprep.subr.bf16.mxu0 0
          %1788 = vmatpush1.bf16.xpose.msra.mxu0 0
          %1789 = vmatprep.subr.bf16.mxu0 0
          %1790 = vmatpush1.bf16.xpose.msra.mxu0 0
          %1791 = vmatprep.subr.bf16.mxu0 0
          %1792 = vmatpush1.bf16.xpose.msra.mxu0 0
          %1793 = vmatprep.subr.bf16.mxu0 0
          %1794 = vmatpush1.bf16.xpose.msra.mxu0 0
          %1795 = vmatprep.subr.bf16.mxu0 0
          %1796 = vmatpush1.bf16.xpose.msra.mxu0 0
          %1797 = vmatprep.subr.bf16.mxu0 0
          %1798 = vmatpush1.bf16.xpose.msra.mxu0 0
          %1799 = vmatprep.mubr.bf16.mxu0 0
          %1800 = vmatmul.mubr.bf16.gmra.mrb[0].mxu0 %v979
          %v1801 = vpop.f32.mrb[0].mxu0
          %v1802 = vadd.f32 %v1753, %v1801
          %v1803 = vpop.f32.mrb[0].mxu0
          %v1804 = vpop.f32.mrb[0].mxu0
          %v1805 = vadd.f32 %v1753, %v1804
          %v1806 = vpop.f32.mrb[0].mxu0
          %1807 = vdwg.mxu0
          %v1808 = vmul.f32 %v1802, 0.17677669
          %v1809 = vmul.f32 %v1805, 0.17677669
          %s1810 = scalar_lea.vmem [#allocation9], 32
          %v1811 = vld [vmem:[%s1810] sm:$0xf]
          %v1812 = vld [vmem:[%s1810 + $0x4] sm:$0xf]
          %v1813 = vld [vmem:[%s1810 + $0x8] sm:$0xf]
          %v1814 = vld [vmem:[%s1810 + $0xc] sm:$0xf]
          %s1815 = scalar_lea.vmem [#allocation13], 2
          %v1816 = vld [vmem:[%s1815] sm:$0x1]
          %v1818 = vlaneseq
          %v1819 = vshrl.u32 %v1818, 7
          %v1820 = vsub.s32 0, %v1819
          %v1821 = vrot.slane %v1816, %v1820
          %v1827 = vunpack.c.l.b16 %v1811
          %v1828 = vunpack.c.l.b16 %v1812
          %v1829 = vunpack.c.l.b16 %v1813
          %v1830 = vunpack.c.l.b16 %v1814
          %v1831 = vpack.c.b16 %v1828, %v1827
          %v1832 = vpack.c.b16 %v1830, %v1829
          %1835 = vmatprep.subr.bf16.mxu0 0
          %1836 = vmatpush1.bf16.xpose.msra.mxu0 %v1831
          %1837 = vmatprep.subr.bf16.mxu0 0
          %1838 = vmatpush1.bf16.xpose.msra.mxu0 %v1832
          %1839 = vmatprep.subr.bf16.mxu0 0
          %1840 = vmatpush1.bf16.xpose.msra.mxu0 0
          %1841 = vmatprep.subr.bf16.mxu0 0
          %1842 = vmatpush1.bf16.xpose.msra.mxu0 0
          %1843 = vmatprep.subr.bf16.mxu0 0
          %1844 = vmatpush1.bf16.xpose.msra.mxu0 0
          %1845 = vmatprep.subr.bf16.mxu0 0
          %1846 = vmatpush1.bf16.xpose.msra.mxu0 0
          %1847 = vmatprep.subr.bf16.mxu0 0
          %1848 = vmatpush1.bf16.xpose.msra.mxu0 0
          %1849 = vmatprep.subr.bf16.mxu0 0
          %1850 = vmatpush1.bf16.xpose.msra.mxu0 0
          %1851 = vmatprep.subr.bf16.mxu0 0
          %1852 = vmatpush1.bf16.xpose.msra.mxu0 0
          %1853 = vmatprep.subr.bf16.mxu0 0
          %1854 = vmatpush1.bf16.xpose.msra.mxu0 0
          %1855 = vmatprep.subr.bf16.mxu0 0
          %1856 = vmatpush1.bf16.xpose.msra.mxu0 0
          %1857 = vmatprep.subr.bf16.mxu0 0
          %1858 = vmatpush1.bf16.xpose.msra.mxu0 0
          %1859 = vmatprep.subr.bf16.mxu0 0
          %1860 = vmatpush1.bf16.xpose.msra.mxu0 0
          %1861 = vmatprep.subr.bf16.mxu0 0
          %1862 = vmatpush1.bf16.xpose.msra.mxu0 0
          %1863 = vmatprep.subr.bf16.mxu0 0
          %1864 = vmatpush1.bf16.xpose.msra.mxu0 0
          %1865 = vmatprep.subr.bf16.mxu0 0
          %1866 = vmatpush1.bf16.xpose.msra.mxu0 0
          %1867 = vmatprep.mubr.bf16.mxu0 0
          %1868 = vmatmul.mubr.bf16.gmra.mrb[0].mxu0 %v979
          %v1869 = vpop.f32.mrb[0].mxu0
          %v1870 = vadd.f32 %v1821, %v1869
          %v1871 = vpop.f32.mrb[0].mxu0
          %v1872 = vpop.f32.mrb[0].mxu0
          %v1873 = vadd.f32 %v1821, %v1872
          %v1874 = vpop.f32.mrb[0].mxu0
          %1875 = vdwg.mxu0
          %s1876 = scalar_lea.vmem [#allocation10], 32
          %v1877 = vld [vmem:[%s1876] sm:$0xf]
          %v1878 = vld [vmem:[%s1876 + $0x4] sm:$0xf]
          %v1879 = vld [vmem:[%s1876 + $0x8] sm:$0xf]
          %v1880 = vld [vmem:[%s1876 + $0xc] sm:$0xf]
          %s1881 = scalar_lea.vmem [#allocation15], 2
          %v1882 = vld [vmem:[%s1881] sm:$0x1]
          %v1884 = vlaneseq
          %v1885 = vshrl.u32 %v1884, 7
          %v1886 = vsub.s32 0, %v1885
          %v1887 = vrot.slane %v1882, %v1886
          %v1893 = vunpack.c.l.b16 %v1877
          %v1894 = vunpack.c.l.b16 %v1878
          %v1895 = vunpack.c.l.b16 %v1879
          %v1896 = vunpack.c.l.b16 %v1880
          %v1897 = vpack.c.b16 %v1894, %v1893
          %v1898 = vpack.c.b16 %v1896, %v1895
          %1901 = vmatprep.subr.bf16.mxu0 0
          %1902 = vmatpush1.bf16.xpose.msra.mxu0 %v1897
          %1903 = vmatprep.subr.bf16.mxu0 0
          %1904 = vmatpush1.bf16.xpose.msra.mxu0 %v1898
          %1905 = vmatprep.subr.bf16.mxu0 0
          %1906 = vmatpush1.bf16.xpose.msra.mxu0 0
          %1907 = vmatprep.subr.bf16.mxu0 0
          %1908 = vmatpush1.bf16.xpose.msra.mxu0 0
          %1909 = vmatprep.subr.bf16.mxu0 0
          %1910 = vmatpush1.bf16.xpose.msra.mxu0 0
          %1911 = vmatprep.subr.bf16.mxu0 0
          %1912 = vmatpush1.bf16.xpose.msra.mxu0 0
          %1913 = vmatprep.subr.bf16.mxu0 0
          %1914 = vmatpush1.bf16.xpose.msra.mxu0 0
          %1915 = vmatprep.subr.bf16.mxu0 0
          %1916 = vmatpush1.bf16.xpose.msra.mxu0 0
          %1917 = vmatprep.subr.bf16.mxu0 0
          %1918 = vmatpush1.bf16.xpose.msra.mxu0 0
          %1919 = vmatprep.subr.bf16.mxu0 0
          %1920 = vmatpush1.bf16.xpose.msra.mxu0 0
          %1921 = vmatprep.subr.bf16.mxu0 0
          %1922 = vmatpush1.bf16.xpose.msra.mxu0 0
          %1923 = vmatprep.subr.bf16.mxu0 0
          %1924 = vmatpush1.bf16.xpose.msra.mxu0 0
          %1925 = vmatprep.subr.bf16.mxu0 0
          %1926 = vmatpush1.bf16.xpose.msra.mxu0 0
          %1927 = vmatprep.subr.bf16.mxu0 0
          %1928 = vmatpush1.bf16.xpose.msra.mxu0 0
          %1929 = vmatprep.subr.bf16.mxu0 0
          %1930 = vmatpush1.bf16.xpose.msra.mxu0 0
          %1931 = vmatprep.subr.bf16.mxu0 0
          %1932 = vmatpush1.bf16.xpose.msra.mxu0 0
          %1933 = vmatprep.mubr.bf16.mxu0 0
          %1934 = vmatmul.mubr.bf16.gmra.mrb[0].mxu0 %v979
          %v1935 = vpop.f32.mrb[0].mxu0
          %v1936 = vadd.f32 %v1887, %v1935
          %v1937 = vpop.f32.mrb[0].mxu0
          %v1938 = vpop.f32.mrb[0].mxu0
          %v1939 = vadd.f32 %v1887, %v1938
          %v1940 = vpop.f32.mrb[0].mxu0
          %1941 = vdwg.mxu0
          %v1942 = vpack.c.bf16 %v1809, %v1808
          %v1943 = vpack.c.bf16 %v1873, %v1870
          %v1945 = vsel %vm1185, %v1942, 0
          %v1948 = vsel %vm1185, %v1943, 0
          %1950 = vmatprep.subr.bf16.mxu0 0
          %1951 = vmatpush1.bf16.xpose.msra.mxu0 %v1948
          %1952 = vmatprep.subr.bf16.mxu0 0
          %1953 = vmatpush1.bf16.xpose.msra.mxu0 0
          %1954 = vmatprep.subr.bf16.mxu0 0
          %1955 = vmatpush1.bf16.xpose.msra.mxu0 0
          %1956 = vmatprep.subr.bf16.mxu0 0
          %1957 = vmatpush1.bf16.xpose.msra.mxu0 0
          %1958 = vmatprep.subr.bf16.mxu0 0
          %1959 = vmatpush1.bf16.xpose.msra.mxu0 0
          %1960 = vmatprep.subr.bf16.mxu0 0
          %1961 = vmatpush1.bf16.xpose.msra.mxu0 0
          %1962 = vmatprep.subr.bf16.mxu0 0
          %1963 = vmatpush1.bf16.xpose.msra.mxu0 0
          %1964 = vmatprep.subr.bf16.mxu0 0
          %1965 = vmatpush1.bf16.xpose.msra.mxu0 0
          %1966 = vmatprep.subr.bf16.mxu0 0
          %1967 = vmatpush1.bf16.xpose.msra.mxu0 0
          %1968 = vmatprep.subr.bf16.mxu0 0
          %1969 = vmatpush1.bf16.xpose.msra.mxu0 0
          %1970 = vmatprep.subr.bf16.mxu0 0
          %1971 = vmatpush1.bf16.xpose.msra.mxu0 0
          %1972 = vmatprep.subr.bf16.mxu0 0
          %1973 = vmatpush1.bf16.xpose.msra.mxu0 0
          %1974 = vmatprep.subr.bf16.mxu0 0
          %1975 = vmatpush1.bf16.xpose.msra.mxu0 0
          %1976 = vmatprep.subr.bf16.mxu0 0
          %1977 = vmatpush1.bf16.xpose.msra.mxu0 0
          %1978 = vmatprep.subr.bf16.mxu0 0
          %1979 = vmatpush1.bf16.xpose.msra.mxu0 0
          %1980 = vmatprep.subr.bf16.mxu0 0
          %1981 = vmatpush1.bf16.xpose.msra.mxu0 0
          %1982 = vmatprep.mubr.bf16.mxu0 0
          %1983 = vmatmul.mubr.bf16.gmra.mrb[0].mxu0 %v1945
          %v1984 = vpop.f32.mrb[0].mxu0
          %v1985 = vadd.f32 %v987, %v1984
          %v1986 = vpop.f32.mrb[0].mxu0
          %v1987 = vpop.f32.mrb[0].mxu0
          %v1988 = vadd.f32 %v988, %v1987
          %v1989 = vpop.f32.mrb[0].mxu0
          %1990 = vdwg.mxu0
          %v1991 = vsel %vm1233, %v1985, -inf
          %1992 = vmax.xlane.f32.xlu0 %v1991
          %v1993 = vpop.xlane.xlu0 %1992
          %v1994 = vsel %vm1233, %v1988, -inf
          %1995 = vmax.xlane.f32.xlu0 %v1994
          %v1996 = vpop.xlane.xlu0 %1995
          %v1997 = vsub.f32 %v1985, %v1993
          %v1998 = vsub.f32 %v1988, %v1996
          %v1999 = vmul.f32 %v1997, 1.442695
          %v2000 = vpow.pop %v1999
          %v2001 = vmul.f32 %v1998, 1.442695
          %v2002 = vpow.pop %v2001
          %v2003 = vsel %vm1233, %v2000, 0.0
          %2004 = vadd.xlane.f32.xlu0 %v2003
          %v2005 = vpop.xlane.xlu0 %2004
          %v2006 = vsel %vm1233, %v2002, 0.0
          %2007 = vadd.xlane.f32.xlu0 %v2006
          %v2008 = vpop.xlane.xlu0 %2007
          %v2009 = vpack.c.bf16 %v2002, %v2000
          %v2010 = vpack.c.bf16 %v1939, %v1936
          %v2012 = vsel %vm1233, %v2009, 0
          %2014 = vmatprep.subr.bf16.mxu0 0
          %2015 = vmatpush1.bf16.msra.mxu0 %v2010
          %2016 = vmatprep.subr.bf16.mxu0 0
          %2017 = vmatpush1.bf16.msra.mxu0 0
          %2018 = vmatprep.subr.bf16.mxu0 0
          %2019 = vmatpush1.bf16.msra.mxu0 0
          %2020 = vmatprep.subr.bf16.mxu0 0
          %2021 = vmatpush1.bf16.msra.mxu0 0
          %2022 = vmatprep.subr.bf16.mxu0 0
          %2023 = vmatpush1.bf16.msra.mxu0 0
          %2024 = vmatprep.subr.bf16.mxu0 0
          %2025 = vmatpush1.bf16.msra.mxu0 0
          %2026 = vmatprep.subr.bf16.mxu0 0
          %2027 = vmatpush1.bf16.msra.mxu0 0
          %2028 = vmatprep.subr.bf16.mxu0 0
          %2029 = vmatpush1.bf16.msra.mxu0 0
          %2030 = vmatprep.subr.bf16.mxu0 0
          %2031 = vmatpush1.bf16.msra.mxu0 0
          %2032 = vmatprep.subr.bf16.mxu0 0
          %2033 = vmatpush1.bf16.msra.mxu0 0
          %2034 = vmatprep.subr.bf16.mxu0 0
          %2035 = vmatpush1.bf16.msra.mxu0 0
          %2036 = vmatprep.subr.bf16.mxu0 0
          %2037 = vmatpush1.bf16.msra.mxu0 0
          %2038 = vmatprep.subr.bf16.mxu0 0
          %2039 = vmatpush1.bf16.msra.mxu0 0
          %2040 = vmatprep.subr.bf16.mxu0 0
          %2041 = vmatpush1.bf16.msra.mxu0 0
          %2042 = vmatprep.subr.bf16.mxu0 0
          %2043 = vmatpush1.bf16.msra.mxu0 0
          %2044 = vmatprep.subr.bf16.mxu0 0
          %2045 = vmatpush1.bf16.msra.mxu0 0
          %2046 = vmatprep.mubr.bf16.mxu0 0
          %2047 = vmatmul.mubr.bf16.gmra.mrb[0].mxu0 %v2012
          %v2048 = vpop.f32.mrb[0].mxu0
          %v2049 = vadd.f32 0.0, %v2048
          %v2050 = vpop.f32.mrb[0].mxu0
          %v2051 = vpop.f32.mrb[0].mxu0
          %v2052 = vadd.f32 0.0, %v2051
          %v2053 = vpop.f32.mrb[0].mxu0
          %2054 = vdwg.mxu0
          %v2055 = vrcp.pop %v2005
          %v2056 = vrcp.pop %v2008
          %v2057 = vmul.f32 %v2049, %v2055
          %v2058 = vmul.f32 %v2052, %v2056
          %v2059 = vpack.c.bf16 %v2058, %v2057
          %s2060 = scalar_lea.vmem [#allocation16], 32
          %v2061 = vld [vmem:[%s2060] sm:$0xf]
          %v2062 = vld [vmem:[%s2060 + $0x4] sm:$0xf]
          %v2063 = vld [vmem:[%s2060 + $0x8] sm:$0xf]
          %v2064 = vld [vmem:[%s2060 + $0xc] sm:$0xf]
          %v2069 = vunpack.c.l.b16 %v2061
          %v2070 = vunpack.c.l.b16 %v2062
          %v2071 = vunpack.c.l.b16 %v2063
          %v2072 = vunpack.c.l.b16 %v2064
          %v2073 = vpack.c.b16 %v2070, %v2069
          %v2074 = vpack.c.b16 %v2072, %v2071
          %v2078 = vsel %vm1185, %v2059, 0
          %2080 = vmatprep.subr.bf16.mxu0 0
          %2081 = vmatpush1.bf16.msra.mxu0 %v2073
          %2082 = vmatprep.subr.bf16.mxu0 0
          %2083 = vmatpush1.bf16.msra.mxu0 %v2074
          %2084 = vmatprep.subr.bf16.mxu0 0
          %2085 = vmatpush1.bf16.msra.mxu0 0
          %2086 = vmatprep.subr.bf16.mxu0 0
          %2087 = vmatpush1.bf16.msra.mxu0 0
          %2088 = vmatprep.subr.bf16.mxu0 0
          %2089 = vmatpush1.bf16.msra.mxu0 0
          %2090 = vmatprep.subr.bf16.mxu0 0
          %2091 = vmatpush1.bf16.msra.mxu0 0
          %2092 = vmatprep.subr.bf16.mxu0 0
          %2093 = vmatpush1.bf16.msra.mxu0 0
          %2094 = vmatprep.subr.bf16.mxu0 0
          %2095 = vmatpush1.bf16.msra.mxu0 0
          %2096 = vmatprep.subr.bf16.mxu0 0
          %2097 = vmatpush1.bf16.msra.mxu0 0
          %2098 = vmatprep.subr.bf16.mxu0 0
          %2099 = vmatpush1.bf16.msra.mxu0 0
          %2100 = vmatprep.subr.bf16.mxu0 0
          %2101 = vmatpush1.bf16.msra.mxu0 0
          %2102 = vmatprep.subr.bf16.mxu0 0
          %2103 = vmatpush1.bf16.msra.mxu0 0
          %2104 = vmatprep.subr.bf16.mxu0 0
          %2105 = vmatpush1.bf16.msra.mxu0 0
          %2106 = vmatprep.subr.bf16.mxu0 0
          %2107 = vmatpush1.bf16.msra.mxu0 0
          %2108 = vmatprep.subr.bf16.mxu0 0
          %2109 = vmatpush1.bf16.msra.mxu0 0
          %2110 = vmatprep.subr.bf16.mxu0 0
          %2111 = vmatpush1.bf16.msra.mxu0 0
          %2112 = vmatprep.mubr.bf16.mxu0 0
          %2113 = vmatmul.mubr.bf16.gmra.mrb[0].mxu0 %v2078
          %v2114 = vpop.f32.mrb[0].mxu0
          %v2115 = vadd.f32 0.0, %v2114
          %v2116 = vpop.f32.mrb[0].mxu0
          %v2117 = vpop.f32.mrb[0].mxu0
          %v2118 = vadd.f32 0.0, %v2117
          %v2119 = vpop.f32.mrb[0].mxu0
          %2120 = vdwg.mxu0
          %v2121 = vadd.f32 %v1736, %v2115
          %v2122 = vadd.f32 %v1739, %v2118
          %s2123 = scalar_lea.vmem [#allocation7], 48
          %v2124 = vld [vmem:[%s2123] sm:$0xf]
          %v2125 = vld [vmem:[%s2123 + $0x4] sm:$0xf]
          %v2126 = vld [vmem:[%s2123 + $0x8] sm:$0xf]
          %v2127 = vld [vmem:[%s2123 + $0xc] sm:$0xf]
          %s2128 = scalar_lea.vmem [#allocation12], 3
          %v2129 = vld [vmem:[%s2128] sm:$0x1]
          %v2131 = vlaneseq
          %v2132 = vshrl.u32 %v2131, 7
          %v2133 = vsub.s32 0, %v2132
          %v2134 = vrot.slane %v2129, %v2133
          %v2140 = vunpack.c.l.b16 %v2124
          %v2141 = vunpack.c.l.b16 %v2125
          %v2142 = vunpack.c.l.b16 %v2126
          %v2143 = vunpack.c.l.b16 %v2127
          %v2144 = vpack.c.b16 %v2141, %v2140
          %v2145 = vpack.c.b16 %v2143, %v2142
          %2148 = vmatprep.subr.bf16.mxu0 0
          %2149 = vmatpush1.bf16.xpose.msra.mxu0 %v2144
          %2150 = vmatprep.subr.bf16.mxu0 0
          %2151 = vmatpush1.bf16.xpose.msra.mxu0 %v2145
          %2152 = vmatprep.subr.bf16.mxu0 0
          %2153 = vmatpush1.bf16.xpose.msra.mxu0 0
          %2154 = vmatprep.subr.bf16.mxu0 0
          %2155 = vmatpush1.bf16.xpose.msra.mxu0 0
          %2156 = vmatprep.subr.bf16.mxu0 0
          %2157 = vmatpush1.bf16.xpose.msra.mxu0 0
          %2158 = vmatprep.subr.bf16.mxu0 0
          %2159 = vmatpush1.bf16.xpose.msra.mxu0 0
          %2160 = vmatprep.subr.bf16.mxu0 0
          %2161 = vmatpush1.bf16.xpose.msra.mxu0 0
          %2162 = vmatprep.subr.bf16.mxu0 0
          %2163 = vmatpush1.bf16.xpose.msra.mxu0 0
          %2164 = vmatprep.subr.bf16.mxu0 0
          %2165 = vmatpush1.bf16.xpose.msra.mxu0 0
          %2166 = vmatprep.subr.bf16.mxu0 0
          %2167 = vmatpush1.bf16.xpose.msra.mxu0 0
          %2168 = vmatprep.subr.bf16.mxu0 0
          %2169 = vmatpush1.bf16.xpose.msra.mxu0 0
          %2170 = vmatprep.subr.bf16.mxu0 0
          %2171 = vmatpush1.bf16.xpose.msra.mxu0 0
          %2172 = vmatprep.subr.bf16.mxu0 0
          %2173 = vmatpush1.bf16.xpose.msra.mxu0 0
          %2174 = vmatprep.subr.bf16.mxu0 0
          %2175 = vmatpush1.bf16.xpose.msra.mxu0 0
          %2176 = vmatprep.subr.bf16.mxu0 0
          %2177 = vmatpush1.bf16.xpose.msra.mxu0 0
          %2178 = vmatprep.subr.bf16.mxu0 0
          %2179 = vmatpush1.bf16.xpose.msra.mxu0 0
          %2180 = vmatprep.mubr.bf16.mxu0 0
          %2181 = vmatmul.mubr.bf16.gmra.mrb[0].mxu0 %v979
          %v2182 = vpop.f32.mrb[0].mxu0
          %v2183 = vadd.f32 %v2134, %v2182
          %v2184 = vpop.f32.mrb[0].mxu0
          %v2185 = vpop.f32.mrb[0].mxu0
          %v2186 = vadd.f32 %v2134, %v2185
          %v2187 = vpop.f32.mrb[0].mxu0
          %2188 = vdwg.mxu0
          %v2189 = vmul.f32 %v2183, 0.17677669
          %v2190 = vmul.f32 %v2186, 0.17677669
          %s2191 = scalar_lea.vmem [#allocation9], 48
          %v2192 = vld [vmem:[%s2191] sm:$0xf]
          %v2193 = vld [vmem:[%s2191 + $0x4] sm:$0xf]
          %v2194 = vld [vmem:[%s2191 + $0x8] sm:$0xf]
          %v2195 = vld [vmem:[%s2191 + $0xc] sm:$0xf]
          %s2196 = scalar_lea.vmem [#allocation13], 3
          %v2197 = vld [vmem:[%s2196] sm:$0x1]
          %v2199 = vlaneseq
          %v2200 = vshrl.u32 %v2199, 7
          %v2201 = vsub.s32 0, %v2200
          %v2202 = vrot.slane %v2197, %v2201
          %v2208 = vunpack.c.l.b16 %v2192
          %v2209 = vunpack.c.l.b16 %v2193
          %v2210 = vunpack.c.l.b16 %v2194
          %v2211 = vunpack.c.l.b16 %v2195
          %v2212 = vpack.c.b16 %v2209, %v2208
          %v2213 = vpack.c.b16 %v2211, %v2210
          %2216 = vmatprep.subr.bf16.mxu0 0
          %2217 = vmatpush1.bf16.xpose.msra.mxu0 %v2212
          %2218 = vmatprep.subr.bf16.mxu0 0
          %2219 = vmatpush1.bf16.xpose.msra.mxu0 %v2213
          %2220 = vmatprep.subr.bf16.mxu0 0
          %2221 = vmatpush1.bf16.xpose.msra.mxu0 0
          %2222 = vmatprep.subr.bf16.mxu0 0
          %2223 = vmatpush1.bf16.xpose.msra.mxu0 0
          %2224 = vmatprep.subr.bf16.mxu0 0
          %2225 = vmatpush1.bf16.xpose.msra.mxu0 0
          %2226 = vmatprep.subr.bf16.mxu0 0
          %2227 = vmatpush1.bf16.xpose.msra.mxu0 0
          %2228 = vmatprep.subr.bf16.mxu0 0
          %2229 = vmatpush1.bf16.xpose.msra.mxu0 0
          %2230 = vmatprep.subr.bf16.mxu0 0
          %2231 = vmatpush1.bf16.xpose.msra.mxu0 0
          %2232 = vmatprep.subr.bf16.mxu0 0
          %2233 = vmatpush1.bf16.xpose.msra.mxu0 0
          %2234 = vmatprep.subr.bf16.mxu0 0
          %2235 = vmatpush1.bf16.xpose.msra.mxu0 0
          %2236 = vmatprep.subr.bf16.mxu0 0
          %2237 = vmatpush1.bf16.xpose.msra.mxu0 0
          %2238 = vmatprep.subr.bf16.mxu0 0
          %2239 = vmatpush1.bf16.xpose.msra.mxu0 0
          %2240 = vmatprep.subr.bf16.mxu0 0
          %2241 = vmatpush1.bf16.xpose.msra.mxu0 0
          %2242 = vmatprep.subr.bf16.mxu0 0
          %2243 = vmatpush1.bf16.xpose.msra.mxu0 0
          %2244 = vmatprep.subr.bf16.mxu0 0
          %2245 = vmatpush1.bf16.xpose.msra.mxu0 0
          %2246 = vmatprep.subr.bf16.mxu0 0
          %2247 = vmatpush1.bf16.xpose.msra.mxu0 0
          %2248 = vmatprep.mubr.bf16.mxu0 0
          %2249 = vmatmul.mubr.bf16.gmra.mrb[0].mxu0 %v979
          %v2250 = vpop.f32.mrb[0].mxu0
          %v2251 = vadd.f32 %v2202, %v2250
          %v2252 = vpop.f32.mrb[0].mxu0
          %v2253 = vpop.f32.mrb[0].mxu0
          %v2254 = vadd.f32 %v2202, %v2253
          %v2255 = vpop.f32.mrb[0].mxu0
          %2256 = vdwg.mxu0
          %s2257 = scalar_lea.vmem [#allocation10], 48
          %v2258 = vld [vmem:[%s2257] sm:$0xf]
          %v2259 = vld [vmem:[%s2257 + $0x4] sm:$0xf]
          %v2260 = vld [vmem:[%s2257 + $0x8] sm:$0xf]
          %v2261 = vld [vmem:[%s2257 + $0xc] sm:$0xf]
          %s2262 = scalar_lea.vmem [#allocation15], 3
          %v2263 = vld [vmem:[%s2262] sm:$0x1]
          %v2265 = vlaneseq
          %v2266 = vshrl.u32 %v2265, 7
          %v2267 = vsub.s32 0, %v2266
          %v2268 = vrot.slane %v2263, %v2267
          %v2274 = vunpack.c.l.b16 %v2258
          %v2275 = vunpack.c.l.b16 %v2259
          %v2276 = vunpack.c.l.b16 %v2260
          %v2277 = vunpack.c.l.b16 %v2261
          %v2278 = vpack.c.b16 %v2275, %v2274
          %v2279 = vpack.c.b16 %v2277, %v2276
          %2282 = vmatprep.subr.bf16.mxu0 0
          %2283 = vmatpush1.bf16.xpose.msra.mxu0 %v2278
          %2284 = vmatprep.subr.bf16.mxu0 0
          %2285 = vmatpush1.bf16.xpose.msra.mxu0 %v2279
          %2286 = vmatprep.subr.bf16.mxu0 0
          %2287 = vmatpush1.bf16.xpose.msra.mxu0 0
          %2288 = vmatprep.subr.bf16.mxu0 0
          %2289 = vmatpush1.bf16.xpose.msra.mxu0 0
          %2290 = vmatprep.subr.bf16.mxu0 0
          %2291 = vmatpush1.bf16.xpose.msra.mxu0 0
          %2292 = vmatprep.subr.bf16.mxu0 0
          %2293 = vmatpush1.bf16.xpose.msra.mxu0 0
          %2294 = vmatprep.subr.bf16.mxu0 0
          %2295 = vmatpush1.bf16.xpose.msra.mxu0 0
          %2296 = vmatprep.subr.bf16.mxu0 0
          %2297 = vmatpush1.bf16.xpose.msra.mxu0 0
          %2298 = vmatprep.subr.bf16.mxu0 0
          %2299 = vmatpush1.bf16.xpose.msra.mxu0 0
          %2300 = vmatprep.subr.bf16.mxu0 0
          %2301 = vmatpush1.bf16.xpose.msra.mxu0 0
          %2302 = vmatprep.subr.bf16.mxu0 0
          %2303 = vmatpush1.bf16.xpose.msra.mxu0 0
          %2304 = vmatprep.subr.bf16.mxu0 0
          %2305 = vmatpush1.bf16.xpose.msra.mxu0 0
          %2306 = vmatprep.subr.bf16.mxu0 0
          %2307 = vmatpush1.bf16.xpose.msra.mxu0 0
          %2308 = vmatprep.subr.bf16.mxu0 0
          %2309 = vmatpush1.bf16.xpose.msra.mxu0 0
          %2310 = vmatprep.subr.bf16.mxu0 0
          %2311 = vmatpush1.bf16.xpose.msra.mxu0 0
          %2312 = vmatprep.subr.bf16.mxu0 0
          %2313 = vmatpush1.bf16.xpose.msra.mxu0 0
          %2314 = vmatprep.mubr.bf16.mxu0 0
          %2315 = vmatmul.mubr.bf16.gmra.mrb[0].mxu0 %v979
          %v2316 = vpop.f32.mrb[0].mxu0
          %v2317 = vadd.f32 %v2268, %v2316
          %v2318 = vpop.f32.mrb[0].mxu0
          %v2319 = vpop.f32.mrb[0].mxu0
          %v2320 = vadd.f32 %v2268, %v2319
          %v2321 = vpop.f32.mrb[0].mxu0
          %2322 = vdwg.mxu0
          %v2323 = vpack.c.bf16 %v2190, %v2189
          %v2324 = vpack.c.bf16 %v2254, %v2251
          %v2326 = vsel %vm1185, %v2323, 0
          %v2329 = vsel %vm1185, %v2324, 0
          %2331 = vmatprep.subr.bf16.mxu0 0
          %2332 = vmatpush1.bf16.xpose.msra.mxu0 %v2329
          %2333 = vmatprep.subr.bf16.mxu0 0
          %2334 = vmatpush1.bf16.xpose.msra.mxu0 0
          %2335 = vmatprep.subr.bf16.mxu0 0
          %2336 = vmatpush1.bf16.xpose.msra.mxu0 0
          %2337 = vmatprep.subr.bf16.mxu0 0
          %2338 = vmatpush1.bf16.xpose.msra.mxu0 0
          %2339 = vmatprep.subr.bf16.mxu0 0
          %2340 = vmatpush1.bf16.xpose.msra.mxu0 0
          %2341 = vmatprep.subr.bf16.mxu0 0
          %2342 = vmatpush1.bf16.xpose.msra.mxu0 0
          %2343 = vmatprep.subr.bf16.mxu0 0
          %2344 = vmatpush1.bf16.xpose.msra.mxu0 0
          %2345 = vmatprep.subr.bf16.mxu0 0
          %2346 = vmatpush1.bf16.xpose.msra.mxu0 0
          %2347 = vmatprep.subr.bf16.mxu0 0
          %2348 = vmatpush1.bf16.xpose.msra.mxu0 0
          %2349 = vmatprep.subr.bf16.mxu0 0
          %2350 = vmatpush1.bf16.xpose.msra.mxu0 0
          %2351 = vmatprep.subr.bf16.mxu0 0
          %2352 = vmatpush1.bf16.xpose.msra.mxu0 0
          %2353 = vmatprep.subr.bf16.mxu0 0
          %2354 = vmatpush1.bf16.xpose.msra.mxu0 0
          %2355 = vmatprep.subr.bf16.mxu0 0
          %2356 = vmatpush1.bf16.xpose.msra.mxu0 0
          %2357 = vmatprep.subr.bf16.mxu0 0
          %2358 = vmatpush1.bf16.xpose.msra.mxu0 0
          %2359 = vmatprep.subr.bf16.mxu0 0
          %2360 = vmatpush1.bf16.xpose.msra.mxu0 0
          %2361 = vmatprep.subr.bf16.mxu0 0
          %2362 = vmatpush1.bf16.xpose.msra.mxu0 0
          %2363 = vmatprep.mubr.bf16.mxu0 0
          %2364 = vmatmul.mubr.bf16.gmra.mrb[0].mxu0 %v2326
          %v2365 = vpop.f32.mrb[0].mxu0
          %v2366 = vadd.f32 %v987, %v2365
          %v2367 = vpop.f32.mrb[0].mxu0
          %v2368 = vpop.f32.mrb[0].mxu0
          %v2369 = vadd.f32 %v988, %v2368
          %v2370 = vpop.f32.mrb[0].mxu0
          %2371 = vdwg.mxu0
          %v2372 = vsel %vm1233, %v2366, -inf
          %2373 = vmax.xlane.f32.xlu0 %v2372
          %v2374 = vpop.xlane.xlu0 %2373
          %v2375 = vsel %vm1233, %v2369, -inf
          %2376 = vmax.xlane.f32.xlu0 %v2375
          %v2377 = vpop.xlane.xlu0 %2376
          %v2378 = vsub.f32 %v2366, %v2374
          %v2379 = vsub.f32 %v2369, %v2377
          %v2380 = vmul.f32 %v2378, 1.442695
          %v2381 = vpow.pop %v2380
          %v2382 = vmul.f32 %v2379, 1.442695
          %v2383 = vpow.pop %v2382
          %v2384 = vsel %vm1233, %v2381, 0.0
          %2385 = vadd.xlane.f32.xlu0 %v2384
          %v2386 = vpop.xlane.xlu0 %2385
          %v2387 = vsel %vm1233, %v2383, 0.0
          %2388 = vadd.xlane.f32.xlu0 %v2387
          %v2389 = vpop.xlane.xlu0 %2388
          %v2390 = vpack.c.bf16 %v2383, %v2381
          %v2391 = vpack.c.bf16 %v2320, %v2317
          %v2393 = vsel %vm1233, %v2390, 0
          %2395 = vmatprep.subr.bf16.mxu0 0
          %2396 = vmatpush1.bf16.msra.mxu0 %v2391
          %2397 = vmatprep.subr.bf16.mxu0 0
          %2398 = vmatpush1.bf16.msra.mxu0 0
          %2399 = vmatprep.subr.bf16.mxu0 0
          %2400 = vmatpush1.bf16.msra.mxu0 0
          %2401 = vmatprep.subr.bf16.mxu0 0
          %2402 = vmatpush1.bf16.msra.mxu0 0
          %2403 = vmatprep.subr.bf16.mxu0 0
          %2404 = vmatpush1.bf16.msra.mxu0 0
          %2405 = vmatprep.subr.bf16.mxu0 0
          %2406 = vmatpush1.bf16.msra.mxu0 0
          %2407 = vmatprep.subr.bf16.mxu0 0
          %2408 = vmatpush1.bf16.msra.mxu0 0
          %2409 = vmatprep.subr.bf16.mxu0 0
          %2410 = vmatpush1.bf16.msra.mxu0 0
          %2411 = vmatprep.subr.bf16.mxu0 0
          %2412 = vmatpush1.bf16.msra.mxu0 0
          %2413 = vmatprep.subr.bf16.mxu0 0
          %2414 = vmatpush1.bf16.msra.mxu0 0
          %2415 = vmatprep.subr.bf16.mxu0 0
          %2416 = vmatpush1.bf16.msra.mxu0 0
          %2417 = vmatprep.subr.bf16.mxu0 0
          %2418 = vmatpush1.bf16.msra.mxu0 0
          %2419 = vmatprep.subr.bf16.mxu0 0
          %2420 = vmatpush1.bf16.msra.mxu0 0
          %2421 = vmatprep.subr.bf16.mxu0 0
          %2422 = vmatpush1.bf16.msra.mxu0 0
          %2423 = vmatprep.subr.bf16.mxu0 0
          %2424 = vmatpush1.bf16.msra.mxu0 0
          %2425 = vmatprep.subr.bf16.mxu0 0
          %2426 = vmatpush1.bf16.msra.mxu0 0
          %2427 = vmatprep.mubr.bf16.mxu0 0
          %2428 = vmatmul.mubr.bf16.gmra.mrb[0].mxu0 %v2393
          %v2429 = vpop.f32.mrb[0].mxu0
          %v2430 = vadd.f32 0.0, %v2429
          %v2431 = vpop.f32.mrb[0].mxu0
          %v2432 = vpop.f32.mrb[0].mxu0
          %v2433 = vadd.f32 0.0, %v2432
          %v2434 = vpop.f32.mrb[0].mxu0
          %2435 = vdwg.mxu0
          %v2436 = vrcp.pop %v2386
          %v2437 = vrcp.pop %v2389
          %v2438 = vmul.f32 %v2430, %v2436
          %v2439 = vmul.f32 %v2433, %v2437
          %v2440 = vpack.c.bf16 %v2439, %v2438
          %s2441 = scalar_lea.vmem [#allocation16], 48
          %v2442 = vld [vmem:[%s2441] sm:$0xf]
          %v2443 = vld [vmem:[%s2441 + $0x4] sm:$0xf]
          %v2444 = vld [vmem:[%s2441 + $0x8] sm:$0xf]
          %v2445 = vld [vmem:[%s2441 + $0xc] sm:$0xf]
          %v2450 = vunpack.c.l.b16 %v2442
          %v2451 = vunpack.c.l.b16 %v2443
          %v2452 = vunpack.c.l.b16 %v2444
          %v2453 = vunpack.c.l.b16 %v2445
          %v2454 = vpack.c.b16 %v2451, %v2450
          %v2455 = vpack.c.b16 %v2453, %v2452
          %v2459 = vsel %vm1185, %v2440, 0
          %2461 = vmatprep.subr.bf16.mxu0 0
          %2462 = vmatpush1.bf16.msra.mxu0 %v2454
          %2463 = vmatprep.subr.bf16.mxu0 0
          %2464 = vmatpush1.bf16.msra.mxu0 %v2455
          %2465 = vmatprep.subr.bf16.mxu0 0
          %2466 = vmatpush1.bf16.msra.mxu0 0
          %2467 = vmatprep.subr.bf16.mxu0 0
          %2468 = vmatpush1.bf16.msra.mxu0 0
          %2469 = vmatprep.subr.bf16.mxu0 0
          %2470 = vmatpush1.bf16.msra.mxu0 0
          %2471 = vmatprep.subr.bf16.mxu0 0
          %2472 = vmatpush1.bf16.msra.mxu0 0
          %2473 = vmatprep.subr.bf16.mxu0 0
          %2474 = vmatpush1.bf16.msra.mxu0 0
          %2475 = vmatprep.subr.bf16.mxu0 0
          %2476 = vmatpush1.bf16.msra.mxu0 0
          %2477 = vmatprep.subr.bf16.mxu0 0
          %2478 = vmatpush1.bf16.msra.mxu0 0
          %2479 = vmatprep.subr.bf16.mxu0 0
          %2480 = vmatpush1.bf16.msra.mxu0 0
          %2481 = vmatprep.subr.bf16.mxu0 0
          %2482 = vmatpush1.bf16.msra.mxu0 0
          %2483 = vmatprep.subr.bf16.mxu0 0
          %2484 = vmatpush1.bf16.msra.mxu0 0
          %2485 = vmatprep.subr.bf16.mxu0 0
          %2486 = vmatpush1.bf16.msra.mxu0 0
          %2487 = vmatprep.subr.bf16.mxu0 0
          %2488 = vmatpush1.bf16.msra.mxu0 0
          %2489 = vmatprep.subr.bf16.mxu0 0
          %2490 = vmatpush1.bf16.msra.mxu0 0
          %2491 = vmatprep.subr.bf16.mxu0 0
          %2492 = vmatpush1.bf16.msra.mxu0 0
          %2493 = vmatprep.mubr.bf16.mxu0 0
          %2494 = vmatmul.mubr.bf16.gmra.mrb[0].mxu0 %v2459
          %v2495 = vpop.f32.mrb[0].mxu0
          %v2496 = vadd.f32 0.0, %v2495
          %v2497 = vpop.f32.mrb[0].mxu0
          %v2498 = vpop.f32.mrb[0].mxu0
          %v2499 = vadd.f32 0.0, %v2498
          %v2500 = vpop.f32.mrb[0].mxu0
          %2501 = vdwg.mxu0
          %v2502 = vadd.f32 %v2121, %v2496
          %v2503 = vadd.f32 %v2122, %v2499
          %v2504 = vadd.f32 %v936, %v2502
          %v2505 = vadd.f32 %v937, %v2503
          %v2506 = vld [vmem:[#allocation18] sm:$0x1]
          %v2508 = vlaneseq
          %v2509 = vshrl.u32 %v2508, 7
          %v2510 = vsub.s32 0, %v2509
          %v2511 = vrot.slane %v2506, %v2510
          %v2513 = vadd.f32 %v2504, %v2511
          %v2514 = vadd.f32 %v2505, %v2511
          %2515 = vst [vmem:[#allocation2] sm:$0xff] %v2513
          %2516 = vst [vmem:[#allocation2 + $0x8] sm:$0xff] %v2514
          %v2517 = vld [vmem:[%s11] sm:$0x1]
          %v2518 = vld [vmem:[%s12] sm:$0x1]
          %2519 = vadd.xlane.f32.xlu0 %v2513
          %v2520 = vpop.xlane.xlu0 %2519
          %2521 = vadd.xlane.f32.xlu0 %v2514
          %v2522 = vpop.xlane.xlu0 %2521
          %v2523 = vmul.f32 %v2520, %v944
          %v2524 = vmul.f32 %v2522, %v944
          %v2525 = vsub.f32 %v2513, %v2523
          %v2526 = vsub.f32 %v2514, %v2524
          %v2527 = vmul.f32 %v2525, %v2525
          %v2528 = vmul.f32 %v2526, %v2526
          %2529 = vadd.xlane.f32.xlu0 %v2527
          %v2530 = vpop.xlane.xlu0 %2529
          %2531 = vadd.xlane.f32.xlu0 %v2528
          %v2532 = vpop.xlane.xlu0 %2531
          %v2533 = vmul.f32 %v2530, %v944
          %v2534 = vmul.f32 %v2532, %v944
          %v2535 = vadd.f32 %v2533, 1e-05
          %v2536 = vadd.f32 %v2534, 1e-05
          %v2537 = vrsqrt.pop %v2535
          %v2538 = vrsqrt.pop %v2536
          %v2539 = vmul.f32 %v2525, %v2537
          %v2540 = vmul.f32 %v2526, %v2538
          %v2542 = vlaneseq
          %v2543 = vshrl.u32 %v2542, 7
          %v2544 = vsub.s32 0, %v2543
          %v2545 = vrot.slane %v2517, %v2544
          %v2547 = vmul.f32 %v2539, %v2545
          %v2548 = vmul.f32 %v2540, %v2545
          %v2550 = vlaneseq
          %v2551 = vshrl.u32 %v2550, 7
          %v2552 = vsub.s32 0, %v2551
          %v2553 = vrot.slane %v2518, %v2552
          %v2555 = vadd.f32 %v2547, %v2553
          %v2556 = vadd.f32 %v2548, %v2553
          %v2557 = vpack.c.bf16 %v2556, %v2555
          %2558 = vst [vmem:[#allocation3] sm:$0xff] %v2557
          %2559 = vst [vmem:[#allocation4] sm:$0xff] 0.0
          %2560 = vst [vmem:[#allocation4 + $0x8] sm:$0xff] 0.0
        $region185: #{clip_forward.2} parent=132 // pred_fallthru
          _
        %v2561 = vld [vmem:[#allocation3] sm:$0xff]
        %v2562 = vld [vmem:[%s836] sm:$0xf]
        %v2563 = vld [vmem:[%s836 + $0x4] sm:$0xf]
        %v2564 = vld [vmem:[%s836 + $0x8] sm:$0xf]
        %v2565 = vld [vmem:[%s836 + $0xc] sm:$0xf]
        %v2566 = vld [vmem:[%s836 + $0x10] sm:$0xf]
        %v2567 = vld [vmem:[%s836 + $0x14] sm:$0xf]
        %v2568 = vld [vmem:[%s836 + $0x18] sm:$0xf]
        %v2569 = vld [vmem:[%s836 + $0x1c] sm:$0xf]
        %v2570 = vld [vmem:[%s836 + $0x20] sm:$0xf]
        %v2571 = vld [vmem:[%s836 + $0x24] sm:$0xf]
        %v2572 = vld [vmem:[%s836 + $0x28] sm:$0xf]
        %v2573 = vld [vmem:[%s836 + $0x2c] sm:$0xf]
        %v2574 = vld [vmem:[%s836 + $0x30] sm:$0xf]
        %v2575 = vld [vmem:[%s836 + $0x34] sm:$0xf]
        %v2576 = vld [vmem:[%s836 + $0x38] sm:$0xf]
        %v2577 = vld [vmem:[%s836 + $0x3c] sm:$0xf]
        %v2578 = vld [vmem:[%s843] sm:$0x1]
        %v2580 = vlaneseq
        %v2581 = vshrl.u32 %v2580, 7
        %v2582 = vsub.s32 0, %v2581
        %v2583 = vrot.slane %v2578, %v2582
        %v2601 = vunpack.c.l.b16 %v2562
        %v2602 = vunpack.c.l.b16 %v2563
        %v2603 = vunpack.c.l.b16 %v2564
        %v2604 = vunpack.c.l.b16 %v2565
        %v2605 = vunpack.c.l.b16 %v2566
        %v2606 = vunpack.c.l.b16 %v2567
        %v2607 = vunpack.c.l.b16 %v2568
        %v2608 = vunpack.c.l.b16 %v2569
        %v2609 = vunpack.c.l.b16 %v2570
        %v2610 = vunpack.c.l.b16 %v2571
        %v2611 = vunpack.c.l.b16 %v2572
        %v2612 = vunpack.c.l.b16 %v2573
        %v2613 = vunpack.c.l.b16 %v2574
        %v2614 = vunpack.c.l.b16 %v2575
        %v2615 = vunpack.c.l.b16 %v2576
        %v2616 = vunpack.c.l.b16 %v2577
        %v2617 = vpack.c.b16 %v2602, %v2601
        %v2618 = vpack.c.b16 %v2604, %v2603
        %v2619 = vpack.c.b16 %v2606, %v2605
        %v2620 = vpack.c.b16 %v2608, %v2607
        %v2621 = vpack.c.b16 %v2610, %v2609
        %v2622 = vpack.c.b16 %v2612, %v2611
        %v2623 = vpack.c.b16 %v2614, %v2613
        %v2624 = vpack.c.b16 %v2616, %v2615
        %2633 = vmatprep.subr.bf16.mxu0 0
        %2634 = vmatpush1.bf16.msra.mxu0 %v2617
        %2635 = vmatprep.subr.bf16.mxu0 0
        %2636 = vmatpush1.bf16.msra.mxu0 %v2618
        %2637 = vmatprep.subr.bf16.mxu0 0
        %2638 = vmatpush1.bf16.msra.mxu0 %v2619
        %2639 = vmatprep.subr.bf16.mxu0 0
        %2640 = vmatpush1.bf16.msra.mxu0 %v2620
        %2641 = vmatprep.subr.bf16.mxu0 0
        %2642 = vmatpush1.bf16.msra.mxu0 %v2621
        %2643 = vmatprep.subr.bf16.mxu0 0
        %2644 = vmatpush1.bf16.msra.mxu0 %v2622
        %2645 = vmatprep.subr.bf16.mxu0 0
        %2646 = vmatpush1.bf16.msra.mxu0 %v2623
        %2647 = vmatprep.subr.bf16.mxu0 0
        %2648 = vmatpush1.bf16.msra.mxu0 %v2624
        %2649 = vmatprep.subr.bf16.mxu0 0
        %2650 = vmatpush1.bf16.msra.mxu0 0
        %2651 = vmatprep.subr.bf16.mxu0 0
        %2652 = vmatpush1.bf16.msra.mxu0 0
        %2653 = vmatprep.subr.bf16.mxu0 0
        %2654 = vmatpush1.bf16.msra.mxu0 0
        %2655 = vmatprep.subr.bf16.mxu0 0
        %2656 = vmatpush1.bf16.msra.mxu0 0
        %2657 = vmatprep.subr.bf16.mxu0 0
        %2658 = vmatpush1.bf16.msra.mxu0 0
        %2659 = vmatprep.subr.bf16.mxu0 0
        %2660 = vmatpush1.bf16.msra.mxu0 0
        %2661 = vmatprep.subr.bf16.mxu0 0
        %2662 = vmatpush1.bf16.msra.mxu0 0
        %2663 = vmatprep.subr.bf16.mxu0 0
        %2664 = vmatpush1.bf16.msra.mxu0 0
        %2665 = vmatprep.mubr.bf16.mxu0 0
        %2666 = vmatmul.mubr.bf16.gmra.mrb[0].mxu0 %v2561
        %v2667 = vpop.f32.mrb[0].mxu0
        %v2668 = vadd.f32 %v2583, %v2667
        %v2669 = vpop.f32.mrb[0].mxu0
        %v2670 = vpop.f32.mrb[0].mxu0
        %v2671 = vadd.f32 %v2583, %v2670
        %v2672 = vpop.f32.mrb[0].mxu0
        %2673 = vdwg.mxu0
        %v2674 = vmul.f32 %v2668, 1.702
        %v2675 = vmul.f32 %v2671, 1.702
        %v2676 = vxor.u32 %v2674, 2147483648
        %v2677 = vxor.u32 %v2675, 2147483648
        %v2678 = vmul.f32 %v2676, 1.442695
        %v2679 = vpow.pop %v2678
        %v2680 = vmul.f32 %v2677, 1.442695
        %v2681 = vpow.pop %v2680
        %v2682 = vadd.f32 %v2679, 1.0
        %v2683 = vadd.f32 %v2681, 1.0
        %v2684 = vrcp.pop %v2682
        %v2685 = vmul.f32 1.0, %v2684
        %v2686 = vrcp.pop %v2683
        %v2687 = vmul.f32 1.0, %v2686
        %v2688 = vmul.f32 %v2668, %v2685
        %v2689 = vmul.f32 %v2671, %v2687
        %v2690 = vld [vmem:[#allocation4] sm:$0xff]
        %v2691 = vld [vmem:[#allocation4 + $0x8] sm:$0xff]
        %v2692 = vpack.c.bf16 %v2689, %v2688
        %v2693 = vld [vmem:[%s924] sm:$0xf]
        %v2694 = vld [vmem:[%s924 + $0x4] sm:$0xf]
        %v2695 = vld [vmem:[%s924 + $0x8] sm:$0xf]
        %v2696 = vld [vmem:[%s924 + $0xc] sm:$0xf]
        %v2697 = vld [vmem:[%s924 + $0x10] sm:$0xf]
        %v2698 = vld [vmem:[%s924 + $0x14] sm:$0xf]
        %v2699 = vld [vmem:[%s924 + $0x18] sm:$0xf]
        %v2700 = vld [vmem:[%s924 + $0x1c] sm:$0xf]
        %v2701 = vld [vmem:[%s924 + $0x20] sm:$0xf]
        %v2702 = vld [vmem:[%s924 + $0x24] sm:$0xf]
        %v2703 = vld [vmem:[%s924 + $0x28] sm:$0xf]
        %v2704 = vld [vmem:[%s924 + $0x2c] sm:$0xf]
        %v2705 = vld [vmem:[%s924 + $0x30] sm:$0xf]
        %v2706 = vld [vmem:[%s924 + $0x34] sm:$0xf]
        %v2707 = vld [vmem:[%s924 + $0x38] sm:$0xf]
        %v2708 = vld [vmem:[%s924 + $0x3c] sm:$0xf]
        %v2725 = vunpack.c.l.b16 %v2693
        %v2726 = vunpack.c.l.b16 %v2694
        %v2727 = vunpack.c.l.b16 %v2695
        %v2728 = vunpack.c.l.b16 %v2696
        %v2729 = vunpack.c.l.b16 %v2697
        %v2730 = vunpack.c.l.b16 %v2698
        %v2731 = vunpack.c.l.b16 %v2699
        %v2732 = vunpack.c.l.b16 %v2700
        %v2733 = vunpack.c.l.b16 %v2701
        %v2734 = vunpack.c.l.b16 %v2702
        %v2735 = vunpack.c.l.b16 %v2703
        %v2736 = vunpack.c.l.b16 %v2704
        %v2737 = vunpack.c.l.b16 %v2705
        %v2738 = vunpack.c.l.b16 %v2706
        %v2739 = vunpack.c.l.b16 %v2707
        %v2740 = vunpack.c.l.b16 %v2708
        %v2741 = vpack.c.b16 %v2726, %v2725
        %v2742 = vpack.c.b16 %v2728, %v2727
        %v2743 = vpack.c.b16 %v2730, %v2729
        %v2744 = vpack.c.b16 %v2732, %v2731
        %v2745 = vpack.c.b16 %v2734, %v2733
        %v2746 = vpack.c.b16 %v2736, %v2735
        %v2747 = vpack.c.b16 %v2738, %v2737
        %v2748 = vpack.c.b16 %v2740, %v2739
        %2757 = vmatprep.subr.bf16.mxu0 0
        %2758 = vmatpush1.bf16.msra.mxu0 %v2741
        %2759 = vmatprep.subr.bf16.mxu0 0
        %2760 = vmatpush1.bf16.msra.mxu0 %v2742
        %2761 = vmatprep.subr.bf16.mxu0 0
        %2762 = vmatpush1.bf16.msra.mxu0 %v2743
        %2763 = vmatprep.subr.bf16.mxu0 0
        %2764 = vmatpush1.bf16.msra.mxu0 %v2744
        %2765 = vmatprep.subr.bf16.mxu0 0
        %2766 = vmatpush1.bf16.msra.mxu0 %v2745
        %2767 = vmatprep.subr.bf16.mxu0 0
        %2768 = vmatpush1.bf16.msra.mxu0 %v2746
        %2769 = vmatprep.subr.bf16.mxu0 0
        %2770 = vmatpush1.bf16.msra.mxu0 %v2747
        %2771 = vmatprep.subr.bf16.mxu0 0
        %2772 = vmatpush1.bf16.msra.mxu0 %v2748
        %2773 = vmatprep.subr.bf16.mxu0 0
        %2774 = vmatpush1.bf16.msra.mxu0 0
        %2775 = vmatprep.subr.bf16.mxu0 0
        %2776 = vmatpush1.bf16.msra.mxu0 0
        %2777 = vmatprep.subr.bf16.mxu0 0
        %2778 = vmatpush1.bf16.msra.mxu0 0
        %2779 = vmatprep.subr.bf16.mxu0 0
        %2780 = vmatpush1.bf16.msra.mxu0 0
        %2781 = vmatprep.subr.bf16.mxu0 0
        %2782 = vmatpush1.bf16.msra.mxu0 0
        %2783 = vmatprep.subr.bf16.mxu0 0
        %2784 = vmatpush1.bf16.msra.mxu0 0
        %2785 = vmatprep.subr.bf16.mxu0 0
        %2786 = vmatpush1.bf16.msra.mxu0 0
        %2787 = vmatprep.subr.bf16.mxu0 0
        %2788 = vmatpush1.bf16.msra.mxu0 0
        %2789 = vmatprep.mubr.bf16.mxu0 0
        %2790 = vmatmul.mubr.bf16.gmra.mrb[0].mxu0 %v2692
        %v2791 = vpop.f32.mrb[0].mxu0
        %v2792 = vadd.f32 0.0, %v2791
        %v2793 = vpop.f32.mrb[0].mxu0
        %v2794 = vpop.f32.mrb[0].mxu0
        %v2795 = vadd.f32 0.0, %v2794
        %v2796 = vpop.f32.mrb[0].mxu0
        %2797 = vdwg.mxu0
        %v2798 = vadd.f32 %v2690, %v2792
        %v2799 = vadd.f32 %v2691, %v2795
        %2800 = vst [vmem:[#allocation4] sm:$0xff] %v2798
        %2801 = vst [vmem:[#allocation4 + $0x8] sm:$0xff] %v2799
        %p2802 = scmp.eq.s32.totalorder %s43, 3
        // Predicated region
        $region186: #{clip_forward.2} parent=132 // pred_check
          %p2803 = pneg %p2802
        $region187: #{clip_forward.2} parent=132 // pred_check_branch
          %2805 = sbr.rel (%p2803) target = $region189
        $region188: #{clip_forward.2} parent=132 // pred_region
          %v2806 = vld [vmem:[#allocation2] sm:$0xff]
          %v2807 = vld [vmem:[#allocation2 + $0x8] sm:$0xff]
          %v2808 = vld [vmem:[#allocation4] sm:$0xff]
          %v2809 = vld [vmem:[#allocation4 + $0x8] sm:$0xff]
          %v2810 = vadd.f32 %v2806, %v2808
          %v2811 = vadd.f32 %v2807, %v2809
          %v2812 = vld [vmem:[#allocation22] sm:$0x1]
          %v2814 = vlaneseq
          %v2815 = vshrl.u32 %v2814, 7
          %v2816 = vsub.s32 0, %v2815
          %v2817 = vrot.slane %v2812, %v2816
          %v2819 = vadd.f32 %v2810, %v2817
          %v2820 = vadd.f32 %v2811, %v2817
          %2821 = vst [vmem:[%s930] sm:$0xff] %v2819
          %2822 = vst [vmem:[%s930 + $0x8] sm:$0xff] %v2820
        $region189: #{clip_forward.2} parent=132 // pred_fallthru
          _
        %p2823 = scmp.lt.s32.totalorder %s42, 1
        %s2824 = scalar_select %p2823, %s42, 1
        %s2825 = smul.addr %s2824, 2
        %s2826 = smul.addr %s2825, 8
        %s2827 = scalar_lea.vmem %s19, %s2826
        // Predicated region
        $region190: #{clip_forward.2} parent=132 // pred_check
          %p2828 = pneg %p487
        $region191: #{clip_forward.2} parent=132 // pred_check_branch
          %2830 = sbr.rel (%p2828) target = $region193
        $region192: #{clip_forward.2} parent=132 // pred_region
          _
        $region193: #{clip_forward.2} parent=132 // pred_fallthru
          _
      $region133: #{clip_forward.2} parent=5 // pred_fallthru
        _
      %p2831 = scmp.le.s32.totalorder 2, %s33
      // Predicated region
      $region194: #{clip_forward.2} parent=5 // pred_check
        %p2832 = pneg %p2831
      $region195: #{clip_forward.2} parent=5 // pred_check_branch
        %2834 = sbr.rel (%p2832) target = $region197
      $region196: #{clip_forward.2} parent=5 // pred_region
        %s2835 = ssub.s32 %s33, 2
        // Predicated region
        $region198: #{clip_forward.2} parent=196 // pred_check
          %p2836 = pneg %p493
        $region199: #{clip_forward.2} parent=196 // pred_check_branch
          %2838 = sbr.rel (%p2836) target = $region201
        $region200: #{clip_forward.2} parent=196 // pred_region
          %p2839 = scmp.lt.s32.totalorder %s44, 1
          %s2840 = scalar_select %p2839, %s44, 1
          %s2841 = smul.addr %s2840, 2
          %s2842 = smul.addr %s2841, 8
          %s2843 = scalar_lea.vmem %s19, %s2842
        $region201: #{clip_forward.2} parent=196 // pred_fallthru
          _
      $region197: #{clip_forward.2} parent=5 // pred_fallthru
        _
    $region6: #{clip_forward.2} parent=1 // loop_footer
      %s37 = sadd.s32 1, %s33
    $region7: #{clip_forward.2} parent=1 // loop_footer_branch
      %32 = sbr.rel target = $region3
    $region8: #{clip_forward.2} parent=1 // loop_exit
      _
    %2844 = vsyncpa [#allocation6], 1
    %s2845 = scalar_lea.sflag [#allocation6], 1
    %2846 = vsyncpa %s2845, 1
    %2847 = vsyncpa [#allocation8], 1
    %2848 = vsyncpa [#allocation11], 1
    %2849 = vsyncpa [#allocation14], 1
    %2850 = vsyncpa [#allocation17], 1
    %2851 = vsyncpa [#allocation21], 1
    %s2852 = scalar_lea.sflag [#allocation21], 1
    %2853 = vsyncpa %s2852, 1

</llo_original>
